<compile_context>
chip_gen: v7x
topology: tpu7x:2x2x1
jax: 0.10.0
libtpu: 0.0.40
codegen_flags: <defaults>
</compile_context>

<pallas_src>
import functools

import jax
import jax.numpy as jnp
from jax.experimental import pallas as pl
from jax.experimental.pallas import tpu as pltpu


# ------------------------------- Pallas kernel ------------------------------

def _vq_kernel(x_ref, et2_ref, e2_ref, q_ref, enc_ref, *, n_codes, d_lat):
    """One row-tile of the vector quantizer.

    x_ref   : (tm, C)   encoder outputs (rows = flattened voxels)
    et2_ref : (C, K)    -2 * codebook^T   (constant across steps)
    e2_ref  : (1, K)    per-code squared norms (constant across steps)
    q_ref   : (C, tm)   quantized rows, transposed / lane-dense (out)
    enc_ref : (tm, K)   one-hot encodings, lane-dense in K (out)
    """
    x = x_ref[...]                                    # (tm, C) f32
    et2 = et2_ref[...]                                # (C, K)  = -2 e^T
    e2 = e2_ref[...]                                  # (1, K)

    # Distance up to a per-row constant:  ||e||^2 - 2 x.e   (x^2 dropped;
    # argmin is invariant to it).  Small latent dims use a VPU broadcast
    # multiply-add; larger dims use the MXU.
    if d_lat <= 32:
        dist = e2 + x[:, 0:1] * et2[0:1, :]
        for d in range(1, d_lat):
            dist = dist + x[:, d:d + 1] * et2[d:d + 1, :]
    else:
        dist = e2 + jnp.dot(x, et2, preferred_element_type=jnp.float32)

    # argmin over K (lane axis), first-min tie break like torch.argmin.
    min_d = jnp.min(dist, axis=-1, keepdims=True)                      # (tm, 1)
    k_idx = jax.lax.broadcasted_iota(jnp.int32, dist.shape, 1)         # (tm, K)
    masked = jnp.where(dist <= min_d, k_idx, n_codes)                  # int32
    first = jnp.min(masked, axis=-1, keepdims=True)                    # (tm, 1)

    enc = (k_idx == first).astype(enc_ref.dtype)                       # one-hot
    enc_ref[...] = enc

    # Codebook lookup, transposed: q^T = -0.5 * (et2 @ enc^T)  -> (C, tm).
    # (-2 and -0.5 are exact power-of-two scalings, so q is bit-exact e[idx].)
    q_t = jax.lax.dot_general(
        et2, enc,
        dimension_numbers=(((1,), (1,)), ((), ())),
        preferred_element_type=jnp.float32) * (-0.5)
    q_ref[...] = q_t


# --------------------------------- wrapper ----------------------------------

def vector_quantizer_forward(x_ncdhw, embedding, beta):
    """PyTorch VectorQuantizer.forward.

    x_ncdhw  : (B, C, D, H, W) float32 (C = latent_channels)
    embedding: (K, C) float32 codebook (nn.Embedding.weight)
    returns  : (loss scalar, quantized (B, C, D, H, W), encodings (N, K))
    """
    B, C, Dz, Hz, Wz = x_ncdhw.shape
    K, Dlat = embedding.shape
    assert C == Dlat, (C, Dlat)

    x_perm = jnp.transpose(x_ncdhw, (0, 2, 3, 4, 1))      # (B, D, H, W, C)
    N = B * Dz * Hz * Wz
    x_flat = x_perm.reshape(N, Dlat).astype(jnp.float32)  # (N, C)

    emb = embedding.astype(jnp.float32)                   # (K, C)
    et2 = -2.0 * jnp.transpose(emb)                       # (C, K), host-folded -2
    e2 = jnp.sum(emb * emb, axis=1).reshape(1, K)         # (1, K)

    # Fixed, padded tiling: tm is a multiple of 128 (<=1024), N padded up to a
    # multiple of tm.  Padded (zero) rows are quantized harmlessly and sliced
    # off below; the loss is computed on un-padded data only.
    if N >= 1024:
        tm = 1024
    else:
        tm = ((N + 127) // 128) * 128
    n_tiles = pl.cdiv(N, tm)
    n_pad = n_tiles * tm
    x_in = x_flat if n_pad == N else jnp.pad(x_flat, ((0, n_pad - N), (0, 0)))

    kern = functools.partial(_vq_kernel, n_codes=K, d_lat=Dlat)

    q_t, encodings = pl.pallas_call(
        kern,
        out_shape=(
            jax.ShapeDtypeStruct((Dlat, n_pad), jnp.float32),   # quantized^T, lane-dense
            jax.ShapeDtypeStruct((n_pad, K), jnp.float32),      # one-hot encodings
        ),
        grid=(n_tiles,),
        in_specs=[
            pl.BlockSpec((tm, Dlat), lambda i: (i, 0)),         # x rows
            pl.BlockSpec((Dlat, K), lambda i: (0, 0)),          # -2 e^T (constant)
            pl.BlockSpec((1, K), lambda i: (0, 0)),             # ||e||^2 (constant)
        ],
        out_specs=(
            pl.BlockSpec((Dlat, tm), lambda i: (0, i)),         # q^T lane-dense
            pl.BlockSpec((tm, K), lambda i: (i, 0)),            # enc lane-dense
        ),
        compiler_params=pltpu.CompilerParams(
            dimension_semantics=("parallel",),                  # no cross-step state
            vmem_limit_bytes=40 * 1024 * 1024,
        ),
    )(x_in, et2, e2)

    q_t = q_t[:, :N]                                            # (C, N)
    encodings = encodings[:N]                                   # (N, K)

    # loss = q_latent + beta * e_latent = (1 + beta) * mean((q - x)^2); reduced
    # in the wrapper (tiny traffic) so the kernel grid stays fully parallel.
    loss = (1.0 + float(beta)) * jnp.mean(jnp.square(q_t - jnp.transpose(x_flat)))

    quantized = jnp.transpose(q_t.reshape(Dlat, B, Dz, Hz, Wz), (1, 0, 2, 3, 4))
    return loss, quantized, encodings


# ---------------------------- pure-JAX reference ----------------------------

def vector_quantizer_ref(x_ncdhw, embedding, beta):
    """Direct transcription of the PyTorch module (includes the x^2 term)."""
    B, C, Dz, Hz, Wz = x_ncdhw.shape
    K, Dlat = embedding.shape
    xp = jnp.transpose(x_ncdhw, (0, 2, 3, 4, 1))
    xf = xp.reshape(-1, Dlat).astype(jnp.float32)
    emb = embedding.astype(jnp.float32)

    x2 = jnp.sum(xf * xf, axis=1, keepdims=True)
    e2 = jnp.sum(emb * emb, axis=1).reshape(1, K)
    xet = jnp.dot(xf, emb.T, precision=jax.lax.Precision.HIGHEST)
    dist = x2 + e2 - 2.0 * xet

    idx = jnp.argmin(dist, axis=1)
    enc = jax.nn.one_hot(idx, K, dtype=jnp.float32)
    q = jnp.take(emb, idx, axis=0)

    loss = (1.0 + float(beta)) * jnp.mean((q - xf) ** 2)
    quantized = jnp.transpose(q.reshape(B, Dz, Hz, Wz, Dlat), (0, 4, 1, 2, 3))
    return loss, quantized, enc, dist


# ------------------------------------ main -----------------------------------

if __name__ == "__main__":
    key = jax.random.PRNGKey(0)
    kx, ke = jax.random.split(key)

    # Shapes implied by the module: latent feature map (B, latent_channels=1, D, H, W),
    # codebook of K=512 entries of dim latent_channels.
    B, C, Dz, Hz, Wz = 2, 1, 8, 8, 8
    K = 512
    beta = 0.25

    x = jax.random.normal(kx, (B, C, Dz, Hz, Wz), jnp.float32)
    embedding = jax.random.uniform(ke, (K, C), jnp.float32, -1.0 / K, 1.0 / K)

    loss, quantized, encodings = jax.block_until_ready(
        vector_quantizer_forward(x, embedding, beta))

    N = B * Dz * Hz * Wz
    assert quantized.shape == (B, C, Dz, Hz, Wz), quantized.shape
    assert encodings.shape == (N, K), encodings.shape
    assert bool(jnp.isfinite(loss))
    assert bool(jnp.all(jnp.isfinite(quantized)))
    # valid one-hot rows
    assert bool(jnp.all(jnp.abs(jnp.sum(encodings, axis=1) - 1.0) < 1e-6))

    loss_r, quant_r, enc_r, dist_r = vector_quantizer_ref(x, embedding, beta)

    # Index comparison: must agree except on genuine floating-point near-ties of
    # the reference distance (the kernel's argmin drops the per-row x^2 constant,
    # which is mathematically argmin-invariant but can round differently on ties).
    idx_k = jnp.argmax(encodings, axis=1)
    idx_r = jnp.argmax(enc_r, axis=1)
    rows = jnp.arange(N)
    d_k = dist_r[rows, idx_k]
    d_r = dist_r[rows, idx_r]
    tie_tol = 1e-5 * (1.0 + jnp.abs(d_r))
    assert bool(jnp.all((idx_k == idx_r) | (jnp.abs(d_k - d_r) <= tie_tol))), \
        "encoding indices mismatch beyond tie tolerance"

    q_err = float(jnp.max(jnp.abs(quantized - quant_r)))
    assert bool(jnp.allclose(quantized, quant_r, rtol=1e-5, atol=1e-6)), q_err
    l_err = abs(float(loss) - float(loss_r))
    assert bool(jnp.allclose(loss, loss_r, rtol=1e-5, atol=1e-6)), l_err

    print("KERNEL_OK")
</pallas_src>

<mosaic_0001>
module attributes {stable_mosaic.version = 11 : i64} {
  func.func @_vq_kernel(%arg0: i32, %arg1: memref<1024x1xf32, #tpu.memory_space<vmem>>, %arg2: memref<1x512xf32, #tpu.memory_space<vmem>>, %arg3: memref<1x512xf32, #tpu.memory_space<vmem>>, %arg4: memref<1x1024xf32, #tpu.memory_space<vmem>>, %arg5: memref<1024x512xf32, #tpu.memory_space<vmem>>) attributes {dimension_semantics = [#tpu.dimension_semantics<parallel>], iteration_bounds = array<i64: 1>, scalar_prefetch = 0 : i64, scratch_operands = 0 : i64, tpu.core_type = #tpu.core_type<tc>, window_params = [{transform_indices = @transform_0, window_bounds = array<i64: 1024, 1>}, {pipeline_mode = #tpu.pipeline_mode<synchronous>, transform_indices = @transform_1, window_bounds = array<i64: 1, 512>}, {pipeline_mode = #tpu.pipeline_mode<synchronous>, transform_indices = @transform_2, window_bounds = array<i64: 1, 512>}, {transform_indices = @transform_3, window_bounds = array<i64: 1, 1024>}, {transform_indices = @transform_4, window_bounds = array<i64: 1024, 512>}]} {
    %c0 = arith.constant 0 : index
    %c0_0 = arith.constant 0 : index
    %0 = vector.load %arg1[%c0, %c0_0] : memref<1024x1xf32, #tpu.memory_space<vmem>>, vector<1024x1xf32>
    %c0_1 = arith.constant 0 : index
    %c0_2 = arith.constant 0 : index
    %1 = vector.load %arg2[%c0_1, %c0_2] : memref<1x512xf32, #tpu.memory_space<vmem>>, vector<1x512xf32>
    %c0_3 = arith.constant 0 : index
    %c0_4 = arith.constant 0 : index
    %2 = vector.load %arg3[%c0_3, %c0_4] : memref<1x512xf32, #tpu.memory_space<vmem>>, vector<1x512xf32>
    %3 = vector.broadcast %0 : vector<1024x1xf32> to vector<1024x512xf32>
    %4 = vector.broadcast %1 : vector<1x512xf32> to vector<1024x512xf32>
    %5 = arith.mulf %3, %4 : vector<1024x512xf32>
    %6 = vector.broadcast %2 : vector<1x512xf32> to vector<1024x512xf32>
    %7 = arith.addf %6, %5 : vector<1024x512xf32>
    %cst = arith.constant dense<0x7F800000> : vector<1024xf32>
    %8 = vector.multi_reduction <minimumf>, %7, %cst [1] : vector<1024x512xf32> to vector<1024xf32>
    %9 = vector.shape_cast %8 : vector<1024xf32> to vector<1024x1xf32>
    %10 = tpu.iota {dimensions = array<i32: 1>} : vector<1024x512xi32>
    %11 = vector.broadcast %9 : vector<1024x1xf32> to vector<1024x512xf32>
    %12 = arith.cmpf ole, %7, %11 : vector<1024x512xf32>
    %c512_i32 = arith.constant 512 : i32
    %13 = vector.broadcast %c512_i32 : i32 to vector<1024x512xi32>
    %14 = arith.select %12, %10, %13 : vector<1024x512xi1>, vector<1024x512xi32>
    %cst_5 = arith.constant dense<2147483647> : vector<1024xi32>
    %15 = vector.multi_reduction <minsi>, %14, %cst_5 [1] : vector<1024x512xi32> to vector<1024xi32>
    %16 = vector.shape_cast %15 : vector<1024xi32> to vector<1024x1xi32>
    %17 = vector.broadcast %16 : vector<1024x1xi32> to vector<1024x512xi32>
    %18 = arith.cmpi eq, %10, %17 : vector<1024x512xi32>
    %19 = arith.extui %18 : vector<1024x512xi1> to vector<1024x512xi32>
    %20 = arith.sitofp %19 : vector<1024x512xi32> to vector<1024x512xf32>
    %c0_6 = arith.constant 0 : index
    %c0_7 = arith.constant 0 : index
    %21 = vector.load %arg5[%c0_6, %c0_7] : memref<1024x512xf32, #tpu.memory_space<vmem>>, vector<1024x512xf32>
    tpu.vector_store %arg5[%c0_6, %c0_7], %20 {strides = array<i32>} : memref<1024x512xf32, #tpu.memory_space<vmem>>, vector<1024x512xf32>,
    %cst_8 = arith.constant dense<0.000000e+00> : vector<1x1024xf32>
    %22 = tpu.matmul %1, %20, %cst_8 {dimension_numbers = #tpu.dot_dimension_numbers<[1], [1], [0], [0], [0, 0, 1, 0], [], []>} : vector<1x512xf32>, vector<1024x512xf32>, vector<1x1024xf32> -> vector<1x1024xf32>
    %cst_9 = arith.constant -5.000000e-01 : f32
    %23 = vector.broadcast %cst_9 : f32 to vector<1x1024xf32>
    %24 = arith.mulf %22, %23 : vector<1x1024xf32>
    %c0_10 = arith.constant 0 : index
    %c0_11 = arith.constant 0 : index
    %25 = vector.load %arg4[%c0_10, %c0_11] : memref<1x1024xf32, #tpu.memory_space<vmem>>, vector<1x1024xf32>
    tpu.vector_store %arg4[%c0_10, %c0_11], %24 {strides = array<i32>} : memref<1x1024xf32, #tpu.memory_space<vmem>>, vector<1x1024xf32>,
    return
  }
  func.func @transform_0(%arg0: i32) -> (i32, i32) {
    %c0_i32 = arith.constant 0 : i32
    %c0_i32_0 = arith.constant 0 : i32
    return %arg0, %c0_i32 : i32, i32
  }
  func.func @transform_1(%arg0: i32) -> (i32, i32) {
    %c0_i32 = arith.constant 0 : i32
    %c0_i32_0 = arith.constant 0 : i32
    %c0_i32_1 = arith.constant 0 : i32
    return %c0_i32, %c0_i32_0 : i32, i32
  }
  func.func @transform_2(%arg0: i32) -> (i32, i32) {
    %c0_i32 = arith.constant 0 : i32
    %c0_i32_0 = arith.constant 0 : i32
    %c0_i32_1 = arith.constant 0 : i32
    return %c0_i32, %c0_i32_0 : i32, i32
  }
  func.func @transform_3(%arg0: i32) -> (i32, i32) {
    %c0_i32 = arith.constant 0 : i32
    %c0_i32_0 = arith.constant 0 : i32
    return %c0_i32, %arg0 : i32, i32
  }
  func.func @transform_4(%arg0: i32) -> (i32, i32) {
    %c0_i32 = arith.constant 0 : i32
    %c0_i32_0 = arith.constant 0 : i32
    return %arg0, %c0_i32 : i32, i32
  }
}

</mosaic_0001>

<llo_original>
// kernel: tpu_custom_call.1
$region0: #{tpu_custom_call.1}
  #allocation0 [shape = 'u32[]', space=smem, size = 0x4, offset = 0x4, fixed_abs, tag = 'smem constant byte address 0x4 - core index']
  #allocation1 [shape = 'u32[144,128]{1,0:T(1,128)}', space=vmem, size = 0x12000, scoped, tag = 'internal scratch']
  %s0 = inlined_call_operand.vmem [shape: f32[1024,1], index: 0, kind: input, shape index: {}]
  %s1 = inlined_call_operand.hbm [shape: f32[1,512], index: 1, kind: input, shape index: {}]
  %s2 = inlined_call_operand.hbm [shape: f32[1,512], index: 2, kind: input, shape index: {}]
  %s3 = inlined_call_operand.hbm [shape: f32[1,1024], index: 3, kind: output, shape index: {0}]
  %s4 = inlined_call_operand.hbm [shape: f32[1024,512], index: 4, kind: output, shape index: {1}]
  %5 = xla_tuple %s3, %s4
  %s6 = sld [smem:[#allocation0]]
  $region38: #{tpu_custom_call.1} parent=0
    _
  %s8 = ssub.s32 1, %s6
  %s9 = scalar_select 0, %s8, %s6
  $region1: #{tpu_custom_call.1} parent=0
    #allocation2 [shape = 'u8[2048]{0}', space=vmem, size = 0x800, scoped, tag = 'input window, operand 1, single buffered']
    #allocation3 [shape = 's32[1]{0}', space=sflag, size = 0x4, scoped, tag = 'scoped memory for tpu_custom_call.1']
    #allocation4 [shape = 's32[1]{0}', space=sflag, size = 0x4, scoped, tag = 'scoped memory for tpu_custom_call.1']
    #allocation5 [shape = 'u8[2048]{0}', space=vmem, size = 0x800, scoped, tag = 'input window, operand 2, single buffered']
    #allocation6 [shape = 's32[1]{0}', space=sflag, size = 0x4, scoped, tag = 'scoped memory for tpu_custom_call.1']
    #allocation7 [shape = 'u8[4096]{0}', space=vmem, size = 0x1000, scoped, tag = 'output window, operand 0, single buffered']
    #allocation8 [shape = 'u8[2097152]{0}', space=vmem, size = 0x200000, scoped, tag = 'output window, operand 1, single buffered']
    #allocation9 [shape = 's32[1]{0}', space=sflag, size = 0x4, scoped, tag = 'scoped memory for tpu_custom_call.1']
    %10 = vsyncpa [#allocation3], 0
    %11 = vsyncpa [#allocation6], 0
    %12 = vsyncpa [#allocation4], 0
    %13 = vsyncpa [#allocation9], 0
    // Predicated region
    $region2: #{tpu_custom_call.1} parent=1 // pred_check
      _
    $region3: #{tpu_custom_call.1} parent=1 // pred_check_branch
      %15 = sbr.rel (0) target = $region5
    $region4: #{tpu_custom_call.1} parent=1 // pred_region
      _
    $region5: #{tpu_custom_call.1} parent=1 // pred_fallthru
      _
    // Predicated region
    $region6: #{tpu_custom_call.1} parent=1 // pred_check
      _
    $region7: #{tpu_custom_call.1} parent=1 // pred_check_branch
      %17 = sbr.rel (0) target = $region9
    $region8: #{tpu_custom_call.1} parent=1 // pred_region
      %s19 = ssub.s32 64, 64
      %20 = vsyncadd [#allocation3], %s19
      %s22 = sshll.u32 [#allocation2], 4
      %s23 = int_to_ptr.vmem [resolvable:$true] %s22
      %25 = dma.hbm_to_vmem [thread:$0]  %s1, 64, %s23, [#allocation3]
    $region9: #{tpu_custom_call.1} parent=1 // pred_fallthru
      _
    // Predicated region
    $region10: #{tpu_custom_call.1} parent=1 // pred_check
      _
    $region11: #{tpu_custom_call.1} parent=1 // pred_check_branch
      %27 = sbr.rel (0) target = $region13
    $region12: #{tpu_custom_call.1} parent=1 // pred_region
      %s29 = ssub.s32 64, 64
      %30 = vsyncadd [#allocation6], %s29
      %s32 = sshll.u32 [#allocation5], 4
      %s33 = int_to_ptr.vmem [resolvable:$true] %s32
      %35 = dma.hbm_to_vmem [thread:$0]  %s2, 64, %s33, [#allocation6]
    $region13: #{tpu_custom_call.1} parent=1 // pred_fallthru
      _
    // Predicated region
    $region14: #{tpu_custom_call.1} parent=1 // pred_check
      _
    $region15: #{tpu_custom_call.1} parent=1 // pred_check_branch
      %37 = sbr.rel (0) target = $region17
    $region16: #{tpu_custom_call.1} parent=1 // pred_region
      %38 = dma.done [#allocation3], 64
    $region17: #{tpu_custom_call.1} parent=1 // pred_fallthru
      _
    // Predicated region
    $region18: #{tpu_custom_call.1} parent=1 // pred_check
      _
    $region19: #{tpu_custom_call.1} parent=1 // pred_check_branch
      %40 = sbr.rel (0) target = $region21
    $region20: #{tpu_custom_call.1} parent=1 // pred_region
      %41 = dma.done [#allocation6], 64
    $region21: #{tpu_custom_call.1} parent=1 // pred_fallthru
      _
    %v42 = vld [vmem:[%s0] sm:$0xff]
    %v43 = vld [vmem:[%s0 + $0x8] sm:$0xff]
    %v44 = vld [vmem:[%s0 + $0x10] sm:$0xff]
    %v45 = vld [vmem:[%s0 + $0x18] sm:$0xff]
    %v46 = vld [vmem:[%s0 + $0x20] sm:$0xff]
    %v47 = vld [vmem:[%s0 + $0x28] sm:$0xff]
    %v48 = vld [vmem:[%s0 + $0x30] sm:$0xff]
    %v49 = vld [vmem:[%s0 + $0x38] sm:$0xff]
    %v50 = vld [vmem:[%s0 + $0x40] sm:$0xff]
    %v51 = vld [vmem:[%s0 + $0x48] sm:$0xff]
    %v52 = vld [vmem:[%s0 + $0x50] sm:$0xff]
    %v53 = vld [vmem:[%s0 + $0x58] sm:$0xff]
    %v54 = vld [vmem:[%s0 + $0x60] sm:$0xff]
    %v55 = vld [vmem:[%s0 + $0x68] sm:$0xff]
    %v56 = vld [vmem:[%s0 + $0x70] sm:$0xff]
    %v57 = vld [vmem:[%s0 + $0x78] sm:$0xff]
    %v58 = vld [vmem:[%s0 + $0x80] sm:$0xff]
    %v59 = vld [vmem:[%s0 + $0x88] sm:$0xff]
    %v60 = vld [vmem:[%s0 + $0x90] sm:$0xff]
    %v61 = vld [vmem:[%s0 + $0x98] sm:$0xff]
    %v62 = vld [vmem:[%s0 + $0xa0] sm:$0xff]
    %v63 = vld [vmem:[%s0 + $0xa8] sm:$0xff]
    %v64 = vld [vmem:[%s0 + $0xb0] sm:$0xff]
    %v65 = vld [vmem:[%s0 + $0xb8] sm:$0xff]
    %v66 = vld [vmem:[%s0 + $0xc0] sm:$0xff]
    %v67 = vld [vmem:[%s0 + $0xc8] sm:$0xff]
    %v68 = vld [vmem:[%s0 + $0xd0] sm:$0xff]
    %v69 = vld [vmem:[%s0 + $0xd8] sm:$0xff]
    %v70 = vld [vmem:[%s0 + $0xe0] sm:$0xff]
    %v71 = vld [vmem:[%s0 + $0xe8] sm:$0xff]
    %v72 = vld [vmem:[%s0 + $0xf0] sm:$0xff]
    %v73 = vld [vmem:[%s0 + $0xf8] sm:$0xff]
    %v74 = vld [vmem:[%s0 + $0x100] sm:$0xff]
    %v75 = vld [vmem:[%s0 + $0x108] sm:$0xff]
    %v76 = vld [vmem:[%s0 + $0x110] sm:$0xff]
    %v77 = vld [vmem:[%s0 + $0x118] sm:$0xff]
    %v78 = vld [vmem:[%s0 + $0x120] sm:$0xff]
    %v79 = vld [vmem:[%s0 + $0x128] sm:$0xff]
    %v80 = vld [vmem:[%s0 + $0x130] sm:$0xff]
    %v81 = vld [vmem:[%s0 + $0x138] sm:$0xff]
    %v82 = vld [vmem:[%s0 + $0x140] sm:$0xff]
    %v83 = vld [vmem:[%s0 + $0x148] sm:$0xff]
    %v84 = vld [vmem:[%s0 + $0x150] sm:$0xff]
    %v85 = vld [vmem:[%s0 + $0x158] sm:$0xff]
    %v86 = vld [vmem:[%s0 + $0x160] sm:$0xff]
    %v87 = vld [vmem:[%s0 + $0x168] sm:$0xff]
    %v88 = vld [vmem:[%s0 + $0x170] sm:$0xff]
    %v89 = vld [vmem:[%s0 + $0x178] sm:$0xff]
    %v90 = vld [vmem:[%s0 + $0x180] sm:$0xff]
    %v91 = vld [vmem:[%s0 + $0x188] sm:$0xff]
    %v92 = vld [vmem:[%s0 + $0x190] sm:$0xff]
    %v93 = vld [vmem:[%s0 + $0x198] sm:$0xff]
    %v94 = vld [vmem:[%s0 + $0x1a0] sm:$0xff]
    %v95 = vld [vmem:[%s0 + $0x1a8] sm:$0xff]
    %v96 = vld [vmem:[%s0 + $0x1b0] sm:$0xff]
    %v97 = vld [vmem:[%s0 + $0x1b8] sm:$0xff]
    %v98 = vld [vmem:[%s0 + $0x1c0] sm:$0xff]
    %v99 = vld [vmem:[%s0 + $0x1c8] sm:$0xff]
    %v100 = vld [vmem:[%s0 + $0x1d0] sm:$0xff]
    %v101 = vld [vmem:[%s0 + $0x1d8] sm:$0xff]
    %v102 = vld [vmem:[%s0 + $0x1e0] sm:$0xff]
    %v103 = vld [vmem:[%s0 + $0x1e8] sm:$0xff]
    %v104 = vld [vmem:[%s0 + $0x1f0] sm:$0xff]
    %v105 = vld [vmem:[%s0 + $0x1f8] sm:$0xff]
    %v106 = vld [vmem:[%s0 + $0x200] sm:$0xff]
    %v107 = vld [vmem:[%s0 + $0x208] sm:$0xff]
    %v108 = vld [vmem:[%s0 + $0x210] sm:$0xff]
    %v109 = vld [vmem:[%s0 + $0x218] sm:$0xff]
    %v110 = vld [vmem:[%s0 + $0x220] sm:$0xff]
    %v111 = vld [vmem:[%s0 + $0x228] sm:$0xff]
    %v112 = vld [vmem:[%s0 + $0x230] sm:$0xff]
    %v113 = vld [vmem:[%s0 + $0x238] sm:$0xff]
    %v114 = vld [vmem:[%s0 + $0x240] sm:$0xff]
    %v115 = vld [vmem:[%s0 + $0x248] sm:$0xff]
    %v116 = vld [vmem:[%s0 + $0x250] sm:$0xff]
    %v117 = vld [vmem:[%s0 + $0x258] sm:$0xff]
    %v118 = vld [vmem:[%s0 + $0x260] sm:$0xff]
    %v119 = vld [vmem:[%s0 + $0x268] sm:$0xff]
    %v120 = vld [vmem:[%s0 + $0x270] sm:$0xff]
    %v121 = vld [vmem:[%s0 + $0x278] sm:$0xff]
    %v122 = vld [vmem:[%s0 + $0x280] sm:$0xff]
    %v123 = vld [vmem:[%s0 + $0x288] sm:$0xff]
    %v124 = vld [vmem:[%s0 + $0x290] sm:$0xff]
    %v125 = vld [vmem:[%s0 + $0x298] sm:$0xff]
    %v126 = vld [vmem:[%s0 + $0x2a0] sm:$0xff]
    %v127 = vld [vmem:[%s0 + $0x2a8] sm:$0xff]
    %v128 = vld [vmem:[%s0 + $0x2b0] sm:$0xff]
    %v129 = vld [vmem:[%s0 + $0x2b8] sm:$0xff]
    %v130 = vld [vmem:[%s0 + $0x2c0] sm:$0xff]
    %v131 = vld [vmem:[%s0 + $0x2c8] sm:$0xff]
    %v132 = vld [vmem:[%s0 + $0x2d0] sm:$0xff]
    %v133 = vld [vmem:[%s0 + $0x2d8] sm:$0xff]
    %v134 = vld [vmem:[%s0 + $0x2e0] sm:$0xff]
    %v135 = vld [vmem:[%s0 + $0x2e8] sm:$0xff]
    %v136 = vld [vmem:[%s0 + $0x2f0] sm:$0xff]
    %v137 = vld [vmem:[%s0 + $0x2f8] sm:$0xff]
    %v138 = vld [vmem:[%s0 + $0x300] sm:$0xff]
    %v139 = vld [vmem:[%s0 + $0x308] sm:$0xff]
    %v140 = vld [vmem:[%s0 + $0x310] sm:$0xff]
    %v141 = vld [vmem:[%s0 + $0x318] sm:$0xff]
    %v142 = vld [vmem:[%s0 + $0x320] sm:$0xff]
    %v143 = vld [vmem:[%s0 + $0x328] sm:$0xff]
    %v144 = vld [vmem:[%s0 + $0x330] sm:$0xff]
    %v145 = vld [vmem:[%s0 + $0x338] sm:$0xff]
    %v146 = vld [vmem:[%s0 + $0x340] sm:$0xff]
    %v147 = vld [vmem:[%s0 + $0x348] sm:$0xff]
    %v148 = vld [vmem:[%s0 + $0x350] sm:$0xff]
    %v149 = vld [vmem:[%s0 + $0x358] sm:$0xff]
    %v150 = vld [vmem:[%s0 + $0x360] sm:$0xff]
    %v151 = vld [vmem:[%s0 + $0x368] sm:$0xff]
    %v152 = vld [vmem:[%s0 + $0x370] sm:$0xff]
    %v153 = vld [vmem:[%s0 + $0x378] sm:$0xff]
    %v154 = vld [vmem:[%s0 + $0x380] sm:$0xff]
    %v155 = vld [vmem:[%s0 + $0x388] sm:$0xff]
    %v156 = vld [vmem:[%s0 + $0x390] sm:$0xff]
    %v157 = vld [vmem:[%s0 + $0x398] sm:$0xff]
    %v158 = vld [vmem:[%s0 + $0x3a0] sm:$0xff]
    %v159 = vld [vmem:[%s0 + $0x3a8] sm:$0xff]
    %v160 = vld [vmem:[%s0 + $0x3b0] sm:$0xff]
    %v161 = vld [vmem:[%s0 + $0x3b8] sm:$0xff]
    %v162 = vld [vmem:[%s0 + $0x3c0] sm:$0xff]
    %v163 = vld [vmem:[%s0 + $0x3c8] sm:$0xff]
    %v164 = vld [vmem:[%s0 + $0x3d0] sm:$0xff]
    %v165 = vld [vmem:[%s0 + $0x3d8] sm:$0xff]
    %v166 = vld [vmem:[%s0 + $0x3e0] sm:$0xff]
    %v167 = vld [vmem:[%s0 + $0x3e8] sm:$0xff]
    %v168 = vld [vmem:[%s0 + $0x3f0] sm:$0xff]
    %v169 = vld [vmem:[%s0 + $0x3f8] sm:$0xff]
    %v170 = vld [vmem:[#allocation2] sm:$0xf]
    %v171 = vld [vmem:[#allocation5] sm:$0xf]
    %173 = vset.pattern.permute.xlu0 0
    %174 = vperm.xlu0 %173, %v42
    %v175 = vpop.permute.xlu0 %174
    %178 = vset.pattern.permute.xlu0 0
    %179 = vperm.xlu0 %178, %v43
    %v180 = vpop.permute.xlu0 %179
    %183 = vset.pattern.permute.xlu0 0
    %184 = vperm.xlu0 %183, %v44
    %v185 = vpop.permute.xlu0 %184
    %188 = vset.pattern.permute.xlu0 0
    %189 = vperm.xlu0 %188, %v45
    %v190 = vpop.permute.xlu0 %189
    %193 = vset.pattern.permute.xlu0 0
    %194 = vperm.xlu0 %193, %v46
    %v195 = vpop.permute.xlu0 %194
    %198 = vset.pattern.permute.xlu0 0
    %199 = vperm.xlu0 %198, %v47
    %v200 = vpop.permute.xlu0 %199
    %203 = vset.pattern.permute.xlu0 0
    %204 = vperm.xlu0 %203, %v48
    %v205 = vpop.permute.xlu0 %204
    %208 = vset.pattern.permute.xlu0 0
    %209 = vperm.xlu0 %208, %v49
    %v210 = vpop.permute.xlu0 %209
    %213 = vset.pattern.permute.xlu0 0
    %214 = vperm.xlu0 %213, %v50
    %v215 = vpop.permute.xlu0 %214
    %218 = vset.pattern.permute.xlu0 0
    %219 = vperm.xlu0 %218, %v51
    %v220 = vpop.permute.xlu0 %219
    %223 = vset.pattern.permute.xlu0 0
    %224 = vperm.xlu0 %223, %v52
    %v225 = vpop.permute.xlu0 %224
    %228 = vset.pattern.permute.xlu0 0
    %229 = vperm.xlu0 %228, %v53
    %v230 = vpop.permute.xlu0 %229
    %233 = vset.pattern.permute.xlu0 0
    %234 = vperm.xlu0 %233, %v54
    %v235 = vpop.permute.xlu0 %234
    %238 = vset.pattern.permute.xlu0 0
    %239 = vperm.xlu0 %238, %v55
    %v240 = vpop.permute.xlu0 %239
    %243 = vset.pattern.permute.xlu0 0
    %244 = vperm.xlu0 %243, %v56
    %v245 = vpop.permute.xlu0 %244
    %248 = vset.pattern.permute.xlu0 0
    %249 = vperm.xlu0 %248, %v57
    %v250 = vpop.permute.xlu0 %249
    %253 = vset.pattern.permute.xlu0 0
    %254 = vperm.xlu0 %253, %v58
    %v255 = vpop.permute.xlu0 %254
    %258 = vset.pattern.permute.xlu0 0
    %259 = vperm.xlu0 %258, %v59
    %v260 = vpop.permute.xlu0 %259
    %263 = vset.pattern.permute.xlu0 0
    %264 = vperm.xlu0 %263, %v60
    %v265 = vpop.permute.xlu0 %264
    %268 = vset.pattern.permute.xlu0 0
    %269 = vperm.xlu0 %268, %v61
    %v270 = vpop.permute.xlu0 %269
    %273 = vset.pattern.permute.xlu0 0
    %274 = vperm.xlu0 %273, %v62
    %v275 = vpop.permute.xlu0 %274
    %278 = vset.pattern.permute.xlu0 0
    %279 = vperm.xlu0 %278, %v63
    %v280 = vpop.permute.xlu0 %279
    %283 = vset.pattern.permute.xlu0 0
    %284 = vperm.xlu0 %283, %v64
    %v285 = vpop.permute.xlu0 %284
    %288 = vset.pattern.permute.xlu0 0
    %289 = vperm.xlu0 %288, %v65
    %v290 = vpop.permute.xlu0 %289
    %293 = vset.pattern.permute.xlu0 0
    %294 = vperm.xlu0 %293, %v66
    %v295 = vpop.permute.xlu0 %294
    %298 = vset.pattern.permute.xlu0 0
    %299 = vperm.xlu0 %298, %v67
    %v300 = vpop.permute.xlu0 %299
    %303 = vset.pattern.permute.xlu0 0
    %304 = vperm.xlu0 %303, %v68
    %v305 = vpop.permute.xlu0 %304
    %308 = vset.pattern.permute.xlu0 0
    %309 = vperm.xlu0 %308, %v69
    %v310 = vpop.permute.xlu0 %309
    %313 = vset.pattern.permute.xlu0 0
    %314 = vperm.xlu0 %313, %v70
    %v315 = vpop.permute.xlu0 %314
    %318 = vset.pattern.permute.xlu0 0
    %319 = vperm.xlu0 %318, %v71
    %v320 = vpop.permute.xlu0 %319
    %323 = vset.pattern.permute.xlu0 0
    %324 = vperm.xlu0 %323, %v72
    %v325 = vpop.permute.xlu0 %324
    %328 = vset.pattern.permute.xlu0 0
    %329 = vperm.xlu0 %328, %v73
    %v330 = vpop.permute.xlu0 %329
    %333 = vset.pattern.permute.xlu0 0
    %334 = vperm.xlu0 %333, %v74
    %v335 = vpop.permute.xlu0 %334
    %338 = vset.pattern.permute.xlu0 0
    %339 = vperm.xlu0 %338, %v75
    %v340 = vpop.permute.xlu0 %339
    %343 = vset.pattern.permute.xlu0 0
    %344 = vperm.xlu0 %343, %v76
    %v345 = vpop.permute.xlu0 %344
    %348 = vset.pattern.permute.xlu0 0
    %349 = vperm.xlu0 %348, %v77
    %v350 = vpop.permute.xlu0 %349
    %353 = vset.pattern.permute.xlu0 0
    %354 = vperm.xlu0 %353, %v78
    %v355 = vpop.permute.xlu0 %354
    %358 = vset.pattern.permute.xlu0 0
    %359 = vperm.xlu0 %358, %v79
    %v360 = vpop.permute.xlu0 %359
    %363 = vset.pattern.permute.xlu0 0
    %364 = vperm.xlu0 %363, %v80
    %v365 = vpop.permute.xlu0 %364
    %368 = vset.pattern.permute.xlu0 0
    %369 = vperm.xlu0 %368, %v81
    %v370 = vpop.permute.xlu0 %369
    %373 = vset.pattern.permute.xlu0 0
    %374 = vperm.xlu0 %373, %v82
    %v375 = vpop.permute.xlu0 %374
    %378 = vset.pattern.permute.xlu0 0
    %379 = vperm.xlu0 %378, %v83
    %v380 = vpop.permute.xlu0 %379
    %383 = vset.pattern.permute.xlu0 0
    %384 = vperm.xlu0 %383, %v84
    %v385 = vpop.permute.xlu0 %384
    %388 = vset.pattern.permute.xlu0 0
    %389 = vperm.xlu0 %388, %v85
    %v390 = vpop.permute.xlu0 %389
    %393 = vset.pattern.permute.xlu0 0
    %394 = vperm.xlu0 %393, %v86
    %v395 = vpop.permute.xlu0 %394
    %398 = vset.pattern.permute.xlu0 0
    %399 = vperm.xlu0 %398, %v87
    %v400 = vpop.permute.xlu0 %399
    %403 = vset.pattern.permute.xlu0 0
    %404 = vperm.xlu0 %403, %v88
    %v405 = vpop.permute.xlu0 %404
    %408 = vset.pattern.permute.xlu0 0
    %409 = vperm.xlu0 %408, %v89
    %v410 = vpop.permute.xlu0 %409
    %413 = vset.pattern.permute.xlu0 0
    %414 = vperm.xlu0 %413, %v90
    %v415 = vpop.permute.xlu0 %414
    %418 = vset.pattern.permute.xlu0 0
    %419 = vperm.xlu0 %418, %v91
    %v420 = vpop.permute.xlu0 %419
    %423 = vset.pattern.permute.xlu0 0
    %424 = vperm.xlu0 %423, %v92
    %v425 = vpop.permute.xlu0 %424
    %428 = vset.pattern.permute.xlu0 0
    %429 = vperm.xlu0 %428, %v93
    %v430 = vpop.permute.xlu0 %429
    %433 = vset.pattern.permute.xlu0 0
    %434 = vperm.xlu0 %433, %v94
    %v435 = vpop.permute.xlu0 %434
    %438 = vset.pattern.permute.xlu0 0
    %439 = vperm.xlu0 %438, %v95
    %v440 = vpop.permute.xlu0 %439
    %443 = vset.pattern.permute.xlu0 0
    %444 = vperm.xlu0 %443, %v96
    %v445 = vpop.permute.xlu0 %444
    %448 = vset.pattern.permute.xlu0 0
    %449 = vperm.xlu0 %448, %v97
    %v450 = vpop.permute.xlu0 %449
    %453 = vset.pattern.permute.xlu0 0
    %454 = vperm.xlu0 %453, %v98
    %v455 = vpop.permute.xlu0 %454
    %458 = vset.pattern.permute.xlu0 0
    %459 = vperm.xlu0 %458, %v99
    %v460 = vpop.permute.xlu0 %459
    %463 = vset.pattern.permute.xlu0 0
    %464 = vperm.xlu0 %463, %v100
    %v465 = vpop.permute.xlu0 %464
    %468 = vset.pattern.permute.xlu0 0
    %469 = vperm.xlu0 %468, %v101
    %v470 = vpop.permute.xlu0 %469
    %473 = vset.pattern.permute.xlu0 0
    %474 = vperm.xlu0 %473, %v102
    %v475 = vpop.permute.xlu0 %474
    %478 = vset.pattern.permute.xlu0 0
    %479 = vperm.xlu0 %478, %v103
    %v480 = vpop.permute.xlu0 %479
    %483 = vset.pattern.permute.xlu0 0
    %484 = vperm.xlu0 %483, %v104
    %v485 = vpop.permute.xlu0 %484
    %488 = vset.pattern.permute.xlu0 0
    %489 = vperm.xlu0 %488, %v105
    %v490 = vpop.permute.xlu0 %489
    %493 = vset.pattern.permute.xlu0 0
    %494 = vperm.xlu0 %493, %v106
    %v495 = vpop.permute.xlu0 %494
    %498 = vset.pattern.permute.xlu0 0
    %499 = vperm.xlu0 %498, %v107
    %v500 = vpop.permute.xlu0 %499
    %503 = vset.pattern.permute.xlu0 0
    %504 = vperm.xlu0 %503, %v108
    %v505 = vpop.permute.xlu0 %504
    %508 = vset.pattern.permute.xlu0 0
    %509 = vperm.xlu0 %508, %v109
    %v510 = vpop.permute.xlu0 %509
    %513 = vset.pattern.permute.xlu0 0
    %514 = vperm.xlu0 %513, %v110
    %v515 = vpop.permute.xlu0 %514
    %518 = vset.pattern.permute.xlu0 0
    %519 = vperm.xlu0 %518, %v111
    %v520 = vpop.permute.xlu0 %519
    %523 = vset.pattern.permute.xlu0 0
    %524 = vperm.xlu0 %523, %v112
    %v525 = vpop.permute.xlu0 %524
    %528 = vset.pattern.permute.xlu0 0
    %529 = vperm.xlu0 %528, %v113
    %v530 = vpop.permute.xlu0 %529
    %533 = vset.pattern.permute.xlu0 0
    %534 = vperm.xlu0 %533, %v114
    %v535 = vpop.permute.xlu0 %534
    %538 = vset.pattern.permute.xlu0 0
    %539 = vperm.xlu0 %538, %v115
    %v540 = vpop.permute.xlu0 %539
    %543 = vset.pattern.permute.xlu0 0
    %544 = vperm.xlu0 %543, %v116
    %v545 = vpop.permute.xlu0 %544
    %548 = vset.pattern.permute.xlu0 0
    %549 = vperm.xlu0 %548, %v117
    %v550 = vpop.permute.xlu0 %549
    %553 = vset.pattern.permute.xlu0 0
    %554 = vperm.xlu0 %553, %v118
    %v555 = vpop.permute.xlu0 %554
    %558 = vset.pattern.permute.xlu0 0
    %559 = vperm.xlu0 %558, %v119
    %v560 = vpop.permute.xlu0 %559
    %563 = vset.pattern.permute.xlu0 0
    %564 = vperm.xlu0 %563, %v120
    %v565 = vpop.permute.xlu0 %564
    %568 = vset.pattern.permute.xlu0 0
    %569 = vperm.xlu0 %568, %v121
    %v570 = vpop.permute.xlu0 %569
    %573 = vset.pattern.permute.xlu0 0
    %574 = vperm.xlu0 %573, %v122
    %v575 = vpop.permute.xlu0 %574
    %578 = vset.pattern.permute.xlu0 0
    %579 = vperm.xlu0 %578, %v123
    %v580 = vpop.permute.xlu0 %579
    %583 = vset.pattern.permute.xlu0 0
    %584 = vperm.xlu0 %583, %v124
    %v585 = vpop.permute.xlu0 %584
    %588 = vset.pattern.permute.xlu0 0
    %589 = vperm.xlu0 %588, %v125
    %v590 = vpop.permute.xlu0 %589
    %593 = vset.pattern.permute.xlu0 0
    %594 = vperm.xlu0 %593, %v126
    %v595 = vpop.permute.xlu0 %594
    %598 = vset.pattern.permute.xlu0 0
    %599 = vperm.xlu0 %598, %v127
    %v600 = vpop.permute.xlu0 %599
    %603 = vset.pattern.permute.xlu0 0
    %604 = vperm.xlu0 %603, %v128
    %v605 = vpop.permute.xlu0 %604
    %608 = vset.pattern.permute.xlu0 0
    %609 = vperm.xlu0 %608, %v129
    %v610 = vpop.permute.xlu0 %609
    %613 = vset.pattern.permute.xlu0 0
    %614 = vperm.xlu0 %613, %v130
    %v615 = vpop.permute.xlu0 %614
    %618 = vset.pattern.permute.xlu0 0
    %619 = vperm.xlu0 %618, %v131
    %v620 = vpop.permute.xlu0 %619
    %623 = vset.pattern.permute.xlu0 0
    %624 = vperm.xlu0 %623, %v132
    %v625 = vpop.permute.xlu0 %624
    %628 = vset.pattern.permute.xlu0 0
    %629 = vperm.xlu0 %628, %v133
    %v630 = vpop.permute.xlu0 %629
    %633 = vset.pattern.permute.xlu0 0
    %634 = vperm.xlu0 %633, %v134
    %v635 = vpop.permute.xlu0 %634
    %638 = vset.pattern.permute.xlu0 0
    %639 = vperm.xlu0 %638, %v135
    %v640 = vpop.permute.xlu0 %639
    %643 = vset.pattern.permute.xlu0 0
    %644 = vperm.xlu0 %643, %v136
    %v645 = vpop.permute.xlu0 %644
    %648 = vset.pattern.permute.xlu0 0
    %649 = vperm.xlu0 %648, %v137
    %v650 = vpop.permute.xlu0 %649
    %653 = vset.pattern.permute.xlu0 0
    %654 = vperm.xlu0 %653, %v138
    %v655 = vpop.permute.xlu0 %654
    %658 = vset.pattern.permute.xlu0 0
    %659 = vperm.xlu0 %658, %v139
    %v660 = vpop.permute.xlu0 %659
    %663 = vset.pattern.permute.xlu0 0
    %664 = vperm.xlu0 %663, %v140
    %v665 = vpop.permute.xlu0 %664
    %668 = vset.pattern.permute.xlu0 0
    %669 = vperm.xlu0 %668, %v141
    %v670 = vpop.permute.xlu0 %669
    %673 = vset.pattern.permute.xlu0 0
    %674 = vperm.xlu0 %673, %v142
    %v675 = vpop.permute.xlu0 %674
    %678 = vset.pattern.permute.xlu0 0
    %679 = vperm.xlu0 %678, %v143
    %v680 = vpop.permute.xlu0 %679
    %683 = vset.pattern.permute.xlu0 0
    %684 = vperm.xlu0 %683, %v144
    %v685 = vpop.permute.xlu0 %684
    %688 = vset.pattern.permute.xlu0 0
    %689 = vperm.xlu0 %688, %v145
    %v690 = vpop.permute.xlu0 %689
    %693 = vset.pattern.permute.xlu0 0
    %694 = vperm.xlu0 %693, %v146
    %v695 = vpop.permute.xlu0 %694
    %698 = vset.pattern.permute.xlu0 0
    %699 = vperm.xlu0 %698, %v147
    %v700 = vpop.permute.xlu0 %699
    %703 = vset.pattern.permute.xlu0 0
    %704 = vperm.xlu0 %703, %v148
    %v705 = vpop.permute.xlu0 %704
    %708 = vset.pattern.permute.xlu0 0
    %709 = vperm.xlu0 %708, %v149
    %v710 = vpop.permute.xlu0 %709
    %713 = vset.pattern.permute.xlu0 0
    %714 = vperm.xlu0 %713, %v150
    %v715 = vpop.permute.xlu0 %714
    %718 = vset.pattern.permute.xlu0 0
    %719 = vperm.xlu0 %718, %v151
    %v720 = vpop.permute.xlu0 %719
    %723 = vset.pattern.permute.xlu0 0
    %724 = vperm.xlu0 %723, %v152
    %v725 = vpop.permute.xlu0 %724
    %728 = vset.pattern.permute.xlu0 0
    %729 = vperm.xlu0 %728, %v153
    %v730 = vpop.permute.xlu0 %729
    %733 = vset.pattern.permute.xlu0 0
    %734 = vperm.xlu0 %733, %v154
    %v735 = vpop.permute.xlu0 %734
    %738 = vset.pattern.permute.xlu0 0
    %739 = vperm.xlu0 %738, %v155
    %v740 = vpop.permute.xlu0 %739
    %743 = vset.pattern.permute.xlu0 0
    %744 = vperm.xlu0 %743, %v156
    %v745 = vpop.permute.xlu0 %744
    %748 = vset.pattern.permute.xlu0 0
    %749 = vperm.xlu0 %748, %v157
    %v750 = vpop.permute.xlu0 %749
    %753 = vset.pattern.permute.xlu0 0
    %754 = vperm.xlu0 %753, %v158
    %v755 = vpop.permute.xlu0 %754
    %758 = vset.pattern.permute.xlu0 0
    %759 = vperm.xlu0 %758, %v159
    %v760 = vpop.permute.xlu0 %759
    %763 = vset.pattern.permute.xlu0 0
    %764 = vperm.xlu0 %763, %v160
    %v765 = vpop.permute.xlu0 %764
    %768 = vset.pattern.permute.xlu0 0
    %769 = vperm.xlu0 %768, %v161
    %v770 = vpop.permute.xlu0 %769
    %773 = vset.pattern.permute.xlu0 0
    %774 = vperm.xlu0 %773, %v162
    %v775 = vpop.permute.xlu0 %774
    %778 = vset.pattern.permute.xlu0 0
    %779 = vperm.xlu0 %778, %v163
    %v780 = vpop.permute.xlu0 %779
    %783 = vset.pattern.permute.xlu0 0
    %784 = vperm.xlu0 %783, %v164
    %v785 = vpop.permute.xlu0 %784
    %788 = vset.pattern.permute.xlu0 0
    %789 = vperm.xlu0 %788, %v165
    %v790 = vpop.permute.xlu0 %789
    %793 = vset.pattern.permute.xlu0 0
    %794 = vperm.xlu0 %793, %v166
    %v795 = vpop.permute.xlu0 %794
    %798 = vset.pattern.permute.xlu0 0
    %799 = vperm.xlu0 %798, %v167
    %v800 = vpop.permute.xlu0 %799
    %803 = vset.pattern.permute.xlu0 0
    %804 = vperm.xlu0 %803, %v168
    %v805 = vpop.permute.xlu0 %804
    %808 = vset.pattern.permute.xlu0 0
    %809 = vperm.xlu0 %808, %v169
    %v810 = vpop.permute.xlu0 %809
    %v813 = vlaneseq
    %v814 = vshrl.u32 %v813, 7
    %v815 = vsub.s32 0, %v814
    %v816 = vrot.slane %v170, %v815
    %v817 = vlaneseq
    %v818 = vshrl.u32 %v817, 7
    %v819 = vsub.s32 1, %v818
    %v820 = vrot.slane %v170, %v819
    %v821 = vlaneseq
    %v822 = vshrl.u32 %v821, 7
    %v823 = vsub.s32 2, %v822
    %v824 = vrot.slane %v170, %v823
    %v825 = vlaneseq
    %v826 = vshrl.u32 %v825, 7
    %v827 = vsub.s32 3, %v826
    %v828 = vrot.slane %v170, %v827
    %v833 = vmul.f32 %v175, %v816
    %v834 = vmul.f32 %v175, %v820
    %v835 = vmul.f32 %v175, %v824
    %v836 = vmul.f32 %v175, %v828
    %v837 = vmul.f32 %v180, %v816
    %v838 = vmul.f32 %v180, %v820
    %v839 = vmul.f32 %v180, %v824
    %v840 = vmul.f32 %v180, %v828
    %v841 = vmul.f32 %v185, %v816
    %v842 = vmul.f32 %v185, %v820
    %v843 = vmul.f32 %v185, %v824
    %v844 = vmul.f32 %v185, %v828
    %v845 = vmul.f32 %v190, %v816
    %v846 = vmul.f32 %v190, %v820
    %v847 = vmul.f32 %v190, %v824
    %v848 = vmul.f32 %v190, %v828
    %v849 = vmul.f32 %v195, %v816
    %v850 = vmul.f32 %v195, %v820
    %v851 = vmul.f32 %v195, %v824
    %v852 = vmul.f32 %v195, %v828
    %v853 = vmul.f32 %v200, %v816
    %v854 = vmul.f32 %v200, %v820
    %v855 = vmul.f32 %v200, %v824
    %v856 = vmul.f32 %v200, %v828
    %v857 = vmul.f32 %v205, %v816
    %v858 = vmul.f32 %v205, %v820
    %v859 = vmul.f32 %v205, %v824
    %v860 = vmul.f32 %v205, %v828
    %v861 = vmul.f32 %v210, %v816
    %v862 = vmul.f32 %v210, %v820
    %v863 = vmul.f32 %v210, %v824
    %v864 = vmul.f32 %v210, %v828
    %v865 = vmul.f32 %v215, %v816
    %v866 = vmul.f32 %v215, %v820
    %v867 = vmul.f32 %v215, %v824
    %v868 = vmul.f32 %v215, %v828
    %v869 = vmul.f32 %v220, %v816
    %v870 = vmul.f32 %v220, %v820
    %v871 = vmul.f32 %v220, %v824
    %v872 = vmul.f32 %v220, %v828
    %v873 = vmul.f32 %v225, %v816
    %v874 = vmul.f32 %v225, %v820
    %v875 = vmul.f32 %v225, %v824
    %v876 = vmul.f32 %v225, %v828
    %v877 = vmul.f32 %v230, %v816
    %v878 = vmul.f32 %v230, %v820
    %v879 = vmul.f32 %v230, %v824
    %v880 = vmul.f32 %v230, %v828
    %v881 = vmul.f32 %v235, %v816
    %v882 = vmul.f32 %v235, %v820
    %v883 = vmul.f32 %v235, %v824
    %v884 = vmul.f32 %v235, %v828
    %v885 = vmul.f32 %v240, %v816
    %v886 = vmul.f32 %v240, %v820
    %v887 = vmul.f32 %v240, %v824
    %v888 = vmul.f32 %v240, %v828
    %v889 = vmul.f32 %v245, %v816
    %v890 = vmul.f32 %v245, %v820
    %v891 = vmul.f32 %v245, %v824
    %v892 = vmul.f32 %v245, %v828
    %v893 = vmul.f32 %v250, %v816
    %v894 = vmul.f32 %v250, %v820
    %v895 = vmul.f32 %v250, %v824
    %v896 = vmul.f32 %v250, %v828
    %v897 = vmul.f32 %v255, %v816
    %v898 = vmul.f32 %v255, %v820
    %v899 = vmul.f32 %v255, %v824
    %v900 = vmul.f32 %v255, %v828
    %v901 = vmul.f32 %v260, %v816
    %v902 = vmul.f32 %v260, %v820
    %v903 = vmul.f32 %v260, %v824
    %v904 = vmul.f32 %v260, %v828
    %v905 = vmul.f32 %v265, %v816
    %v906 = vmul.f32 %v265, %v820
    %v907 = vmul.f32 %v265, %v824
    %v908 = vmul.f32 %v265, %v828
    %v909 = vmul.f32 %v270, %v816
    %v910 = vmul.f32 %v270, %v820
    %v911 = vmul.f32 %v270, %v824
    %v912 = vmul.f32 %v270, %v828
    %v913 = vmul.f32 %v275, %v816
    %v914 = vmul.f32 %v275, %v820
    %v915 = vmul.f32 %v275, %v824
    %v916 = vmul.f32 %v275, %v828
    %v917 = vmul.f32 %v280, %v816
    %v918 = vmul.f32 %v280, %v820
    %v919 = vmul.f32 %v280, %v824
    %v920 = vmul.f32 %v280, %v828
    %v921 = vmul.f32 %v285, %v816
    %v922 = vmul.f32 %v285, %v820
    %v923 = vmul.f32 %v285, %v824
    %v924 = vmul.f32 %v285, %v828
    %v925 = vmul.f32 %v290, %v816
    %v926 = vmul.f32 %v290, %v820
    %v927 = vmul.f32 %v290, %v824
    %v928 = vmul.f32 %v290, %v828
    %v929 = vmul.f32 %v295, %v816
    %v930 = vmul.f32 %v295, %v820
    %v931 = vmul.f32 %v295, %v824
    %v932 = vmul.f32 %v295, %v828
    %v933 = vmul.f32 %v300, %v816
    %v934 = vmul.f32 %v300, %v820
    %v935 = vmul.f32 %v300, %v824
    %v936 = vmul.f32 %v300, %v828
    %v937 = vmul.f32 %v305, %v816
    %v938 = vmul.f32 %v305, %v820
    %v939 = vmul.f32 %v305, %v824
    %v940 = vmul.f32 %v305, %v828
    %v941 = vmul.f32 %v310, %v816
    %v942 = vmul.f32 %v310, %v820
    %v943 = vmul.f32 %v310, %v824
    %v944 = vmul.f32 %v310, %v828
    %v945 = vmul.f32 %v315, %v816
    %v946 = vmul.f32 %v315, %v820
    %v947 = vmul.f32 %v315, %v824
    %v948 = vmul.f32 %v315, %v828
    %v949 = vmul.f32 %v320, %v816
    %v950 = vmul.f32 %v320, %v820
    %v951 = vmul.f32 %v320, %v824
    %v952 = vmul.f32 %v320, %v828
    %v953 = vmul.f32 %v325, %v816
    %v954 = vmul.f32 %v325, %v820
    %v955 = vmul.f32 %v325, %v824
    %v956 = vmul.f32 %v325, %v828
    %v957 = vmul.f32 %v330, %v816
    %v958 = vmul.f32 %v330, %v820
    %v959 = vmul.f32 %v330, %v824
    %v960 = vmul.f32 %v330, %v828
    %v961 = vmul.f32 %v335, %v816
    %v962 = vmul.f32 %v335, %v820
    %v963 = vmul.f32 %v335, %v824
    %v964 = vmul.f32 %v335, %v828
    %v965 = vmul.f32 %v340, %v816
    %v966 = vmul.f32 %v340, %v820
    %v967 = vmul.f32 %v340, %v824
    %v968 = vmul.f32 %v340, %v828
    %v969 = vmul.f32 %v345, %v816
    %v970 = vmul.f32 %v345, %v820
    %v971 = vmul.f32 %v345, %v824
    %v972 = vmul.f32 %v345, %v828
    %v973 = vmul.f32 %v350, %v816
    %v974 = vmul.f32 %v350, %v820
    %v975 = vmul.f32 %v350, %v824
    %v976 = vmul.f32 %v350, %v828
    %v977 = vmul.f32 %v355, %v816
    %v978 = vmul.f32 %v355, %v820
    %v979 = vmul.f32 %v355, %v824
    %v980 = vmul.f32 %v355, %v828
    %v981 = vmul.f32 %v360, %v816
    %v982 = vmul.f32 %v360, %v820
    %v983 = vmul.f32 %v360, %v824
    %v984 = vmul.f32 %v360, %v828
    %v985 = vmul.f32 %v365, %v816
    %v986 = vmul.f32 %v365, %v820
    %v987 = vmul.f32 %v365, %v824
    %v988 = vmul.f32 %v365, %v828
    %v989 = vmul.f32 %v370, %v816
    %v990 = vmul.f32 %v370, %v820
    %v991 = vmul.f32 %v370, %v824
    %v992 = vmul.f32 %v370, %v828
    %v993 = vmul.f32 %v375, %v816
    %v994 = vmul.f32 %v375, %v820
    %v995 = vmul.f32 %v375, %v824
    %v996 = vmul.f32 %v375, %v828
    %v997 = vmul.f32 %v380, %v816
    %v998 = vmul.f32 %v380, %v820
    %v999 = vmul.f32 %v380, %v824
    %v1000 = vmul.f32 %v380, %v828
    %v1001 = vmul.f32 %v385, %v816
    %v1002 = vmul.f32 %v385, %v820
    %v1003 = vmul.f32 %v385, %v824
    %v1004 = vmul.f32 %v385, %v828
    %v1005 = vmul.f32 %v390, %v816
    %v1006 = vmul.f32 %v390, %v820
    %v1007 = vmul.f32 %v390, %v824
    %v1008 = vmul.f32 %v390, %v828
    %v1009 = vmul.f32 %v395, %v816
    %v1010 = vmul.f32 %v395, %v820
    %v1011 = vmul.f32 %v395, %v824
    %v1012 = vmul.f32 %v395, %v828
    %v1013 = vmul.f32 %v400, %v816
    %v1014 = vmul.f32 %v400, %v820
    %v1015 = vmul.f32 %v400, %v824
    %v1016 = vmul.f32 %v400, %v828
    %v1017 = vmul.f32 %v405, %v816
    %v1018 = vmul.f32 %v405, %v820
    %v1019 = vmul.f32 %v405, %v824
    %v1020 = vmul.f32 %v405, %v828
    %v1021 = vmul.f32 %v410, %v816
    %v1022 = vmul.f32 %v410, %v820
    %v1023 = vmul.f32 %v410, %v824
    %v1024 = vmul.f32 %v410, %v828
    %v1025 = vmul.f32 %v415, %v816
    %v1026 = vmul.f32 %v415, %v820
    %v1027 = vmul.f32 %v415, %v824
    %v1028 = vmul.f32 %v415, %v828
    %v1029 = vmul.f32 %v420, %v816
    %v1030 = vmul.f32 %v420, %v820
    %v1031 = vmul.f32 %v420, %v824
    %v1032 = vmul.f32 %v420, %v828
    %v1033 = vmul.f32 %v425, %v816
    %v1034 = vmul.f32 %v425, %v820
    %v1035 = vmul.f32 %v425, %v824
    %v1036 = vmul.f32 %v425, %v828
    %v1037 = vmul.f32 %v430, %v816
    %v1038 = vmul.f32 %v430, %v820
    %v1039 = vmul.f32 %v430, %v824
    %v1040 = vmul.f32 %v430, %v828
    %v1041 = vmul.f32 %v435, %v816
    %v1042 = vmul.f32 %v435, %v820
    %v1043 = vmul.f32 %v435, %v824
    %v1044 = vmul.f32 %v435, %v828
    %v1045 = vmul.f32 %v440, %v816
    %v1046 = vmul.f32 %v440, %v820
    %v1047 = vmul.f32 %v440, %v824
    %v1048 = vmul.f32 %v440, %v828
    %v1049 = vmul.f32 %v445, %v816
    %v1050 = vmul.f32 %v445, %v820
    %v1051 = vmul.f32 %v445, %v824
    %v1052 = vmul.f32 %v445, %v828
    %v1053 = vmul.f32 %v450, %v816
    %v1054 = vmul.f32 %v450, %v820
    %v1055 = vmul.f32 %v450, %v824
    %v1056 = vmul.f32 %v450, %v828
    %v1057 = vmul.f32 %v455, %v816
    %v1058 = vmul.f32 %v455, %v820
    %v1059 = vmul.f32 %v455, %v824
    %v1060 = vmul.f32 %v455, %v828
    %v1061 = vmul.f32 %v460, %v816
    %v1062 = vmul.f32 %v460, %v820
    %v1063 = vmul.f32 %v460, %v824
    %v1064 = vmul.f32 %v460, %v828
    %v1065 = vmul.f32 %v465, %v816
    %v1066 = vmul.f32 %v465, %v820
    %v1067 = vmul.f32 %v465, %v824
    %v1068 = vmul.f32 %v465, %v828
    %v1069 = vmul.f32 %v470, %v816
    %v1070 = vmul.f32 %v470, %v820
    %v1071 = vmul.f32 %v470, %v824
    %v1072 = vmul.f32 %v470, %v828
    %v1073 = vmul.f32 %v475, %v816
    %v1074 = vmul.f32 %v475, %v820
    %v1075 = vmul.f32 %v475, %v824
    %v1076 = vmul.f32 %v475, %v828
    %v1077 = vmul.f32 %v480, %v816
    %v1078 = vmul.f32 %v480, %v820
    %v1079 = vmul.f32 %v480, %v824
    %v1080 = vmul.f32 %v480, %v828
    %v1081 = vmul.f32 %v485, %v816
    %v1082 = vmul.f32 %v485, %v820
    %v1083 = vmul.f32 %v485, %v824
    %v1084 = vmul.f32 %v485, %v828
    %v1085 = vmul.f32 %v490, %v816
    %v1086 = vmul.f32 %v490, %v820
    %v1087 = vmul.f32 %v490, %v824
    %v1088 = vmul.f32 %v490, %v828
    %v1089 = vmul.f32 %v495, %v816
    %v1090 = vmul.f32 %v495, %v820
    %v1091 = vmul.f32 %v495, %v824
    %v1092 = vmul.f32 %v495, %v828
    %v1093 = vmul.f32 %v500, %v816
    %v1094 = vmul.f32 %v500, %v820
    %v1095 = vmul.f32 %v500, %v824
    %v1096 = vmul.f32 %v500, %v828
    %v1097 = vmul.f32 %v505, %v816
    %v1098 = vmul.f32 %v505, %v820
    %v1099 = vmul.f32 %v505, %v824
    %v1100 = vmul.f32 %v505, %v828
    %v1101 = vmul.f32 %v510, %v816
    %v1102 = vmul.f32 %v510, %v820
    %v1103 = vmul.f32 %v510, %v824
    %v1104 = vmul.f32 %v510, %v828
    %v1105 = vmul.f32 %v515, %v816
    %v1106 = vmul.f32 %v515, %v820
    %v1107 = vmul.f32 %v515, %v824
    %v1108 = vmul.f32 %v515, %v828
    %v1109 = vmul.f32 %v520, %v816
    %v1110 = vmul.f32 %v520, %v820
    %v1111 = vmul.f32 %v520, %v824
    %v1112 = vmul.f32 %v520, %v828
    %v1113 = vmul.f32 %v525, %v816
    %v1114 = vmul.f32 %v525, %v820
    %v1115 = vmul.f32 %v525, %v824
    %v1116 = vmul.f32 %v525, %v828
    %v1117 = vmul.f32 %v530, %v816
    %v1118 = vmul.f32 %v530, %v820
    %v1119 = vmul.f32 %v530, %v824
    %v1120 = vmul.f32 %v530, %v828
    %v1121 = vmul.f32 %v535, %v816
    %v1122 = vmul.f32 %v535, %v820
    %v1123 = vmul.f32 %v535, %v824
    %v1124 = vmul.f32 %v535, %v828
    %v1125 = vmul.f32 %v540, %v816
    %v1126 = vmul.f32 %v540, %v820
    %v1127 = vmul.f32 %v540, %v824
    %v1128 = vmul.f32 %v540, %v828
    %v1129 = vmul.f32 %v545, %v816
    %v1130 = vmul.f32 %v545, %v820
    %v1131 = vmul.f32 %v545, %v824
    %v1132 = vmul.f32 %v545, %v828
    %v1133 = vmul.f32 %v550, %v816
    %v1134 = vmul.f32 %v550, %v820
    %v1135 = vmul.f32 %v550, %v824
    %v1136 = vmul.f32 %v550, %v828
    %v1137 = vmul.f32 %v555, %v816
    %v1138 = vmul.f32 %v555, %v820
    %v1139 = vmul.f32 %v555, %v824
    %v1140 = vmul.f32 %v555, %v828
    %v1141 = vmul.f32 %v560, %v816
    %v1142 = vmul.f32 %v560, %v820
    %v1143 = vmul.f32 %v560, %v824
    %v1144 = vmul.f32 %v560, %v828
    %v1145 = vmul.f32 %v565, %v816
    %v1146 = vmul.f32 %v565, %v820
    %v1147 = vmul.f32 %v565, %v824
    %v1148 = vmul.f32 %v565, %v828
    %v1149 = vmul.f32 %v570, %v816
    %v1150 = vmul.f32 %v570, %v820
    %v1151 = vmul.f32 %v570, %v824
    %v1152 = vmul.f32 %v570, %v828
    %v1153 = vmul.f32 %v575, %v816
    %v1154 = vmul.f32 %v575, %v820
    %v1155 = vmul.f32 %v575, %v824
    %v1156 = vmul.f32 %v575, %v828
    %v1157 = vmul.f32 %v580, %v816
    %v1158 = vmul.f32 %v580, %v820
    %v1159 = vmul.f32 %v580, %v824
    %v1160 = vmul.f32 %v580, %v828
    %v1161 = vmul.f32 %v585, %v816
    %v1162 = vmul.f32 %v585, %v820
    %v1163 = vmul.f32 %v585, %v824
    %v1164 = vmul.f32 %v585, %v828
    %v1165 = vmul.f32 %v590, %v816
    %v1166 = vmul.f32 %v590, %v820
    %v1167 = vmul.f32 %v590, %v824
    %v1168 = vmul.f32 %v590, %v828
    %v1169 = vmul.f32 %v595, %v816
    %v1170 = vmul.f32 %v595, %v820
    %v1171 = vmul.f32 %v595, %v824
    %v1172 = vmul.f32 %v595, %v828
    %v1173 = vmul.f32 %v600, %v816
    %v1174 = vmul.f32 %v600, %v820
    %v1175 = vmul.f32 %v600, %v824
    %v1176 = vmul.f32 %v600, %v828
    %v1177 = vmul.f32 %v605, %v816
    %v1178 = vmul.f32 %v605, %v820
    %v1179 = vmul.f32 %v605, %v824
    %v1180 = vmul.f32 %v605, %v828
    %v1181 = vmul.f32 %v610, %v816
    %v1182 = vmul.f32 %v610, %v820
    %v1183 = vmul.f32 %v610, %v824
    %v1184 = vmul.f32 %v610, %v828
    %v1185 = vmul.f32 %v615, %v816
    %v1186 = vmul.f32 %v615, %v820
    %v1187 = vmul.f32 %v615, %v824
    %v1188 = vmul.f32 %v615, %v828
    %v1189 = vmul.f32 %v620, %v816
    %v1190 = vmul.f32 %v620, %v820
    %v1191 = vmul.f32 %v620, %v824
    %v1192 = vmul.f32 %v620, %v828
    %v1193 = vmul.f32 %v625, %v816
    %v1194 = vmul.f32 %v625, %v820
    %v1195 = vmul.f32 %v625, %v824
    %v1196 = vmul.f32 %v625, %v828
    %v1197 = vmul.f32 %v630, %v816
    %v1198 = vmul.f32 %v630, %v820
    %v1199 = vmul.f32 %v630, %v824
    %v1200 = vmul.f32 %v630, %v828
    %v1201 = vmul.f32 %v635, %v816
    %v1202 = vmul.f32 %v635, %v820
    %v1203 = vmul.f32 %v635, %v824
    %v1204 = vmul.f32 %v635, %v828
    %v1205 = vmul.f32 %v640, %v816
    %v1206 = vmul.f32 %v640, %v820
    %v1207 = vmul.f32 %v640, %v824
    %v1208 = vmul.f32 %v640, %v828
    %v1209 = vmul.f32 %v645, %v816
    %v1210 = vmul.f32 %v645, %v820
    %v1211 = vmul.f32 %v645, %v824
    %v1212 = vmul.f32 %v645, %v828
    %v1213 = vmul.f32 %v650, %v816
    %v1214 = vmul.f32 %v650, %v820
    %v1215 = vmul.f32 %v650, %v824
    %v1216 = vmul.f32 %v650, %v828
    %v1217 = vmul.f32 %v655, %v816
    %v1218 = vmul.f32 %v655, %v820
    %v1219 = vmul.f32 %v655, %v824
    %v1220 = vmul.f32 %v655, %v828
    %v1221 = vmul.f32 %v660, %v816
    %v1222 = vmul.f32 %v660, %v820
    %v1223 = vmul.f32 %v660, %v824
    %v1224 = vmul.f32 %v660, %v828
    %v1225 = vmul.f32 %v665, %v816
    %v1226 = vmul.f32 %v665, %v820
    %v1227 = vmul.f32 %v665, %v824
    %v1228 = vmul.f32 %v665, %v828
    %v1229 = vmul.f32 %v670, %v816
    %v1230 = vmul.f32 %v670, %v820
    %v1231 = vmul.f32 %v670, %v824
    %v1232 = vmul.f32 %v670, %v828
    %v1233 = vmul.f32 %v675, %v816
    %v1234 = vmul.f32 %v675, %v820
    %v1235 = vmul.f32 %v675, %v824
    %v1236 = vmul.f32 %v675, %v828
    %v1237 = vmul.f32 %v680, %v816
    %v1238 = vmul.f32 %v680, %v820
    %v1239 = vmul.f32 %v680, %v824
    %v1240 = vmul.f32 %v680, %v828
    %v1241 = vmul.f32 %v685, %v816
    %v1242 = vmul.f32 %v685, %v820
    %v1243 = vmul.f32 %v685, %v824
    %v1244 = vmul.f32 %v685, %v828
    %v1245 = vmul.f32 %v690, %v816
    %v1246 = vmul.f32 %v690, %v820
    %v1247 = vmul.f32 %v690, %v824
    %v1248 = vmul.f32 %v690, %v828
    %v1249 = vmul.f32 %v695, %v816
    %v1250 = vmul.f32 %v695, %v820
    %v1251 = vmul.f32 %v695, %v824
    %v1252 = vmul.f32 %v695, %v828
    %v1253 = vmul.f32 %v700, %v816
    %v1254 = vmul.f32 %v700, %v820
    %v1255 = vmul.f32 %v700, %v824
    %v1256 = vmul.f32 %v700, %v828
    %v1257 = vmul.f32 %v705, %v816
    %v1258 = vmul.f32 %v705, %v820
    %v1259 = vmul.f32 %v705, %v824
    %v1260 = vmul.f32 %v705, %v828
    %v1261 = vmul.f32 %v710, %v816
    %v1262 = vmul.f32 %v710, %v820
    %v1263 = vmul.f32 %v710, %v824
    %v1264 = vmul.f32 %v710, %v828
    %v1265 = vmul.f32 %v715, %v816
    %v1266 = vmul.f32 %v715, %v820
    %v1267 = vmul.f32 %v715, %v824
    %v1268 = vmul.f32 %v715, %v828
    %v1269 = vmul.f32 %v720, %v816
    %v1270 = vmul.f32 %v720, %v820
    %v1271 = vmul.f32 %v720, %v824
    %v1272 = vmul.f32 %v720, %v828
    %v1273 = vmul.f32 %v725, %v816
    %v1274 = vmul.f32 %v725, %v820
    %v1275 = vmul.f32 %v725, %v824
    %v1276 = vmul.f32 %v725, %v828
    %v1277 = vmul.f32 %v730, %v816
    %v1278 = vmul.f32 %v730, %v820
    %v1279 = vmul.f32 %v730, %v824
    %v1280 = vmul.f32 %v730, %v828
    %v1281 = vmul.f32 %v735, %v816
    %v1282 = vmul.f32 %v735, %v820
    %v1283 = vmul.f32 %v735, %v824
    %v1284 = vmul.f32 %v735, %v828
    %v1285 = vmul.f32 %v740, %v816
    %v1286 = vmul.f32 %v740, %v820
    %v1287 = vmul.f32 %v740, %v824
    %v1288 = vmul.f32 %v740, %v828
    %v1289 = vmul.f32 %v745, %v816
    %v1290 = vmul.f32 %v745, %v820
    %v1291 = vmul.f32 %v745, %v824
    %v1292 = vmul.f32 %v745, %v828
    %v1293 = vmul.f32 %v750, %v816
    %v1294 = vmul.f32 %v750, %v820
    %v1295 = vmul.f32 %v750, %v824
    %v1296 = vmul.f32 %v750, %v828
    %v1297 = vmul.f32 %v755, %v816
    %v1298 = vmul.f32 %v755, %v820
    %v1299 = vmul.f32 %v755, %v824
    %v1300 = vmul.f32 %v755, %v828
    %v1301 = vmul.f32 %v760, %v816
    %v1302 = vmul.f32 %v760, %v820
    %v1303 = vmul.f32 %v760, %v824
    %v1304 = vmul.f32 %v760, %v828
    %v1305 = vmul.f32 %v765, %v816
    %v1306 = vmul.f32 %v765, %v820
    %v1307 = vmul.f32 %v765, %v824
    %v1308 = vmul.f32 %v765, %v828
    %v1309 = vmul.f32 %v770, %v816
    %v1310 = vmul.f32 %v770, %v820
    %v1311 = vmul.f32 %v770, %v824
    %v1312 = vmul.f32 %v770, %v828
    %v1313 = vmul.f32 %v775, %v816
    %v1314 = vmul.f32 %v775, %v820
    %v1315 = vmul.f32 %v775, %v824
    %v1316 = vmul.f32 %v775, %v828
    %v1317 = vmul.f32 %v780, %v816
    %v1318 = vmul.f32 %v780, %v820
    %v1319 = vmul.f32 %v780, %v824
    %v1320 = vmul.f32 %v780, %v828
    %v1321 = vmul.f32 %v785, %v816
    %v1322 = vmul.f32 %v785, %v820
    %v1323 = vmul.f32 %v785, %v824
    %v1324 = vmul.f32 %v785, %v828
    %v1325 = vmul.f32 %v790, %v816
    %v1326 = vmul.f32 %v790, %v820
    %v1327 = vmul.f32 %v790, %v824
    %v1328 = vmul.f32 %v790, %v828
    %v1329 = vmul.f32 %v795, %v816
    %v1330 = vmul.f32 %v795, %v820
    %v1331 = vmul.f32 %v795, %v824
    %v1332 = vmul.f32 %v795, %v828
    %v1333 = vmul.f32 %v800, %v816
    %v1334 = vmul.f32 %v800, %v820
    %v1335 = vmul.f32 %v800, %v824
    %v1336 = vmul.f32 %v800, %v828
    %v1337 = vmul.f32 %v805, %v816
    %v1338 = vmul.f32 %v805, %v820
    %v1339 = vmul.f32 %v805, %v824
    %v1340 = vmul.f32 %v805, %v828
    %v1341 = vmul.f32 %v810, %v816
    %v1342 = vmul.f32 %v810, %v820
    %v1343 = vmul.f32 %v810, %v824
    %v1344 = vmul.f32 %v810, %v828
    %v1346 = vlaneseq
    %v1347 = vshrl.u32 %v1346, 7
    %v1348 = vsub.s32 0, %v1347
    %v1349 = vrot.slane %v171, %v1348
    %v1350 = vlaneseq
    %v1351 = vshrl.u32 %v1350, 7
    %v1352 = vsub.s32 1, %v1351
    %v1353 = vrot.slane %v171, %v1352
    %v1354 = vlaneseq
    %v1355 = vshrl.u32 %v1354, 7
    %v1356 = vsub.s32 2, %v1355
    %v1357 = vrot.slane %v171, %v1356
    %v1358 = vlaneseq
    %v1359 = vshrl.u32 %v1358, 7
    %v1360 = vsub.s32 3, %v1359
    %v1361 = vrot.slane %v171, %v1360
    %v1366 = vadd.f32 %v1349, %v833
    %v1367 = vadd.f32 %v1353, %v834
    %v1368 = vadd.f32 %v1357, %v835
    %v1369 = vadd.f32 %v1361, %v836
    %v1370 = vadd.f32 %v1349, %v837
    %v1371 = vadd.f32 %v1353, %v838
    %v1372 = vadd.f32 %v1357, %v839
    %v1373 = vadd.f32 %v1361, %v840
    %v1374 = vadd.f32 %v1349, %v841
    %v1375 = vadd.f32 %v1353, %v842
    %v1376 = vadd.f32 %v1357, %v843
    %v1377 = vadd.f32 %v1361, %v844
    %v1378 = vadd.f32 %v1349, %v845
    %v1379 = vadd.f32 %v1353, %v846
    %v1380 = vadd.f32 %v1357, %v847
    %v1381 = vadd.f32 %v1361, %v848
    %v1382 = vadd.f32 %v1349, %v849
    %v1383 = vadd.f32 %v1353, %v850
    %v1384 = vadd.f32 %v1357, %v851
    %v1385 = vadd.f32 %v1361, %v852
    %v1386 = vadd.f32 %v1349, %v853
    %v1387 = vadd.f32 %v1353, %v854
    %v1388 = vadd.f32 %v1357, %v855
    %v1389 = vadd.f32 %v1361, %v856
    %v1390 = vadd.f32 %v1349, %v857
    %v1391 = vadd.f32 %v1353, %v858
    %v1392 = vadd.f32 %v1357, %v859
    %v1393 = vadd.f32 %v1361, %v860
    %v1394 = vadd.f32 %v1349, %v861
    %v1395 = vadd.f32 %v1353, %v862
    %v1396 = vadd.f32 %v1357, %v863
    %v1397 = vadd.f32 %v1361, %v864
    %v1398 = vadd.f32 %v1349, %v865
    %v1399 = vadd.f32 %v1353, %v866
    %v1400 = vadd.f32 %v1357, %v867
    %v1401 = vadd.f32 %v1361, %v868
    %v1402 = vadd.f32 %v1349, %v869
    %v1403 = vadd.f32 %v1353, %v870
    %v1404 = vadd.f32 %v1357, %v871
    %v1405 = vadd.f32 %v1361, %v872
    %v1406 = vadd.f32 %v1349, %v873
    %v1407 = vadd.f32 %v1353, %v874
    %v1408 = vadd.f32 %v1357, %v875
    %v1409 = vadd.f32 %v1361, %v876
    %v1410 = vadd.f32 %v1349, %v877
    %v1411 = vadd.f32 %v1353, %v878
    %v1412 = vadd.f32 %v1357, %v879
    %v1413 = vadd.f32 %v1361, %v880
    %v1414 = vadd.f32 %v1349, %v881
    %v1415 = vadd.f32 %v1353, %v882
    %v1416 = vadd.f32 %v1357, %v883
    %v1417 = vadd.f32 %v1361, %v884
    %v1418 = vadd.f32 %v1349, %v885
    %v1419 = vadd.f32 %v1353, %v886
    %v1420 = vadd.f32 %v1357, %v887
    %v1421 = vadd.f32 %v1361, %v888
    %v1422 = vadd.f32 %v1349, %v889
    %v1423 = vadd.f32 %v1353, %v890
    %v1424 = vadd.f32 %v1357, %v891
    %v1425 = vadd.f32 %v1361, %v892
    %v1426 = vadd.f32 %v1349, %v893
    %v1427 = vadd.f32 %v1353, %v894
    %v1428 = vadd.f32 %v1357, %v895
    %v1429 = vadd.f32 %v1361, %v896
    %v1430 = vadd.f32 %v1349, %v897
    %v1431 = vadd.f32 %v1353, %v898
    %v1432 = vadd.f32 %v1357, %v899
    %v1433 = vadd.f32 %v1361, %v900
    %v1434 = vadd.f32 %v1349, %v901
    %v1435 = vadd.f32 %v1353, %v902
    %v1436 = vadd.f32 %v1357, %v903
    %v1437 = vadd.f32 %v1361, %v904
    %v1438 = vadd.f32 %v1349, %v905
    %v1439 = vadd.f32 %v1353, %v906
    %v1440 = vadd.f32 %v1357, %v907
    %v1441 = vadd.f32 %v1361, %v908
    %v1442 = vadd.f32 %v1349, %v909
    %v1443 = vadd.f32 %v1353, %v910
    %v1444 = vadd.f32 %v1357, %v911
    %v1445 = vadd.f32 %v1361, %v912
    %v1446 = vadd.f32 %v1349, %v913
    %v1447 = vadd.f32 %v1353, %v914
    %v1448 = vadd.f32 %v1357, %v915
    %v1449 = vadd.f32 %v1361, %v916
    %v1450 = vadd.f32 %v1349, %v917
    %v1451 = vadd.f32 %v1353, %v918
    %v1452 = vadd.f32 %v1357, %v919
    %v1453 = vadd.f32 %v1361, %v920
    %v1454 = vadd.f32 %v1349, %v921
    %v1455 = vadd.f32 %v1353, %v922
    %v1456 = vadd.f32 %v1357, %v923
    %v1457 = vadd.f32 %v1361, %v924
    %v1458 = vadd.f32 %v1349, %v925
    %v1459 = vadd.f32 %v1353, %v926
    %v1460 = vadd.f32 %v1357, %v927
    %v1461 = vadd.f32 %v1361, %v928
    %v1462 = vadd.f32 %v1349, %v929
    %v1463 = vadd.f32 %v1353, %v930
    %v1464 = vadd.f32 %v1357, %v931
    %v1465 = vadd.f32 %v1361, %v932
    %v1466 = vadd.f32 %v1349, %v933
    %v1467 = vadd.f32 %v1353, %v934
    %v1468 = vadd.f32 %v1357, %v935
    %v1469 = vadd.f32 %v1361, %v936
    %v1470 = vadd.f32 %v1349, %v937
    %v1471 = vadd.f32 %v1353, %v938
    %v1472 = vadd.f32 %v1357, %v939
    %v1473 = vadd.f32 %v1361, %v940
    %v1474 = vadd.f32 %v1349, %v941
    %v1475 = vadd.f32 %v1353, %v942
    %v1476 = vadd.f32 %v1357, %v943
    %v1477 = vadd.f32 %v1361, %v944
    %v1478 = vadd.f32 %v1349, %v945
    %v1479 = vadd.f32 %v1353, %v946
    %v1480 = vadd.f32 %v1357, %v947
    %v1481 = vadd.f32 %v1361, %v948
    %v1482 = vadd.f32 %v1349, %v949
    %v1483 = vadd.f32 %v1353, %v950
    %v1484 = vadd.f32 %v1357, %v951
    %v1485 = vadd.f32 %v1361, %v952
    %v1486 = vadd.f32 %v1349, %v953
    %v1487 = vadd.f32 %v1353, %v954
    %v1488 = vadd.f32 %v1357, %v955
    %v1489 = vadd.f32 %v1361, %v956
    %v1490 = vadd.f32 %v1349, %v957
    %v1491 = vadd.f32 %v1353, %v958
    %v1492 = vadd.f32 %v1357, %v959
    %v1493 = vadd.f32 %v1361, %v960
    %v1494 = vadd.f32 %v1349, %v961
    %v1495 = vadd.f32 %v1353, %v962
    %v1496 = vadd.f32 %v1357, %v963
    %v1497 = vadd.f32 %v1361, %v964
    %v1498 = vadd.f32 %v1349, %v965
    %v1499 = vadd.f32 %v1353, %v966
    %v1500 = vadd.f32 %v1357, %v967
    %v1501 = vadd.f32 %v1361, %v968
    %v1502 = vadd.f32 %v1349, %v969
    %v1503 = vadd.f32 %v1353, %v970
    %v1504 = vadd.f32 %v1357, %v971
    %v1505 = vadd.f32 %v1361, %v972
    %v1506 = vadd.f32 %v1349, %v973
    %v1507 = vadd.f32 %v1353, %v974
    %v1508 = vadd.f32 %v1357, %v975
    %v1509 = vadd.f32 %v1361, %v976
    %v1510 = vadd.f32 %v1349, %v977
    %v1511 = vadd.f32 %v1353, %v978
    %v1512 = vadd.f32 %v1357, %v979
    %v1513 = vadd.f32 %v1361, %v980
    %v1514 = vadd.f32 %v1349, %v981
    %v1515 = vadd.f32 %v1353, %v982
    %v1516 = vadd.f32 %v1357, %v983
    %v1517 = vadd.f32 %v1361, %v984
    %v1518 = vadd.f32 %v1349, %v985
    %v1519 = vadd.f32 %v1353, %v986
    %v1520 = vadd.f32 %v1357, %v987
    %v1521 = vadd.f32 %v1361, %v988
    %v1522 = vadd.f32 %v1349, %v989
    %v1523 = vadd.f32 %v1353, %v990
    %v1524 = vadd.f32 %v1357, %v991
    %v1525 = vadd.f32 %v1361, %v992
    %v1526 = vadd.f32 %v1349, %v993
    %v1527 = vadd.f32 %v1353, %v994
    %v1528 = vadd.f32 %v1357, %v995
    %v1529 = vadd.f32 %v1361, %v996
    %v1530 = vadd.f32 %v1349, %v997
    %v1531 = vadd.f32 %v1353, %v998
    %v1532 = vadd.f32 %v1357, %v999
    %v1533 = vadd.f32 %v1361, %v1000
    %v1534 = vadd.f32 %v1349, %v1001
    %v1535 = vadd.f32 %v1353, %v1002
    %v1536 = vadd.f32 %v1357, %v1003
    %v1537 = vadd.f32 %v1361, %v1004
    %v1538 = vadd.f32 %v1349, %v1005
    %v1539 = vadd.f32 %v1353, %v1006
    %v1540 = vadd.f32 %v1357, %v1007
    %v1541 = vadd.f32 %v1361, %v1008
    %v1542 = vadd.f32 %v1349, %v1009
    %v1543 = vadd.f32 %v1353, %v1010
    %v1544 = vadd.f32 %v1357, %v1011
    %v1545 = vadd.f32 %v1361, %v1012
    %v1546 = vadd.f32 %v1349, %v1013
    %v1547 = vadd.f32 %v1353, %v1014
    %v1548 = vadd.f32 %v1357, %v1015
    %v1549 = vadd.f32 %v1361, %v1016
    %v1550 = vadd.f32 %v1349, %v1017
    %v1551 = vadd.f32 %v1353, %v1018
    %v1552 = vadd.f32 %v1357, %v1019
    %v1553 = vadd.f32 %v1361, %v1020
    %v1554 = vadd.f32 %v1349, %v1021
    %v1555 = vadd.f32 %v1353, %v1022
    %v1556 = vadd.f32 %v1357, %v1023
    %v1557 = vadd.f32 %v1361, %v1024
    %v1558 = vadd.f32 %v1349, %v1025
    %v1559 = vadd.f32 %v1353, %v1026
    %v1560 = vadd.f32 %v1357, %v1027
    %v1561 = vadd.f32 %v1361, %v1028
    %v1562 = vadd.f32 %v1349, %v1029
    %v1563 = vadd.f32 %v1353, %v1030
    %v1564 = vadd.f32 %v1357, %v1031
    %v1565 = vadd.f32 %v1361, %v1032
    %v1566 = vadd.f32 %v1349, %v1033
    %v1567 = vadd.f32 %v1353, %v1034
    %v1568 = vadd.f32 %v1357, %v1035
    %v1569 = vadd.f32 %v1361, %v1036
    %v1570 = vadd.f32 %v1349, %v1037
    %v1571 = vadd.f32 %v1353, %v1038
    %v1572 = vadd.f32 %v1357, %v1039
    %v1573 = vadd.f32 %v1361, %v1040
    %v1574 = vadd.f32 %v1349, %v1041
    %v1575 = vadd.f32 %v1353, %v1042
    %v1576 = vadd.f32 %v1357, %v1043
    %v1577 = vadd.f32 %v1361, %v1044
    %v1578 = vadd.f32 %v1349, %v1045
    %v1579 = vadd.f32 %v1353, %v1046
    %v1580 = vadd.f32 %v1357, %v1047
    %v1581 = vadd.f32 %v1361, %v1048
    %v1582 = vadd.f32 %v1349, %v1049
    %v1583 = vadd.f32 %v1353, %v1050
    %v1584 = vadd.f32 %v1357, %v1051
    %v1585 = vadd.f32 %v1361, %v1052
    %v1586 = vadd.f32 %v1349, %v1053
    %v1587 = vadd.f32 %v1353, %v1054
    %v1588 = vadd.f32 %v1357, %v1055
    %v1589 = vadd.f32 %v1361, %v1056
    %v1590 = vadd.f32 %v1349, %v1057
    %v1591 = vadd.f32 %v1353, %v1058
    %v1592 = vadd.f32 %v1357, %v1059
    %v1593 = vadd.f32 %v1361, %v1060
    %v1594 = vadd.f32 %v1349, %v1061
    %v1595 = vadd.f32 %v1353, %v1062
    %v1596 = vadd.f32 %v1357, %v1063
    %v1597 = vadd.f32 %v1361, %v1064
    %v1598 = vadd.f32 %v1349, %v1065
    %v1599 = vadd.f32 %v1353, %v1066
    %v1600 = vadd.f32 %v1357, %v1067
    %v1601 = vadd.f32 %v1361, %v1068
    %v1602 = vadd.f32 %v1349, %v1069
    %v1603 = vadd.f32 %v1353, %v1070
    %v1604 = vadd.f32 %v1357, %v1071
    %v1605 = vadd.f32 %v1361, %v1072
    %v1606 = vadd.f32 %v1349, %v1073
    %v1607 = vadd.f32 %v1353, %v1074
    %v1608 = vadd.f32 %v1357, %v1075
    %v1609 = vadd.f32 %v1361, %v1076
    %v1610 = vadd.f32 %v1349, %v1077
    %v1611 = vadd.f32 %v1353, %v1078
    %v1612 = vadd.f32 %v1357, %v1079
    %v1613 = vadd.f32 %v1361, %v1080
    %v1614 = vadd.f32 %v1349, %v1081
    %v1615 = vadd.f32 %v1353, %v1082
    %v1616 = vadd.f32 %v1357, %v1083
    %v1617 = vadd.f32 %v1361, %v1084
    %v1618 = vadd.f32 %v1349, %v1085
    %v1619 = vadd.f32 %v1353, %v1086
    %v1620 = vadd.f32 %v1357, %v1087
    %v1621 = vadd.f32 %v1361, %v1088
    %v1622 = vadd.f32 %v1349, %v1089
    %v1623 = vadd.f32 %v1353, %v1090
    %v1624 = vadd.f32 %v1357, %v1091
    %v1625 = vadd.f32 %v1361, %v1092
    %v1626 = vadd.f32 %v1349, %v1093
    %v1627 = vadd.f32 %v1353, %v1094
    %v1628 = vadd.f32 %v1357, %v1095
    %v1629 = vadd.f32 %v1361, %v1096
    %v1630 = vadd.f32 %v1349, %v1097
    %v1631 = vadd.f32 %v1353, %v1098
    %v1632 = vadd.f32 %v1357, %v1099
    %v1633 = vadd.f32 %v1361, %v1100
    %v1634 = vadd.f32 %v1349, %v1101
    %v1635 = vadd.f32 %v1353, %v1102
    %v1636 = vadd.f32 %v1357, %v1103
    %v1637 = vadd.f32 %v1361, %v1104
    %v1638 = vadd.f32 %v1349, %v1105
    %v1639 = vadd.f32 %v1353, %v1106
    %v1640 = vadd.f32 %v1357, %v1107
    %v1641 = vadd.f32 %v1361, %v1108
    %v1642 = vadd.f32 %v1349, %v1109
    %v1643 = vadd.f32 %v1353, %v1110
    %v1644 = vadd.f32 %v1357, %v1111
    %v1645 = vadd.f32 %v1361, %v1112
    %v1646 = vadd.f32 %v1349, %v1113
    %v1647 = vadd.f32 %v1353, %v1114
    %v1648 = vadd.f32 %v1357, %v1115
    %v1649 = vadd.f32 %v1361, %v1116
    %v1650 = vadd.f32 %v1349, %v1117
    %v1651 = vadd.f32 %v1353, %v1118
    %v1652 = vadd.f32 %v1357, %v1119
    %v1653 = vadd.f32 %v1361, %v1120
    %v1654 = vadd.f32 %v1349, %v1121
    %v1655 = vadd.f32 %v1353, %v1122
    %v1656 = vadd.f32 %v1357, %v1123
    %v1657 = vadd.f32 %v1361, %v1124
    %v1658 = vadd.f32 %v1349, %v1125
    %v1659 = vadd.f32 %v1353, %v1126
    %v1660 = vadd.f32 %v1357, %v1127
    %v1661 = vadd.f32 %v1361, %v1128
    %v1662 = vadd.f32 %v1349, %v1129
    %v1663 = vadd.f32 %v1353, %v1130
    %v1664 = vadd.f32 %v1357, %v1131
    %v1665 = vadd.f32 %v1361, %v1132
    %v1666 = vadd.f32 %v1349, %v1133
    %v1667 = vadd.f32 %v1353, %v1134
    %v1668 = vadd.f32 %v1357, %v1135
    %v1669 = vadd.f32 %v1361, %v1136
    %v1670 = vadd.f32 %v1349, %v1137
    %v1671 = vadd.f32 %v1353, %v1138
    %v1672 = vadd.f32 %v1357, %v1139
    %v1673 = vadd.f32 %v1361, %v1140
    %v1674 = vadd.f32 %v1349, %v1141
    %v1675 = vadd.f32 %v1353, %v1142
    %v1676 = vadd.f32 %v1357, %v1143
    %v1677 = vadd.f32 %v1361, %v1144
    %v1678 = vadd.f32 %v1349, %v1145
    %v1679 = vadd.f32 %v1353, %v1146
    %v1680 = vadd.f32 %v1357, %v1147
    %v1681 = vadd.f32 %v1361, %v1148
    %v1682 = vadd.f32 %v1349, %v1149
    %v1683 = vadd.f32 %v1353, %v1150
    %v1684 = vadd.f32 %v1357, %v1151
    %v1685 = vadd.f32 %v1361, %v1152
    %v1686 = vadd.f32 %v1349, %v1153
    %v1687 = vadd.f32 %v1353, %v1154
    %v1688 = vadd.f32 %v1357, %v1155
    %v1689 = vadd.f32 %v1361, %v1156
    %v1690 = vadd.f32 %v1349, %v1157
    %v1691 = vadd.f32 %v1353, %v1158
    %v1692 = vadd.f32 %v1357, %v1159
    %v1693 = vadd.f32 %v1361, %v1160
    %v1694 = vadd.f32 %v1349, %v1161
    %v1695 = vadd.f32 %v1353, %v1162
    %v1696 = vadd.f32 %v1357, %v1163
    %v1697 = vadd.f32 %v1361, %v1164
    %v1698 = vadd.f32 %v1349, %v1165
    %v1699 = vadd.f32 %v1353, %v1166
    %v1700 = vadd.f32 %v1357, %v1167
    %v1701 = vadd.f32 %v1361, %v1168
    %v1702 = vadd.f32 %v1349, %v1169
    %v1703 = vadd.f32 %v1353, %v1170
    %v1704 = vadd.f32 %v1357, %v1171
    %v1705 = vadd.f32 %v1361, %v1172
    %v1706 = vadd.f32 %v1349, %v1173
    %v1707 = vadd.f32 %v1353, %v1174
    %v1708 = vadd.f32 %v1357, %v1175
    %v1709 = vadd.f32 %v1361, %v1176
    %v1710 = vadd.f32 %v1349, %v1177
    %v1711 = vadd.f32 %v1353, %v1178
    %v1712 = vadd.f32 %v1357, %v1179
    %v1713 = vadd.f32 %v1361, %v1180
    %v1714 = vadd.f32 %v1349, %v1181
    %v1715 = vadd.f32 %v1353, %v1182
    %v1716 = vadd.f32 %v1357, %v1183
    %v1717 = vadd.f32 %v1361, %v1184
    %v1718 = vadd.f32 %v1349, %v1185
    %v1719 = vadd.f32 %v1353, %v1186
    %v1720 = vadd.f32 %v1357, %v1187
    %v1721 = vadd.f32 %v1361, %v1188
    %v1722 = vadd.f32 %v1349, %v1189
    %v1723 = vadd.f32 %v1353, %v1190
    %v1724 = vadd.f32 %v1357, %v1191
    %v1725 = vadd.f32 %v1361, %v1192
    %v1726 = vadd.f32 %v1349, %v1193
    %v1727 = vadd.f32 %v1353, %v1194
    %v1728 = vadd.f32 %v1357, %v1195
    %v1729 = vadd.f32 %v1361, %v1196
    %v1730 = vadd.f32 %v1349, %v1197
    %v1731 = vadd.f32 %v1353, %v1198
    %v1732 = vadd.f32 %v1357, %v1199
    %v1733 = vadd.f32 %v1361, %v1200
    %v1734 = vadd.f32 %v1349, %v1201
    %v1735 = vadd.f32 %v1353, %v1202
    %v1736 = vadd.f32 %v1357, %v1203
    %v1737 = vadd.f32 %v1361, %v1204
    %v1738 = vadd.f32 %v1349, %v1205
    %v1739 = vadd.f32 %v1353, %v1206
    %v1740 = vadd.f32 %v1357, %v1207
    %v1741 = vadd.f32 %v1361, %v1208
    %v1742 = vadd.f32 %v1349, %v1209
    %v1743 = vadd.f32 %v1353, %v1210
    %v1744 = vadd.f32 %v1357, %v1211
    %v1745 = vadd.f32 %v1361, %v1212
    %v1746 = vadd.f32 %v1349, %v1213
    %v1747 = vadd.f32 %v1353, %v1214
    %v1748 = vadd.f32 %v1357, %v1215
    %v1749 = vadd.f32 %v1361, %v1216
    %v1750 = vadd.f32 %v1349, %v1217
    %v1751 = vadd.f32 %v1353, %v1218
    %v1752 = vadd.f32 %v1357, %v1219
    %v1753 = vadd.f32 %v1361, %v1220
    %v1754 = vadd.f32 %v1349, %v1221
    %v1755 = vadd.f32 %v1353, %v1222
    %v1756 = vadd.f32 %v1357, %v1223
    %v1757 = vadd.f32 %v1361, %v1224
    %v1758 = vadd.f32 %v1349, %v1225
    %v1759 = vadd.f32 %v1353, %v1226
    %v1760 = vadd.f32 %v1357, %v1227
    %v1761 = vadd.f32 %v1361, %v1228
    %v1762 = vadd.f32 %v1349, %v1229
    %v1763 = vadd.f32 %v1353, %v1230
    %v1764 = vadd.f32 %v1357, %v1231
    %v1765 = vadd.f32 %v1361, %v1232
    %v1766 = vadd.f32 %v1349, %v1233
    %v1767 = vadd.f32 %v1353, %v1234
    %v1768 = vadd.f32 %v1357, %v1235
    %v1769 = vadd.f32 %v1361, %v1236
    %v1770 = vadd.f32 %v1349, %v1237
    %v1771 = vadd.f32 %v1353, %v1238
    %v1772 = vadd.f32 %v1357, %v1239
    %v1773 = vadd.f32 %v1361, %v1240
    %v1774 = vadd.f32 %v1349, %v1241
    %v1775 = vadd.f32 %v1353, %v1242
    %v1776 = vadd.f32 %v1357, %v1243
    %v1777 = vadd.f32 %v1361, %v1244
    %v1778 = vadd.f32 %v1349, %v1245
    %v1779 = vadd.f32 %v1353, %v1246
    %v1780 = vadd.f32 %v1357, %v1247
    %v1781 = vadd.f32 %v1361, %v1248
    %v1782 = vadd.f32 %v1349, %v1249
    %v1783 = vadd.f32 %v1353, %v1250
    %v1784 = vadd.f32 %v1357, %v1251
    %v1785 = vadd.f32 %v1361, %v1252
    %v1786 = vadd.f32 %v1349, %v1253
    %v1787 = vadd.f32 %v1353, %v1254
    %v1788 = vadd.f32 %v1357, %v1255
    %v1789 = vadd.f32 %v1361, %v1256
    %v1790 = vadd.f32 %v1349, %v1257
    %v1791 = vadd.f32 %v1353, %v1258
    %v1792 = vadd.f32 %v1357, %v1259
    %v1793 = vadd.f32 %v1361, %v1260
    %v1794 = vadd.f32 %v1349, %v1261
    %v1795 = vadd.f32 %v1353, %v1262
    %v1796 = vadd.f32 %v1357, %v1263
    %v1797 = vadd.f32 %v1361, %v1264
    %v1798 = vadd.f32 %v1349, %v1265
    %v1799 = vadd.f32 %v1353, %v1266
    %v1800 = vadd.f32 %v1357, %v1267
    %v1801 = vadd.f32 %v1361, %v1268
    %v1802 = vadd.f32 %v1349, %v1269
    %v1803 = vadd.f32 %v1353, %v1270
    %v1804 = vadd.f32 %v1357, %v1271
    %v1805 = vadd.f32 %v1361, %v1272
    %v1806 = vadd.f32 %v1349, %v1273
    %v1807 = vadd.f32 %v1353, %v1274
    %v1808 = vadd.f32 %v1357, %v1275
    %v1809 = vadd.f32 %v1361, %v1276
    %v1810 = vadd.f32 %v1349, %v1277
    %v1811 = vadd.f32 %v1353, %v1278
    %v1812 = vadd.f32 %v1357, %v1279
    %v1813 = vadd.f32 %v1361, %v1280
    %v1814 = vadd.f32 %v1349, %v1281
    %v1815 = vadd.f32 %v1353, %v1282
    %v1816 = vadd.f32 %v1357, %v1283
    %v1817 = vadd.f32 %v1361, %v1284
    %v1818 = vadd.f32 %v1349, %v1285
    %v1819 = vadd.f32 %v1353, %v1286
    %v1820 = vadd.f32 %v1357, %v1287
    %v1821 = vadd.f32 %v1361, %v1288
    %v1822 = vadd.f32 %v1349, %v1289
    %v1823 = vadd.f32 %v1353, %v1290
    %v1824 = vadd.f32 %v1357, %v1291
    %v1825 = vadd.f32 %v1361, %v1292
    %v1826 = vadd.f32 %v1349, %v1293
    %v1827 = vadd.f32 %v1353, %v1294
    %v1828 = vadd.f32 %v1357, %v1295
    %v1829 = vadd.f32 %v1361, %v1296
    %v1830 = vadd.f32 %v1349, %v1297
    %v1831 = vadd.f32 %v1353, %v1298
    %v1832 = vadd.f32 %v1357, %v1299
    %v1833 = vadd.f32 %v1361, %v1300
    %v1834 = vadd.f32 %v1349, %v1301
    %v1835 = vadd.f32 %v1353, %v1302
    %v1836 = vadd.f32 %v1357, %v1303
    %v1837 = vadd.f32 %v1361, %v1304
    %v1838 = vadd.f32 %v1349, %v1305
    %v1839 = vadd.f32 %v1353, %v1306
    %v1840 = vadd.f32 %v1357, %v1307
    %v1841 = vadd.f32 %v1361, %v1308
    %v1842 = vadd.f32 %v1349, %v1309
    %v1843 = vadd.f32 %v1353, %v1310
    %v1844 = vadd.f32 %v1357, %v1311
    %v1845 = vadd.f32 %v1361, %v1312
    %v1846 = vadd.f32 %v1349, %v1313
    %v1847 = vadd.f32 %v1353, %v1314
    %v1848 = vadd.f32 %v1357, %v1315
    %v1849 = vadd.f32 %v1361, %v1316
    %v1850 = vadd.f32 %v1349, %v1317
    %v1851 = vadd.f32 %v1353, %v1318
    %v1852 = vadd.f32 %v1357, %v1319
    %v1853 = vadd.f32 %v1361, %v1320
    %v1854 = vadd.f32 %v1349, %v1321
    %v1855 = vadd.f32 %v1353, %v1322
    %v1856 = vadd.f32 %v1357, %v1323
    %v1857 = vadd.f32 %v1361, %v1324
    %v1858 = vadd.f32 %v1349, %v1325
    %v1859 = vadd.f32 %v1353, %v1326
    %v1860 = vadd.f32 %v1357, %v1327
    %v1861 = vadd.f32 %v1361, %v1328
    %v1862 = vadd.f32 %v1349, %v1329
    %v1863 = vadd.f32 %v1353, %v1330
    %v1864 = vadd.f32 %v1357, %v1331
    %v1865 = vadd.f32 %v1361, %v1332
    %v1866 = vadd.f32 %v1349, %v1333
    %v1867 = vadd.f32 %v1353, %v1334
    %v1868 = vadd.f32 %v1357, %v1335
    %v1869 = vadd.f32 %v1361, %v1336
    %v1870 = vadd.f32 %v1349, %v1337
    %v1871 = vadd.f32 %v1353, %v1338
    %v1872 = vadd.f32 %v1357, %v1339
    %v1873 = vadd.f32 %v1361, %v1340
    %v1874 = vadd.f32 %v1349, %v1341
    %v1875 = vadd.f32 %v1353, %v1342
    %v1876 = vadd.f32 %v1357, %v1343
    %v1877 = vadd.f32 %v1361, %v1344
    %v1878 = vmin.f32 %v1366, %v1367
    %v1879 = vmin.f32 %v1878, %v1368
    %v1880 = vmin.f32 %v1879, %v1369
    %1881 = vmin.xlane.f32.xlu0 %v1880
    %v1882 = vpop.xlane.xlu0 %1881
    %v1883 = vmin.f32 %v1370, %v1371
    %v1884 = vmin.f32 %v1883, %v1372
    %v1885 = vmin.f32 %v1884, %v1373
    %1886 = vmin.xlane.f32.xlu0 %v1885
    %v1887 = vpop.xlane.xlu0 %1886
    %v1888 = vmin.f32 %v1374, %v1375
    %v1889 = vmin.f32 %v1888, %v1376
    %v1890 = vmin.f32 %v1889, %v1377
    %1891 = vmin.xlane.f32.xlu0 %v1890
    %v1892 = vpop.xlane.xlu0 %1891
    %v1893 = vmin.f32 %v1378, %v1379
    %v1894 = vmin.f32 %v1893, %v1380
    %v1895 = vmin.f32 %v1894, %v1381
    %1896 = vmin.xlane.f32.xlu0 %v1895
    %v1897 = vpop.xlane.xlu0 %1896
    %v1898 = vmin.f32 %v1382, %v1383
    %v1899 = vmin.f32 %v1898, %v1384
    %v1900 = vmin.f32 %v1899, %v1385
    %1901 = vmin.xlane.f32.xlu0 %v1900
    %v1902 = vpop.xlane.xlu0 %1901
    %v1903 = vmin.f32 %v1386, %v1387
    %v1904 = vmin.f32 %v1903, %v1388
    %v1905 = vmin.f32 %v1904, %v1389
    %1906 = vmin.xlane.f32.xlu0 %v1905
    %v1907 = vpop.xlane.xlu0 %1906
    %v1908 = vmin.f32 %v1390, %v1391
    %v1909 = vmin.f32 %v1908, %v1392
    %v1910 = vmin.f32 %v1909, %v1393
    %1911 = vmin.xlane.f32.xlu0 %v1910
    %v1912 = vpop.xlane.xlu0 %1911
    %v1913 = vmin.f32 %v1394, %v1395
    %v1914 = vmin.f32 %v1913, %v1396
    %v1915 = vmin.f32 %v1914, %v1397
    %1916 = vmin.xlane.f32.xlu0 %v1915
    %v1917 = vpop.xlane.xlu0 %1916
    %v1918 = vmin.f32 %v1398, %v1399
    %v1919 = vmin.f32 %v1918, %v1400
    %v1920 = vmin.f32 %v1919, %v1401
    %1921 = vmin.xlane.f32.xlu0 %v1920
    %v1922 = vpop.xlane.xlu0 %1921
    %v1923 = vmin.f32 %v1402, %v1403
    %v1924 = vmin.f32 %v1923, %v1404
    %v1925 = vmin.f32 %v1924, %v1405
    %1926 = vmin.xlane.f32.xlu0 %v1925
    %v1927 = vpop.xlane.xlu0 %1926
    %v1928 = vmin.f32 %v1406, %v1407
    %v1929 = vmin.f32 %v1928, %v1408
    %v1930 = vmin.f32 %v1929, %v1409
    %1931 = vmin.xlane.f32.xlu0 %v1930
    %v1932 = vpop.xlane.xlu0 %1931
    %v1933 = vmin.f32 %v1410, %v1411
    %v1934 = vmin.f32 %v1933, %v1412
    %v1935 = vmin.f32 %v1934, %v1413
    %1936 = vmin.xlane.f32.xlu0 %v1935
    %v1937 = vpop.xlane.xlu0 %1936
    %v1938 = vmin.f32 %v1414, %v1415
    %v1939 = vmin.f32 %v1938, %v1416
    %v1940 = vmin.f32 %v1939, %v1417
    %1941 = vmin.xlane.f32.xlu0 %v1940
    %v1942 = vpop.xlane.xlu0 %1941
    %v1943 = vmin.f32 %v1418, %v1419
    %v1944 = vmin.f32 %v1943, %v1420
    %v1945 = vmin.f32 %v1944, %v1421
    %1946 = vmin.xlane.f32.xlu0 %v1945
    %v1947 = vpop.xlane.xlu0 %1946
    %v1948 = vmin.f32 %v1422, %v1423
    %v1949 = vmin.f32 %v1948, %v1424
    %v1950 = vmin.f32 %v1949, %v1425
    %1951 = vmin.xlane.f32.xlu0 %v1950
    %v1952 = vpop.xlane.xlu0 %1951
    %v1953 = vmin.f32 %v1426, %v1427
    %v1954 = vmin.f32 %v1953, %v1428
    %v1955 = vmin.f32 %v1954, %v1429
    %1956 = vmin.xlane.f32.xlu0 %v1955
    %v1957 = vpop.xlane.xlu0 %1956
    %v1958 = vmin.f32 %v1430, %v1431
    %v1959 = vmin.f32 %v1958, %v1432
    %v1960 = vmin.f32 %v1959, %v1433
    %1961 = vmin.xlane.f32.xlu0 %v1960
    %v1962 = vpop.xlane.xlu0 %1961
    %v1963 = vmin.f32 %v1434, %v1435
    %v1964 = vmin.f32 %v1963, %v1436
    %v1965 = vmin.f32 %v1964, %v1437
    %1966 = vmin.xlane.f32.xlu0 %v1965
    %v1967 = vpop.xlane.xlu0 %1966
    %v1968 = vmin.f32 %v1438, %v1439
    %v1969 = vmin.f32 %v1968, %v1440
    %v1970 = vmin.f32 %v1969, %v1441
    %1971 = vmin.xlane.f32.xlu0 %v1970
    %v1972 = vpop.xlane.xlu0 %1971
    %v1973 = vmin.f32 %v1442, %v1443
    %v1974 = vmin.f32 %v1973, %v1444
    %v1975 = vmin.f32 %v1974, %v1445
    %1976 = vmin.xlane.f32.xlu0 %v1975
    %v1977 = vpop.xlane.xlu0 %1976
    %v1978 = vmin.f32 %v1446, %v1447
    %v1979 = vmin.f32 %v1978, %v1448
    %v1980 = vmin.f32 %v1979, %v1449
    %1981 = vmin.xlane.f32.xlu0 %v1980
    %v1982 = vpop.xlane.xlu0 %1981
    %v1983 = vmin.f32 %v1450, %v1451
    %v1984 = vmin.f32 %v1983, %v1452
    %v1985 = vmin.f32 %v1984, %v1453
    %1986 = vmin.xlane.f32.xlu0 %v1985
    %v1987 = vpop.xlane.xlu0 %1986
    %v1988 = vmin.f32 %v1454, %v1455
    %v1989 = vmin.f32 %v1988, %v1456
    %v1990 = vmin.f32 %v1989, %v1457
    %1991 = vmin.xlane.f32.xlu0 %v1990
    %v1992 = vpop.xlane.xlu0 %1991
    %v1993 = vmin.f32 %v1458, %v1459
    %v1994 = vmin.f32 %v1993, %v1460
    %v1995 = vmin.f32 %v1994, %v1461
    %1996 = vmin.xlane.f32.xlu0 %v1995
    %v1997 = vpop.xlane.xlu0 %1996
    %v1998 = vmin.f32 %v1462, %v1463
    %v1999 = vmin.f32 %v1998, %v1464
    %v2000 = vmin.f32 %v1999, %v1465
    %2001 = vmin.xlane.f32.xlu0 %v2000
    %v2002 = vpop.xlane.xlu0 %2001
    %v2003 = vmin.f32 %v1466, %v1467
    %v2004 = vmin.f32 %v2003, %v1468
    %v2005 = vmin.f32 %v2004, %v1469
    %2006 = vmin.xlane.f32.xlu0 %v2005
    %v2007 = vpop.xlane.xlu0 %2006
    %v2008 = vmin.f32 %v1470, %v1471
    %v2009 = vmin.f32 %v2008, %v1472
    %v2010 = vmin.f32 %v2009, %v1473
    %2011 = vmin.xlane.f32.xlu0 %v2010
    %v2012 = vpop.xlane.xlu0 %2011
    %v2013 = vmin.f32 %v1474, %v1475
    %v2014 = vmin.f32 %v2013, %v1476
    %v2015 = vmin.f32 %v2014, %v1477
    %2016 = vmin.xlane.f32.xlu0 %v2015
    %v2017 = vpop.xlane.xlu0 %2016
    %v2018 = vmin.f32 %v1478, %v1479
    %v2019 = vmin.f32 %v2018, %v1480
    %v2020 = vmin.f32 %v2019, %v1481
    %2021 = vmin.xlane.f32.xlu0 %v2020
    %v2022 = vpop.xlane.xlu0 %2021
    %v2023 = vmin.f32 %v1482, %v1483
    %v2024 = vmin.f32 %v2023, %v1484
    %v2025 = vmin.f32 %v2024, %v1485
    %2026 = vmin.xlane.f32.xlu0 %v2025
    %v2027 = vpop.xlane.xlu0 %2026
    %v2028 = vmin.f32 %v1486, %v1487
    %v2029 = vmin.f32 %v2028, %v1488
    %v2030 = vmin.f32 %v2029, %v1489
    %2031 = vmin.xlane.f32.xlu0 %v2030
    %v2032 = vpop.xlane.xlu0 %2031
    %v2033 = vmin.f32 %v1490, %v1491
    %v2034 = vmin.f32 %v2033, %v1492
    %v2035 = vmin.f32 %v2034, %v1493
    %2036 = vmin.xlane.f32.xlu0 %v2035
    %v2037 = vpop.xlane.xlu0 %2036
    %v2038 = vmin.f32 %v1494, %v1495
    %v2039 = vmin.f32 %v2038, %v1496
    %v2040 = vmin.f32 %v2039, %v1497
    %2041 = vmin.xlane.f32.xlu0 %v2040
    %v2042 = vpop.xlane.xlu0 %2041
    %v2043 = vmin.f32 %v1498, %v1499
    %v2044 = vmin.f32 %v2043, %v1500
    %v2045 = vmin.f32 %v2044, %v1501
    %2046 = vmin.xlane.f32.xlu0 %v2045
    %v2047 = vpop.xlane.xlu0 %2046
    %v2048 = vmin.f32 %v1502, %v1503
    %v2049 = vmin.f32 %v2048, %v1504
    %v2050 = vmin.f32 %v2049, %v1505
    %2051 = vmin.xlane.f32.xlu0 %v2050
    %v2052 = vpop.xlane.xlu0 %2051
    %v2053 = vmin.f32 %v1506, %v1507
    %v2054 = vmin.f32 %v2053, %v1508
    %v2055 = vmin.f32 %v2054, %v1509
    %2056 = vmin.xlane.f32.xlu0 %v2055
    %v2057 = vpop.xlane.xlu0 %2056
    %v2058 = vmin.f32 %v1510, %v1511
    %v2059 = vmin.f32 %v2058, %v1512
    %v2060 = vmin.f32 %v2059, %v1513
    %2061 = vmin.xlane.f32.xlu0 %v2060
    %v2062 = vpop.xlane.xlu0 %2061
    %v2063 = vmin.f32 %v1514, %v1515
    %v2064 = vmin.f32 %v2063, %v1516
    %v2065 = vmin.f32 %v2064, %v1517
    %2066 = vmin.xlane.f32.xlu0 %v2065
    %v2067 = vpop.xlane.xlu0 %2066
    %v2068 = vmin.f32 %v1518, %v1519
    %v2069 = vmin.f32 %v2068, %v1520
    %v2070 = vmin.f32 %v2069, %v1521
    %2071 = vmin.xlane.f32.xlu0 %v2070
    %v2072 = vpop.xlane.xlu0 %2071
    %v2073 = vmin.f32 %v1522, %v1523
    %v2074 = vmin.f32 %v2073, %v1524
    %v2075 = vmin.f32 %v2074, %v1525
    %2076 = vmin.xlane.f32.xlu0 %v2075
    %v2077 = vpop.xlane.xlu0 %2076
    %v2078 = vmin.f32 %v1526, %v1527
    %v2079 = vmin.f32 %v2078, %v1528
    %v2080 = vmin.f32 %v2079, %v1529
    %2081 = vmin.xlane.f32.xlu0 %v2080
    %v2082 = vpop.xlane.xlu0 %2081
    %v2083 = vmin.f32 %v1530, %v1531
    %v2084 = vmin.f32 %v2083, %v1532
    %v2085 = vmin.f32 %v2084, %v1533
    %2086 = vmin.xlane.f32.xlu0 %v2085
    %v2087 = vpop.xlane.xlu0 %2086
    %v2088 = vmin.f32 %v1534, %v1535
    %v2089 = vmin.f32 %v2088, %v1536
    %v2090 = vmin.f32 %v2089, %v1537
    %2091 = vmin.xlane.f32.xlu0 %v2090
    %v2092 = vpop.xlane.xlu0 %2091
    %v2093 = vmin.f32 %v1538, %v1539
    %v2094 = vmin.f32 %v2093, %v1540
    %v2095 = vmin.f32 %v2094, %v1541
    %2096 = vmin.xlane.f32.xlu0 %v2095
    %v2097 = vpop.xlane.xlu0 %2096
    %v2098 = vmin.f32 %v1542, %v1543
    %v2099 = vmin.f32 %v2098, %v1544
    %v2100 = vmin.f32 %v2099, %v1545
    %2101 = vmin.xlane.f32.xlu0 %v2100
    %v2102 = vpop.xlane.xlu0 %2101
    %v2103 = vmin.f32 %v1546, %v1547
    %v2104 = vmin.f32 %v2103, %v1548
    %v2105 = vmin.f32 %v2104, %v1549
    %2106 = vmin.xlane.f32.xlu0 %v2105
    %v2107 = vpop.xlane.xlu0 %2106
    %v2108 = vmin.f32 %v1550, %v1551
    %v2109 = vmin.f32 %v2108, %v1552
    %v2110 = vmin.f32 %v2109, %v1553
    %2111 = vmin.xlane.f32.xlu0 %v2110
    %v2112 = vpop.xlane.xlu0 %2111
    %v2113 = vmin.f32 %v1554, %v1555
    %v2114 = vmin.f32 %v2113, %v1556
    %v2115 = vmin.f32 %v2114, %v1557
    %2116 = vmin.xlane.f32.xlu0 %v2115
    %v2117 = vpop.xlane.xlu0 %2116
    %v2118 = vmin.f32 %v1558, %v1559
    %v2119 = vmin.f32 %v2118, %v1560
    %v2120 = vmin.f32 %v2119, %v1561
    %2121 = vmin.xlane.f32.xlu0 %v2120
    %v2122 = vpop.xlane.xlu0 %2121
    %v2123 = vmin.f32 %v1562, %v1563
    %v2124 = vmin.f32 %v2123, %v1564
    %v2125 = vmin.f32 %v2124, %v1565
    %2126 = vmin.xlane.f32.xlu0 %v2125
    %v2127 = vpop.xlane.xlu0 %2126
    %v2128 = vmin.f32 %v1566, %v1567
    %v2129 = vmin.f32 %v2128, %v1568
    %v2130 = vmin.f32 %v2129, %v1569
    %2131 = vmin.xlane.f32.xlu0 %v2130
    %v2132 = vpop.xlane.xlu0 %2131
    %v2133 = vmin.f32 %v1570, %v1571
    %v2134 = vmin.f32 %v2133, %v1572
    %v2135 = vmin.f32 %v2134, %v1573
    %2136 = vmin.xlane.f32.xlu0 %v2135
    %v2137 = vpop.xlane.xlu0 %2136
    %v2138 = vmin.f32 %v1574, %v1575
    %v2139 = vmin.f32 %v2138, %v1576
    %v2140 = vmin.f32 %v2139, %v1577
    %2141 = vmin.xlane.f32.xlu0 %v2140
    %v2142 = vpop.xlane.xlu0 %2141
    %v2143 = vmin.f32 %v1578, %v1579
    %v2144 = vmin.f32 %v2143, %v1580
    %v2145 = vmin.f32 %v2144, %v1581
    %2146 = vmin.xlane.f32.xlu0 %v2145
    %v2147 = vpop.xlane.xlu0 %2146
    %v2148 = vmin.f32 %v1582, %v1583
    %v2149 = vmin.f32 %v2148, %v1584
    %v2150 = vmin.f32 %v2149, %v1585
    %2151 = vmin.xlane.f32.xlu0 %v2150
    %v2152 = vpop.xlane.xlu0 %2151
    %v2153 = vmin.f32 %v1586, %v1587
    %v2154 = vmin.f32 %v2153, %v1588
    %v2155 = vmin.f32 %v2154, %v1589
    %2156 = vmin.xlane.f32.xlu0 %v2155
    %v2157 = vpop.xlane.xlu0 %2156
    %v2158 = vmin.f32 %v1590, %v1591
    %v2159 = vmin.f32 %v2158, %v1592
    %v2160 = vmin.f32 %v2159, %v1593
    %2161 = vmin.xlane.f32.xlu0 %v2160
    %v2162 = vpop.xlane.xlu0 %2161
    %v2163 = vmin.f32 %v1594, %v1595
    %v2164 = vmin.f32 %v2163, %v1596
    %v2165 = vmin.f32 %v2164, %v1597
    %2166 = vmin.xlane.f32.xlu0 %v2165
    %v2167 = vpop.xlane.xlu0 %2166
    %v2168 = vmin.f32 %v1598, %v1599
    %v2169 = vmin.f32 %v2168, %v1600
    %v2170 = vmin.f32 %v2169, %v1601
    %2171 = vmin.xlane.f32.xlu0 %v2170
    %v2172 = vpop.xlane.xlu0 %2171
    %v2173 = vmin.f32 %v1602, %v1603
    %v2174 = vmin.f32 %v2173, %v1604
    %v2175 = vmin.f32 %v2174, %v1605
    %2176 = vmin.xlane.f32.xlu0 %v2175
    %v2177 = vpop.xlane.xlu0 %2176
    %v2178 = vmin.f32 %v1606, %v1607
    %v2179 = vmin.f32 %v2178, %v1608
    %v2180 = vmin.f32 %v2179, %v1609
    %2181 = vmin.xlane.f32.xlu0 %v2180
    %v2182 = vpop.xlane.xlu0 %2181
    %v2183 = vmin.f32 %v1610, %v1611
    %v2184 = vmin.f32 %v2183, %v1612
    %v2185 = vmin.f32 %v2184, %v1613
    %2186 = vmin.xlane.f32.xlu0 %v2185
    %v2187 = vpop.xlane.xlu0 %2186
    %v2188 = vmin.f32 %v1614, %v1615
    %v2189 = vmin.f32 %v2188, %v1616
    %v2190 = vmin.f32 %v2189, %v1617
    %2191 = vmin.xlane.f32.xlu0 %v2190
    %v2192 = vpop.xlane.xlu0 %2191
    %v2193 = vmin.f32 %v1618, %v1619
    %v2194 = vmin.f32 %v2193, %v1620
    %v2195 = vmin.f32 %v2194, %v1621
    %2196 = vmin.xlane.f32.xlu0 %v2195
    %v2197 = vpop.xlane.xlu0 %2196
    %v2198 = vmin.f32 %v1622, %v1623
    %v2199 = vmin.f32 %v2198, %v1624
    %v2200 = vmin.f32 %v2199, %v1625
    %2201 = vmin.xlane.f32.xlu0 %v2200
    %v2202 = vpop.xlane.xlu0 %2201
    %v2203 = vmin.f32 %v1626, %v1627
    %v2204 = vmin.f32 %v2203, %v1628
    %v2205 = vmin.f32 %v2204, %v1629
    %2206 = vmin.xlane.f32.xlu0 %v2205
    %v2207 = vpop.xlane.xlu0 %2206
    %v2208 = vmin.f32 %v1630, %v1631
    %v2209 = vmin.f32 %v2208, %v1632
    %v2210 = vmin.f32 %v2209, %v1633
    %2211 = vmin.xlane.f32.xlu0 %v2210
    %v2212 = vpop.xlane.xlu0 %2211
    %v2213 = vmin.f32 %v1634, %v1635
    %v2214 = vmin.f32 %v2213, %v1636
    %v2215 = vmin.f32 %v2214, %v1637
    %2216 = vmin.xlane.f32.xlu0 %v2215
    %v2217 = vpop.xlane.xlu0 %2216
    %v2218 = vmin.f32 %v1638, %v1639
    %v2219 = vmin.f32 %v2218, %v1640
    %v2220 = vmin.f32 %v2219, %v1641
    %2221 = vmin.xlane.f32.xlu0 %v2220
    %v2222 = vpop.xlane.xlu0 %2221
    %v2223 = vmin.f32 %v1642, %v1643
    %v2224 = vmin.f32 %v2223, %v1644
    %v2225 = vmin.f32 %v2224, %v1645
    %2226 = vmin.xlane.f32.xlu0 %v2225
    %v2227 = vpop.xlane.xlu0 %2226
    %v2228 = vmin.f32 %v1646, %v1647
    %v2229 = vmin.f32 %v2228, %v1648
    %v2230 = vmin.f32 %v2229, %v1649
    %2231 = vmin.xlane.f32.xlu0 %v2230
    %v2232 = vpop.xlane.xlu0 %2231
    %v2233 = vmin.f32 %v1650, %v1651
    %v2234 = vmin.f32 %v2233, %v1652
    %v2235 = vmin.f32 %v2234, %v1653
    %2236 = vmin.xlane.f32.xlu0 %v2235
    %v2237 = vpop.xlane.xlu0 %2236
    %v2238 = vmin.f32 %v1654, %v1655
    %v2239 = vmin.f32 %v2238, %v1656
    %v2240 = vmin.f32 %v2239, %v1657
    %2241 = vmin.xlane.f32.xlu0 %v2240
    %v2242 = vpop.xlane.xlu0 %2241
    %v2243 = vmin.f32 %v1658, %v1659
    %v2244 = vmin.f32 %v2243, %v1660
    %v2245 = vmin.f32 %v2244, %v1661
    %2246 = vmin.xlane.f32.xlu0 %v2245
    %v2247 = vpop.xlane.xlu0 %2246
    %v2248 = vmin.f32 %v1662, %v1663
    %v2249 = vmin.f32 %v2248, %v1664
    %v2250 = vmin.f32 %v2249, %v1665
    %2251 = vmin.xlane.f32.xlu0 %v2250
    %v2252 = vpop.xlane.xlu0 %2251
    %v2253 = vmin.f32 %v1666, %v1667
    %v2254 = vmin.f32 %v2253, %v1668
    %v2255 = vmin.f32 %v2254, %v1669
    %2256 = vmin.xlane.f32.xlu0 %v2255
    %v2257 = vpop.xlane.xlu0 %2256
    %v2258 = vmin.f32 %v1670, %v1671
    %v2259 = vmin.f32 %v2258, %v1672
    %v2260 = vmin.f32 %v2259, %v1673
    %2261 = vmin.xlane.f32.xlu0 %v2260
    %v2262 = vpop.xlane.xlu0 %2261
    %v2263 = vmin.f32 %v1674, %v1675
    %v2264 = vmin.f32 %v2263, %v1676
    %v2265 = vmin.f32 %v2264, %v1677
    %2266 = vmin.xlane.f32.xlu0 %v2265
    %v2267 = vpop.xlane.xlu0 %2266
    %v2268 = vmin.f32 %v1678, %v1679
    %v2269 = vmin.f32 %v2268, %v1680
    %v2270 = vmin.f32 %v2269, %v1681
    %2271 = vmin.xlane.f32.xlu0 %v2270
    %v2272 = vpop.xlane.xlu0 %2271
    %v2273 = vmin.f32 %v1682, %v1683
    %v2274 = vmin.f32 %v2273, %v1684
    %v2275 = vmin.f32 %v2274, %v1685
    %2276 = vmin.xlane.f32.xlu0 %v2275
    %v2277 = vpop.xlane.xlu0 %2276
    %v2278 = vmin.f32 %v1686, %v1687
    %v2279 = vmin.f32 %v2278, %v1688
    %v2280 = vmin.f32 %v2279, %v1689
    %2281 = vmin.xlane.f32.xlu0 %v2280
    %v2282 = vpop.xlane.xlu0 %2281
    %v2283 = vmin.f32 %v1690, %v1691
    %v2284 = vmin.f32 %v2283, %v1692
    %v2285 = vmin.f32 %v2284, %v1693
    %2286 = vmin.xlane.f32.xlu0 %v2285
    %v2287 = vpop.xlane.xlu0 %2286
    %v2288 = vmin.f32 %v1694, %v1695
    %v2289 = vmin.f32 %v2288, %v1696
    %v2290 = vmin.f32 %v2289, %v1697
    %2291 = vmin.xlane.f32.xlu0 %v2290
    %v2292 = vpop.xlane.xlu0 %2291
    %v2293 = vmin.f32 %v1698, %v1699
    %v2294 = vmin.f32 %v2293, %v1700
    %v2295 = vmin.f32 %v2294, %v1701
    %2296 = vmin.xlane.f32.xlu0 %v2295
    %v2297 = vpop.xlane.xlu0 %2296
    %v2298 = vmin.f32 %v1702, %v1703
    %v2299 = vmin.f32 %v2298, %v1704
    %v2300 = vmin.f32 %v2299, %v1705
    %2301 = vmin.xlane.f32.xlu0 %v2300
    %v2302 = vpop.xlane.xlu0 %2301
    %v2303 = vmin.f32 %v1706, %v1707
    %v2304 = vmin.f32 %v2303, %v1708
    %v2305 = vmin.f32 %v2304, %v1709
    %2306 = vmin.xlane.f32.xlu0 %v2305
    %v2307 = vpop.xlane.xlu0 %2306
    %v2308 = vmin.f32 %v1710, %v1711
    %v2309 = vmin.f32 %v2308, %v1712
    %v2310 = vmin.f32 %v2309, %v1713
    %2311 = vmin.xlane.f32.xlu0 %v2310
    %v2312 = vpop.xlane.xlu0 %2311
    %v2313 = vmin.f32 %v1714, %v1715
    %v2314 = vmin.f32 %v2313, %v1716
    %v2315 = vmin.f32 %v2314, %v1717
    %2316 = vmin.xlane.f32.xlu0 %v2315
    %v2317 = vpop.xlane.xlu0 %2316
    %v2318 = vmin.f32 %v1718, %v1719
    %v2319 = vmin.f32 %v2318, %v1720
    %v2320 = vmin.f32 %v2319, %v1721
    %2321 = vmin.xlane.f32.xlu0 %v2320
    %v2322 = vpop.xlane.xlu0 %2321
    %v2323 = vmin.f32 %v1722, %v1723
    %v2324 = vmin.f32 %v2323, %v1724
    %v2325 = vmin.f32 %v2324, %v1725
    %2326 = vmin.xlane.f32.xlu0 %v2325
    %v2327 = vpop.xlane.xlu0 %2326
    %v2328 = vmin.f32 %v1726, %v1727
    %v2329 = vmin.f32 %v2328, %v1728
    %v2330 = vmin.f32 %v2329, %v1729
    %2331 = vmin.xlane.f32.xlu0 %v2330
    %v2332 = vpop.xlane.xlu0 %2331
    %v2333 = vmin.f32 %v1730, %v1731
    %v2334 = vmin.f32 %v2333, %v1732
    %v2335 = vmin.f32 %v2334, %v1733
    %2336 = vmin.xlane.f32.xlu0 %v2335
    %v2337 = vpop.xlane.xlu0 %2336
    %v2338 = vmin.f32 %v1734, %v1735
    %v2339 = vmin.f32 %v2338, %v1736
    %v2340 = vmin.f32 %v2339, %v1737
    %2341 = vmin.xlane.f32.xlu0 %v2340
    %v2342 = vpop.xlane.xlu0 %2341
    %v2343 = vmin.f32 %v1738, %v1739
    %v2344 = vmin.f32 %v2343, %v1740
    %v2345 = vmin.f32 %v2344, %v1741
    %2346 = vmin.xlane.f32.xlu0 %v2345
    %v2347 = vpop.xlane.xlu0 %2346
    %v2348 = vmin.f32 %v1742, %v1743
    %v2349 = vmin.f32 %v2348, %v1744
    %v2350 = vmin.f32 %v2349, %v1745
    %2351 = vmin.xlane.f32.xlu0 %v2350
    %v2352 = vpop.xlane.xlu0 %2351
    %v2353 = vmin.f32 %v1746, %v1747
    %v2354 = vmin.f32 %v2353, %v1748
    %v2355 = vmin.f32 %v2354, %v1749
    %2356 = vmin.xlane.f32.xlu0 %v2355
    %v2357 = vpop.xlane.xlu0 %2356
    %v2358 = vmin.f32 %v1750, %v1751
    %v2359 = vmin.f32 %v2358, %v1752
    %v2360 = vmin.f32 %v2359, %v1753
    %2361 = vmin.xlane.f32.xlu0 %v2360
    %v2362 = vpop.xlane.xlu0 %2361
    %v2363 = vmin.f32 %v1754, %v1755
    %v2364 = vmin.f32 %v2363, %v1756
    %v2365 = vmin.f32 %v2364, %v1757
    %2366 = vmin.xlane.f32.xlu0 %v2365
    %v2367 = vpop.xlane.xlu0 %2366
    %v2368 = vmin.f32 %v1758, %v1759
    %v2369 = vmin.f32 %v2368, %v1760
    %v2370 = vmin.f32 %v2369, %v1761
    %2371 = vmin.xlane.f32.xlu0 %v2370
    %v2372 = vpop.xlane.xlu0 %2371
    %v2373 = vmin.f32 %v1762, %v1763
    %v2374 = vmin.f32 %v2373, %v1764
    %v2375 = vmin.f32 %v2374, %v1765
    %2376 = vmin.xlane.f32.xlu0 %v2375
    %v2377 = vpop.xlane.xlu0 %2376
    %v2378 = vmin.f32 %v1766, %v1767
    %v2379 = vmin.f32 %v2378, %v1768
    %v2380 = vmin.f32 %v2379, %v1769
    %2381 = vmin.xlane.f32.xlu0 %v2380
    %v2382 = vpop.xlane.xlu0 %2381
    %v2383 = vmin.f32 %v1770, %v1771
    %v2384 = vmin.f32 %v2383, %v1772
    %v2385 = vmin.f32 %v2384, %v1773
    %2386 = vmin.xlane.f32.xlu0 %v2385
    %v2387 = vpop.xlane.xlu0 %2386
    %v2388 = vmin.f32 %v1774, %v1775
    %v2389 = vmin.f32 %v2388, %v1776
    %v2390 = vmin.f32 %v2389, %v1777
    %2391 = vmin.xlane.f32.xlu0 %v2390
    %v2392 = vpop.xlane.xlu0 %2391
    %v2393 = vmin.f32 %v1778, %v1779
    %v2394 = vmin.f32 %v2393, %v1780
    %v2395 = vmin.f32 %v2394, %v1781
    %2396 = vmin.xlane.f32.xlu0 %v2395
    %v2397 = vpop.xlane.xlu0 %2396
    %v2398 = vmin.f32 %v1782, %v1783
    %v2399 = vmin.f32 %v2398, %v1784
    %v2400 = vmin.f32 %v2399, %v1785
    %2401 = vmin.xlane.f32.xlu0 %v2400
    %v2402 = vpop.xlane.xlu0 %2401
    %v2403 = vmin.f32 %v1786, %v1787
    %v2404 = vmin.f32 %v2403, %v1788
    %v2405 = vmin.f32 %v2404, %v1789
    %2406 = vmin.xlane.f32.xlu0 %v2405
    %v2407 = vpop.xlane.xlu0 %2406
    %v2408 = vmin.f32 %v1790, %v1791
    %v2409 = vmin.f32 %v2408, %v1792
    %v2410 = vmin.f32 %v2409, %v1793
    %2411 = vmin.xlane.f32.xlu0 %v2410
    %v2412 = vpop.xlane.xlu0 %2411
    %v2413 = vmin.f32 %v1794, %v1795
    %v2414 = vmin.f32 %v2413, %v1796
    %v2415 = vmin.f32 %v2414, %v1797
    %2416 = vmin.xlane.f32.xlu0 %v2415
    %v2417 = vpop.xlane.xlu0 %2416
    %v2418 = vmin.f32 %v1798, %v1799
    %v2419 = vmin.f32 %v2418, %v1800
    %v2420 = vmin.f32 %v2419, %v1801
    %2421 = vmin.xlane.f32.xlu0 %v2420
    %v2422 = vpop.xlane.xlu0 %2421
    %v2423 = vmin.f32 %v1802, %v1803
    %v2424 = vmin.f32 %v2423, %v1804
    %v2425 = vmin.f32 %v2424, %v1805
    %2426 = vmin.xlane.f32.xlu0 %v2425
    %v2427 = vpop.xlane.xlu0 %2426
    %v2428 = vmin.f32 %v1806, %v1807
    %v2429 = vmin.f32 %v2428, %v1808
    %v2430 = vmin.f32 %v2429, %v1809
    %2431 = vmin.xlane.f32.xlu0 %v2430
    %v2432 = vpop.xlane.xlu0 %2431
    %v2433 = vmin.f32 %v1810, %v1811
    %v2434 = vmin.f32 %v2433, %v1812
    %v2435 = vmin.f32 %v2434, %v1813
    %2436 = vmin.xlane.f32.xlu0 %v2435
    %v2437 = vpop.xlane.xlu0 %2436
    %v2438 = vmin.f32 %v1814, %v1815
    %v2439 = vmin.f32 %v2438, %v1816
    %v2440 = vmin.f32 %v2439, %v1817
    %2441 = vmin.xlane.f32.xlu0 %v2440
    %v2442 = vpop.xlane.xlu0 %2441
    %v2443 = vmin.f32 %v1818, %v1819
    %v2444 = vmin.f32 %v2443, %v1820
    %v2445 = vmin.f32 %v2444, %v1821
    %2446 = vmin.xlane.f32.xlu0 %v2445
    %v2447 = vpop.xlane.xlu0 %2446
    %v2448 = vmin.f32 %v1822, %v1823
    %v2449 = vmin.f32 %v2448, %v1824
    %v2450 = vmin.f32 %v2449, %v1825
    %2451 = vmin.xlane.f32.xlu0 %v2450
    %v2452 = vpop.xlane.xlu0 %2451
    %v2453 = vmin.f32 %v1826, %v1827
    %v2454 = vmin.f32 %v2453, %v1828
    %v2455 = vmin.f32 %v2454, %v1829
    %2456 = vmin.xlane.f32.xlu0 %v2455
    %v2457 = vpop.xlane.xlu0 %2456
    %v2458 = vmin.f32 %v1830, %v1831
    %v2459 = vmin.f32 %v2458, %v1832
    %v2460 = vmin.f32 %v2459, %v1833
    %2461 = vmin.xlane.f32.xlu0 %v2460
    %v2462 = vpop.xlane.xlu0 %2461
    %v2463 = vmin.f32 %v1834, %v1835
    %v2464 = vmin.f32 %v2463, %v1836
    %v2465 = vmin.f32 %v2464, %v1837
    %2466 = vmin.xlane.f32.xlu0 %v2465
    %v2467 = vpop.xlane.xlu0 %2466
    %v2468 = vmin.f32 %v1838, %v1839
    %v2469 = vmin.f32 %v2468, %v1840
    %v2470 = vmin.f32 %v2469, %v1841
    %2471 = vmin.xlane.f32.xlu0 %v2470
    %v2472 = vpop.xlane.xlu0 %2471
    %v2473 = vmin.f32 %v1842, %v1843
    %v2474 = vmin.f32 %v2473, %v1844
    %v2475 = vmin.f32 %v2474, %v1845
    %2476 = vmin.xlane.f32.xlu0 %v2475
    %v2477 = vpop.xlane.xlu0 %2476
    %v2478 = vmin.f32 %v1846, %v1847
    %v2479 = vmin.f32 %v2478, %v1848
    %v2480 = vmin.f32 %v2479, %v1849
    %2481 = vmin.xlane.f32.xlu0 %v2480
    %v2482 = vpop.xlane.xlu0 %2481
    %v2483 = vmin.f32 %v1850, %v1851
    %v2484 = vmin.f32 %v2483, %v1852
    %v2485 = vmin.f32 %v2484, %v1853
    %2486 = vmin.xlane.f32.xlu0 %v2485
    %v2487 = vpop.xlane.xlu0 %2486
    %v2488 = vmin.f32 %v1854, %v1855
    %v2489 = vmin.f32 %v2488, %v1856
    %v2490 = vmin.f32 %v2489, %v1857
    %2491 = vmin.xlane.f32.xlu0 %v2490
    %v2492 = vpop.xlane.xlu0 %2491
    %v2493 = vmin.f32 %v1858, %v1859
    %v2494 = vmin.f32 %v2493, %v1860
    %v2495 = vmin.f32 %v2494, %v1861
    %2496 = vmin.xlane.f32.xlu0 %v2495
    %v2497 = vpop.xlane.xlu0 %2496
    %v2498 = vmin.f32 %v1862, %v1863
    %v2499 = vmin.f32 %v2498, %v1864
    %v2500 = vmin.f32 %v2499, %v1865
    %2501 = vmin.xlane.f32.xlu0 %v2500
    %v2502 = vpop.xlane.xlu0 %2501
    %v2503 = vmin.f32 %v1866, %v1867
    %v2504 = vmin.f32 %v2503, %v1868
    %v2505 = vmin.f32 %v2504, %v1869
    %2506 = vmin.xlane.f32.xlu0 %v2505
    %v2507 = vpop.xlane.xlu0 %2506
    %v2508 = vmin.f32 %v1870, %v1871
    %v2509 = vmin.f32 %v2508, %v1872
    %v2510 = vmin.f32 %v2509, %v1873
    %2511 = vmin.xlane.f32.xlu0 %v2510
    %v2512 = vpop.xlane.xlu0 %2511
    %v2513 = vmin.f32 %v1874, %v1875
    %v2514 = vmin.f32 %v2513, %v1876
    %v2515 = vmin.f32 %v2514, %v1877
    %2516 = vmin.xlane.f32.xlu0 %v2515
    %v2517 = vpop.xlane.xlu0 %2516
    %v2518 = vlaneseq
    %v2519 = vand.u32 %v2518, 127
    %v2520 = vadd.s32 %v2519, 128
    %v2521 = vadd.s32 %v2519, 256
    %v2522 = vadd.s32 %v2519, 384
    %vm2523 = vcmp.le.f32.partialorder %v1366, %v1882
    %vm2524 = vcmp.le.f32.partialorder %v1367, %v1882
    %vm2525 = vcmp.le.f32.partialorder %v1368, %v1882
    %vm2526 = vcmp.le.f32.partialorder %v1369, %v1882
    %vm2527 = vcmp.le.f32.partialorder %v1370, %v1887
    %vm2528 = vcmp.le.f32.partialorder %v1371, %v1887
    %vm2529 = vcmp.le.f32.partialorder %v1372, %v1887
    %vm2530 = vcmp.le.f32.partialorder %v1373, %v1887
    %vm2531 = vcmp.le.f32.partialorder %v1374, %v1892
    %vm2532 = vcmp.le.f32.partialorder %v1375, %v1892
    %vm2533 = vcmp.le.f32.partialorder %v1376, %v1892
    %vm2534 = vcmp.le.f32.partialorder %v1377, %v1892
    %vm2535 = vcmp.le.f32.partialorder %v1378, %v1897
    %vm2536 = vcmp.le.f32.partialorder %v1379, %v1897
    %vm2537 = vcmp.le.f32.partialorder %v1380, %v1897
    %vm2538 = vcmp.le.f32.partialorder %v1381, %v1897
    %vm2539 = vcmp.le.f32.partialorder %v1382, %v1902
    %vm2540 = vcmp.le.f32.partialorder %v1383, %v1902
    %vm2541 = vcmp.le.f32.partialorder %v1384, %v1902
    %vm2542 = vcmp.le.f32.partialorder %v1385, %v1902
    %vm2543 = vcmp.le.f32.partialorder %v1386, %v1907
    %vm2544 = vcmp.le.f32.partialorder %v1387, %v1907
    %vm2545 = vcmp.le.f32.partialorder %v1388, %v1907
    %vm2546 = vcmp.le.f32.partialorder %v1389, %v1907
    %vm2547 = vcmp.le.f32.partialorder %v1390, %v1912
    %vm2548 = vcmp.le.f32.partialorder %v1391, %v1912
    %vm2549 = vcmp.le.f32.partialorder %v1392, %v1912
    %vm2550 = vcmp.le.f32.partialorder %v1393, %v1912
    %vm2551 = vcmp.le.f32.partialorder %v1394, %v1917
    %vm2552 = vcmp.le.f32.partialorder %v1395, %v1917
    %vm2553 = vcmp.le.f32.partialorder %v1396, %v1917
    %vm2554 = vcmp.le.f32.partialorder %v1397, %v1917
    %vm2555 = vcmp.le.f32.partialorder %v1398, %v1922
    %vm2556 = vcmp.le.f32.partialorder %v1399, %v1922
    %vm2557 = vcmp.le.f32.partialorder %v1400, %v1922
    %vm2558 = vcmp.le.f32.partialorder %v1401, %v1922
    %vm2559 = vcmp.le.f32.partialorder %v1402, %v1927
    %vm2560 = vcmp.le.f32.partialorder %v1403, %v1927
    %vm2561 = vcmp.le.f32.partialorder %v1404, %v1927
    %vm2562 = vcmp.le.f32.partialorder %v1405, %v1927
    %vm2563 = vcmp.le.f32.partialorder %v1406, %v1932
    %vm2564 = vcmp.le.f32.partialorder %v1407, %v1932
    %vm2565 = vcmp.le.f32.partialorder %v1408, %v1932
    %vm2566 = vcmp.le.f32.partialorder %v1409, %v1932
    %vm2567 = vcmp.le.f32.partialorder %v1410, %v1937
    %vm2568 = vcmp.le.f32.partialorder %v1411, %v1937
    %vm2569 = vcmp.le.f32.partialorder %v1412, %v1937
    %vm2570 = vcmp.le.f32.partialorder %v1413, %v1937
    %vm2571 = vcmp.le.f32.partialorder %v1414, %v1942
    %vm2572 = vcmp.le.f32.partialorder %v1415, %v1942
    %vm2573 = vcmp.le.f32.partialorder %v1416, %v1942
    %vm2574 = vcmp.le.f32.partialorder %v1417, %v1942
    %vm2575 = vcmp.le.f32.partialorder %v1418, %v1947
    %vm2576 = vcmp.le.f32.partialorder %v1419, %v1947
    %vm2577 = vcmp.le.f32.partialorder %v1420, %v1947
    %vm2578 = vcmp.le.f32.partialorder %v1421, %v1947
    %vm2579 = vcmp.le.f32.partialorder %v1422, %v1952
    %vm2580 = vcmp.le.f32.partialorder %v1423, %v1952
    %vm2581 = vcmp.le.f32.partialorder %v1424, %v1952
    %vm2582 = vcmp.le.f32.partialorder %v1425, %v1952
    %vm2583 = vcmp.le.f32.partialorder %v1426, %v1957
    %vm2584 = vcmp.le.f32.partialorder %v1427, %v1957
    %vm2585 = vcmp.le.f32.partialorder %v1428, %v1957
    %vm2586 = vcmp.le.f32.partialorder %v1429, %v1957
    %vm2587 = vcmp.le.f32.partialorder %v1430, %v1962
    %vm2588 = vcmp.le.f32.partialorder %v1431, %v1962
    %vm2589 = vcmp.le.f32.partialorder %v1432, %v1962
    %vm2590 = vcmp.le.f32.partialorder %v1433, %v1962
    %vm2591 = vcmp.le.f32.partialorder %v1434, %v1967
    %vm2592 = vcmp.le.f32.partialorder %v1435, %v1967
    %vm2593 = vcmp.le.f32.partialorder %v1436, %v1967
    %vm2594 = vcmp.le.f32.partialorder %v1437, %v1967
    %vm2595 = vcmp.le.f32.partialorder %v1438, %v1972
    %vm2596 = vcmp.le.f32.partialorder %v1439, %v1972
    %vm2597 = vcmp.le.f32.partialorder %v1440, %v1972
    %vm2598 = vcmp.le.f32.partialorder %v1441, %v1972
    %vm2599 = vcmp.le.f32.partialorder %v1442, %v1977
    %vm2600 = vcmp.le.f32.partialorder %v1443, %v1977
    %vm2601 = vcmp.le.f32.partialorder %v1444, %v1977
    %vm2602 = vcmp.le.f32.partialorder %v1445, %v1977
    %vm2603 = vcmp.le.f32.partialorder %v1446, %v1982
    %vm2604 = vcmp.le.f32.partialorder %v1447, %v1982
    %vm2605 = vcmp.le.f32.partialorder %v1448, %v1982
    %vm2606 = vcmp.le.f32.partialorder %v1449, %v1982
    %vm2607 = vcmp.le.f32.partialorder %v1450, %v1987
    %vm2608 = vcmp.le.f32.partialorder %v1451, %v1987
    %vm2609 = vcmp.le.f32.partialorder %v1452, %v1987
    %vm2610 = vcmp.le.f32.partialorder %v1453, %v1987
    %vm2611 = vcmp.le.f32.partialorder %v1454, %v1992
    %vm2612 = vcmp.le.f32.partialorder %v1455, %v1992
    %vm2613 = vcmp.le.f32.partialorder %v1456, %v1992
    %vm2614 = vcmp.le.f32.partialorder %v1457, %v1992
    %vm2615 = vcmp.le.f32.partialorder %v1458, %v1997
    %vm2616 = vcmp.le.f32.partialorder %v1459, %v1997
    %vm2617 = vcmp.le.f32.partialorder %v1460, %v1997
    %vm2618 = vcmp.le.f32.partialorder %v1461, %v1997
    %vm2619 = vcmp.le.f32.partialorder %v1462, %v2002
    %vm2620 = vcmp.le.f32.partialorder %v1463, %v2002
    %vm2621 = vcmp.le.f32.partialorder %v1464, %v2002
    %vm2622 = vcmp.le.f32.partialorder %v1465, %v2002
    %vm2623 = vcmp.le.f32.partialorder %v1466, %v2007
    %vm2624 = vcmp.le.f32.partialorder %v1467, %v2007
    %vm2625 = vcmp.le.f32.partialorder %v1468, %v2007
    %vm2626 = vcmp.le.f32.partialorder %v1469, %v2007
    %vm2627 = vcmp.le.f32.partialorder %v1470, %v2012
    %vm2628 = vcmp.le.f32.partialorder %v1471, %v2012
    %vm2629 = vcmp.le.f32.partialorder %v1472, %v2012
    %vm2630 = vcmp.le.f32.partialorder %v1473, %v2012
    %vm2631 = vcmp.le.f32.partialorder %v1474, %v2017
    %vm2632 = vcmp.le.f32.partialorder %v1475, %v2017
    %vm2633 = vcmp.le.f32.partialorder %v1476, %v2017
    %vm2634 = vcmp.le.f32.partialorder %v1477, %v2017
    %vm2635 = vcmp.le.f32.partialorder %v1478, %v2022
    %vm2636 = vcmp.le.f32.partialorder %v1479, %v2022
    %vm2637 = vcmp.le.f32.partialorder %v1480, %v2022
    %vm2638 = vcmp.le.f32.partialorder %v1481, %v2022
    %vm2639 = vcmp.le.f32.partialorder %v1482, %v2027
    %vm2640 = vcmp.le.f32.partialorder %v1483, %v2027
    %vm2641 = vcmp.le.f32.partialorder %v1484, %v2027
    %vm2642 = vcmp.le.f32.partialorder %v1485, %v2027
    %vm2643 = vcmp.le.f32.partialorder %v1486, %v2032
    %vm2644 = vcmp.le.f32.partialorder %v1487, %v2032
    %vm2645 = vcmp.le.f32.partialorder %v1488, %v2032
    %vm2646 = vcmp.le.f32.partialorder %v1489, %v2032
    %vm2647 = vcmp.le.f32.partialorder %v1490, %v2037
    %vm2648 = vcmp.le.f32.partialorder %v1491, %v2037
    %vm2649 = vcmp.le.f32.partialorder %v1492, %v2037
    %vm2650 = vcmp.le.f32.partialorder %v1493, %v2037
    %vm2651 = vcmp.le.f32.partialorder %v1494, %v2042
    %vm2652 = vcmp.le.f32.partialorder %v1495, %v2042
    %vm2653 = vcmp.le.f32.partialorder %v1496, %v2042
    %vm2654 = vcmp.le.f32.partialorder %v1497, %v2042
    %vm2655 = vcmp.le.f32.partialorder %v1498, %v2047
    %vm2656 = vcmp.le.f32.partialorder %v1499, %v2047
    %vm2657 = vcmp.le.f32.partialorder %v1500, %v2047
    %vm2658 = vcmp.le.f32.partialorder %v1501, %v2047
    %vm2659 = vcmp.le.f32.partialorder %v1502, %v2052
    %vm2660 = vcmp.le.f32.partialorder %v1503, %v2052
    %vm2661 = vcmp.le.f32.partialorder %v1504, %v2052
    %vm2662 = vcmp.le.f32.partialorder %v1505, %v2052
    %vm2663 = vcmp.le.f32.partialorder %v1506, %v2057
    %vm2664 = vcmp.le.f32.partialorder %v1507, %v2057
    %vm2665 = vcmp.le.f32.partialorder %v1508, %v2057
    %vm2666 = vcmp.le.f32.partialorder %v1509, %v2057
    %vm2667 = vcmp.le.f32.partialorder %v1510, %v2062
    %vm2668 = vcmp.le.f32.partialorder %v1511, %v2062
    %vm2669 = vcmp.le.f32.partialorder %v1512, %v2062
    %vm2670 = vcmp.le.f32.partialorder %v1513, %v2062
    %vm2671 = vcmp.le.f32.partialorder %v1514, %v2067
    %vm2672 = vcmp.le.f32.partialorder %v1515, %v2067
    %vm2673 = vcmp.le.f32.partialorder %v1516, %v2067
    %vm2674 = vcmp.le.f32.partialorder %v1517, %v2067
    %vm2675 = vcmp.le.f32.partialorder %v1518, %v2072
    %vm2676 = vcmp.le.f32.partialorder %v1519, %v2072
    %vm2677 = vcmp.le.f32.partialorder %v1520, %v2072
    %vm2678 = vcmp.le.f32.partialorder %v1521, %v2072
    %vm2679 = vcmp.le.f32.partialorder %v1522, %v2077
    %vm2680 = vcmp.le.f32.partialorder %v1523, %v2077
    %vm2681 = vcmp.le.f32.partialorder %v1524, %v2077
    %vm2682 = vcmp.le.f32.partialorder %v1525, %v2077
    %vm2683 = vcmp.le.f32.partialorder %v1526, %v2082
    %vm2684 = vcmp.le.f32.partialorder %v1527, %v2082
    %vm2685 = vcmp.le.f32.partialorder %v1528, %v2082
    %vm2686 = vcmp.le.f32.partialorder %v1529, %v2082
    %vm2687 = vcmp.le.f32.partialorder %v1530, %v2087
    %vm2688 = vcmp.le.f32.partialorder %v1531, %v2087
    %vm2689 = vcmp.le.f32.partialorder %v1532, %v2087
    %vm2690 = vcmp.le.f32.partialorder %v1533, %v2087
    %vm2691 = vcmp.le.f32.partialorder %v1534, %v2092
    %vm2692 = vcmp.le.f32.partialorder %v1535, %v2092
    %vm2693 = vcmp.le.f32.partialorder %v1536, %v2092
    %vm2694 = vcmp.le.f32.partialorder %v1537, %v2092
    %vm2695 = vcmp.le.f32.partialorder %v1538, %v2097
    %vm2696 = vcmp.le.f32.partialorder %v1539, %v2097
    %vm2697 = vcmp.le.f32.partialorder %v1540, %v2097
    %vm2698 = vcmp.le.f32.partialorder %v1541, %v2097
    %vm2699 = vcmp.le.f32.partialorder %v1542, %v2102
    %vm2700 = vcmp.le.f32.partialorder %v1543, %v2102
    %vm2701 = vcmp.le.f32.partialorder %v1544, %v2102
    %vm2702 = vcmp.le.f32.partialorder %v1545, %v2102
    %vm2703 = vcmp.le.f32.partialorder %v1546, %v2107
    %vm2704 = vcmp.le.f32.partialorder %v1547, %v2107
    %vm2705 = vcmp.le.f32.partialorder %v1548, %v2107
    %vm2706 = vcmp.le.f32.partialorder %v1549, %v2107
    %vm2707 = vcmp.le.f32.partialorder %v1550, %v2112
    %vm2708 = vcmp.le.f32.partialorder %v1551, %v2112
    %vm2709 = vcmp.le.f32.partialorder %v1552, %v2112
    %vm2710 = vcmp.le.f32.partialorder %v1553, %v2112
    %vm2711 = vcmp.le.f32.partialorder %v1554, %v2117
    %vm2712 = vcmp.le.f32.partialorder %v1555, %v2117
    %vm2713 = vcmp.le.f32.partialorder %v1556, %v2117
    %vm2714 = vcmp.le.f32.partialorder %v1557, %v2117
    %vm2715 = vcmp.le.f32.partialorder %v1558, %v2122
    %vm2716 = vcmp.le.f32.partialorder %v1559, %v2122
    %vm2717 = vcmp.le.f32.partialorder %v1560, %v2122
    %vm2718 = vcmp.le.f32.partialorder %v1561, %v2122
    %vm2719 = vcmp.le.f32.partialorder %v1562, %v2127
    %vm2720 = vcmp.le.f32.partialorder %v1563, %v2127
    %vm2721 = vcmp.le.f32.partialorder %v1564, %v2127
    %vm2722 = vcmp.le.f32.partialorder %v1565, %v2127
    %vm2723 = vcmp.le.f32.partialorder %v1566, %v2132
    %vm2724 = vcmp.le.f32.partialorder %v1567, %v2132
    %vm2725 = vcmp.le.f32.partialorder %v1568, %v2132
    %vm2726 = vcmp.le.f32.partialorder %v1569, %v2132
    %vm2727 = vcmp.le.f32.partialorder %v1570, %v2137
    %vm2728 = vcmp.le.f32.partialorder %v1571, %v2137
    %vm2729 = vcmp.le.f32.partialorder %v1572, %v2137
    %vm2730 = vcmp.le.f32.partialorder %v1573, %v2137
    %vm2731 = vcmp.le.f32.partialorder %v1574, %v2142
    %vm2732 = vcmp.le.f32.partialorder %v1575, %v2142
    %vm2733 = vcmp.le.f32.partialorder %v1576, %v2142
    %vm2734 = vcmp.le.f32.partialorder %v1577, %v2142
    %vm2735 = vcmp.le.f32.partialorder %v1578, %v2147
    %vm2736 = vcmp.le.f32.partialorder %v1579, %v2147
    %vm2737 = vcmp.le.f32.partialorder %v1580, %v2147
    %vm2738 = vcmp.le.f32.partialorder %v1581, %v2147
    %vm2739 = vcmp.le.f32.partialorder %v1582, %v2152
    %vm2740 = vcmp.le.f32.partialorder %v1583, %v2152
    %vm2741 = vcmp.le.f32.partialorder %v1584, %v2152
    %vm2742 = vcmp.le.f32.partialorder %v1585, %v2152
    %vm2743 = vcmp.le.f32.partialorder %v1586, %v2157
    %vm2744 = vcmp.le.f32.partialorder %v1587, %v2157
    %vm2745 = vcmp.le.f32.partialorder %v1588, %v2157
    %vm2746 = vcmp.le.f32.partialorder %v1589, %v2157
    %vm2747 = vcmp.le.f32.partialorder %v1590, %v2162
    %vm2748 = vcmp.le.f32.partialorder %v1591, %v2162
    %vm2749 = vcmp.le.f32.partialorder %v1592, %v2162
    %vm2750 = vcmp.le.f32.partialorder %v1593, %v2162
    %vm2751 = vcmp.le.f32.partialorder %v1594, %v2167
    %vm2752 = vcmp.le.f32.partialorder %v1595, %v2167
    %vm2753 = vcmp.le.f32.partialorder %v1596, %v2167
    %vm2754 = vcmp.le.f32.partialorder %v1597, %v2167
    %vm2755 = vcmp.le.f32.partialorder %v1598, %v2172
    %vm2756 = vcmp.le.f32.partialorder %v1599, %v2172
    %vm2757 = vcmp.le.f32.partialorder %v1600, %v2172
    %vm2758 = vcmp.le.f32.partialorder %v1601, %v2172
    %vm2759 = vcmp.le.f32.partialorder %v1602, %v2177
    %vm2760 = vcmp.le.f32.partialorder %v1603, %v2177
    %vm2761 = vcmp.le.f32.partialorder %v1604, %v2177
    %vm2762 = vcmp.le.f32.partialorder %v1605, %v2177
    %vm2763 = vcmp.le.f32.partialorder %v1606, %v2182
    %vm2764 = vcmp.le.f32.partialorder %v1607, %v2182
    %vm2765 = vcmp.le.f32.partialorder %v1608, %v2182
    %vm2766 = vcmp.le.f32.partialorder %v1609, %v2182
    %vm2767 = vcmp.le.f32.partialorder %v1610, %v2187
    %vm2768 = vcmp.le.f32.partialorder %v1611, %v2187
    %vm2769 = vcmp.le.f32.partialorder %v1612, %v2187
    %vm2770 = vcmp.le.f32.partialorder %v1613, %v2187
    %vm2771 = vcmp.le.f32.partialorder %v1614, %v2192
    %vm2772 = vcmp.le.f32.partialorder %v1615, %v2192
    %vm2773 = vcmp.le.f32.partialorder %v1616, %v2192
    %vm2774 = vcmp.le.f32.partialorder %v1617, %v2192
    %vm2775 = vcmp.le.f32.partialorder %v1618, %v2197
    %vm2776 = vcmp.le.f32.partialorder %v1619, %v2197
    %vm2777 = vcmp.le.f32.partialorder %v1620, %v2197
    %vm2778 = vcmp.le.f32.partialorder %v1621, %v2197
    %vm2779 = vcmp.le.f32.partialorder %v1622, %v2202
    %vm2780 = vcmp.le.f32.partialorder %v1623, %v2202
    %vm2781 = vcmp.le.f32.partialorder %v1624, %v2202
    %vm2782 = vcmp.le.f32.partialorder %v1625, %v2202
    %vm2783 = vcmp.le.f32.partialorder %v1626, %v2207
    %vm2784 = vcmp.le.f32.partialorder %v1627, %v2207
    %vm2785 = vcmp.le.f32.partialorder %v1628, %v2207
    %vm2786 = vcmp.le.f32.partialorder %v1629, %v2207
    %vm2787 = vcmp.le.f32.partialorder %v1630, %v2212
    %vm2788 = vcmp.le.f32.partialorder %v1631, %v2212
    %vm2789 = vcmp.le.f32.partialorder %v1632, %v2212
    %vm2790 = vcmp.le.f32.partialorder %v1633, %v2212
    %vm2791 = vcmp.le.f32.partialorder %v1634, %v2217
    %vm2792 = vcmp.le.f32.partialorder %v1635, %v2217
    %vm2793 = vcmp.le.f32.partialorder %v1636, %v2217
    %vm2794 = vcmp.le.f32.partialorder %v1637, %v2217
    %vm2795 = vcmp.le.f32.partialorder %v1638, %v2222
    %vm2796 = vcmp.le.f32.partialorder %v1639, %v2222
    %vm2797 = vcmp.le.f32.partialorder %v1640, %v2222
    %vm2798 = vcmp.le.f32.partialorder %v1641, %v2222
    %vm2799 = vcmp.le.f32.partialorder %v1642, %v2227
    %vm2800 = vcmp.le.f32.partialorder %v1643, %v2227
    %vm2801 = vcmp.le.f32.partialorder %v1644, %v2227
    %vm2802 = vcmp.le.f32.partialorder %v1645, %v2227
    %vm2803 = vcmp.le.f32.partialorder %v1646, %v2232
    %vm2804 = vcmp.le.f32.partialorder %v1647, %v2232
    %vm2805 = vcmp.le.f32.partialorder %v1648, %v2232
    %vm2806 = vcmp.le.f32.partialorder %v1649, %v2232
    %vm2807 = vcmp.le.f32.partialorder %v1650, %v2237
    %vm2808 = vcmp.le.f32.partialorder %v1651, %v2237
    %vm2809 = vcmp.le.f32.partialorder %v1652, %v2237
    %vm2810 = vcmp.le.f32.partialorder %v1653, %v2237
    %vm2811 = vcmp.le.f32.partialorder %v1654, %v2242
    %vm2812 = vcmp.le.f32.partialorder %v1655, %v2242
    %vm2813 = vcmp.le.f32.partialorder %v1656, %v2242
    %vm2814 = vcmp.le.f32.partialorder %v1657, %v2242
    %vm2815 = vcmp.le.f32.partialorder %v1658, %v2247
    %vm2816 = vcmp.le.f32.partialorder %v1659, %v2247
    %vm2817 = vcmp.le.f32.partialorder %v1660, %v2247
    %vm2818 = vcmp.le.f32.partialorder %v1661, %v2247
    %vm2819 = vcmp.le.f32.partialorder %v1662, %v2252
    %vm2820 = vcmp.le.f32.partialorder %v1663, %v2252
    %vm2821 = vcmp.le.f32.partialorder %v1664, %v2252
    %vm2822 = vcmp.le.f32.partialorder %v1665, %v2252
    %vm2823 = vcmp.le.f32.partialorder %v1666, %v2257
    %vm2824 = vcmp.le.f32.partialorder %v1667, %v2257
    %vm2825 = vcmp.le.f32.partialorder %v1668, %v2257
    %vm2826 = vcmp.le.f32.partialorder %v1669, %v2257
    %vm2827 = vcmp.le.f32.partialorder %v1670, %v2262
    %vm2828 = vcmp.le.f32.partialorder %v1671, %v2262
    %vm2829 = vcmp.le.f32.partialorder %v1672, %v2262
    %vm2830 = vcmp.le.f32.partialorder %v1673, %v2262
    %vm2831 = vcmp.le.f32.partialorder %v1674, %v2267
    %vm2832 = vcmp.le.f32.partialorder %v1675, %v2267
    %vm2833 = vcmp.le.f32.partialorder %v1676, %v2267
    %vm2834 = vcmp.le.f32.partialorder %v1677, %v2267
    %vm2835 = vcmp.le.f32.partialorder %v1678, %v2272
    %vm2836 = vcmp.le.f32.partialorder %v1679, %v2272
    %vm2837 = vcmp.le.f32.partialorder %v1680, %v2272
    %vm2838 = vcmp.le.f32.partialorder %v1681, %v2272
    %vm2839 = vcmp.le.f32.partialorder %v1682, %v2277
    %vm2840 = vcmp.le.f32.partialorder %v1683, %v2277
    %vm2841 = vcmp.le.f32.partialorder %v1684, %v2277
    %vm2842 = vcmp.le.f32.partialorder %v1685, %v2277
    %vm2843 = vcmp.le.f32.partialorder %v1686, %v2282
    %vm2844 = vcmp.le.f32.partialorder %v1687, %v2282
    %vm2845 = vcmp.le.f32.partialorder %v1688, %v2282
    %vm2846 = vcmp.le.f32.partialorder %v1689, %v2282
    %vm2847 = vcmp.le.f32.partialorder %v1690, %v2287
    %vm2848 = vcmp.le.f32.partialorder %v1691, %v2287
    %vm2849 = vcmp.le.f32.partialorder %v1692, %v2287
    %vm2850 = vcmp.le.f32.partialorder %v1693, %v2287
    %vm2851 = vcmp.le.f32.partialorder %v1694, %v2292
    %vm2852 = vcmp.le.f32.partialorder %v1695, %v2292
    %vm2853 = vcmp.le.f32.partialorder %v1696, %v2292
    %vm2854 = vcmp.le.f32.partialorder %v1697, %v2292
    %vm2855 = vcmp.le.f32.partialorder %v1698, %v2297
    %vm2856 = vcmp.le.f32.partialorder %v1699, %v2297
    %vm2857 = vcmp.le.f32.partialorder %v1700, %v2297
    %vm2858 = vcmp.le.f32.partialorder %v1701, %v2297
    %vm2859 = vcmp.le.f32.partialorder %v1702, %v2302
    %vm2860 = vcmp.le.f32.partialorder %v1703, %v2302
    %vm2861 = vcmp.le.f32.partialorder %v1704, %v2302
    %vm2862 = vcmp.le.f32.partialorder %v1705, %v2302
    %vm2863 = vcmp.le.f32.partialorder %v1706, %v2307
    %vm2864 = vcmp.le.f32.partialorder %v1707, %v2307
    %vm2865 = vcmp.le.f32.partialorder %v1708, %v2307
    %vm2866 = vcmp.le.f32.partialorder %v1709, %v2307
    %vm2867 = vcmp.le.f32.partialorder %v1710, %v2312
    %vm2868 = vcmp.le.f32.partialorder %v1711, %v2312
    %vm2869 = vcmp.le.f32.partialorder %v1712, %v2312
    %vm2870 = vcmp.le.f32.partialorder %v1713, %v2312
    %vm2871 = vcmp.le.f32.partialorder %v1714, %v2317
    %vm2872 = vcmp.le.f32.partialorder %v1715, %v2317
    %vm2873 = vcmp.le.f32.partialorder %v1716, %v2317
    %vm2874 = vcmp.le.f32.partialorder %v1717, %v2317
    %vm2875 = vcmp.le.f32.partialorder %v1718, %v2322
    %vm2876 = vcmp.le.f32.partialorder %v1719, %v2322
    %vm2877 = vcmp.le.f32.partialorder %v1720, %v2322
    %vm2878 = vcmp.le.f32.partialorder %v1721, %v2322
    %vm2879 = vcmp.le.f32.partialorder %v1722, %v2327
    %vm2880 = vcmp.le.f32.partialorder %v1723, %v2327
    %vm2881 = vcmp.le.f32.partialorder %v1724, %v2327
    %vm2882 = vcmp.le.f32.partialorder %v1725, %v2327
    %vm2883 = vcmp.le.f32.partialorder %v1726, %v2332
    %vm2884 = vcmp.le.f32.partialorder %v1727, %v2332
    %vm2885 = vcmp.le.f32.partialorder %v1728, %v2332
    %vm2886 = vcmp.le.f32.partialorder %v1729, %v2332
    %vm2887 = vcmp.le.f32.partialorder %v1730, %v2337
    %vm2888 = vcmp.le.f32.partialorder %v1731, %v2337
    %vm2889 = vcmp.le.f32.partialorder %v1732, %v2337
    %vm2890 = vcmp.le.f32.partialorder %v1733, %v2337
    %vm2891 = vcmp.le.f32.partialorder %v1734, %v2342
    %vm2892 = vcmp.le.f32.partialorder %v1735, %v2342
    %vm2893 = vcmp.le.f32.partialorder %v1736, %v2342
    %vm2894 = vcmp.le.f32.partialorder %v1737, %v2342
    %vm2895 = vcmp.le.f32.partialorder %v1738, %v2347
    %vm2896 = vcmp.le.f32.partialorder %v1739, %v2347
    %vm2897 = vcmp.le.f32.partialorder %v1740, %v2347
    %vm2898 = vcmp.le.f32.partialorder %v1741, %v2347
    %vm2899 = vcmp.le.f32.partialorder %v1742, %v2352
    %vm2900 = vcmp.le.f32.partialorder %v1743, %v2352
    %vm2901 = vcmp.le.f32.partialorder %v1744, %v2352
    %vm2902 = vcmp.le.f32.partialorder %v1745, %v2352
    %vm2903 = vcmp.le.f32.partialorder %v1746, %v2357
    %vm2904 = vcmp.le.f32.partialorder %v1747, %v2357
    %vm2905 = vcmp.le.f32.partialorder %v1748, %v2357
    %vm2906 = vcmp.le.f32.partialorder %v1749, %v2357
    %vm2907 = vcmp.le.f32.partialorder %v1750, %v2362
    %vm2908 = vcmp.le.f32.partialorder %v1751, %v2362
    %vm2909 = vcmp.le.f32.partialorder %v1752, %v2362
    %vm2910 = vcmp.le.f32.partialorder %v1753, %v2362
    %vm2911 = vcmp.le.f32.partialorder %v1754, %v2367
    %vm2912 = vcmp.le.f32.partialorder %v1755, %v2367
    %vm2913 = vcmp.le.f32.partialorder %v1756, %v2367
    %vm2914 = vcmp.le.f32.partialorder %v1757, %v2367
    %vm2915 = vcmp.le.f32.partialorder %v1758, %v2372
    %vm2916 = vcmp.le.f32.partialorder %v1759, %v2372
    %vm2917 = vcmp.le.f32.partialorder %v1760, %v2372
    %vm2918 = vcmp.le.f32.partialorder %v1761, %v2372
    %vm2919 = vcmp.le.f32.partialorder %v1762, %v2377
    %vm2920 = vcmp.le.f32.partialorder %v1763, %v2377
    %vm2921 = vcmp.le.f32.partialorder %v1764, %v2377
    %vm2922 = vcmp.le.f32.partialorder %v1765, %v2377
    %vm2923 = vcmp.le.f32.partialorder %v1766, %v2382
    %vm2924 = vcmp.le.f32.partialorder %v1767, %v2382
    %vm2925 = vcmp.le.f32.partialorder %v1768, %v2382
    %vm2926 = vcmp.le.f32.partialorder %v1769, %v2382
    %vm2927 = vcmp.le.f32.partialorder %v1770, %v2387
    %vm2928 = vcmp.le.f32.partialorder %v1771, %v2387
    %vm2929 = vcmp.le.f32.partialorder %v1772, %v2387
    %vm2930 = vcmp.le.f32.partialorder %v1773, %v2387
    %vm2931 = vcmp.le.f32.partialorder %v1774, %v2392
    %vm2932 = vcmp.le.f32.partialorder %v1775, %v2392
    %vm2933 = vcmp.le.f32.partialorder %v1776, %v2392
    %vm2934 = vcmp.le.f32.partialorder %v1777, %v2392
    %vm2935 = vcmp.le.f32.partialorder %v1778, %v2397
    %vm2936 = vcmp.le.f32.partialorder %v1779, %v2397
    %vm2937 = vcmp.le.f32.partialorder %v1780, %v2397
    %vm2938 = vcmp.le.f32.partialorder %v1781, %v2397
    %vm2939 = vcmp.le.f32.partialorder %v1782, %v2402
    %vm2940 = vcmp.le.f32.partialorder %v1783, %v2402
    %vm2941 = vcmp.le.f32.partialorder %v1784, %v2402
    %vm2942 = vcmp.le.f32.partialorder %v1785, %v2402
    %vm2943 = vcmp.le.f32.partialorder %v1786, %v2407
    %vm2944 = vcmp.le.f32.partialorder %v1787, %v2407
    %vm2945 = vcmp.le.f32.partialorder %v1788, %v2407
    %vm2946 = vcmp.le.f32.partialorder %v1789, %v2407
    %vm2947 = vcmp.le.f32.partialorder %v1790, %v2412
    %vm2948 = vcmp.le.f32.partialorder %v1791, %v2412
    %vm2949 = vcmp.le.f32.partialorder %v1792, %v2412
    %vm2950 = vcmp.le.f32.partialorder %v1793, %v2412
    %vm2951 = vcmp.le.f32.partialorder %v1794, %v2417
    %vm2952 = vcmp.le.f32.partialorder %v1795, %v2417
    %vm2953 = vcmp.le.f32.partialorder %v1796, %v2417
    %vm2954 = vcmp.le.f32.partialorder %v1797, %v2417
    %vm2955 = vcmp.le.f32.partialorder %v1798, %v2422
    %vm2956 = vcmp.le.f32.partialorder %v1799, %v2422
    %vm2957 = vcmp.le.f32.partialorder %v1800, %v2422
    %vm2958 = vcmp.le.f32.partialorder %v1801, %v2422
    %vm2959 = vcmp.le.f32.partialorder %v1802, %v2427
    %vm2960 = vcmp.le.f32.partialorder %v1803, %v2427
    %vm2961 = vcmp.le.f32.partialorder %v1804, %v2427
    %vm2962 = vcmp.le.f32.partialorder %v1805, %v2427
    %vm2963 = vcmp.le.f32.partialorder %v1806, %v2432
    %vm2964 = vcmp.le.f32.partialorder %v1807, %v2432
    %vm2965 = vcmp.le.f32.partialorder %v1808, %v2432
    %vm2966 = vcmp.le.f32.partialorder %v1809, %v2432
    %vm2967 = vcmp.le.f32.partialorder %v1810, %v2437
    %vm2968 = vcmp.le.f32.partialorder %v1811, %v2437
    %vm2969 = vcmp.le.f32.partialorder %v1812, %v2437
    %vm2970 = vcmp.le.f32.partialorder %v1813, %v2437
    %vm2971 = vcmp.le.f32.partialorder %v1814, %v2442
    %vm2972 = vcmp.le.f32.partialorder %v1815, %v2442
    %vm2973 = vcmp.le.f32.partialorder %v1816, %v2442
    %vm2974 = vcmp.le.f32.partialorder %v1817, %v2442
    %vm2975 = vcmp.le.f32.partialorder %v1818, %v2447
    %vm2976 = vcmp.le.f32.partialorder %v1819, %v2447
    %vm2977 = vcmp.le.f32.partialorder %v1820, %v2447
    %vm2978 = vcmp.le.f32.partialorder %v1821, %v2447
    %vm2979 = vcmp.le.f32.partialorder %v1822, %v2452
    %vm2980 = vcmp.le.f32.partialorder %v1823, %v2452
    %vm2981 = vcmp.le.f32.partialorder %v1824, %v2452
    %vm2982 = vcmp.le.f32.partialorder %v1825, %v2452
    %vm2983 = vcmp.le.f32.partialorder %v1826, %v2457
    %vm2984 = vcmp.le.f32.partialorder %v1827, %v2457
    %vm2985 = vcmp.le.f32.partialorder %v1828, %v2457
    %vm2986 = vcmp.le.f32.partialorder %v1829, %v2457
    %vm2987 = vcmp.le.f32.partialorder %v1830, %v2462
    %vm2988 = vcmp.le.f32.partialorder %v1831, %v2462
    %vm2989 = vcmp.le.f32.partialorder %v1832, %v2462
    %vm2990 = vcmp.le.f32.partialorder %v1833, %v2462
    %vm2991 = vcmp.le.f32.partialorder %v1834, %v2467
    %vm2992 = vcmp.le.f32.partialorder %v1835, %v2467
    %vm2993 = vcmp.le.f32.partialorder %v1836, %v2467
    %vm2994 = vcmp.le.f32.partialorder %v1837, %v2467
    %vm2995 = vcmp.le.f32.partialorder %v1838, %v2472
    %vm2996 = vcmp.le.f32.partialorder %v1839, %v2472
    %vm2997 = vcmp.le.f32.partialorder %v1840, %v2472
    %vm2998 = vcmp.le.f32.partialorder %v1841, %v2472
    %vm2999 = vcmp.le.f32.partialorder %v1842, %v2477
    %vm3000 = vcmp.le.f32.partialorder %v1843, %v2477
    %vm3001 = vcmp.le.f32.partialorder %v1844, %v2477
    %vm3002 = vcmp.le.f32.partialorder %v1845, %v2477
    %vm3003 = vcmp.le.f32.partialorder %v1846, %v2482
    %vm3004 = vcmp.le.f32.partialorder %v1847, %v2482
    %vm3005 = vcmp.le.f32.partialorder %v1848, %v2482
    %vm3006 = vcmp.le.f32.partialorder %v1849, %v2482
    %vm3007 = vcmp.le.f32.partialorder %v1850, %v2487
    %vm3008 = vcmp.le.f32.partialorder %v1851, %v2487
    %vm3009 = vcmp.le.f32.partialorder %v1852, %v2487
    %vm3010 = vcmp.le.f32.partialorder %v1853, %v2487
    %vm3011 = vcmp.le.f32.partialorder %v1854, %v2492
    %vm3012 = vcmp.le.f32.partialorder %v1855, %v2492
    %vm3013 = vcmp.le.f32.partialorder %v1856, %v2492
    %vm3014 = vcmp.le.f32.partialorder %v1857, %v2492
    %vm3015 = vcmp.le.f32.partialorder %v1858, %v2497
    %vm3016 = vcmp.le.f32.partialorder %v1859, %v2497
    %vm3017 = vcmp.le.f32.partialorder %v1860, %v2497
    %vm3018 = vcmp.le.f32.partialorder %v1861, %v2497
    %vm3019 = vcmp.le.f32.partialorder %v1862, %v2502
    %vm3020 = vcmp.le.f32.partialorder %v1863, %v2502
    %vm3021 = vcmp.le.f32.partialorder %v1864, %v2502
    %vm3022 = vcmp.le.f32.partialorder %v1865, %v2502
    %vm3023 = vcmp.le.f32.partialorder %v1866, %v2507
    %vm3024 = vcmp.le.f32.partialorder %v1867, %v2507
    %vm3025 = vcmp.le.f32.partialorder %v1868, %v2507
    %vm3026 = vcmp.le.f32.partialorder %v1869, %v2507
    %vm3027 = vcmp.le.f32.partialorder %v1870, %v2512
    %vm3028 = vcmp.le.f32.partialorder %v1871, %v2512
    %vm3029 = vcmp.le.f32.partialorder %v1872, %v2512
    %vm3030 = vcmp.le.f32.partialorder %v1873, %v2512
    %vm3031 = vcmp.le.f32.partialorder %v1874, %v2517
    %vm3032 = vcmp.le.f32.partialorder %v1875, %v2517
    %vm3033 = vcmp.le.f32.partialorder %v1876, %v2517
    %vm3034 = vcmp.le.f32.partialorder %v1877, %v2517
    %v3035 = vsel %vm2523, %v2519, 512
    %v3036 = vsel %vm2524, %v2520, 512
    %v3037 = vsel %vm2525, %v2521, 512
    %v3038 = vsel %vm2526, %v2522, 512
    %v3039 = vsel %vm2527, %v2519, 512
    %v3040 = vsel %vm2528, %v2520, 512
    %v3041 = vsel %vm2529, %v2521, 512
    %v3042 = vsel %vm2530, %v2522, 512
    %v3043 = vsel %vm2531, %v2519, 512
    %v3044 = vsel %vm2532, %v2520, 512
    %v3045 = vsel %vm2533, %v2521, 512
    %v3046 = vsel %vm2534, %v2522, 512
    %v3047 = vsel %vm2535, %v2519, 512
    %v3048 = vsel %vm2536, %v2520, 512
    %v3049 = vsel %vm2537, %v2521, 512
    %v3050 = vsel %vm2538, %v2522, 512
    %v3051 = vsel %vm2539, %v2519, 512
    %v3052 = vsel %vm2540, %v2520, 512
    %v3053 = vsel %vm2541, %v2521, 512
    %v3054 = vsel %vm2542, %v2522, 512
    %v3055 = vsel %vm2543, %v2519, 512
    %v3056 = vsel %vm2544, %v2520, 512
    %v3057 = vsel %vm2545, %v2521, 512
    %v3058 = vsel %vm2546, %v2522, 512
    %v3059 = vsel %vm2547, %v2519, 512
    %v3060 = vsel %vm2548, %v2520, 512
    %v3061 = vsel %vm2549, %v2521, 512
    %v3062 = vsel %vm2550, %v2522, 512
    %v3063 = vsel %vm2551, %v2519, 512
    %v3064 = vsel %vm2552, %v2520, 512
    %v3065 = vsel %vm2553, %v2521, 512
    %v3066 = vsel %vm2554, %v2522, 512
    %v3067 = vsel %vm2555, %v2519, 512
    %v3068 = vsel %vm2556, %v2520, 512
    %v3069 = vsel %vm2557, %v2521, 512
    %v3070 = vsel %vm2558, %v2522, 512
    %v3071 = vsel %vm2559, %v2519, 512
    %v3072 = vsel %vm2560, %v2520, 512
    %v3073 = vsel %vm2561, %v2521, 512
    %v3074 = vsel %vm2562, %v2522, 512
    %v3075 = vsel %vm2563, %v2519, 512
    %v3076 = vsel %vm2564, %v2520, 512
    %v3077 = vsel %vm2565, %v2521, 512
    %v3078 = vsel %vm2566, %v2522, 512
    %v3079 = vsel %vm2567, %v2519, 512
    %v3080 = vsel %vm2568, %v2520, 512
    %v3081 = vsel %vm2569, %v2521, 512
    %v3082 = vsel %vm2570, %v2522, 512
    %v3083 = vsel %vm2571, %v2519, 512
    %v3084 = vsel %vm2572, %v2520, 512
    %v3085 = vsel %vm2573, %v2521, 512
    %v3086 = vsel %vm2574, %v2522, 512
    %v3087 = vsel %vm2575, %v2519, 512
    %v3088 = vsel %vm2576, %v2520, 512
    %v3089 = vsel %vm2577, %v2521, 512
    %v3090 = vsel %vm2578, %v2522, 512
    %v3091 = vsel %vm2579, %v2519, 512
    %v3092 = vsel %vm2580, %v2520, 512
    %v3093 = vsel %vm2581, %v2521, 512
    %v3094 = vsel %vm2582, %v2522, 512
    %v3095 = vsel %vm2583, %v2519, 512
    %v3096 = vsel %vm2584, %v2520, 512
    %v3097 = vsel %vm2585, %v2521, 512
    %v3098 = vsel %vm2586, %v2522, 512
    %v3099 = vsel %vm2587, %v2519, 512
    %v3100 = vsel %vm2588, %v2520, 512
    %v3101 = vsel %vm2589, %v2521, 512
    %v3102 = vsel %vm2590, %v2522, 512
    %v3103 = vsel %vm2591, %v2519, 512
    %v3104 = vsel %vm2592, %v2520, 512
    %v3105 = vsel %vm2593, %v2521, 512
    %v3106 = vsel %vm2594, %v2522, 512
    %v3107 = vsel %vm2595, %v2519, 512
    %v3108 = vsel %vm2596, %v2520, 512
    %v3109 = vsel %vm2597, %v2521, 512
    %v3110 = vsel %vm2598, %v2522, 512
    %v3111 = vsel %vm2599, %v2519, 512
    %v3112 = vsel %vm2600, %v2520, 512
    %v3113 = vsel %vm2601, %v2521, 512
    %v3114 = vsel %vm2602, %v2522, 512
    %v3115 = vsel %vm2603, %v2519, 512
    %v3116 = vsel %vm2604, %v2520, 512
    %v3117 = vsel %vm2605, %v2521, 512
    %v3118 = vsel %vm2606, %v2522, 512
    %v3119 = vsel %vm2607, %v2519, 512
    %v3120 = vsel %vm2608, %v2520, 512
    %v3121 = vsel %vm2609, %v2521, 512
    %v3122 = vsel %vm2610, %v2522, 512
    %v3123 = vsel %vm2611, %v2519, 512
    %v3124 = vsel %vm2612, %v2520, 512
    %v3125 = vsel %vm2613, %v2521, 512
    %v3126 = vsel %vm2614, %v2522, 512
    %v3127 = vsel %vm2615, %v2519, 512
    %v3128 = vsel %vm2616, %v2520, 512
    %v3129 = vsel %vm2617, %v2521, 512
    %v3130 = vsel %vm2618, %v2522, 512
    %v3131 = vsel %vm2619, %v2519, 512
    %v3132 = vsel %vm2620, %v2520, 512
    %v3133 = vsel %vm2621, %v2521, 512
    %v3134 = vsel %vm2622, %v2522, 512
    %v3135 = vsel %vm2623, %v2519, 512
    %v3136 = vsel %vm2624, %v2520, 512
    %v3137 = vsel %vm2625, %v2521, 512
    %v3138 = vsel %vm2626, %v2522, 512
    %v3139 = vsel %vm2627, %v2519, 512
    %v3140 = vsel %vm2628, %v2520, 512
    %v3141 = vsel %vm2629, %v2521, 512
    %v3142 = vsel %vm2630, %v2522, 512
    %v3143 = vsel %vm2631, %v2519, 512
    %v3144 = vsel %vm2632, %v2520, 512
    %v3145 = vsel %vm2633, %v2521, 512
    %v3146 = vsel %vm2634, %v2522, 512
    %v3147 = vsel %vm2635, %v2519, 512
    %v3148 = vsel %vm2636, %v2520, 512
    %v3149 = vsel %vm2637, %v2521, 512
    %v3150 = vsel %vm2638, %v2522, 512
    %v3151 = vsel %vm2639, %v2519, 512
    %v3152 = vsel %vm2640, %v2520, 512
    %v3153 = vsel %vm2641, %v2521, 512
    %v3154 = vsel %vm2642, %v2522, 512
    %v3155 = vsel %vm2643, %v2519, 512
    %v3156 = vsel %vm2644, %v2520, 512
    %v3157 = vsel %vm2645, %v2521, 512
    %v3158 = vsel %vm2646, %v2522, 512
    %v3159 = vsel %vm2647, %v2519, 512
    %v3160 = vsel %vm2648, %v2520, 512
    %v3161 = vsel %vm2649, %v2521, 512
    %v3162 = vsel %vm2650, %v2522, 512
    %v3163 = vsel %vm2651, %v2519, 512
    %v3164 = vsel %vm2652, %v2520, 512
    %v3165 = vsel %vm2653, %v2521, 512
    %v3166 = vsel %vm2654, %v2522, 512
    %v3167 = vsel %vm2655, %v2519, 512
    %v3168 = vsel %vm2656, %v2520, 512
    %v3169 = vsel %vm2657, %v2521, 512
    %v3170 = vsel %vm2658, %v2522, 512
    %v3171 = vsel %vm2659, %v2519, 512
    %v3172 = vsel %vm2660, %v2520, 512
    %v3173 = vsel %vm2661, %v2521, 512
    %v3174 = vsel %vm2662, %v2522, 512
    %v3175 = vsel %vm2663, %v2519, 512
    %v3176 = vsel %vm2664, %v2520, 512
    %v3177 = vsel %vm2665, %v2521, 512
    %v3178 = vsel %vm2666, %v2522, 512
    %v3179 = vsel %vm2667, %v2519, 512
    %v3180 = vsel %vm2668, %v2520, 512
    %v3181 = vsel %vm2669, %v2521, 512
    %v3182 = vsel %vm2670, %v2522, 512
    %v3183 = vsel %vm2671, %v2519, 512
    %v3184 = vsel %vm2672, %v2520, 512
    %v3185 = vsel %vm2673, %v2521, 512
    %v3186 = vsel %vm2674, %v2522, 512
    %v3187 = vsel %vm2675, %v2519, 512
    %v3188 = vsel %vm2676, %v2520, 512
    %v3189 = vsel %vm2677, %v2521, 512
    %v3190 = vsel %vm2678, %v2522, 512
    %v3191 = vsel %vm2679, %v2519, 512
    %v3192 = vsel %vm2680, %v2520, 512
    %v3193 = vsel %vm2681, %v2521, 512
    %v3194 = vsel %vm2682, %v2522, 512
    %v3195 = vsel %vm2683, %v2519, 512
    %v3196 = vsel %vm2684, %v2520, 512
    %v3197 = vsel %vm2685, %v2521, 512
    %v3198 = vsel %vm2686, %v2522, 512
    %v3199 = vsel %vm2687, %v2519, 512
    %v3200 = vsel %vm2688, %v2520, 512
    %v3201 = vsel %vm2689, %v2521, 512
    %v3202 = vsel %vm2690, %v2522, 512
    %v3203 = vsel %vm2691, %v2519, 512
    %v3204 = vsel %vm2692, %v2520, 512
    %v3205 = vsel %vm2693, %v2521, 512
    %v3206 = vsel %vm2694, %v2522, 512
    %v3207 = vsel %vm2695, %v2519, 512
    %v3208 = vsel %vm2696, %v2520, 512
    %v3209 = vsel %vm2697, %v2521, 512
    %v3210 = vsel %vm2698, %v2522, 512
    %v3211 = vsel %vm2699, %v2519, 512
    %v3212 = vsel %vm2700, %v2520, 512
    %v3213 = vsel %vm2701, %v2521, 512
    %v3214 = vsel %vm2702, %v2522, 512
    %v3215 = vsel %vm2703, %v2519, 512
    %v3216 = vsel %vm2704, %v2520, 512
    %v3217 = vsel %vm2705, %v2521, 512
    %v3218 = vsel %vm2706, %v2522, 512
    %v3219 = vsel %vm2707, %v2519, 512
    %v3220 = vsel %vm2708, %v2520, 512
    %v3221 = vsel %vm2709, %v2521, 512
    %v3222 = vsel %vm2710, %v2522, 512
    %v3223 = vsel %vm2711, %v2519, 512
    %v3224 = vsel %vm2712, %v2520, 512
    %v3225 = vsel %vm2713, %v2521, 512
    %v3226 = vsel %vm2714, %v2522, 512
    %v3227 = vsel %vm2715, %v2519, 512
    %v3228 = vsel %vm2716, %v2520, 512
    %v3229 = vsel %vm2717, %v2521, 512
    %v3230 = vsel %vm2718, %v2522, 512
    %v3231 = vsel %vm2719, %v2519, 512
    %v3232 = vsel %vm2720, %v2520, 512
    %v3233 = vsel %vm2721, %v2521, 512
    %v3234 = vsel %vm2722, %v2522, 512
    %v3235 = vsel %vm2723, %v2519, 512
    %v3236 = vsel %vm2724, %v2520, 512
    %v3237 = vsel %vm2725, %v2521, 512
    %v3238 = vsel %vm2726, %v2522, 512
    %v3239 = vsel %vm2727, %v2519, 512
    %v3240 = vsel %vm2728, %v2520, 512
    %v3241 = vsel %vm2729, %v2521, 512
    %v3242 = vsel %vm2730, %v2522, 512
    %v3243 = vsel %vm2731, %v2519, 512
    %v3244 = vsel %vm2732, %v2520, 512
    %v3245 = vsel %vm2733, %v2521, 512
    %v3246 = vsel %vm2734, %v2522, 512
    %v3247 = vsel %vm2735, %v2519, 512
    %v3248 = vsel %vm2736, %v2520, 512
    %v3249 = vsel %vm2737, %v2521, 512
    %v3250 = vsel %vm2738, %v2522, 512
    %v3251 = vsel %vm2739, %v2519, 512
    %v3252 = vsel %vm2740, %v2520, 512
    %v3253 = vsel %vm2741, %v2521, 512
    %v3254 = vsel %vm2742, %v2522, 512
    %v3255 = vsel %vm2743, %v2519, 512
    %v3256 = vsel %vm2744, %v2520, 512
    %v3257 = vsel %vm2745, %v2521, 512
    %v3258 = vsel %vm2746, %v2522, 512
    %v3259 = vsel %vm2747, %v2519, 512
    %v3260 = vsel %vm2748, %v2520, 512
    %v3261 = vsel %vm2749, %v2521, 512
    %v3262 = vsel %vm2750, %v2522, 512
    %v3263 = vsel %vm2751, %v2519, 512
    %v3264 = vsel %vm2752, %v2520, 512
    %v3265 = vsel %vm2753, %v2521, 512
    %v3266 = vsel %vm2754, %v2522, 512
    %v3267 = vsel %vm2755, %v2519, 512
    %v3268 = vsel %vm2756, %v2520, 512
    %v3269 = vsel %vm2757, %v2521, 512
    %v3270 = vsel %vm2758, %v2522, 512
    %v3271 = vsel %vm2759, %v2519, 512
    %v3272 = vsel %vm2760, %v2520, 512
    %v3273 = vsel %vm2761, %v2521, 512
    %v3274 = vsel %vm2762, %v2522, 512
    %v3275 = vsel %vm2763, %v2519, 512
    %v3276 = vsel %vm2764, %v2520, 512
    %v3277 = vsel %vm2765, %v2521, 512
    %v3278 = vsel %vm2766, %v2522, 512
    %v3279 = vsel %vm2767, %v2519, 512
    %v3280 = vsel %vm2768, %v2520, 512
    %v3281 = vsel %vm2769, %v2521, 512
    %v3282 = vsel %vm2770, %v2522, 512
    %v3283 = vsel %vm2771, %v2519, 512
    %v3284 = vsel %vm2772, %v2520, 512
    %v3285 = vsel %vm2773, %v2521, 512
    %v3286 = vsel %vm2774, %v2522, 512
    %v3287 = vsel %vm2775, %v2519, 512
    %v3288 = vsel %vm2776, %v2520, 512
    %v3289 = vsel %vm2777, %v2521, 512
    %v3290 = vsel %vm2778, %v2522, 512
    %v3291 = vsel %vm2779, %v2519, 512
    %v3292 = vsel %vm2780, %v2520, 512
    %v3293 = vsel %vm2781, %v2521, 512
    %v3294 = vsel %vm2782, %v2522, 512
    %v3295 = vsel %vm2783, %v2519, 512
    %v3296 = vsel %vm2784, %v2520, 512
    %v3297 = vsel %vm2785, %v2521, 512
    %v3298 = vsel %vm2786, %v2522, 512
    %v3299 = vsel %vm2787, %v2519, 512
    %v3300 = vsel %vm2788, %v2520, 512
    %v3301 = vsel %vm2789, %v2521, 512
    %v3302 = vsel %vm2790, %v2522, 512
    %v3303 = vsel %vm2791, %v2519, 512
    %v3304 = vsel %vm2792, %v2520, 512
    %v3305 = vsel %vm2793, %v2521, 512
    %v3306 = vsel %vm2794, %v2522, 512
    %v3307 = vsel %vm2795, %v2519, 512
    %v3308 = vsel %vm2796, %v2520, 512
    %v3309 = vsel %vm2797, %v2521, 512
    %v3310 = vsel %vm2798, %v2522, 512
    %v3311 = vsel %vm2799, %v2519, 512
    %v3312 = vsel %vm2800, %v2520, 512
    %v3313 = vsel %vm2801, %v2521, 512
    %v3314 = vsel %vm2802, %v2522, 512
    %v3315 = vsel %vm2803, %v2519, 512
    %v3316 = vsel %vm2804, %v2520, 512
    %v3317 = vsel %vm2805, %v2521, 512
    %v3318 = vsel %vm2806, %v2522, 512
    %v3319 = vsel %vm2807, %v2519, 512
    %v3320 = vsel %vm2808, %v2520, 512
    %v3321 = vsel %vm2809, %v2521, 512
    %v3322 = vsel %vm2810, %v2522, 512
    %v3323 = vsel %vm2811, %v2519, 512
    %v3324 = vsel %vm2812, %v2520, 512
    %v3325 = vsel %vm2813, %v2521, 512
    %v3326 = vsel %vm2814, %v2522, 512
    %v3327 = vsel %vm2815, %v2519, 512
    %v3328 = vsel %vm2816, %v2520, 512
    %v3329 = vsel %vm2817, %v2521, 512
    %v3330 = vsel %vm2818, %v2522, 512
    %v3331 = vsel %vm2819, %v2519, 512
    %v3332 = vsel %vm2820, %v2520, 512
    %v3333 = vsel %vm2821, %v2521, 512
    %v3334 = vsel %vm2822, %v2522, 512
    %v3335 = vsel %vm2823, %v2519, 512
    %v3336 = vsel %vm2824, %v2520, 512
    %v3337 = vsel %vm2825, %v2521, 512
    %v3338 = vsel %vm2826, %v2522, 512
    %v3339 = vsel %vm2827, %v2519, 512
    %v3340 = vsel %vm2828, %v2520, 512
    %v3341 = vsel %vm2829, %v2521, 512
    %v3342 = vsel %vm2830, %v2522, 512
    %v3343 = vsel %vm2831, %v2519, 512
    %v3344 = vsel %vm2832, %v2520, 512
    %v3345 = vsel %vm2833, %v2521, 512
    %v3346 = vsel %vm2834, %v2522, 512
    %v3347 = vsel %vm2835, %v2519, 512
    %v3348 = vsel %vm2836, %v2520, 512
    %v3349 = vsel %vm2837, %v2521, 512
    %v3350 = vsel %vm2838, %v2522, 512
    %v3351 = vsel %vm2839, %v2519, 512
    %v3352 = vsel %vm2840, %v2520, 512
    %v3353 = vsel %vm2841, %v2521, 512
    %v3354 = vsel %vm2842, %v2522, 512
    %v3355 = vsel %vm2843, %v2519, 512
    %v3356 = vsel %vm2844, %v2520, 512
    %v3357 = vsel %vm2845, %v2521, 512
    %v3358 = vsel %vm2846, %v2522, 512
    %v3359 = vsel %vm2847, %v2519, 512
    %v3360 = vsel %vm2848, %v2520, 512
    %v3361 = vsel %vm2849, %v2521, 512
    %v3362 = vsel %vm2850, %v2522, 512
    %v3363 = vsel %vm2851, %v2519, 512
    %v3364 = vsel %vm2852, %v2520, 512
    %v3365 = vsel %vm2853, %v2521, 512
    %v3366 = vsel %vm2854, %v2522, 512
    %v3367 = vsel %vm2855, %v2519, 512
    %v3368 = vsel %vm2856, %v2520, 512
    %v3369 = vsel %vm2857, %v2521, 512
    %v3370 = vsel %vm2858, %v2522, 512
    %v3371 = vsel %vm2859, %v2519, 512
    %v3372 = vsel %vm2860, %v2520, 512
    %v3373 = vsel %vm2861, %v2521, 512
    %v3374 = vsel %vm2862, %v2522, 512
    %v3375 = vsel %vm2863, %v2519, 512
    %v3376 = vsel %vm2864, %v2520, 512
    %v3377 = vsel %vm2865, %v2521, 512
    %v3378 = vsel %vm2866, %v2522, 512
    %v3379 = vsel %vm2867, %v2519, 512
    %v3380 = vsel %vm2868, %v2520, 512
    %v3381 = vsel %vm2869, %v2521, 512
    %v3382 = vsel %vm2870, %v2522, 512
    %v3383 = vsel %vm2871, %v2519, 512
    %v3384 = vsel %vm2872, %v2520, 512
    %v3385 = vsel %vm2873, %v2521, 512
    %v3386 = vsel %vm2874, %v2522, 512
    %v3387 = vsel %vm2875, %v2519, 512
    %v3388 = vsel %vm2876, %v2520, 512
    %v3389 = vsel %vm2877, %v2521, 512
    %v3390 = vsel %vm2878, %v2522, 512
    %v3391 = vsel %vm2879, %v2519, 512
    %v3392 = vsel %vm2880, %v2520, 512
    %v3393 = vsel %vm2881, %v2521, 512
    %v3394 = vsel %vm2882, %v2522, 512
    %v3395 = vsel %vm2883, %v2519, 512
    %v3396 = vsel %vm2884, %v2520, 512
    %v3397 = vsel %vm2885, %v2521, 512
    %v3398 = vsel %vm2886, %v2522, 512
    %v3399 = vsel %vm2887, %v2519, 512
    %v3400 = vsel %vm2888, %v2520, 512
    %v3401 = vsel %vm2889, %v2521, 512
    %v3402 = vsel %vm2890, %v2522, 512
    %v3403 = vsel %vm2891, %v2519, 512
    %v3404 = vsel %vm2892, %v2520, 512
    %v3405 = vsel %vm2893, %v2521, 512
    %v3406 = vsel %vm2894, %v2522, 512
    %v3407 = vsel %vm2895, %v2519, 512
    %v3408 = vsel %vm2896, %v2520, 512
    %v3409 = vsel %vm2897, %v2521, 512
    %v3410 = vsel %vm2898, %v2522, 512
    %v3411 = vsel %vm2899, %v2519, 512
    %v3412 = vsel %vm2900, %v2520, 512
    %v3413 = vsel %vm2901, %v2521, 512
    %v3414 = vsel %vm2902, %v2522, 512
    %v3415 = vsel %vm2903, %v2519, 512
    %v3416 = vsel %vm2904, %v2520, 512
    %v3417 = vsel %vm2905, %v2521, 512
    %v3418 = vsel %vm2906, %v2522, 512
    %v3419 = vsel %vm2907, %v2519, 512
    %v3420 = vsel %vm2908, %v2520, 512
    %v3421 = vsel %vm2909, %v2521, 512
    %v3422 = vsel %vm2910, %v2522, 512
    %v3423 = vsel %vm2911, %v2519, 512
    %v3424 = vsel %vm2912, %v2520, 512
    %v3425 = vsel %vm2913, %v2521, 512
    %v3426 = vsel %vm2914, %v2522, 512
    %v3427 = vsel %vm2915, %v2519, 512
    %v3428 = vsel %vm2916, %v2520, 512
    %v3429 = vsel %vm2917, %v2521, 512
    %v3430 = vsel %vm2918, %v2522, 512
    %v3431 = vsel %vm2919, %v2519, 512
    %v3432 = vsel %vm2920, %v2520, 512
    %v3433 = vsel %vm2921, %v2521, 512
    %v3434 = vsel %vm2922, %v2522, 512
    %v3435 = vsel %vm2923, %v2519, 512
    %v3436 = vsel %vm2924, %v2520, 512
    %v3437 = vsel %vm2925, %v2521, 512
    %v3438 = vsel %vm2926, %v2522, 512
    %v3439 = vsel %vm2927, %v2519, 512
    %v3440 = vsel %vm2928, %v2520, 512
    %v3441 = vsel %vm2929, %v2521, 512
    %v3442 = vsel %vm2930, %v2522, 512
    %v3443 = vsel %vm2931, %v2519, 512
    %v3444 = vsel %vm2932, %v2520, 512
    %v3445 = vsel %vm2933, %v2521, 512
    %v3446 = vsel %vm2934, %v2522, 512
    %v3447 = vsel %vm2935, %v2519, 512
    %v3448 = vsel %vm2936, %v2520, 512
    %v3449 = vsel %vm2937, %v2521, 512
    %v3450 = vsel %vm2938, %v2522, 512
    %v3451 = vsel %vm2939, %v2519, 512
    %v3452 = vsel %vm2940, %v2520, 512
    %v3453 = vsel %vm2941, %v2521, 512
    %v3454 = vsel %vm2942, %v2522, 512
    %v3455 = vsel %vm2943, %v2519, 512
    %v3456 = vsel %vm2944, %v2520, 512
    %v3457 = vsel %vm2945, %v2521, 512
    %v3458 = vsel %vm2946, %v2522, 512
    %v3459 = vsel %vm2947, %v2519, 512
    %v3460 = vsel %vm2948, %v2520, 512
    %v3461 = vsel %vm2949, %v2521, 512
    %v3462 = vsel %vm2950, %v2522, 512
    %v3463 = vsel %vm2951, %v2519, 512
    %v3464 = vsel %vm2952, %v2520, 512
    %v3465 = vsel %vm2953, %v2521, 512
    %v3466 = vsel %vm2954, %v2522, 512
    %v3467 = vsel %vm2955, %v2519, 512
    %v3468 = vsel %vm2956, %v2520, 512
    %v3469 = vsel %vm2957, %v2521, 512
    %v3470 = vsel %vm2958, %v2522, 512
    %v3471 = vsel %vm2959, %v2519, 512
    %v3472 = vsel %vm2960, %v2520, 512
    %v3473 = vsel %vm2961, %v2521, 512
    %v3474 = vsel %vm2962, %v2522, 512
    %v3475 = vsel %vm2963, %v2519, 512
    %v3476 = vsel %vm2964, %v2520, 512
    %v3477 = vsel %vm2965, %v2521, 512
    %v3478 = vsel %vm2966, %v2522, 512
    %v3479 = vsel %vm2967, %v2519, 512
    %v3480 = vsel %vm2968, %v2520, 512
    %v3481 = vsel %vm2969, %v2521, 512
    %v3482 = vsel %vm2970, %v2522, 512
    %v3483 = vsel %vm2971, %v2519, 512
    %v3484 = vsel %vm2972, %v2520, 512
    %v3485 = vsel %vm2973, %v2521, 512
    %v3486 = vsel %vm2974, %v2522, 512
    %v3487 = vsel %vm2975, %v2519, 512
    %v3488 = vsel %vm2976, %v2520, 512
    %v3489 = vsel %vm2977, %v2521, 512
    %v3490 = vsel %vm2978, %v2522, 512
    %v3491 = vsel %vm2979, %v2519, 512
    %v3492 = vsel %vm2980, %v2520, 512
    %v3493 = vsel %vm2981, %v2521, 512
    %v3494 = vsel %vm2982, %v2522, 512
    %v3495 = vsel %vm2983, %v2519, 512
    %v3496 = vsel %vm2984, %v2520, 512
    %v3497 = vsel %vm2985, %v2521, 512
    %v3498 = vsel %vm2986, %v2522, 512
    %v3499 = vsel %vm2987, %v2519, 512
    %v3500 = vsel %vm2988, %v2520, 512
    %v3501 = vsel %vm2989, %v2521, 512
    %v3502 = vsel %vm2990, %v2522, 512
    %v3503 = vsel %vm2991, %v2519, 512
    %v3504 = vsel %vm2992, %v2520, 512
    %v3505 = vsel %vm2993, %v2521, 512
    %v3506 = vsel %vm2994, %v2522, 512
    %v3507 = vsel %vm2995, %v2519, 512
    %v3508 = vsel %vm2996, %v2520, 512
    %v3509 = vsel %vm2997, %v2521, 512
    %v3510 = vsel %vm2998, %v2522, 512
    %v3511 = vsel %vm2999, %v2519, 512
    %v3512 = vsel %vm3000, %v2520, 512
    %v3513 = vsel %vm3001, %v2521, 512
    %v3514 = vsel %vm3002, %v2522, 512
    %v3515 = vsel %vm3003, %v2519, 512
    %v3516 = vsel %vm3004, %v2520, 512
    %v3517 = vsel %vm3005, %v2521, 512
    %v3518 = vsel %vm3006, %v2522, 512
    %v3519 = vsel %vm3007, %v2519, 512
    %v3520 = vsel %vm3008, %v2520, 512
    %v3521 = vsel %vm3009, %v2521, 512
    %v3522 = vsel %vm3010, %v2522, 512
    %v3523 = vsel %vm3011, %v2519, 512
    %v3524 = vsel %vm3012, %v2520, 512
    %v3525 = vsel %vm3013, %v2521, 512
    %v3526 = vsel %vm3014, %v2522, 512
    %v3527 = vsel %vm3015, %v2519, 512
    %v3528 = vsel %vm3016, %v2520, 512
    %v3529 = vsel %vm3017, %v2521, 512
    %v3530 = vsel %vm3018, %v2522, 512
    %v3531 = vsel %vm3019, %v2519, 512
    %v3532 = vsel %vm3020, %v2520, 512
    %v3533 = vsel %vm3021, %v2521, 512
    %v3534 = vsel %vm3022, %v2522, 512
    %v3535 = vsel %vm3023, %v2519, 512
    %v3536 = vsel %vm3024, %v2520, 512
    %v3537 = vsel %vm3025, %v2521, 512
    %v3538 = vsel %vm3026, %v2522, 512
    %v3539 = vsel %vm3027, %v2519, 512
    %v3540 = vsel %vm3028, %v2520, 512
    %v3541 = vsel %vm3029, %v2521, 512
    %v3542 = vsel %vm3030, %v2522, 512
    %v3543 = vsel %vm3031, %v2519, 512
    %v3544 = vsel %vm3032, %v2520, 512
    %v3545 = vsel %vm3033, %v2521, 512
    %v3546 = vsel %vm3034, %v2522, 512
    %vm3547 = vcmp.lt.s32.totalorder %v3035, %v3036
    %v3548 = vsel %vm3547, %v3035, %v3036
    %vm3549 = vcmp.lt.s32.totalorder %v3548, %v3037
    %v3550 = vsel %vm3549, %v3548, %v3037
    %vm3551 = vcmp.lt.s32.totalorder %v3550, %v3038
    %v3552 = vsel %vm3551, %v3550, %v3038
    %v3553 = vand.u32 %v3552, 65535
    %v3554 = vshra.s32 %v3552, 16
    %v3555 = vcvt.s32.f32 %v3553
    %v3556 = vcvt.s32.f32 %v3554
    %3557 = vmin.xlane.f32.xlu0 %v3556
    %v3558 = vpop.xlane.xlu0 %3557
    %vm3559 = vcmp.eq.f32.partialorder %v3556, %v3558
    %v3560 = vsel %vm3559, %v3555, inf
    %3561 = vmin.xlane.f32.xlu0 %v3560
    %v3562 = vpop.xlane.xlu0 %3561
    %v3563 = vcvt.f32.s32 %v3562
    %v3564 = vcvt.f32.s32 %v3558
    %v3565 = vshll.u32 %v3564, 16
    %v3566 = vadd.s32 %v3565, %v3563
    %vm3567 = vcmp.lt.s32.totalorder %v3039, %v3040
    %v3568 = vsel %vm3567, %v3039, %v3040
    %vm3569 = vcmp.lt.s32.totalorder %v3568, %v3041
    %v3570 = vsel %vm3569, %v3568, %v3041
    %vm3571 = vcmp.lt.s32.totalorder %v3570, %v3042
    %v3572 = vsel %vm3571, %v3570, %v3042
    %v3573 = vand.u32 %v3572, 65535
    %v3574 = vshra.s32 %v3572, 16
    %v3575 = vcvt.s32.f32 %v3573
    %v3576 = vcvt.s32.f32 %v3574
    %3577 = vmin.xlane.f32.xlu0 %v3576
    %v3578 = vpop.xlane.xlu0 %3577
    %vm3579 = vcmp.eq.f32.partialorder %v3576, %v3578
    %v3580 = vsel %vm3579, %v3575, inf
    %3581 = vmin.xlane.f32.xlu0 %v3580
    %v3582 = vpop.xlane.xlu0 %3581
    %v3583 = vcvt.f32.s32 %v3582
    %v3584 = vcvt.f32.s32 %v3578
    %v3585 = vshll.u32 %v3584, 16
    %v3586 = vadd.s32 %v3585, %v3583
    %vm3587 = vcmp.lt.s32.totalorder %v3043, %v3044
    %v3588 = vsel %vm3587, %v3043, %v3044
    %vm3589 = vcmp.lt.s32.totalorder %v3588, %v3045
    %v3590 = vsel %vm3589, %v3588, %v3045
    %vm3591 = vcmp.lt.s32.totalorder %v3590, %v3046
    %v3592 = vsel %vm3591, %v3590, %v3046
    %v3593 = vand.u32 %v3592, 65535
    %v3594 = vshra.s32 %v3592, 16
    %v3595 = vcvt.s32.f32 %v3593
    %v3596 = vcvt.s32.f32 %v3594
    %3597 = vmin.xlane.f32.xlu0 %v3596
    %v3598 = vpop.xlane.xlu0 %3597
    %vm3599 = vcmp.eq.f32.partialorder %v3596, %v3598
    %v3600 = vsel %vm3599, %v3595, inf
    %3601 = vmin.xlane.f32.xlu0 %v3600
    %v3602 = vpop.xlane.xlu0 %3601
    %v3603 = vcvt.f32.s32 %v3602
    %v3604 = vcvt.f32.s32 %v3598
    %v3605 = vshll.u32 %v3604, 16
    %v3606 = vadd.s32 %v3605, %v3603
    %vm3607 = vcmp.lt.s32.totalorder %v3047, %v3048
    %v3608 = vsel %vm3607, %v3047, %v3048
    %vm3609 = vcmp.lt.s32.totalorder %v3608, %v3049
    %v3610 = vsel %vm3609, %v3608, %v3049
    %vm3611 = vcmp.lt.s32.totalorder %v3610, %v3050
    %v3612 = vsel %vm3611, %v3610, %v3050
    %v3613 = vand.u32 %v3612, 65535
    %v3614 = vshra.s32 %v3612, 16
    %v3615 = vcvt.s32.f32 %v3613
    %v3616 = vcvt.s32.f32 %v3614
    %3617 = vmin.xlane.f32.xlu0 %v3616
    %v3618 = vpop.xlane.xlu0 %3617
    %vm3619 = vcmp.eq.f32.partialorder %v3616, %v3618
    %v3620 = vsel %vm3619, %v3615, inf
    %3621 = vmin.xlane.f32.xlu0 %v3620
    %v3622 = vpop.xlane.xlu0 %3621
    %v3623 = vcvt.f32.s32 %v3622
    %v3624 = vcvt.f32.s32 %v3618
    %v3625 = vshll.u32 %v3624, 16
    %v3626 = vadd.s32 %v3625, %v3623
    %vm3627 = vcmp.lt.s32.totalorder %v3051, %v3052
    %v3628 = vsel %vm3627, %v3051, %v3052
    %vm3629 = vcmp.lt.s32.totalorder %v3628, %v3053
    %v3630 = vsel %vm3629, %v3628, %v3053
    %vm3631 = vcmp.lt.s32.totalorder %v3630, %v3054
    %v3632 = vsel %vm3631, %v3630, %v3054
    %v3633 = vand.u32 %v3632, 65535
    %v3634 = vshra.s32 %v3632, 16
    %v3635 = vcvt.s32.f32 %v3633
    %v3636 = vcvt.s32.f32 %v3634
    %3637 = vmin.xlane.f32.xlu0 %v3636
    %v3638 = vpop.xlane.xlu0 %3637
    %vm3639 = vcmp.eq.f32.partialorder %v3636, %v3638
    %v3640 = vsel %vm3639, %v3635, inf
    %3641 = vmin.xlane.f32.xlu0 %v3640
    %v3642 = vpop.xlane.xlu0 %3641
    %v3643 = vcvt.f32.s32 %v3642
    %v3644 = vcvt.f32.s32 %v3638
    %v3645 = vshll.u32 %v3644, 16
    %v3646 = vadd.s32 %v3645, %v3643
    %vm3647 = vcmp.lt.s32.totalorder %v3055, %v3056
    %v3648 = vsel %vm3647, %v3055, %v3056
    %vm3649 = vcmp.lt.s32.totalorder %v3648, %v3057
    %v3650 = vsel %vm3649, %v3648, %v3057
    %vm3651 = vcmp.lt.s32.totalorder %v3650, %v3058
    %v3652 = vsel %vm3651, %v3650, %v3058
    %v3653 = vand.u32 %v3652, 65535
    %v3654 = vshra.s32 %v3652, 16
    %v3655 = vcvt.s32.f32 %v3653
    %v3656 = vcvt.s32.f32 %v3654
    %3657 = vmin.xlane.f32.xlu0 %v3656
    %v3658 = vpop.xlane.xlu0 %3657
    %vm3659 = vcmp.eq.f32.partialorder %v3656, %v3658
    %v3660 = vsel %vm3659, %v3655, inf
    %3661 = vmin.xlane.f32.xlu0 %v3660
    %v3662 = vpop.xlane.xlu0 %3661
    %v3663 = vcvt.f32.s32 %v3662
    %v3664 = vcvt.f32.s32 %v3658
    %v3665 = vshll.u32 %v3664, 16
    %v3666 = vadd.s32 %v3665, %v3663
    %vm3667 = vcmp.lt.s32.totalorder %v3059, %v3060
    %v3668 = vsel %vm3667, %v3059, %v3060
    %vm3669 = vcmp.lt.s32.totalorder %v3668, %v3061
    %v3670 = vsel %vm3669, %v3668, %v3061
    %vm3671 = vcmp.lt.s32.totalorder %v3670, %v3062
    %v3672 = vsel %vm3671, %v3670, %v3062
    %v3673 = vand.u32 %v3672, 65535
    %v3674 = vshra.s32 %v3672, 16
    %v3675 = vcvt.s32.f32 %v3673
    %v3676 = vcvt.s32.f32 %v3674
    %3677 = vmin.xlane.f32.xlu0 %v3676
    %v3678 = vpop.xlane.xlu0 %3677
    %vm3679 = vcmp.eq.f32.partialorder %v3676, %v3678
    %v3680 = vsel %vm3679, %v3675, inf
    %3681 = vmin.xlane.f32.xlu0 %v3680
    %v3682 = vpop.xlane.xlu0 %3681
    %v3683 = vcvt.f32.s32 %v3682
    %v3684 = vcvt.f32.s32 %v3678
    %v3685 = vshll.u32 %v3684, 16
    %v3686 = vadd.s32 %v3685, %v3683
    %vm3687 = vcmp.lt.s32.totalorder %v3063, %v3064
    %v3688 = vsel %vm3687, %v3063, %v3064
    %vm3689 = vcmp.lt.s32.totalorder %v3688, %v3065
    %v3690 = vsel %vm3689, %v3688, %v3065
    %vm3691 = vcmp.lt.s32.totalorder %v3690, %v3066
    %v3692 = vsel %vm3691, %v3690, %v3066
    %v3693 = vand.u32 %v3692, 65535
    %v3694 = vshra.s32 %v3692, 16
    %v3695 = vcvt.s32.f32 %v3693
    %v3696 = vcvt.s32.f32 %v3694
    %3697 = vmin.xlane.f32.xlu0 %v3696
    %v3698 = vpop.xlane.xlu0 %3697
    %vm3699 = vcmp.eq.f32.partialorder %v3696, %v3698
    %v3700 = vsel %vm3699, %v3695, inf
    %3701 = vmin.xlane.f32.xlu0 %v3700
    %v3702 = vpop.xlane.xlu0 %3701
    %v3703 = vcvt.f32.s32 %v3702
    %v3704 = vcvt.f32.s32 %v3698
    %v3705 = vshll.u32 %v3704, 16
    %v3706 = vadd.s32 %v3705, %v3703
    %vm3707 = vcmp.lt.s32.totalorder %v3067, %v3068
    %v3708 = vsel %vm3707, %v3067, %v3068
    %vm3709 = vcmp.lt.s32.totalorder %v3708, %v3069
    %v3710 = vsel %vm3709, %v3708, %v3069
    %vm3711 = vcmp.lt.s32.totalorder %v3710, %v3070
    %v3712 = vsel %vm3711, %v3710, %v3070
    %v3713 = vand.u32 %v3712, 65535
    %v3714 = vshra.s32 %v3712, 16
    %v3715 = vcvt.s32.f32 %v3713
    %v3716 = vcvt.s32.f32 %v3714
    %3717 = vmin.xlane.f32.xlu0 %v3716
    %v3718 = vpop.xlane.xlu0 %3717
    %vm3719 = vcmp.eq.f32.partialorder %v3716, %v3718
    %v3720 = vsel %vm3719, %v3715, inf
    %3721 = vmin.xlane.f32.xlu0 %v3720
    %v3722 = vpop.xlane.xlu0 %3721
    %v3723 = vcvt.f32.s32 %v3722
    %v3724 = vcvt.f32.s32 %v3718
    %v3725 = vshll.u32 %v3724, 16
    %v3726 = vadd.s32 %v3725, %v3723
    %vm3727 = vcmp.lt.s32.totalorder %v3071, %v3072
    %v3728 = vsel %vm3727, %v3071, %v3072
    %vm3729 = vcmp.lt.s32.totalorder %v3728, %v3073
    %v3730 = vsel %vm3729, %v3728, %v3073
    %vm3731 = vcmp.lt.s32.totalorder %v3730, %v3074
    %v3732 = vsel %vm3731, %v3730, %v3074
    %v3733 = vand.u32 %v3732, 65535
    %v3734 = vshra.s32 %v3732, 16
    %v3735 = vcvt.s32.f32 %v3733
    %v3736 = vcvt.s32.f32 %v3734
    %3737 = vmin.xlane.f32.xlu0 %v3736
    %v3738 = vpop.xlane.xlu0 %3737
    %vm3739 = vcmp.eq.f32.partialorder %v3736, %v3738
    %v3740 = vsel %vm3739, %v3735, inf
    %3741 = vmin.xlane.f32.xlu0 %v3740
    %v3742 = vpop.xlane.xlu0 %3741
    %v3743 = vcvt.f32.s32 %v3742
    %v3744 = vcvt.f32.s32 %v3738
    %v3745 = vshll.u32 %v3744, 16
    %v3746 = vadd.s32 %v3745, %v3743
    %vm3747 = vcmp.lt.s32.totalorder %v3075, %v3076
    %v3748 = vsel %vm3747, %v3075, %v3076
    %vm3749 = vcmp.lt.s32.totalorder %v3748, %v3077
    %v3750 = vsel %vm3749, %v3748, %v3077
    %vm3751 = vcmp.lt.s32.totalorder %v3750, %v3078
    %v3752 = vsel %vm3751, %v3750, %v3078
    %v3753 = vand.u32 %v3752, 65535
    %v3754 = vshra.s32 %v3752, 16
    %v3755 = vcvt.s32.f32 %v3753
    %v3756 = vcvt.s32.f32 %v3754
    %3757 = vmin.xlane.f32.xlu0 %v3756
    %v3758 = vpop.xlane.xlu0 %3757
    %vm3759 = vcmp.eq.f32.partialorder %v3756, %v3758
    %v3760 = vsel %vm3759, %v3755, inf
    %3761 = vmin.xlane.f32.xlu0 %v3760
    %v3762 = vpop.xlane.xlu0 %3761
    %v3763 = vcvt.f32.s32 %v3762
    %v3764 = vcvt.f32.s32 %v3758
    %v3765 = vshll.u32 %v3764, 16
    %v3766 = vadd.s32 %v3765, %v3763
    %vm3767 = vcmp.lt.s32.totalorder %v3079, %v3080
    %v3768 = vsel %vm3767, %v3079, %v3080
    %vm3769 = vcmp.lt.s32.totalorder %v3768, %v3081
    %v3770 = vsel %vm3769, %v3768, %v3081
    %vm3771 = vcmp.lt.s32.totalorder %v3770, %v3082
    %v3772 = vsel %vm3771, %v3770, %v3082
    %v3773 = vand.u32 %v3772, 65535
    %v3774 = vshra.s32 %v3772, 16
    %v3775 = vcvt.s32.f32 %v3773
    %v3776 = vcvt.s32.f32 %v3774
    %3777 = vmin.xlane.f32.xlu0 %v3776
    %v3778 = vpop.xlane.xlu0 %3777
    %vm3779 = vcmp.eq.f32.partialorder %v3776, %v3778
    %v3780 = vsel %vm3779, %v3775, inf
    %3781 = vmin.xlane.f32.xlu0 %v3780
    %v3782 = vpop.xlane.xlu0 %3781
    %v3783 = vcvt.f32.s32 %v3782
    %v3784 = vcvt.f32.s32 %v3778
    %v3785 = vshll.u32 %v3784, 16
    %v3786 = vadd.s32 %v3785, %v3783
    %vm3787 = vcmp.lt.s32.totalorder %v3083, %v3084
    %v3788 = vsel %vm3787, %v3083, %v3084
    %vm3789 = vcmp.lt.s32.totalorder %v3788, %v3085
    %v3790 = vsel %vm3789, %v3788, %v3085
    %vm3791 = vcmp.lt.s32.totalorder %v3790, %v3086
    %v3792 = vsel %vm3791, %v3790, %v3086
    %v3793 = vand.u32 %v3792, 65535
    %v3794 = vshra.s32 %v3792, 16
    %v3795 = vcvt.s32.f32 %v3793
    %v3796 = vcvt.s32.f32 %v3794
    %3797 = vmin.xlane.f32.xlu0 %v3796
    %v3798 = vpop.xlane.xlu0 %3797
    %vm3799 = vcmp.eq.f32.partialorder %v3796, %v3798
    %v3800 = vsel %vm3799, %v3795, inf
    %3801 = vmin.xlane.f32.xlu0 %v3800
    %v3802 = vpop.xlane.xlu0 %3801
    %v3803 = vcvt.f32.s32 %v3802
    %v3804 = vcvt.f32.s32 %v3798
    %v3805 = vshll.u32 %v3804, 16
    %v3806 = vadd.s32 %v3805, %v3803
    %vm3807 = vcmp.lt.s32.totalorder %v3087, %v3088
    %v3808 = vsel %vm3807, %v3087, %v3088
    %vm3809 = vcmp.lt.s32.totalorder %v3808, %v3089
    %v3810 = vsel %vm3809, %v3808, %v3089
    %vm3811 = vcmp.lt.s32.totalorder %v3810, %v3090
    %v3812 = vsel %vm3811, %v3810, %v3090
    %v3813 = vand.u32 %v3812, 65535
    %v3814 = vshra.s32 %v3812, 16
    %v3815 = vcvt.s32.f32 %v3813
    %v3816 = vcvt.s32.f32 %v3814
    %3817 = vmin.xlane.f32.xlu0 %v3816
    %v3818 = vpop.xlane.xlu0 %3817
    %vm3819 = vcmp.eq.f32.partialorder %v3816, %v3818
    %v3820 = vsel %vm3819, %v3815, inf
    %3821 = vmin.xlane.f32.xlu0 %v3820
    %v3822 = vpop.xlane.xlu0 %3821
    %v3823 = vcvt.f32.s32 %v3822
    %v3824 = vcvt.f32.s32 %v3818
    %v3825 = vshll.u32 %v3824, 16
    %v3826 = vadd.s32 %v3825, %v3823
    %vm3827 = vcmp.lt.s32.totalorder %v3091, %v3092
    %v3828 = vsel %vm3827, %v3091, %v3092
    %vm3829 = vcmp.lt.s32.totalorder %v3828, %v3093
    %v3830 = vsel %vm3829, %v3828, %v3093
    %vm3831 = vcmp.lt.s32.totalorder %v3830, %v3094
    %v3832 = vsel %vm3831, %v3830, %v3094
    %v3833 = vand.u32 %v3832, 65535
    %v3834 = vshra.s32 %v3832, 16
    %v3835 = vcvt.s32.f32 %v3833
    %v3836 = vcvt.s32.f32 %v3834
    %3837 = vmin.xlane.f32.xlu0 %v3836
    %v3838 = vpop.xlane.xlu0 %3837
    %vm3839 = vcmp.eq.f32.partialorder %v3836, %v3838
    %v3840 = vsel %vm3839, %v3835, inf
    %3841 = vmin.xlane.f32.xlu0 %v3840
    %v3842 = vpop.xlane.xlu0 %3841
    %v3843 = vcvt.f32.s32 %v3842
    %v3844 = vcvt.f32.s32 %v3838
    %v3845 = vshll.u32 %v3844, 16
    %v3846 = vadd.s32 %v3845, %v3843
    %vm3847 = vcmp.lt.s32.totalorder %v3095, %v3096
    %v3848 = vsel %vm3847, %v3095, %v3096
    %vm3849 = vcmp.lt.s32.totalorder %v3848, %v3097
    %v3850 = vsel %vm3849, %v3848, %v3097
    %vm3851 = vcmp.lt.s32.totalorder %v3850, %v3098
    %v3852 = vsel %vm3851, %v3850, %v3098
    %v3853 = vand.u32 %v3852, 65535
    %v3854 = vshra.s32 %v3852, 16
    %v3855 = vcvt.s32.f32 %v3853
    %v3856 = vcvt.s32.f32 %v3854
    %3857 = vmin.xlane.f32.xlu0 %v3856
    %v3858 = vpop.xlane.xlu0 %3857
    %vm3859 = vcmp.eq.f32.partialorder %v3856, %v3858
    %v3860 = vsel %vm3859, %v3855, inf
    %3861 = vmin.xlane.f32.xlu0 %v3860
    %v3862 = vpop.xlane.xlu0 %3861
    %v3863 = vcvt.f32.s32 %v3862
    %v3864 = vcvt.f32.s32 %v3858
    %v3865 = vshll.u32 %v3864, 16
    %v3866 = vadd.s32 %v3865, %v3863
    %vm3867 = vcmp.lt.s32.totalorder %v3099, %v3100
    %v3868 = vsel %vm3867, %v3099, %v3100
    %vm3869 = vcmp.lt.s32.totalorder %v3868, %v3101
    %v3870 = vsel %vm3869, %v3868, %v3101
    %vm3871 = vcmp.lt.s32.totalorder %v3870, %v3102
    %v3872 = vsel %vm3871, %v3870, %v3102
    %v3873 = vand.u32 %v3872, 65535
    %v3874 = vshra.s32 %v3872, 16
    %v3875 = vcvt.s32.f32 %v3873
    %v3876 = vcvt.s32.f32 %v3874
    %3877 = vmin.xlane.f32.xlu0 %v3876
    %v3878 = vpop.xlane.xlu0 %3877
    %vm3879 = vcmp.eq.f32.partialorder %v3876, %v3878
    %v3880 = vsel %vm3879, %v3875, inf
    %3881 = vmin.xlane.f32.xlu0 %v3880
    %v3882 = vpop.xlane.xlu0 %3881
    %v3883 = vcvt.f32.s32 %v3882
    %v3884 = vcvt.f32.s32 %v3878
    %v3885 = vshll.u32 %v3884, 16
    %v3886 = vadd.s32 %v3885, %v3883
    %vm3887 = vcmp.lt.s32.totalorder %v3103, %v3104
    %v3888 = vsel %vm3887, %v3103, %v3104
    %vm3889 = vcmp.lt.s32.totalorder %v3888, %v3105
    %v3890 = vsel %vm3889, %v3888, %v3105
    %vm3891 = vcmp.lt.s32.totalorder %v3890, %v3106
    %v3892 = vsel %vm3891, %v3890, %v3106
    %v3893 = vand.u32 %v3892, 65535
    %v3894 = vshra.s32 %v3892, 16
    %v3895 = vcvt.s32.f32 %v3893
    %v3896 = vcvt.s32.f32 %v3894
    %3897 = vmin.xlane.f32.xlu0 %v3896
    %v3898 = vpop.xlane.xlu0 %3897
    %vm3899 = vcmp.eq.f32.partialorder %v3896, %v3898
    %v3900 = vsel %vm3899, %v3895, inf
    %3901 = vmin.xlane.f32.xlu0 %v3900
    %v3902 = vpop.xlane.xlu0 %3901
    %v3903 = vcvt.f32.s32 %v3902
    %v3904 = vcvt.f32.s32 %v3898
    %v3905 = vshll.u32 %v3904, 16
    %v3906 = vadd.s32 %v3905, %v3903
    %vm3907 = vcmp.lt.s32.totalorder %v3107, %v3108
    %v3908 = vsel %vm3907, %v3107, %v3108
    %vm3909 = vcmp.lt.s32.totalorder %v3908, %v3109
    %v3910 = vsel %vm3909, %v3908, %v3109
    %vm3911 = vcmp.lt.s32.totalorder %v3910, %v3110
    %v3912 = vsel %vm3911, %v3910, %v3110
    %v3913 = vand.u32 %v3912, 65535
    %v3914 = vshra.s32 %v3912, 16
    %v3915 = vcvt.s32.f32 %v3913
    %v3916 = vcvt.s32.f32 %v3914
    %3917 = vmin.xlane.f32.xlu0 %v3916
    %v3918 = vpop.xlane.xlu0 %3917
    %vm3919 = vcmp.eq.f32.partialorder %v3916, %v3918
    %v3920 = vsel %vm3919, %v3915, inf
    %3921 = vmin.xlane.f32.xlu0 %v3920
    %v3922 = vpop.xlane.xlu0 %3921
    %v3923 = vcvt.f32.s32 %v3922
    %v3924 = vcvt.f32.s32 %v3918
    %v3925 = vshll.u32 %v3924, 16
    %v3926 = vadd.s32 %v3925, %v3923
    %vm3927 = vcmp.lt.s32.totalorder %v3111, %v3112
    %v3928 = vsel %vm3927, %v3111, %v3112
    %vm3929 = vcmp.lt.s32.totalorder %v3928, %v3113
    %v3930 = vsel %vm3929, %v3928, %v3113
    %vm3931 = vcmp.lt.s32.totalorder %v3930, %v3114
    %v3932 = vsel %vm3931, %v3930, %v3114
    %v3933 = vand.u32 %v3932, 65535
    %v3934 = vshra.s32 %v3932, 16
    %v3935 = vcvt.s32.f32 %v3933
    %v3936 = vcvt.s32.f32 %v3934
    %3937 = vmin.xlane.f32.xlu0 %v3936
    %v3938 = vpop.xlane.xlu0 %3937
    %vm3939 = vcmp.eq.f32.partialorder %v3936, %v3938
    %v3940 = vsel %vm3939, %v3935, inf
    %3941 = vmin.xlane.f32.xlu0 %v3940
    %v3942 = vpop.xlane.xlu0 %3941
    %v3943 = vcvt.f32.s32 %v3942
    %v3944 = vcvt.f32.s32 %v3938
    %v3945 = vshll.u32 %v3944, 16
    %v3946 = vadd.s32 %v3945, %v3943
    %vm3947 = vcmp.lt.s32.totalorder %v3115, %v3116
    %v3948 = vsel %vm3947, %v3115, %v3116
    %vm3949 = vcmp.lt.s32.totalorder %v3948, %v3117
    %v3950 = vsel %vm3949, %v3948, %v3117
    %vm3951 = vcmp.lt.s32.totalorder %v3950, %v3118
    %v3952 = vsel %vm3951, %v3950, %v3118
    %v3953 = vand.u32 %v3952, 65535
    %v3954 = vshra.s32 %v3952, 16
    %v3955 = vcvt.s32.f32 %v3953
    %v3956 = vcvt.s32.f32 %v3954
    %3957 = vmin.xlane.f32.xlu0 %v3956
    %v3958 = vpop.xlane.xlu0 %3957
    %vm3959 = vcmp.eq.f32.partialorder %v3956, %v3958
    %v3960 = vsel %vm3959, %v3955, inf
    %3961 = vmin.xlane.f32.xlu0 %v3960
    %v3962 = vpop.xlane.xlu0 %3961
    %v3963 = vcvt.f32.s32 %v3962
    %v3964 = vcvt.f32.s32 %v3958
    %v3965 = vshll.u32 %v3964, 16
    %v3966 = vadd.s32 %v3965, %v3963
    %vm3967 = vcmp.lt.s32.totalorder %v3119, %v3120
    %v3968 = vsel %vm3967, %v3119, %v3120
    %vm3969 = vcmp.lt.s32.totalorder %v3968, %v3121
    %v3970 = vsel %vm3969, %v3968, %v3121
    %vm3971 = vcmp.lt.s32.totalorder %v3970, %v3122
    %v3972 = vsel %vm3971, %v3970, %v3122
    %v3973 = vand.u32 %v3972, 65535
    %v3974 = vshra.s32 %v3972, 16
    %v3975 = vcvt.s32.f32 %v3973
    %v3976 = vcvt.s32.f32 %v3974
    %3977 = vmin.xlane.f32.xlu0 %v3976
    %v3978 = vpop.xlane.xlu0 %3977
    %vm3979 = vcmp.eq.f32.partialorder %v3976, %v3978
    %v3980 = vsel %vm3979, %v3975, inf
    %3981 = vmin.xlane.f32.xlu0 %v3980
    %v3982 = vpop.xlane.xlu0 %3981
    %v3983 = vcvt.f32.s32 %v3982
    %v3984 = vcvt.f32.s32 %v3978
    %v3985 = vshll.u32 %v3984, 16
    %v3986 = vadd.s32 %v3985, %v3983
    %vm3987 = vcmp.lt.s32.totalorder %v3123, %v3124
    %v3988 = vsel %vm3987, %v3123, %v3124
    %vm3989 = vcmp.lt.s32.totalorder %v3988, %v3125
    %v3990 = vsel %vm3989, %v3988, %v3125
    %vm3991 = vcmp.lt.s32.totalorder %v3990, %v3126
    %v3992 = vsel %vm3991, %v3990, %v3126
    %v3993 = vand.u32 %v3992, 65535
    %v3994 = vshra.s32 %v3992, 16
    %v3995 = vcvt.s32.f32 %v3993
    %v3996 = vcvt.s32.f32 %v3994
    %3997 = vmin.xlane.f32.xlu0 %v3996
    %v3998 = vpop.xlane.xlu0 %3997
    %vm3999 = vcmp.eq.f32.partialorder %v3996, %v3998
    %v4000 = vsel %vm3999, %v3995, inf
    %4001 = vmin.xlane.f32.xlu0 %v4000
    %v4002 = vpop.xlane.xlu0 %4001
    %v4003 = vcvt.f32.s32 %v4002
    %v4004 = vcvt.f32.s32 %v3998
    %v4005 = vshll.u32 %v4004, 16
    %v4006 = vadd.s32 %v4005, %v4003
    %vm4007 = vcmp.lt.s32.totalorder %v3127, %v3128
    %v4008 = vsel %vm4007, %v3127, %v3128
    %vm4009 = vcmp.lt.s32.totalorder %v4008, %v3129
    %v4010 = vsel %vm4009, %v4008, %v3129
    %vm4011 = vcmp.lt.s32.totalorder %v4010, %v3130
    %v4012 = vsel %vm4011, %v4010, %v3130
    %v4013 = vand.u32 %v4012, 65535
    %v4014 = vshra.s32 %v4012, 16
    %v4015 = vcvt.s32.f32 %v4013
    %v4016 = vcvt.s32.f32 %v4014
    %4017 = vmin.xlane.f32.xlu0 %v4016
    %v4018 = vpop.xlane.xlu0 %4017
    %vm4019 = vcmp.eq.f32.partialorder %v4016, %v4018
    %v4020 = vsel %vm4019, %v4015, inf
    %4021 = vmin.xlane.f32.xlu0 %v4020
    %v4022 = vpop.xlane.xlu0 %4021
    %v4023 = vcvt.f32.s32 %v4022
    %v4024 = vcvt.f32.s32 %v4018
    %v4025 = vshll.u32 %v4024, 16
    %v4026 = vadd.s32 %v4025, %v4023
    %vm4027 = vcmp.lt.s32.totalorder %v3131, %v3132
    %v4028 = vsel %vm4027, %v3131, %v3132
    %vm4029 = vcmp.lt.s32.totalorder %v4028, %v3133
    %v4030 = vsel %vm4029, %v4028, %v3133
    %vm4031 = vcmp.lt.s32.totalorder %v4030, %v3134
    %v4032 = vsel %vm4031, %v4030, %v3134
    %v4033 = vand.u32 %v4032, 65535
    %v4034 = vshra.s32 %v4032, 16
    %v4035 = vcvt.s32.f32 %v4033
    %v4036 = vcvt.s32.f32 %v4034
    %4037 = vmin.xlane.f32.xlu0 %v4036
    %v4038 = vpop.xlane.xlu0 %4037
    %vm4039 = vcmp.eq.f32.partialorder %v4036, %v4038
    %v4040 = vsel %vm4039, %v4035, inf
    %4041 = vmin.xlane.f32.xlu0 %v4040
    %v4042 = vpop.xlane.xlu0 %4041
    %v4043 = vcvt.f32.s32 %v4042
    %v4044 = vcvt.f32.s32 %v4038
    %v4045 = vshll.u32 %v4044, 16
    %v4046 = vadd.s32 %v4045, %v4043
    %vm4047 = vcmp.lt.s32.totalorder %v3135, %v3136
    %v4048 = vsel %vm4047, %v3135, %v3136
    %vm4049 = vcmp.lt.s32.totalorder %v4048, %v3137
    %v4050 = vsel %vm4049, %v4048, %v3137
    %vm4051 = vcmp.lt.s32.totalorder %v4050, %v3138
    %v4052 = vsel %vm4051, %v4050, %v3138
    %v4053 = vand.u32 %v4052, 65535
    %v4054 = vshra.s32 %v4052, 16
    %v4055 = vcvt.s32.f32 %v4053
    %v4056 = vcvt.s32.f32 %v4054
    %4057 = vmin.xlane.f32.xlu0 %v4056
    %v4058 = vpop.xlane.xlu0 %4057
    %vm4059 = vcmp.eq.f32.partialorder %v4056, %v4058
    %v4060 = vsel %vm4059, %v4055, inf
    %4061 = vmin.xlane.f32.xlu0 %v4060
    %v4062 = vpop.xlane.xlu0 %4061
    %v4063 = vcvt.f32.s32 %v4062
    %v4064 = vcvt.f32.s32 %v4058
    %v4065 = vshll.u32 %v4064, 16
    %v4066 = vadd.s32 %v4065, %v4063
    %vm4067 = vcmp.lt.s32.totalorder %v3139, %v3140
    %v4068 = vsel %vm4067, %v3139, %v3140
    %vm4069 = vcmp.lt.s32.totalorder %v4068, %v3141
    %v4070 = vsel %vm4069, %v4068, %v3141
    %vm4071 = vcmp.lt.s32.totalorder %v4070, %v3142
    %v4072 = vsel %vm4071, %v4070, %v3142
    %v4073 = vand.u32 %v4072, 65535
    %v4074 = vshra.s32 %v4072, 16
    %v4075 = vcvt.s32.f32 %v4073
    %v4076 = vcvt.s32.f32 %v4074
    %4077 = vmin.xlane.f32.xlu0 %v4076
    %v4078 = vpop.xlane.xlu0 %4077
    %vm4079 = vcmp.eq.f32.partialorder %v4076, %v4078
    %v4080 = vsel %vm4079, %v4075, inf
    %4081 = vmin.xlane.f32.xlu0 %v4080
    %v4082 = vpop.xlane.xlu0 %4081
    %v4083 = vcvt.f32.s32 %v4082
    %v4084 = vcvt.f32.s32 %v4078
    %v4085 = vshll.u32 %v4084, 16
    %v4086 = vadd.s32 %v4085, %v4083
    %vm4087 = vcmp.lt.s32.totalorder %v3143, %v3144
    %v4088 = vsel %vm4087, %v3143, %v3144
    %vm4089 = vcmp.lt.s32.totalorder %v4088, %v3145
    %v4090 = vsel %vm4089, %v4088, %v3145
    %vm4091 = vcmp.lt.s32.totalorder %v4090, %v3146
    %v4092 = vsel %vm4091, %v4090, %v3146
    %v4093 = vand.u32 %v4092, 65535
    %v4094 = vshra.s32 %v4092, 16
    %v4095 = vcvt.s32.f32 %v4093
    %v4096 = vcvt.s32.f32 %v4094
    %4097 = vmin.xlane.f32.xlu0 %v4096
    %v4098 = vpop.xlane.xlu0 %4097
    %vm4099 = vcmp.eq.f32.partialorder %v4096, %v4098
    %v4100 = vsel %vm4099, %v4095, inf
    %4101 = vmin.xlane.f32.xlu0 %v4100
    %v4102 = vpop.xlane.xlu0 %4101
    %v4103 = vcvt.f32.s32 %v4102
    %v4104 = vcvt.f32.s32 %v4098
    %v4105 = vshll.u32 %v4104, 16
    %v4106 = vadd.s32 %v4105, %v4103
    %vm4107 = vcmp.lt.s32.totalorder %v3147, %v3148
    %v4108 = vsel %vm4107, %v3147, %v3148
    %vm4109 = vcmp.lt.s32.totalorder %v4108, %v3149
    %v4110 = vsel %vm4109, %v4108, %v3149
    %vm4111 = vcmp.lt.s32.totalorder %v4110, %v3150
    %v4112 = vsel %vm4111, %v4110, %v3150
    %v4113 = vand.u32 %v4112, 65535
    %v4114 = vshra.s32 %v4112, 16
    %v4115 = vcvt.s32.f32 %v4113
    %v4116 = vcvt.s32.f32 %v4114
    %4117 = vmin.xlane.f32.xlu0 %v4116
    %v4118 = vpop.xlane.xlu0 %4117
    %vm4119 = vcmp.eq.f32.partialorder %v4116, %v4118
    %v4120 = vsel %vm4119, %v4115, inf
    %4121 = vmin.xlane.f32.xlu0 %v4120
    %v4122 = vpop.xlane.xlu0 %4121
    %v4123 = vcvt.f32.s32 %v4122
    %v4124 = vcvt.f32.s32 %v4118
    %v4125 = vshll.u32 %v4124, 16
    %v4126 = vadd.s32 %v4125, %v4123
    %vm4127 = vcmp.lt.s32.totalorder %v3151, %v3152
    %v4128 = vsel %vm4127, %v3151, %v3152
    %vm4129 = vcmp.lt.s32.totalorder %v4128, %v3153
    %v4130 = vsel %vm4129, %v4128, %v3153
    %vm4131 = vcmp.lt.s32.totalorder %v4130, %v3154
    %v4132 = vsel %vm4131, %v4130, %v3154
    %v4133 = vand.u32 %v4132, 65535
    %v4134 = vshra.s32 %v4132, 16
    %v4135 = vcvt.s32.f32 %v4133
    %v4136 = vcvt.s32.f32 %v4134
    %4137 = vmin.xlane.f32.xlu0 %v4136
    %v4138 = vpop.xlane.xlu0 %4137
    %vm4139 = vcmp.eq.f32.partialorder %v4136, %v4138
    %v4140 = vsel %vm4139, %v4135, inf
    %4141 = vmin.xlane.f32.xlu0 %v4140
    %v4142 = vpop.xlane.xlu0 %4141
    %v4143 = vcvt.f32.s32 %v4142
    %v4144 = vcvt.f32.s32 %v4138
    %v4145 = vshll.u32 %v4144, 16
    %v4146 = vadd.s32 %v4145, %v4143
    %vm4147 = vcmp.lt.s32.totalorder %v3155, %v3156
    %v4148 = vsel %vm4147, %v3155, %v3156
    %vm4149 = vcmp.lt.s32.totalorder %v4148, %v3157
    %v4150 = vsel %vm4149, %v4148, %v3157
    %vm4151 = vcmp.lt.s32.totalorder %v4150, %v3158
    %v4152 = vsel %vm4151, %v4150, %v3158
    %v4153 = vand.u32 %v4152, 65535
    %v4154 = vshra.s32 %v4152, 16
    %v4155 = vcvt.s32.f32 %v4153
    %v4156 = vcvt.s32.f32 %v4154
    %4157 = vmin.xlane.f32.xlu0 %v4156
    %v4158 = vpop.xlane.xlu0 %4157
    %vm4159 = vcmp.eq.f32.partialorder %v4156, %v4158
    %v4160 = vsel %vm4159, %v4155, inf
    %4161 = vmin.xlane.f32.xlu0 %v4160
    %v4162 = vpop.xlane.xlu0 %4161
    %v4163 = vcvt.f32.s32 %v4162
    %v4164 = vcvt.f32.s32 %v4158
    %v4165 = vshll.u32 %v4164, 16
    %v4166 = vadd.s32 %v4165, %v4163
    %vm4167 = vcmp.lt.s32.totalorder %v3159, %v3160
    %v4168 = vsel %vm4167, %v3159, %v3160
    %vm4169 = vcmp.lt.s32.totalorder %v4168, %v3161
    %v4170 = vsel %vm4169, %v4168, %v3161
    %vm4171 = vcmp.lt.s32.totalorder %v4170, %v3162
    %v4172 = vsel %vm4171, %v4170, %v3162
    %v4173 = vand.u32 %v4172, 65535
    %v4174 = vshra.s32 %v4172, 16
    %v4175 = vcvt.s32.f32 %v4173
    %v4176 = vcvt.s32.f32 %v4174
    %4177 = vmin.xlane.f32.xlu0 %v4176
    %v4178 = vpop.xlane.xlu0 %4177
    %vm4179 = vcmp.eq.f32.partialorder %v4176, %v4178
    %v4180 = vsel %vm4179, %v4175, inf
    %4181 = vmin.xlane.f32.xlu0 %v4180
    %v4182 = vpop.xlane.xlu0 %4181
    %v4183 = vcvt.f32.s32 %v4182
    %v4184 = vcvt.f32.s32 %v4178
    %v4185 = vshll.u32 %v4184, 16
    %v4186 = vadd.s32 %v4185, %v4183
    %vm4187 = vcmp.lt.s32.totalorder %v3163, %v3164
    %v4188 = vsel %vm4187, %v3163, %v3164
    %vm4189 = vcmp.lt.s32.totalorder %v4188, %v3165
    %v4190 = vsel %vm4189, %v4188, %v3165
    %vm4191 = vcmp.lt.s32.totalorder %v4190, %v3166
    %v4192 = vsel %vm4191, %v4190, %v3166
    %v4193 = vand.u32 %v4192, 65535
    %v4194 = vshra.s32 %v4192, 16
    %v4195 = vcvt.s32.f32 %v4193
    %v4196 = vcvt.s32.f32 %v4194
    %4197 = vmin.xlane.f32.xlu0 %v4196
    %v4198 = vpop.xlane.xlu0 %4197
    %vm4199 = vcmp.eq.f32.partialorder %v4196, %v4198
    %v4200 = vsel %vm4199, %v4195, inf
    %4201 = vmin.xlane.f32.xlu0 %v4200
    %v4202 = vpop.xlane.xlu0 %4201
    %v4203 = vcvt.f32.s32 %v4202
    %v4204 = vcvt.f32.s32 %v4198
    %v4205 = vshll.u32 %v4204, 16
    %v4206 = vadd.s32 %v4205, %v4203
    %vm4207 = vcmp.lt.s32.totalorder %v3167, %v3168
    %v4208 = vsel %vm4207, %v3167, %v3168
    %vm4209 = vcmp.lt.s32.totalorder %v4208, %v3169
    %v4210 = vsel %vm4209, %v4208, %v3169
    %vm4211 = vcmp.lt.s32.totalorder %v4210, %v3170
    %v4212 = vsel %vm4211, %v4210, %v3170
    %v4213 = vand.u32 %v4212, 65535
    %v4214 = vshra.s32 %v4212, 16
    %v4215 = vcvt.s32.f32 %v4213
    %v4216 = vcvt.s32.f32 %v4214
    %4217 = vmin.xlane.f32.xlu0 %v4216
    %v4218 = vpop.xlane.xlu0 %4217
    %vm4219 = vcmp.eq.f32.partialorder %v4216, %v4218
    %v4220 = vsel %vm4219, %v4215, inf
    %4221 = vmin.xlane.f32.xlu0 %v4220
    %v4222 = vpop.xlane.xlu0 %4221
    %v4223 = vcvt.f32.s32 %v4222
    %v4224 = vcvt.f32.s32 %v4218
    %v4225 = vshll.u32 %v4224, 16
    %v4226 = vadd.s32 %v4225, %v4223
    %vm4227 = vcmp.lt.s32.totalorder %v3171, %v3172
    %v4228 = vsel %vm4227, %v3171, %v3172
    %vm4229 = vcmp.lt.s32.totalorder %v4228, %v3173
    %v4230 = vsel %vm4229, %v4228, %v3173
    %vm4231 = vcmp.lt.s32.totalorder %v4230, %v3174
    %v4232 = vsel %vm4231, %v4230, %v3174
    %v4233 = vand.u32 %v4232, 65535
    %v4234 = vshra.s32 %v4232, 16
    %v4235 = vcvt.s32.f32 %v4233
    %v4236 = vcvt.s32.f32 %v4234
    %4237 = vmin.xlane.f32.xlu0 %v4236
    %v4238 = vpop.xlane.xlu0 %4237
    %vm4239 = vcmp.eq.f32.partialorder %v4236, %v4238
    %v4240 = vsel %vm4239, %v4235, inf
    %4241 = vmin.xlane.f32.xlu0 %v4240
    %v4242 = vpop.xlane.xlu0 %4241
    %v4243 = vcvt.f32.s32 %v4242
    %v4244 = vcvt.f32.s32 %v4238
    %v4245 = vshll.u32 %v4244, 16
    %v4246 = vadd.s32 %v4245, %v4243
    %vm4247 = vcmp.lt.s32.totalorder %v3175, %v3176
    %v4248 = vsel %vm4247, %v3175, %v3176
    %vm4249 = vcmp.lt.s32.totalorder %v4248, %v3177
    %v4250 = vsel %vm4249, %v4248, %v3177
    %vm4251 = vcmp.lt.s32.totalorder %v4250, %v3178
    %v4252 = vsel %vm4251, %v4250, %v3178
    %v4253 = vand.u32 %v4252, 65535
    %v4254 = vshra.s32 %v4252, 16
    %v4255 = vcvt.s32.f32 %v4253
    %v4256 = vcvt.s32.f32 %v4254
    %4257 = vmin.xlane.f32.xlu0 %v4256
    %v4258 = vpop.xlane.xlu0 %4257
    %vm4259 = vcmp.eq.f32.partialorder %v4256, %v4258
    %v4260 = vsel %vm4259, %v4255, inf
    %4261 = vmin.xlane.f32.xlu0 %v4260
    %v4262 = vpop.xlane.xlu0 %4261
    %v4263 = vcvt.f32.s32 %v4262
    %v4264 = vcvt.f32.s32 %v4258
    %v4265 = vshll.u32 %v4264, 16
    %v4266 = vadd.s32 %v4265, %v4263
    %vm4267 = vcmp.lt.s32.totalorder %v3179, %v3180
    %v4268 = vsel %vm4267, %v3179, %v3180
    %vm4269 = vcmp.lt.s32.totalorder %v4268, %v3181
    %v4270 = vsel %vm4269, %v4268, %v3181
    %vm4271 = vcmp.lt.s32.totalorder %v4270, %v3182
    %v4272 = vsel %vm4271, %v4270, %v3182
    %v4273 = vand.u32 %v4272, 65535
    %v4274 = vshra.s32 %v4272, 16
    %v4275 = vcvt.s32.f32 %v4273
    %v4276 = vcvt.s32.f32 %v4274
    %4277 = vmin.xlane.f32.xlu0 %v4276
    %v4278 = vpop.xlane.xlu0 %4277
    %vm4279 = vcmp.eq.f32.partialorder %v4276, %v4278
    %v4280 = vsel %vm4279, %v4275, inf
    %4281 = vmin.xlane.f32.xlu0 %v4280
    %v4282 = vpop.xlane.xlu0 %4281
    %v4283 = vcvt.f32.s32 %v4282
    %v4284 = vcvt.f32.s32 %v4278
    %v4285 = vshll.u32 %v4284, 16
    %v4286 = vadd.s32 %v4285, %v4283
    %vm4287 = vcmp.lt.s32.totalorder %v3183, %v3184
    %v4288 = vsel %vm4287, %v3183, %v3184
    %vm4289 = vcmp.lt.s32.totalorder %v4288, %v3185
    %v4290 = vsel %vm4289, %v4288, %v3185
    %vm4291 = vcmp.lt.s32.totalorder %v4290, %v3186
    %v4292 = vsel %vm4291, %v4290, %v3186
    %v4293 = vand.u32 %v4292, 65535
    %v4294 = vshra.s32 %v4292, 16
    %v4295 = vcvt.s32.f32 %v4293
    %v4296 = vcvt.s32.f32 %v4294
    %4297 = vmin.xlane.f32.xlu0 %v4296
    %v4298 = vpop.xlane.xlu0 %4297
    %vm4299 = vcmp.eq.f32.partialorder %v4296, %v4298
    %v4300 = vsel %vm4299, %v4295, inf
    %4301 = vmin.xlane.f32.xlu0 %v4300
    %v4302 = vpop.xlane.xlu0 %4301
    %v4303 = vcvt.f32.s32 %v4302
    %v4304 = vcvt.f32.s32 %v4298
    %v4305 = vshll.u32 %v4304, 16
    %v4306 = vadd.s32 %v4305, %v4303
    %vm4307 = vcmp.lt.s32.totalorder %v3187, %v3188
    %v4308 = vsel %vm4307, %v3187, %v3188
    %vm4309 = vcmp.lt.s32.totalorder %v4308, %v3189
    %v4310 = vsel %vm4309, %v4308, %v3189
    %vm4311 = vcmp.lt.s32.totalorder %v4310, %v3190
    %v4312 = vsel %vm4311, %v4310, %v3190
    %v4313 = vand.u32 %v4312, 65535
    %v4314 = vshra.s32 %v4312, 16
    %v4315 = vcvt.s32.f32 %v4313
    %v4316 = vcvt.s32.f32 %v4314
    %4317 = vmin.xlane.f32.xlu0 %v4316
    %v4318 = vpop.xlane.xlu0 %4317
    %vm4319 = vcmp.eq.f32.partialorder %v4316, %v4318
    %v4320 = vsel %vm4319, %v4315, inf
    %4321 = vmin.xlane.f32.xlu0 %v4320
    %v4322 = vpop.xlane.xlu0 %4321
    %v4323 = vcvt.f32.s32 %v4322
    %v4324 = vcvt.f32.s32 %v4318
    %v4325 = vshll.u32 %v4324, 16
    %v4326 = vadd.s32 %v4325, %v4323
    %vm4327 = vcmp.lt.s32.totalorder %v3191, %v3192
    %v4328 = vsel %vm4327, %v3191, %v3192
    %vm4329 = vcmp.lt.s32.totalorder %v4328, %v3193
    %v4330 = vsel %vm4329, %v4328, %v3193
    %vm4331 = vcmp.lt.s32.totalorder %v4330, %v3194
    %v4332 = vsel %vm4331, %v4330, %v3194
    %v4333 = vand.u32 %v4332, 65535
    %v4334 = vshra.s32 %v4332, 16
    %v4335 = vcvt.s32.f32 %v4333
    %v4336 = vcvt.s32.f32 %v4334
    %4337 = vmin.xlane.f32.xlu0 %v4336
    %v4338 = vpop.xlane.xlu0 %4337
    %vm4339 = vcmp.eq.f32.partialorder %v4336, %v4338
    %v4340 = vsel %vm4339, %v4335, inf
    %4341 = vmin.xlane.f32.xlu0 %v4340
    %v4342 = vpop.xlane.xlu0 %4341
    %v4343 = vcvt.f32.s32 %v4342
    %v4344 = vcvt.f32.s32 %v4338
    %v4345 = vshll.u32 %v4344, 16
    %v4346 = vadd.s32 %v4345, %v4343
    %vm4347 = vcmp.lt.s32.totalorder %v3195, %v3196
    %v4348 = vsel %vm4347, %v3195, %v3196
    %vm4349 = vcmp.lt.s32.totalorder %v4348, %v3197
    %v4350 = vsel %vm4349, %v4348, %v3197
    %vm4351 = vcmp.lt.s32.totalorder %v4350, %v3198
    %v4352 = vsel %vm4351, %v4350, %v3198
    %v4353 = vand.u32 %v4352, 65535
    %v4354 = vshra.s32 %v4352, 16
    %v4355 = vcvt.s32.f32 %v4353
    %v4356 = vcvt.s32.f32 %v4354
    %4357 = vmin.xlane.f32.xlu0 %v4356
    %v4358 = vpop.xlane.xlu0 %4357
    %vm4359 = vcmp.eq.f32.partialorder %v4356, %v4358
    %v4360 = vsel %vm4359, %v4355, inf
    %4361 = vmin.xlane.f32.xlu0 %v4360
    %v4362 = vpop.xlane.xlu0 %4361
    %v4363 = vcvt.f32.s32 %v4362
    %v4364 = vcvt.f32.s32 %v4358
    %v4365 = vshll.u32 %v4364, 16
    %v4366 = vadd.s32 %v4365, %v4363
    %vm4367 = vcmp.lt.s32.totalorder %v3199, %v3200
    %v4368 = vsel %vm4367, %v3199, %v3200
    %vm4369 = vcmp.lt.s32.totalorder %v4368, %v3201
    %v4370 = vsel %vm4369, %v4368, %v3201
    %vm4371 = vcmp.lt.s32.totalorder %v4370, %v3202
    %v4372 = vsel %vm4371, %v4370, %v3202
    %v4373 = vand.u32 %v4372, 65535
    %v4374 = vshra.s32 %v4372, 16
    %v4375 = vcvt.s32.f32 %v4373
    %v4376 = vcvt.s32.f32 %v4374
    %4377 = vmin.xlane.f32.xlu0 %v4376
    %v4378 = vpop.xlane.xlu0 %4377
    %vm4379 = vcmp.eq.f32.partialorder %v4376, %v4378
    %v4380 = vsel %vm4379, %v4375, inf
    %4381 = vmin.xlane.f32.xlu0 %v4380
    %v4382 = vpop.xlane.xlu0 %4381
    %v4383 = vcvt.f32.s32 %v4382
    %v4384 = vcvt.f32.s32 %v4378
    %v4385 = vshll.u32 %v4384, 16
    %v4386 = vadd.s32 %v4385, %v4383
    %vm4387 = vcmp.lt.s32.totalorder %v3203, %v3204
    %v4388 = vsel %vm4387, %v3203, %v3204
    %vm4389 = vcmp.lt.s32.totalorder %v4388, %v3205
    %v4390 = vsel %vm4389, %v4388, %v3205
    %vm4391 = vcmp.lt.s32.totalorder %v4390, %v3206
    %v4392 = vsel %vm4391, %v4390, %v3206
    %v4393 = vand.u32 %v4392, 65535
    %v4394 = vshra.s32 %v4392, 16
    %v4395 = vcvt.s32.f32 %v4393
    %v4396 = vcvt.s32.f32 %v4394
    %4397 = vmin.xlane.f32.xlu0 %v4396
    %v4398 = vpop.xlane.xlu0 %4397
    %vm4399 = vcmp.eq.f32.partialorder %v4396, %v4398
    %v4400 = vsel %vm4399, %v4395, inf
    %4401 = vmin.xlane.f32.xlu0 %v4400
    %v4402 = vpop.xlane.xlu0 %4401
    %v4403 = vcvt.f32.s32 %v4402
    %v4404 = vcvt.f32.s32 %v4398
    %v4405 = vshll.u32 %v4404, 16
    %v4406 = vadd.s32 %v4405, %v4403
    %vm4407 = vcmp.lt.s32.totalorder %v3207, %v3208
    %v4408 = vsel %vm4407, %v3207, %v3208
    %vm4409 = vcmp.lt.s32.totalorder %v4408, %v3209
    %v4410 = vsel %vm4409, %v4408, %v3209
    %vm4411 = vcmp.lt.s32.totalorder %v4410, %v3210
    %v4412 = vsel %vm4411, %v4410, %v3210
    %v4413 = vand.u32 %v4412, 65535
    %v4414 = vshra.s32 %v4412, 16
    %v4415 = vcvt.s32.f32 %v4413
    %v4416 = vcvt.s32.f32 %v4414
    %4417 = vmin.xlane.f32.xlu0 %v4416
    %v4418 = vpop.xlane.xlu0 %4417
    %vm4419 = vcmp.eq.f32.partialorder %v4416, %v4418
    %v4420 = vsel %vm4419, %v4415, inf
    %4421 = vmin.xlane.f32.xlu0 %v4420
    %v4422 = vpop.xlane.xlu0 %4421
    %v4423 = vcvt.f32.s32 %v4422
    %v4424 = vcvt.f32.s32 %v4418
    %v4425 = vshll.u32 %v4424, 16
    %v4426 = vadd.s32 %v4425, %v4423
    %vm4427 = vcmp.lt.s32.totalorder %v3211, %v3212
    %v4428 = vsel %vm4427, %v3211, %v3212
    %vm4429 = vcmp.lt.s32.totalorder %v4428, %v3213
    %v4430 = vsel %vm4429, %v4428, %v3213
    %vm4431 = vcmp.lt.s32.totalorder %v4430, %v3214
    %v4432 = vsel %vm4431, %v4430, %v3214
    %v4433 = vand.u32 %v4432, 65535
    %v4434 = vshra.s32 %v4432, 16
    %v4435 = vcvt.s32.f32 %v4433
    %v4436 = vcvt.s32.f32 %v4434
    %4437 = vmin.xlane.f32.xlu0 %v4436
    %v4438 = vpop.xlane.xlu0 %4437
    %vm4439 = vcmp.eq.f32.partialorder %v4436, %v4438
    %v4440 = vsel %vm4439, %v4435, inf
    %4441 = vmin.xlane.f32.xlu0 %v4440
    %v4442 = vpop.xlane.xlu0 %4441
    %v4443 = vcvt.f32.s32 %v4442
    %v4444 = vcvt.f32.s32 %v4438
    %v4445 = vshll.u32 %v4444, 16
    %v4446 = vadd.s32 %v4445, %v4443
    %vm4447 = vcmp.lt.s32.totalorder %v3215, %v3216
    %v4448 = vsel %vm4447, %v3215, %v3216
    %vm4449 = vcmp.lt.s32.totalorder %v4448, %v3217
    %v4450 = vsel %vm4449, %v4448, %v3217
    %vm4451 = vcmp.lt.s32.totalorder %v4450, %v3218
    %v4452 = vsel %vm4451, %v4450, %v3218
    %v4453 = vand.u32 %v4452, 65535
    %v4454 = vshra.s32 %v4452, 16
    %v4455 = vcvt.s32.f32 %v4453
    %v4456 = vcvt.s32.f32 %v4454
    %4457 = vmin.xlane.f32.xlu0 %v4456
    %v4458 = vpop.xlane.xlu0 %4457
    %vm4459 = vcmp.eq.f32.partialorder %v4456, %v4458
    %v4460 = vsel %vm4459, %v4455, inf
    %4461 = vmin.xlane.f32.xlu0 %v4460
    %v4462 = vpop.xlane.xlu0 %4461
    %v4463 = vcvt.f32.s32 %v4462
    %v4464 = vcvt.f32.s32 %v4458
    %v4465 = vshll.u32 %v4464, 16
    %v4466 = vadd.s32 %v4465, %v4463
    %vm4467 = vcmp.lt.s32.totalorder %v3219, %v3220
    %v4468 = vsel %vm4467, %v3219, %v3220
    %vm4469 = vcmp.lt.s32.totalorder %v4468, %v3221
    %v4470 = vsel %vm4469, %v4468, %v3221
    %vm4471 = vcmp.lt.s32.totalorder %v4470, %v3222
    %v4472 = vsel %vm4471, %v4470, %v3222
    %v4473 = vand.u32 %v4472, 65535
    %v4474 = vshra.s32 %v4472, 16
    %v4475 = vcvt.s32.f32 %v4473
    %v4476 = vcvt.s32.f32 %v4474
    %4477 = vmin.xlane.f32.xlu0 %v4476
    %v4478 = vpop.xlane.xlu0 %4477
    %vm4479 = vcmp.eq.f32.partialorder %v4476, %v4478
    %v4480 = vsel %vm4479, %v4475, inf
    %4481 = vmin.xlane.f32.xlu0 %v4480
    %v4482 = vpop.xlane.xlu0 %4481
    %v4483 = vcvt.f32.s32 %v4482
    %v4484 = vcvt.f32.s32 %v4478
    %v4485 = vshll.u32 %v4484, 16
    %v4486 = vadd.s32 %v4485, %v4483
    %vm4487 = vcmp.lt.s32.totalorder %v3223, %v3224
    %v4488 = vsel %vm4487, %v3223, %v3224
    %vm4489 = vcmp.lt.s32.totalorder %v4488, %v3225
    %v4490 = vsel %vm4489, %v4488, %v3225
    %vm4491 = vcmp.lt.s32.totalorder %v4490, %v3226
    %v4492 = vsel %vm4491, %v4490, %v3226
    %v4493 = vand.u32 %v4492, 65535
    %v4494 = vshra.s32 %v4492, 16
    %v4495 = vcvt.s32.f32 %v4493
    %v4496 = vcvt.s32.f32 %v4494
    %4497 = vmin.xlane.f32.xlu0 %v4496
    %v4498 = vpop.xlane.xlu0 %4497
    %vm4499 = vcmp.eq.f32.partialorder %v4496, %v4498
    %v4500 = vsel %vm4499, %v4495, inf
    %4501 = vmin.xlane.f32.xlu0 %v4500
    %v4502 = vpop.xlane.xlu0 %4501
    %v4503 = vcvt.f32.s32 %v4502
    %v4504 = vcvt.f32.s32 %v4498
    %v4505 = vshll.u32 %v4504, 16
    %v4506 = vadd.s32 %v4505, %v4503
    %vm4507 = vcmp.lt.s32.totalorder %v3227, %v3228
    %v4508 = vsel %vm4507, %v3227, %v3228
    %vm4509 = vcmp.lt.s32.totalorder %v4508, %v3229
    %v4510 = vsel %vm4509, %v4508, %v3229
    %vm4511 = vcmp.lt.s32.totalorder %v4510, %v3230
    %v4512 = vsel %vm4511, %v4510, %v3230
    %v4513 = vand.u32 %v4512, 65535
    %v4514 = vshra.s32 %v4512, 16
    %v4515 = vcvt.s32.f32 %v4513
    %v4516 = vcvt.s32.f32 %v4514
    %4517 = vmin.xlane.f32.xlu0 %v4516
    %v4518 = vpop.xlane.xlu0 %4517
    %vm4519 = vcmp.eq.f32.partialorder %v4516, %v4518
    %v4520 = vsel %vm4519, %v4515, inf
    %4521 = vmin.xlane.f32.xlu0 %v4520
    %v4522 = vpop.xlane.xlu0 %4521
    %v4523 = vcvt.f32.s32 %v4522
    %v4524 = vcvt.f32.s32 %v4518
    %v4525 = vshll.u32 %v4524, 16
    %v4526 = vadd.s32 %v4525, %v4523
    %vm4527 = vcmp.lt.s32.totalorder %v3231, %v3232
    %v4528 = vsel %vm4527, %v3231, %v3232
    %vm4529 = vcmp.lt.s32.totalorder %v4528, %v3233
    %v4530 = vsel %vm4529, %v4528, %v3233
    %vm4531 = vcmp.lt.s32.totalorder %v4530, %v3234
    %v4532 = vsel %vm4531, %v4530, %v3234
    %v4533 = vand.u32 %v4532, 65535
    %v4534 = vshra.s32 %v4532, 16
    %v4535 = vcvt.s32.f32 %v4533
    %v4536 = vcvt.s32.f32 %v4534
    %4537 = vmin.xlane.f32.xlu0 %v4536
    %v4538 = vpop.xlane.xlu0 %4537
    %vm4539 = vcmp.eq.f32.partialorder %v4536, %v4538
    %v4540 = vsel %vm4539, %v4535, inf
    %4541 = vmin.xlane.f32.xlu0 %v4540
    %v4542 = vpop.xlane.xlu0 %4541
    %v4543 = vcvt.f32.s32 %v4542
    %v4544 = vcvt.f32.s32 %v4538
    %v4545 = vshll.u32 %v4544, 16
    %v4546 = vadd.s32 %v4545, %v4543
    %vm4547 = vcmp.lt.s32.totalorder %v3235, %v3236
    %v4548 = vsel %vm4547, %v3235, %v3236
    %vm4549 = vcmp.lt.s32.totalorder %v4548, %v3237
    %v4550 = vsel %vm4549, %v4548, %v3237
    %vm4551 = vcmp.lt.s32.totalorder %v4550, %v3238
    %v4552 = vsel %vm4551, %v4550, %v3238
    %v4553 = vand.u32 %v4552, 65535
    %v4554 = vshra.s32 %v4552, 16
    %v4555 = vcvt.s32.f32 %v4553
    %v4556 = vcvt.s32.f32 %v4554
    %4557 = vmin.xlane.f32.xlu0 %v4556
    %v4558 = vpop.xlane.xlu0 %4557
    %vm4559 = vcmp.eq.f32.partialorder %v4556, %v4558
    %v4560 = vsel %vm4559, %v4555, inf
    %4561 = vmin.xlane.f32.xlu0 %v4560
    %v4562 = vpop.xlane.xlu0 %4561
    %v4563 = vcvt.f32.s32 %v4562
    %v4564 = vcvt.f32.s32 %v4558
    %v4565 = vshll.u32 %v4564, 16
    %v4566 = vadd.s32 %v4565, %v4563
    %vm4567 = vcmp.lt.s32.totalorder %v3239, %v3240
    %v4568 = vsel %vm4567, %v3239, %v3240
    %vm4569 = vcmp.lt.s32.totalorder %v4568, %v3241
    %v4570 = vsel %vm4569, %v4568, %v3241
    %vm4571 = vcmp.lt.s32.totalorder %v4570, %v3242
    %v4572 = vsel %vm4571, %v4570, %v3242
    %v4573 = vand.u32 %v4572, 65535
    %v4574 = vshra.s32 %v4572, 16
    %v4575 = vcvt.s32.f32 %v4573
    %v4576 = vcvt.s32.f32 %v4574
    %4577 = vmin.xlane.f32.xlu0 %v4576
    %v4578 = vpop.xlane.xlu0 %4577
    %vm4579 = vcmp.eq.f32.partialorder %v4576, %v4578
    %v4580 = vsel %vm4579, %v4575, inf
    %4581 = vmin.xlane.f32.xlu0 %v4580
    %v4582 = vpop.xlane.xlu0 %4581
    %v4583 = vcvt.f32.s32 %v4582
    %v4584 = vcvt.f32.s32 %v4578
    %v4585 = vshll.u32 %v4584, 16
    %v4586 = vadd.s32 %v4585, %v4583
    %vm4587 = vcmp.lt.s32.totalorder %v3243, %v3244
    %v4588 = vsel %vm4587, %v3243, %v3244
    %vm4589 = vcmp.lt.s32.totalorder %v4588, %v3245
    %v4590 = vsel %vm4589, %v4588, %v3245
    %vm4591 = vcmp.lt.s32.totalorder %v4590, %v3246
    %v4592 = vsel %vm4591, %v4590, %v3246
    %v4593 = vand.u32 %v4592, 65535
    %v4594 = vshra.s32 %v4592, 16
    %v4595 = vcvt.s32.f32 %v4593
    %v4596 = vcvt.s32.f32 %v4594
    %4597 = vmin.xlane.f32.xlu0 %v4596
    %v4598 = vpop.xlane.xlu0 %4597
    %vm4599 = vcmp.eq.f32.partialorder %v4596, %v4598
    %v4600 = vsel %vm4599, %v4595, inf
    %4601 = vmin.xlane.f32.xlu0 %v4600
    %v4602 = vpop.xlane.xlu0 %4601
    %v4603 = vcvt.f32.s32 %v4602
    %v4604 = vcvt.f32.s32 %v4598
    %v4605 = vshll.u32 %v4604, 16
    %v4606 = vadd.s32 %v4605, %v4603
    %vm4607 = vcmp.lt.s32.totalorder %v3247, %v3248
    %v4608 = vsel %vm4607, %v3247, %v3248
    %vm4609 = vcmp.lt.s32.totalorder %v4608, %v3249
    %v4610 = vsel %vm4609, %v4608, %v3249
    %vm4611 = vcmp.lt.s32.totalorder %v4610, %v3250
    %v4612 = vsel %vm4611, %v4610, %v3250
    %v4613 = vand.u32 %v4612, 65535
    %v4614 = vshra.s32 %v4612, 16
    %v4615 = vcvt.s32.f32 %v4613
    %v4616 = vcvt.s32.f32 %v4614
    %4617 = vmin.xlane.f32.xlu0 %v4616
    %v4618 = vpop.xlane.xlu0 %4617
    %vm4619 = vcmp.eq.f32.partialorder %v4616, %v4618
    %v4620 = vsel %vm4619, %v4615, inf
    %4621 = vmin.xlane.f32.xlu0 %v4620
    %v4622 = vpop.xlane.xlu0 %4621
    %v4623 = vcvt.f32.s32 %v4622
    %v4624 = vcvt.f32.s32 %v4618
    %v4625 = vshll.u32 %v4624, 16
    %v4626 = vadd.s32 %v4625, %v4623
    %vm4627 = vcmp.lt.s32.totalorder %v3251, %v3252
    %v4628 = vsel %vm4627, %v3251, %v3252
    %vm4629 = vcmp.lt.s32.totalorder %v4628, %v3253
    %v4630 = vsel %vm4629, %v4628, %v3253
    %vm4631 = vcmp.lt.s32.totalorder %v4630, %v3254
    %v4632 = vsel %vm4631, %v4630, %v3254
    %v4633 = vand.u32 %v4632, 65535
    %v4634 = vshra.s32 %v4632, 16
    %v4635 = vcvt.s32.f32 %v4633
    %v4636 = vcvt.s32.f32 %v4634
    %4637 = vmin.xlane.f32.xlu0 %v4636
    %v4638 = vpop.xlane.xlu0 %4637
    %vm4639 = vcmp.eq.f32.partialorder %v4636, %v4638
    %v4640 = vsel %vm4639, %v4635, inf
    %4641 = vmin.xlane.f32.xlu0 %v4640
    %v4642 = vpop.xlane.xlu0 %4641
    %v4643 = vcvt.f32.s32 %v4642
    %v4644 = vcvt.f32.s32 %v4638
    %v4645 = vshll.u32 %v4644, 16
    %v4646 = vadd.s32 %v4645, %v4643
    %vm4647 = vcmp.lt.s32.totalorder %v3255, %v3256
    %v4648 = vsel %vm4647, %v3255, %v3256
    %vm4649 = vcmp.lt.s32.totalorder %v4648, %v3257
    %v4650 = vsel %vm4649, %v4648, %v3257
    %vm4651 = vcmp.lt.s32.totalorder %v4650, %v3258
    %v4652 = vsel %vm4651, %v4650, %v3258
    %v4653 = vand.u32 %v4652, 65535
    %v4654 = vshra.s32 %v4652, 16
    %v4655 = vcvt.s32.f32 %v4653
    %v4656 = vcvt.s32.f32 %v4654
    %4657 = vmin.xlane.f32.xlu0 %v4656
    %v4658 = vpop.xlane.xlu0 %4657
    %vm4659 = vcmp.eq.f32.partialorder %v4656, %v4658
    %v4660 = vsel %vm4659, %v4655, inf
    %4661 = vmin.xlane.f32.xlu0 %v4660
    %v4662 = vpop.xlane.xlu0 %4661
    %v4663 = vcvt.f32.s32 %v4662
    %v4664 = vcvt.f32.s32 %v4658
    %v4665 = vshll.u32 %v4664, 16
    %v4666 = vadd.s32 %v4665, %v4663
    %vm4667 = vcmp.lt.s32.totalorder %v3259, %v3260
    %v4668 = vsel %vm4667, %v3259, %v3260
    %vm4669 = vcmp.lt.s32.totalorder %v4668, %v3261
    %v4670 = vsel %vm4669, %v4668, %v3261
    %vm4671 = vcmp.lt.s32.totalorder %v4670, %v3262
    %v4672 = vsel %vm4671, %v4670, %v3262
    %v4673 = vand.u32 %v4672, 65535
    %v4674 = vshra.s32 %v4672, 16
    %v4675 = vcvt.s32.f32 %v4673
    %v4676 = vcvt.s32.f32 %v4674
    %4677 = vmin.xlane.f32.xlu0 %v4676
    %v4678 = vpop.xlane.xlu0 %4677
    %vm4679 = vcmp.eq.f32.partialorder %v4676, %v4678
    %v4680 = vsel %vm4679, %v4675, inf
    %4681 = vmin.xlane.f32.xlu0 %v4680
    %v4682 = vpop.xlane.xlu0 %4681
    %v4683 = vcvt.f32.s32 %v4682
    %v4684 = vcvt.f32.s32 %v4678
    %v4685 = vshll.u32 %v4684, 16
    %v4686 = vadd.s32 %v4685, %v4683
    %vm4687 = vcmp.lt.s32.totalorder %v3263, %v3264
    %v4688 = vsel %vm4687, %v3263, %v3264
    %vm4689 = vcmp.lt.s32.totalorder %v4688, %v3265
    %v4690 = vsel %vm4689, %v4688, %v3265
    %vm4691 = vcmp.lt.s32.totalorder %v4690, %v3266
    %v4692 = vsel %vm4691, %v4690, %v3266
    %v4693 = vand.u32 %v4692, 65535
    %v4694 = vshra.s32 %v4692, 16
    %v4695 = vcvt.s32.f32 %v4693
    %v4696 = vcvt.s32.f32 %v4694
    %4697 = vmin.xlane.f32.xlu0 %v4696
    %v4698 = vpop.xlane.xlu0 %4697
    %vm4699 = vcmp.eq.f32.partialorder %v4696, %v4698
    %v4700 = vsel %vm4699, %v4695, inf
    %4701 = vmin.xlane.f32.xlu0 %v4700
    %v4702 = vpop.xlane.xlu0 %4701
    %v4703 = vcvt.f32.s32 %v4702
    %v4704 = vcvt.f32.s32 %v4698
    %v4705 = vshll.u32 %v4704, 16
    %v4706 = vadd.s32 %v4705, %v4703
    %vm4707 = vcmp.lt.s32.totalorder %v3267, %v3268
    %v4708 = vsel %vm4707, %v3267, %v3268
    %vm4709 = vcmp.lt.s32.totalorder %v4708, %v3269
    %v4710 = vsel %vm4709, %v4708, %v3269
    %vm4711 = vcmp.lt.s32.totalorder %v4710, %v3270
    %v4712 = vsel %vm4711, %v4710, %v3270
    %v4713 = vand.u32 %v4712, 65535
    %v4714 = vshra.s32 %v4712, 16
    %v4715 = vcvt.s32.f32 %v4713
    %v4716 = vcvt.s32.f32 %v4714
    %4717 = vmin.xlane.f32.xlu0 %v4716
    %v4718 = vpop.xlane.xlu0 %4717
    %vm4719 = vcmp.eq.f32.partialorder %v4716, %v4718
    %v4720 = vsel %vm4719, %v4715, inf
    %4721 = vmin.xlane.f32.xlu0 %v4720
    %v4722 = vpop.xlane.xlu0 %4721
    %v4723 = vcvt.f32.s32 %v4722
    %v4724 = vcvt.f32.s32 %v4718
    %v4725 = vshll.u32 %v4724, 16
    %v4726 = vadd.s32 %v4725, %v4723
    %vm4727 = vcmp.lt.s32.totalorder %v3271, %v3272
    %v4728 = vsel %vm4727, %v3271, %v3272
    %vm4729 = vcmp.lt.s32.totalorder %v4728, %v3273
    %v4730 = vsel %vm4729, %v4728, %v3273
    %vm4731 = vcmp.lt.s32.totalorder %v4730, %v3274
    %v4732 = vsel %vm4731, %v4730, %v3274
    %v4733 = vand.u32 %v4732, 65535
    %v4734 = vshra.s32 %v4732, 16
    %v4735 = vcvt.s32.f32 %v4733
    %v4736 = vcvt.s32.f32 %v4734
    %4737 = vmin.xlane.f32.xlu0 %v4736
    %v4738 = vpop.xlane.xlu0 %4737
    %vm4739 = vcmp.eq.f32.partialorder %v4736, %v4738
    %v4740 = vsel %vm4739, %v4735, inf
    %4741 = vmin.xlane.f32.xlu0 %v4740
    %v4742 = vpop.xlane.xlu0 %4741
    %v4743 = vcvt.f32.s32 %v4742
    %v4744 = vcvt.f32.s32 %v4738
    %v4745 = vshll.u32 %v4744, 16
    %v4746 = vadd.s32 %v4745, %v4743
    %vm4747 = vcmp.lt.s32.totalorder %v3275, %v3276
    %v4748 = vsel %vm4747, %v3275, %v3276
    %vm4749 = vcmp.lt.s32.totalorder %v4748, %v3277
    %v4750 = vsel %vm4749, %v4748, %v3277
    %vm4751 = vcmp.lt.s32.totalorder %v4750, %v3278
    %v4752 = vsel %vm4751, %v4750, %v3278
    %v4753 = vand.u32 %v4752, 65535
    %v4754 = vshra.s32 %v4752, 16
    %v4755 = vcvt.s32.f32 %v4753
    %v4756 = vcvt.s32.f32 %v4754
    %4757 = vmin.xlane.f32.xlu0 %v4756
    %v4758 = vpop.xlane.xlu0 %4757
    %vm4759 = vcmp.eq.f32.partialorder %v4756, %v4758
    %v4760 = vsel %vm4759, %v4755, inf
    %4761 = vmin.xlane.f32.xlu0 %v4760
    %v4762 = vpop.xlane.xlu0 %4761
    %v4763 = vcvt.f32.s32 %v4762
    %v4764 = vcvt.f32.s32 %v4758
    %v4765 = vshll.u32 %v4764, 16
    %v4766 = vadd.s32 %v4765, %v4763
    %vm4767 = vcmp.lt.s32.totalorder %v3279, %v3280
    %v4768 = vsel %vm4767, %v3279, %v3280
    %vm4769 = vcmp.lt.s32.totalorder %v4768, %v3281
    %v4770 = vsel %vm4769, %v4768, %v3281
    %vm4771 = vcmp.lt.s32.totalorder %v4770, %v3282
    %v4772 = vsel %vm4771, %v4770, %v3282
    %v4773 = vand.u32 %v4772, 65535
    %v4774 = vshra.s32 %v4772, 16
    %v4775 = vcvt.s32.f32 %v4773
    %v4776 = vcvt.s32.f32 %v4774
    %4777 = vmin.xlane.f32.xlu0 %v4776
    %v4778 = vpop.xlane.xlu0 %4777
    %vm4779 = vcmp.eq.f32.partialorder %v4776, %v4778
    %v4780 = vsel %vm4779, %v4775, inf
    %4781 = vmin.xlane.f32.xlu0 %v4780
    %v4782 = vpop.xlane.xlu0 %4781
    %v4783 = vcvt.f32.s32 %v4782
    %v4784 = vcvt.f32.s32 %v4778
    %v4785 = vshll.u32 %v4784, 16
    %v4786 = vadd.s32 %v4785, %v4783
    %vm4787 = vcmp.lt.s32.totalorder %v3283, %v3284
    %v4788 = vsel %vm4787, %v3283, %v3284
    %vm4789 = vcmp.lt.s32.totalorder %v4788, %v3285
    %v4790 = vsel %vm4789, %v4788, %v3285
    %vm4791 = vcmp.lt.s32.totalorder %v4790, %v3286
    %v4792 = vsel %vm4791, %v4790, %v3286
    %v4793 = vand.u32 %v4792, 65535
    %v4794 = vshra.s32 %v4792, 16
    %v4795 = vcvt.s32.f32 %v4793
    %v4796 = vcvt.s32.f32 %v4794
    %4797 = vmin.xlane.f32.xlu0 %v4796
    %v4798 = vpop.xlane.xlu0 %4797
    %vm4799 = vcmp.eq.f32.partialorder %v4796, %v4798
    %v4800 = vsel %vm4799, %v4795, inf
    %4801 = vmin.xlane.f32.xlu0 %v4800
    %v4802 = vpop.xlane.xlu0 %4801
    %v4803 = vcvt.f32.s32 %v4802
    %v4804 = vcvt.f32.s32 %v4798
    %v4805 = vshll.u32 %v4804, 16
    %v4806 = vadd.s32 %v4805, %v4803
    %vm4807 = vcmp.lt.s32.totalorder %v3287, %v3288
    %v4808 = vsel %vm4807, %v3287, %v3288
    %vm4809 = vcmp.lt.s32.totalorder %v4808, %v3289
    %v4810 = vsel %vm4809, %v4808, %v3289
    %vm4811 = vcmp.lt.s32.totalorder %v4810, %v3290
    %v4812 = vsel %vm4811, %v4810, %v3290
    %v4813 = vand.u32 %v4812, 65535
    %v4814 = vshra.s32 %v4812, 16
    %v4815 = vcvt.s32.f32 %v4813
    %v4816 = vcvt.s32.f32 %v4814
    %4817 = vmin.xlane.f32.xlu0 %v4816
    %v4818 = vpop.xlane.xlu0 %4817
    %vm4819 = vcmp.eq.f32.partialorder %v4816, %v4818
    %v4820 = vsel %vm4819, %v4815, inf
    %4821 = vmin.xlane.f32.xlu0 %v4820
    %v4822 = vpop.xlane.xlu0 %4821
    %v4823 = vcvt.f32.s32 %v4822
    %v4824 = vcvt.f32.s32 %v4818
    %v4825 = vshll.u32 %v4824, 16
    %v4826 = vadd.s32 %v4825, %v4823
    %vm4827 = vcmp.lt.s32.totalorder %v3291, %v3292
    %v4828 = vsel %vm4827, %v3291, %v3292
    %vm4829 = vcmp.lt.s32.totalorder %v4828, %v3293
    %v4830 = vsel %vm4829, %v4828, %v3293
    %vm4831 = vcmp.lt.s32.totalorder %v4830, %v3294
    %v4832 = vsel %vm4831, %v4830, %v3294
    %v4833 = vand.u32 %v4832, 65535
    %v4834 = vshra.s32 %v4832, 16
    %v4835 = vcvt.s32.f32 %v4833
    %v4836 = vcvt.s32.f32 %v4834
    %4837 = vmin.xlane.f32.xlu0 %v4836
    %v4838 = vpop.xlane.xlu0 %4837
    %vm4839 = vcmp.eq.f32.partialorder %v4836, %v4838
    %v4840 = vsel %vm4839, %v4835, inf
    %4841 = vmin.xlane.f32.xlu0 %v4840
    %v4842 = vpop.xlane.xlu0 %4841
    %v4843 = vcvt.f32.s32 %v4842
    %v4844 = vcvt.f32.s32 %v4838
    %v4845 = vshll.u32 %v4844, 16
    %v4846 = vadd.s32 %v4845, %v4843
    %vm4847 = vcmp.lt.s32.totalorder %v3295, %v3296
    %v4848 = vsel %vm4847, %v3295, %v3296
    %vm4849 = vcmp.lt.s32.totalorder %v4848, %v3297
    %v4850 = vsel %vm4849, %v4848, %v3297
    %vm4851 = vcmp.lt.s32.totalorder %v4850, %v3298
    %v4852 = vsel %vm4851, %v4850, %v3298
    %v4853 = vand.u32 %v4852, 65535
    %v4854 = vshra.s32 %v4852, 16
    %v4855 = vcvt.s32.f32 %v4853
    %v4856 = vcvt.s32.f32 %v4854
    %4857 = vmin.xlane.f32.xlu0 %v4856
    %v4858 = vpop.xlane.xlu0 %4857
    %vm4859 = vcmp.eq.f32.partialorder %v4856, %v4858
    %v4860 = vsel %vm4859, %v4855, inf
    %4861 = vmin.xlane.f32.xlu0 %v4860
    %v4862 = vpop.xlane.xlu0 %4861
    %v4863 = vcvt.f32.s32 %v4862
    %v4864 = vcvt.f32.s32 %v4858
    %v4865 = vshll.u32 %v4864, 16
    %v4866 = vadd.s32 %v4865, %v4863
    %vm4867 = vcmp.lt.s32.totalorder %v3299, %v3300
    %v4868 = vsel %vm4867, %v3299, %v3300
    %vm4869 = vcmp.lt.s32.totalorder %v4868, %v3301
    %v4870 = vsel %vm4869, %v4868, %v3301
    %vm4871 = vcmp.lt.s32.totalorder %v4870, %v3302
    %v4872 = vsel %vm4871, %v4870, %v3302
    %v4873 = vand.u32 %v4872, 65535
    %v4874 = vshra.s32 %v4872, 16
    %v4875 = vcvt.s32.f32 %v4873
    %v4876 = vcvt.s32.f32 %v4874
    %4877 = vmin.xlane.f32.xlu0 %v4876
    %v4878 = vpop.xlane.xlu0 %4877
    %vm4879 = vcmp.eq.f32.partialorder %v4876, %v4878
    %v4880 = vsel %vm4879, %v4875, inf
    %4881 = vmin.xlane.f32.xlu0 %v4880
    %v4882 = vpop.xlane.xlu0 %4881
    %v4883 = vcvt.f32.s32 %v4882
    %v4884 = vcvt.f32.s32 %v4878
    %v4885 = vshll.u32 %v4884, 16
    %v4886 = vadd.s32 %v4885, %v4883
    %vm4887 = vcmp.lt.s32.totalorder %v3303, %v3304
    %v4888 = vsel %vm4887, %v3303, %v3304
    %vm4889 = vcmp.lt.s32.totalorder %v4888, %v3305
    %v4890 = vsel %vm4889, %v4888, %v3305
    %vm4891 = vcmp.lt.s32.totalorder %v4890, %v3306
    %v4892 = vsel %vm4891, %v4890, %v3306
    %v4893 = vand.u32 %v4892, 65535
    %v4894 = vshra.s32 %v4892, 16
    %v4895 = vcvt.s32.f32 %v4893
    %v4896 = vcvt.s32.f32 %v4894
    %4897 = vmin.xlane.f32.xlu0 %v4896
    %v4898 = vpop.xlane.xlu0 %4897
    %vm4899 = vcmp.eq.f32.partialorder %v4896, %v4898
    %v4900 = vsel %vm4899, %v4895, inf
    %4901 = vmin.xlane.f32.xlu0 %v4900
    %v4902 = vpop.xlane.xlu0 %4901
    %v4903 = vcvt.f32.s32 %v4902
    %v4904 = vcvt.f32.s32 %v4898
    %v4905 = vshll.u32 %v4904, 16
    %v4906 = vadd.s32 %v4905, %v4903
    %vm4907 = vcmp.lt.s32.totalorder %v3307, %v3308
    %v4908 = vsel %vm4907, %v3307, %v3308
    %vm4909 = vcmp.lt.s32.totalorder %v4908, %v3309
    %v4910 = vsel %vm4909, %v4908, %v3309
    %vm4911 = vcmp.lt.s32.totalorder %v4910, %v3310
    %v4912 = vsel %vm4911, %v4910, %v3310
    %v4913 = vand.u32 %v4912, 65535
    %v4914 = vshra.s32 %v4912, 16
    %v4915 = vcvt.s32.f32 %v4913
    %v4916 = vcvt.s32.f32 %v4914
    %4917 = vmin.xlane.f32.xlu0 %v4916
    %v4918 = vpop.xlane.xlu0 %4917
    %vm4919 = vcmp.eq.f32.partialorder %v4916, %v4918
    %v4920 = vsel %vm4919, %v4915, inf
    %4921 = vmin.xlane.f32.xlu0 %v4920
    %v4922 = vpop.xlane.xlu0 %4921
    %v4923 = vcvt.f32.s32 %v4922
    %v4924 = vcvt.f32.s32 %v4918
    %v4925 = vshll.u32 %v4924, 16
    %v4926 = vadd.s32 %v4925, %v4923
    %vm4927 = vcmp.lt.s32.totalorder %v3311, %v3312
    %v4928 = vsel %vm4927, %v3311, %v3312
    %vm4929 = vcmp.lt.s32.totalorder %v4928, %v3313
    %v4930 = vsel %vm4929, %v4928, %v3313
    %vm4931 = vcmp.lt.s32.totalorder %v4930, %v3314
    %v4932 = vsel %vm4931, %v4930, %v3314
    %v4933 = vand.u32 %v4932, 65535
    %v4934 = vshra.s32 %v4932, 16
    %v4935 = vcvt.s32.f32 %v4933
    %v4936 = vcvt.s32.f32 %v4934
    %4937 = vmin.xlane.f32.xlu0 %v4936
    %v4938 = vpop.xlane.xlu0 %4937
    %vm4939 = vcmp.eq.f32.partialorder %v4936, %v4938
    %v4940 = vsel %vm4939, %v4935, inf
    %4941 = vmin.xlane.f32.xlu0 %v4940
    %v4942 = vpop.xlane.xlu0 %4941
    %v4943 = vcvt.f32.s32 %v4942
    %v4944 = vcvt.f32.s32 %v4938
    %v4945 = vshll.u32 %v4944, 16
    %v4946 = vadd.s32 %v4945, %v4943
    %vm4947 = vcmp.lt.s32.totalorder %v3315, %v3316
    %v4948 = vsel %vm4947, %v3315, %v3316
    %vm4949 = vcmp.lt.s32.totalorder %v4948, %v3317
    %v4950 = vsel %vm4949, %v4948, %v3317
    %vm4951 = vcmp.lt.s32.totalorder %v4950, %v3318
    %v4952 = vsel %vm4951, %v4950, %v3318
    %v4953 = vand.u32 %v4952, 65535
    %v4954 = vshra.s32 %v4952, 16
    %v4955 = vcvt.s32.f32 %v4953
    %v4956 = vcvt.s32.f32 %v4954
    %4957 = vmin.xlane.f32.xlu0 %v4956
    %v4958 = vpop.xlane.xlu0 %4957
    %vm4959 = vcmp.eq.f32.partialorder %v4956, %v4958
    %v4960 = vsel %vm4959, %v4955, inf
    %4961 = vmin.xlane.f32.xlu0 %v4960
    %v4962 = vpop.xlane.xlu0 %4961
    %v4963 = vcvt.f32.s32 %v4962
    %v4964 = vcvt.f32.s32 %v4958
    %v4965 = vshll.u32 %v4964, 16
    %v4966 = vadd.s32 %v4965, %v4963
    %vm4967 = vcmp.lt.s32.totalorder %v3319, %v3320
    %v4968 = vsel %vm4967, %v3319, %v3320
    %vm4969 = vcmp.lt.s32.totalorder %v4968, %v3321
    %v4970 = vsel %vm4969, %v4968, %v3321
    %vm4971 = vcmp.lt.s32.totalorder %v4970, %v3322
    %v4972 = vsel %vm4971, %v4970, %v3322
    %v4973 = vand.u32 %v4972, 65535
    %v4974 = vshra.s32 %v4972, 16
    %v4975 = vcvt.s32.f32 %v4973
    %v4976 = vcvt.s32.f32 %v4974
    %4977 = vmin.xlane.f32.xlu0 %v4976
    %v4978 = vpop.xlane.xlu0 %4977
    %vm4979 = vcmp.eq.f32.partialorder %v4976, %v4978
    %v4980 = vsel %vm4979, %v4975, inf
    %4981 = vmin.xlane.f32.xlu0 %v4980
    %v4982 = vpop.xlane.xlu0 %4981
    %v4983 = vcvt.f32.s32 %v4982
    %v4984 = vcvt.f32.s32 %v4978
    %v4985 = vshll.u32 %v4984, 16
    %v4986 = vadd.s32 %v4985, %v4983
    %vm4987 = vcmp.lt.s32.totalorder %v3323, %v3324
    %v4988 = vsel %vm4987, %v3323, %v3324
    %vm4989 = vcmp.lt.s32.totalorder %v4988, %v3325
    %v4990 = vsel %vm4989, %v4988, %v3325
    %vm4991 = vcmp.lt.s32.totalorder %v4990, %v3326
    %v4992 = vsel %vm4991, %v4990, %v3326
    %v4993 = vand.u32 %v4992, 65535
    %v4994 = vshra.s32 %v4992, 16
    %v4995 = vcvt.s32.f32 %v4993
    %v4996 = vcvt.s32.f32 %v4994
    %4997 = vmin.xlane.f32.xlu0 %v4996
    %v4998 = vpop.xlane.xlu0 %4997
    %vm4999 = vcmp.eq.f32.partialorder %v4996, %v4998
    %v5000 = vsel %vm4999, %v4995, inf
    %5001 = vmin.xlane.f32.xlu0 %v5000
    %v5002 = vpop.xlane.xlu0 %5001
    %v5003 = vcvt.f32.s32 %v5002
    %v5004 = vcvt.f32.s32 %v4998
    %v5005 = vshll.u32 %v5004, 16
    %v5006 = vadd.s32 %v5005, %v5003
    %vm5007 = vcmp.lt.s32.totalorder %v3327, %v3328
    %v5008 = vsel %vm5007, %v3327, %v3328
    %vm5009 = vcmp.lt.s32.totalorder %v5008, %v3329
    %v5010 = vsel %vm5009, %v5008, %v3329
    %vm5011 = vcmp.lt.s32.totalorder %v5010, %v3330
    %v5012 = vsel %vm5011, %v5010, %v3330
    %v5013 = vand.u32 %v5012, 65535
    %v5014 = vshra.s32 %v5012, 16
    %v5015 = vcvt.s32.f32 %v5013
    %v5016 = vcvt.s32.f32 %v5014
    %5017 = vmin.xlane.f32.xlu0 %v5016
    %v5018 = vpop.xlane.xlu0 %5017
    %vm5019 = vcmp.eq.f32.partialorder %v5016, %v5018
    %v5020 = vsel %vm5019, %v5015, inf
    %5021 = vmin.xlane.f32.xlu0 %v5020
    %v5022 = vpop.xlane.xlu0 %5021
    %v5023 = vcvt.f32.s32 %v5022
    %v5024 = vcvt.f32.s32 %v5018
    %v5025 = vshll.u32 %v5024, 16
    %v5026 = vadd.s32 %v5025, %v5023
    %vm5027 = vcmp.lt.s32.totalorder %v3331, %v3332
    %v5028 = vsel %vm5027, %v3331, %v3332
    %vm5029 = vcmp.lt.s32.totalorder %v5028, %v3333
    %v5030 = vsel %vm5029, %v5028, %v3333
    %vm5031 = vcmp.lt.s32.totalorder %v5030, %v3334
    %v5032 = vsel %vm5031, %v5030, %v3334
    %v5033 = vand.u32 %v5032, 65535
    %v5034 = vshra.s32 %v5032, 16
    %v5035 = vcvt.s32.f32 %v5033
    %v5036 = vcvt.s32.f32 %v5034
    %5037 = vmin.xlane.f32.xlu0 %v5036
    %v5038 = vpop.xlane.xlu0 %5037
    %vm5039 = vcmp.eq.f32.partialorder %v5036, %v5038
    %v5040 = vsel %vm5039, %v5035, inf
    %5041 = vmin.xlane.f32.xlu0 %v5040
    %v5042 = vpop.xlane.xlu0 %5041
    %v5043 = vcvt.f32.s32 %v5042
    %v5044 = vcvt.f32.s32 %v5038
    %v5045 = vshll.u32 %v5044, 16
    %v5046 = vadd.s32 %v5045, %v5043
    %vm5047 = vcmp.lt.s32.totalorder %v3335, %v3336
    %v5048 = vsel %vm5047, %v3335, %v3336
    %vm5049 = vcmp.lt.s32.totalorder %v5048, %v3337
    %v5050 = vsel %vm5049, %v5048, %v3337
    %vm5051 = vcmp.lt.s32.totalorder %v5050, %v3338
    %v5052 = vsel %vm5051, %v5050, %v3338
    %v5053 = vand.u32 %v5052, 65535
    %v5054 = vshra.s32 %v5052, 16
    %v5055 = vcvt.s32.f32 %v5053
    %v5056 = vcvt.s32.f32 %v5054
    %5057 = vmin.xlane.f32.xlu0 %v5056
    %v5058 = vpop.xlane.xlu0 %5057
    %vm5059 = vcmp.eq.f32.partialorder %v5056, %v5058
    %v5060 = vsel %vm5059, %v5055, inf
    %5061 = vmin.xlane.f32.xlu0 %v5060
    %v5062 = vpop.xlane.xlu0 %5061
    %v5063 = vcvt.f32.s32 %v5062
    %v5064 = vcvt.f32.s32 %v5058
    %v5065 = vshll.u32 %v5064, 16
    %v5066 = vadd.s32 %v5065, %v5063
    %vm5067 = vcmp.lt.s32.totalorder %v3339, %v3340
    %v5068 = vsel %vm5067, %v3339, %v3340
    %vm5069 = vcmp.lt.s32.totalorder %v5068, %v3341
    %v5070 = vsel %vm5069, %v5068, %v3341
    %vm5071 = vcmp.lt.s32.totalorder %v5070, %v3342
    %v5072 = vsel %vm5071, %v5070, %v3342
    %v5073 = vand.u32 %v5072, 65535
    %v5074 = vshra.s32 %v5072, 16
    %v5075 = vcvt.s32.f32 %v5073
    %v5076 = vcvt.s32.f32 %v5074
    %5077 = vmin.xlane.f32.xlu0 %v5076
    %v5078 = vpop.xlane.xlu0 %5077
    %vm5079 = vcmp.eq.f32.partialorder %v5076, %v5078
    %v5080 = vsel %vm5079, %v5075, inf
    %5081 = vmin.xlane.f32.xlu0 %v5080
    %v5082 = vpop.xlane.xlu0 %5081
    %v5083 = vcvt.f32.s32 %v5082
    %v5084 = vcvt.f32.s32 %v5078
    %v5085 = vshll.u32 %v5084, 16
    %v5086 = vadd.s32 %v5085, %v5083
    %vm5087 = vcmp.lt.s32.totalorder %v3343, %v3344
    %v5088 = vsel %vm5087, %v3343, %v3344
    %vm5089 = vcmp.lt.s32.totalorder %v5088, %v3345
    %v5090 = vsel %vm5089, %v5088, %v3345
    %vm5091 = vcmp.lt.s32.totalorder %v5090, %v3346
    %v5092 = vsel %vm5091, %v5090, %v3346
    %v5093 = vand.u32 %v5092, 65535
    %v5094 = vshra.s32 %v5092, 16
    %v5095 = vcvt.s32.f32 %v5093
    %v5096 = vcvt.s32.f32 %v5094
    %5097 = vmin.xlane.f32.xlu0 %v5096
    %v5098 = vpop.xlane.xlu0 %5097
    %vm5099 = vcmp.eq.f32.partialorder %v5096, %v5098
    %v5100 = vsel %vm5099, %v5095, inf
    %5101 = vmin.xlane.f32.xlu0 %v5100
    %v5102 = vpop.xlane.xlu0 %5101
    %v5103 = vcvt.f32.s32 %v5102
    %v5104 = vcvt.f32.s32 %v5098
    %v5105 = vshll.u32 %v5104, 16
    %v5106 = vadd.s32 %v5105, %v5103
    %vm5107 = vcmp.lt.s32.totalorder %v3347, %v3348
    %v5108 = vsel %vm5107, %v3347, %v3348
    %vm5109 = vcmp.lt.s32.totalorder %v5108, %v3349
    %v5110 = vsel %vm5109, %v5108, %v3349
    %vm5111 = vcmp.lt.s32.totalorder %v5110, %v3350
    %v5112 = vsel %vm5111, %v5110, %v3350
    %v5113 = vand.u32 %v5112, 65535
    %v5114 = vshra.s32 %v5112, 16
    %v5115 = vcvt.s32.f32 %v5113
    %v5116 = vcvt.s32.f32 %v5114
    %5117 = vmin.xlane.f32.xlu0 %v5116
    %v5118 = vpop.xlane.xlu0 %5117
    %vm5119 = vcmp.eq.f32.partialorder %v5116, %v5118
    %v5120 = vsel %vm5119, %v5115, inf
    %5121 = vmin.xlane.f32.xlu0 %v5120
    %v5122 = vpop.xlane.xlu0 %5121
    %v5123 = vcvt.f32.s32 %v5122
    %v5124 = vcvt.f32.s32 %v5118
    %v5125 = vshll.u32 %v5124, 16
    %v5126 = vadd.s32 %v5125, %v5123
    %vm5127 = vcmp.lt.s32.totalorder %v3351, %v3352
    %v5128 = vsel %vm5127, %v3351, %v3352
    %vm5129 = vcmp.lt.s32.totalorder %v5128, %v3353
    %v5130 = vsel %vm5129, %v5128, %v3353
    %vm5131 = vcmp.lt.s32.totalorder %v5130, %v3354
    %v5132 = vsel %vm5131, %v5130, %v3354
    %v5133 = vand.u32 %v5132, 65535
    %v5134 = vshra.s32 %v5132, 16
    %v5135 = vcvt.s32.f32 %v5133
    %v5136 = vcvt.s32.f32 %v5134
    %5137 = vmin.xlane.f32.xlu0 %v5136
    %v5138 = vpop.xlane.xlu0 %5137
    %vm5139 = vcmp.eq.f32.partialorder %v5136, %v5138
    %v5140 = vsel %vm5139, %v5135, inf
    %5141 = vmin.xlane.f32.xlu0 %v5140
    %v5142 = vpop.xlane.xlu0 %5141
    %v5143 = vcvt.f32.s32 %v5142
    %v5144 = vcvt.f32.s32 %v5138
    %v5145 = vshll.u32 %v5144, 16
    %v5146 = vadd.s32 %v5145, %v5143
    %vm5147 = vcmp.lt.s32.totalorder %v3355, %v3356
    %v5148 = vsel %vm5147, %v3355, %v3356
    %vm5149 = vcmp.lt.s32.totalorder %v5148, %v3357
    %v5150 = vsel %vm5149, %v5148, %v3357
    %vm5151 = vcmp.lt.s32.totalorder %v5150, %v3358
    %v5152 = vsel %vm5151, %v5150, %v3358
    %v5153 = vand.u32 %v5152, 65535
    %v5154 = vshra.s32 %v5152, 16
    %v5155 = vcvt.s32.f32 %v5153
    %v5156 = vcvt.s32.f32 %v5154
    %5157 = vmin.xlane.f32.xlu0 %v5156
    %v5158 = vpop.xlane.xlu0 %5157
    %vm5159 = vcmp.eq.f32.partialorder %v5156, %v5158
    %v5160 = vsel %vm5159, %v5155, inf
    %5161 = vmin.xlane.f32.xlu0 %v5160
    %v5162 = vpop.xlane.xlu0 %5161
    %v5163 = vcvt.f32.s32 %v5162
    %v5164 = vcvt.f32.s32 %v5158
    %v5165 = vshll.u32 %v5164, 16
    %v5166 = vadd.s32 %v5165, %v5163
    %vm5167 = vcmp.lt.s32.totalorder %v3359, %v3360
    %v5168 = vsel %vm5167, %v3359, %v3360
    %vm5169 = vcmp.lt.s32.totalorder %v5168, %v3361
    %v5170 = vsel %vm5169, %v5168, %v3361
    %vm5171 = vcmp.lt.s32.totalorder %v5170, %v3362
    %v5172 = vsel %vm5171, %v5170, %v3362
    %v5173 = vand.u32 %v5172, 65535
    %v5174 = vshra.s32 %v5172, 16
    %v5175 = vcvt.s32.f32 %v5173
    %v5176 = vcvt.s32.f32 %v5174
    %5177 = vmin.xlane.f32.xlu0 %v5176
    %v5178 = vpop.xlane.xlu0 %5177
    %vm5179 = vcmp.eq.f32.partialorder %v5176, %v5178
    %v5180 = vsel %vm5179, %v5175, inf
    %5181 = vmin.xlane.f32.xlu0 %v5180
    %v5182 = vpop.xlane.xlu0 %5181
    %v5183 = vcvt.f32.s32 %v5182
    %v5184 = vcvt.f32.s32 %v5178
    %v5185 = vshll.u32 %v5184, 16
    %v5186 = vadd.s32 %v5185, %v5183
    %vm5187 = vcmp.lt.s32.totalorder %v3363, %v3364
    %v5188 = vsel %vm5187, %v3363, %v3364
    %vm5189 = vcmp.lt.s32.totalorder %v5188, %v3365
    %v5190 = vsel %vm5189, %v5188, %v3365
    %vm5191 = vcmp.lt.s32.totalorder %v5190, %v3366
    %v5192 = vsel %vm5191, %v5190, %v3366
    %v5193 = vand.u32 %v5192, 65535
    %v5194 = vshra.s32 %v5192, 16
    %v5195 = vcvt.s32.f32 %v5193
    %v5196 = vcvt.s32.f32 %v5194
    %5197 = vmin.xlane.f32.xlu0 %v5196
    %v5198 = vpop.xlane.xlu0 %5197
    %vm5199 = vcmp.eq.f32.partialorder %v5196, %v5198
    %v5200 = vsel %vm5199, %v5195, inf
    %5201 = vmin.xlane.f32.xlu0 %v5200
    %v5202 = vpop.xlane.xlu0 %5201
    %v5203 = vcvt.f32.s32 %v5202
    %v5204 = vcvt.f32.s32 %v5198
    %v5205 = vshll.u32 %v5204, 16
    %v5206 = vadd.s32 %v5205, %v5203
    %vm5207 = vcmp.lt.s32.totalorder %v3367, %v3368
    %v5208 = vsel %vm5207, %v3367, %v3368
    %vm5209 = vcmp.lt.s32.totalorder %v5208, %v3369
    %v5210 = vsel %vm5209, %v5208, %v3369
    %vm5211 = vcmp.lt.s32.totalorder %v5210, %v3370
    %v5212 = vsel %vm5211, %v5210, %v3370
    %v5213 = vand.u32 %v5212, 65535
    %v5214 = vshra.s32 %v5212, 16
    %v5215 = vcvt.s32.f32 %v5213
    %v5216 = vcvt.s32.f32 %v5214
    %5217 = vmin.xlane.f32.xlu0 %v5216
    %v5218 = vpop.xlane.xlu0 %5217
    %vm5219 = vcmp.eq.f32.partialorder %v5216, %v5218
    %v5220 = vsel %vm5219, %v5215, inf
    %5221 = vmin.xlane.f32.xlu0 %v5220
    %v5222 = vpop.xlane.xlu0 %5221
    %v5223 = vcvt.f32.s32 %v5222
    %v5224 = vcvt.f32.s32 %v5218
    %v5225 = vshll.u32 %v5224, 16
    %v5226 = vadd.s32 %v5225, %v5223
    %vm5227 = vcmp.lt.s32.totalorder %v3371, %v3372
    %v5228 = vsel %vm5227, %v3371, %v3372
    %vm5229 = vcmp.lt.s32.totalorder %v5228, %v3373
    %v5230 = vsel %vm5229, %v5228, %v3373
    %vm5231 = vcmp.lt.s32.totalorder %v5230, %v3374
    %v5232 = vsel %vm5231, %v5230, %v3374
    %v5233 = vand.u32 %v5232, 65535
    %v5234 = vshra.s32 %v5232, 16
    %v5235 = vcvt.s32.f32 %v5233
    %v5236 = vcvt.s32.f32 %v5234
    %5237 = vmin.xlane.f32.xlu0 %v5236
    %v5238 = vpop.xlane.xlu0 %5237
    %vm5239 = vcmp.eq.f32.partialorder %v5236, %v5238
    %v5240 = vsel %vm5239, %v5235, inf
    %5241 = vmin.xlane.f32.xlu0 %v5240
    %v5242 = vpop.xlane.xlu0 %5241
    %v5243 = vcvt.f32.s32 %v5242
    %v5244 = vcvt.f32.s32 %v5238
    %v5245 = vshll.u32 %v5244, 16
    %v5246 = vadd.s32 %v5245, %v5243
    %vm5247 = vcmp.lt.s32.totalorder %v3375, %v3376
    %v5248 = vsel %vm5247, %v3375, %v3376
    %vm5249 = vcmp.lt.s32.totalorder %v5248, %v3377
    %v5250 = vsel %vm5249, %v5248, %v3377
    %vm5251 = vcmp.lt.s32.totalorder %v5250, %v3378
    %v5252 = vsel %vm5251, %v5250, %v3378
    %v5253 = vand.u32 %v5252, 65535
    %v5254 = vshra.s32 %v5252, 16
    %v5255 = vcvt.s32.f32 %v5253
    %v5256 = vcvt.s32.f32 %v5254
    %5257 = vmin.xlane.f32.xlu0 %v5256
    %v5258 = vpop.xlane.xlu0 %5257
    %vm5259 = vcmp.eq.f32.partialorder %v5256, %v5258
    %v5260 = vsel %vm5259, %v5255, inf
    %5261 = vmin.xlane.f32.xlu0 %v5260
    %v5262 = vpop.xlane.xlu0 %5261
    %v5263 = vcvt.f32.s32 %v5262
    %v5264 = vcvt.f32.s32 %v5258
    %v5265 = vshll.u32 %v5264, 16
    %v5266 = vadd.s32 %v5265, %v5263
    %vm5267 = vcmp.lt.s32.totalorder %v3379, %v3380
    %v5268 = vsel %vm5267, %v3379, %v3380
    %vm5269 = vcmp.lt.s32.totalorder %v5268, %v3381
    %v5270 = vsel %vm5269, %v5268, %v3381
    %vm5271 = vcmp.lt.s32.totalorder %v5270, %v3382
    %v5272 = vsel %vm5271, %v5270, %v3382
    %v5273 = vand.u32 %v5272, 65535
    %v5274 = vshra.s32 %v5272, 16
    %v5275 = vcvt.s32.f32 %v5273
    %v5276 = vcvt.s32.f32 %v5274
    %5277 = vmin.xlane.f32.xlu0 %v5276
    %v5278 = vpop.xlane.xlu0 %5277
    %vm5279 = vcmp.eq.f32.partialorder %v5276, %v5278
    %v5280 = vsel %vm5279, %v5275, inf
    %5281 = vmin.xlane.f32.xlu0 %v5280
    %v5282 = vpop.xlane.xlu0 %5281
    %v5283 = vcvt.f32.s32 %v5282
    %v5284 = vcvt.f32.s32 %v5278
    %v5285 = vshll.u32 %v5284, 16
    %v5286 = vadd.s32 %v5285, %v5283
    %vm5287 = vcmp.lt.s32.totalorder %v3383, %v3384
    %v5288 = vsel %vm5287, %v3383, %v3384
    %vm5289 = vcmp.lt.s32.totalorder %v5288, %v3385
    %v5290 = vsel %vm5289, %v5288, %v3385
    %vm5291 = vcmp.lt.s32.totalorder %v5290, %v3386
    %v5292 = vsel %vm5291, %v5290, %v3386
    %v5293 = vand.u32 %v5292, 65535
    %v5294 = vshra.s32 %v5292, 16
    %v5295 = vcvt.s32.f32 %v5293
    %v5296 = vcvt.s32.f32 %v5294
    %5297 = vmin.xlane.f32.xlu0 %v5296
    %v5298 = vpop.xlane.xlu0 %5297
    %vm5299 = vcmp.eq.f32.partialorder %v5296, %v5298
    %v5300 = vsel %vm5299, %v5295, inf
    %5301 = vmin.xlane.f32.xlu0 %v5300
    %v5302 = vpop.xlane.xlu0 %5301
    %v5303 = vcvt.f32.s32 %v5302
    %v5304 = vcvt.f32.s32 %v5298
    %v5305 = vshll.u32 %v5304, 16
    %v5306 = vadd.s32 %v5305, %v5303
    %vm5307 = vcmp.lt.s32.totalorder %v3387, %v3388
    %v5308 = vsel %vm5307, %v3387, %v3388
    %vm5309 = vcmp.lt.s32.totalorder %v5308, %v3389
    %v5310 = vsel %vm5309, %v5308, %v3389
    %vm5311 = vcmp.lt.s32.totalorder %v5310, %v3390
    %v5312 = vsel %vm5311, %v5310, %v3390
    %v5313 = vand.u32 %v5312, 65535
    %v5314 = vshra.s32 %v5312, 16
    %v5315 = vcvt.s32.f32 %v5313
    %v5316 = vcvt.s32.f32 %v5314
    %5317 = vmin.xlane.f32.xlu0 %v5316
    %v5318 = vpop.xlane.xlu0 %5317
    %vm5319 = vcmp.eq.f32.partialorder %v5316, %v5318
    %v5320 = vsel %vm5319, %v5315, inf
    %5321 = vmin.xlane.f32.xlu0 %v5320
    %v5322 = vpop.xlane.xlu0 %5321
    %v5323 = vcvt.f32.s32 %v5322
    %v5324 = vcvt.f32.s32 %v5318
    %v5325 = vshll.u32 %v5324, 16
    %v5326 = vadd.s32 %v5325, %v5323
    %vm5327 = vcmp.lt.s32.totalorder %v3391, %v3392
    %v5328 = vsel %vm5327, %v3391, %v3392
    %vm5329 = vcmp.lt.s32.totalorder %v5328, %v3393
    %v5330 = vsel %vm5329, %v5328, %v3393
    %vm5331 = vcmp.lt.s32.totalorder %v5330, %v3394
    %v5332 = vsel %vm5331, %v5330, %v3394
    %v5333 = vand.u32 %v5332, 65535
    %v5334 = vshra.s32 %v5332, 16
    %v5335 = vcvt.s32.f32 %v5333
    %v5336 = vcvt.s32.f32 %v5334
    %5337 = vmin.xlane.f32.xlu0 %v5336
    %v5338 = vpop.xlane.xlu0 %5337
    %vm5339 = vcmp.eq.f32.partialorder %v5336, %v5338
    %v5340 = vsel %vm5339, %v5335, inf
    %5341 = vmin.xlane.f32.xlu0 %v5340
    %v5342 = vpop.xlane.xlu0 %5341
    %v5343 = vcvt.f32.s32 %v5342
    %v5344 = vcvt.f32.s32 %v5338
    %v5345 = vshll.u32 %v5344, 16
    %v5346 = vadd.s32 %v5345, %v5343
    %vm5347 = vcmp.lt.s32.totalorder %v3395, %v3396
    %v5348 = vsel %vm5347, %v3395, %v3396
    %vm5349 = vcmp.lt.s32.totalorder %v5348, %v3397
    %v5350 = vsel %vm5349, %v5348, %v3397
    %vm5351 = vcmp.lt.s32.totalorder %v5350, %v3398
    %v5352 = vsel %vm5351, %v5350, %v3398
    %v5353 = vand.u32 %v5352, 65535
    %v5354 = vshra.s32 %v5352, 16
    %v5355 = vcvt.s32.f32 %v5353
    %v5356 = vcvt.s32.f32 %v5354
    %5357 = vmin.xlane.f32.xlu0 %v5356
    %v5358 = vpop.xlane.xlu0 %5357
    %vm5359 = vcmp.eq.f32.partialorder %v5356, %v5358
    %v5360 = vsel %vm5359, %v5355, inf
    %5361 = vmin.xlane.f32.xlu0 %v5360
    %v5362 = vpop.xlane.xlu0 %5361
    %v5363 = vcvt.f32.s32 %v5362
    %v5364 = vcvt.f32.s32 %v5358
    %v5365 = vshll.u32 %v5364, 16
    %v5366 = vadd.s32 %v5365, %v5363
    %vm5367 = vcmp.lt.s32.totalorder %v3399, %v3400
    %v5368 = vsel %vm5367, %v3399, %v3400
    %vm5369 = vcmp.lt.s32.totalorder %v5368, %v3401
    %v5370 = vsel %vm5369, %v5368, %v3401
    %vm5371 = vcmp.lt.s32.totalorder %v5370, %v3402
    %v5372 = vsel %vm5371, %v5370, %v3402
    %v5373 = vand.u32 %v5372, 65535
    %v5374 = vshra.s32 %v5372, 16
    %v5375 = vcvt.s32.f32 %v5373
    %v5376 = vcvt.s32.f32 %v5374
    %5377 = vmin.xlane.f32.xlu0 %v5376
    %v5378 = vpop.xlane.xlu0 %5377
    %vm5379 = vcmp.eq.f32.partialorder %v5376, %v5378
    %v5380 = vsel %vm5379, %v5375, inf
    %5381 = vmin.xlane.f32.xlu0 %v5380
    %v5382 = vpop.xlane.xlu0 %5381
    %v5383 = vcvt.f32.s32 %v5382
    %v5384 = vcvt.f32.s32 %v5378
    %v5385 = vshll.u32 %v5384, 16
    %v5386 = vadd.s32 %v5385, %v5383
    %vm5387 = vcmp.lt.s32.totalorder %v3403, %v3404
    %v5388 = vsel %vm5387, %v3403, %v3404
    %vm5389 = vcmp.lt.s32.totalorder %v5388, %v3405
    %v5390 = vsel %vm5389, %v5388, %v3405
    %vm5391 = vcmp.lt.s32.totalorder %v5390, %v3406
    %v5392 = vsel %vm5391, %v5390, %v3406
    %v5393 = vand.u32 %v5392, 65535
    %v5394 = vshra.s32 %v5392, 16
    %v5395 = vcvt.s32.f32 %v5393
    %v5396 = vcvt.s32.f32 %v5394
    %5397 = vmin.xlane.f32.xlu0 %v5396
    %v5398 = vpop.xlane.xlu0 %5397
    %vm5399 = vcmp.eq.f32.partialorder %v5396, %v5398
    %v5400 = vsel %vm5399, %v5395, inf
    %5401 = vmin.xlane.f32.xlu0 %v5400
    %v5402 = vpop.xlane.xlu0 %5401
    %v5403 = vcvt.f32.s32 %v5402
    %v5404 = vcvt.f32.s32 %v5398
    %v5405 = vshll.u32 %v5404, 16
    %v5406 = vadd.s32 %v5405, %v5403
    %vm5407 = vcmp.lt.s32.totalorder %v3407, %v3408
    %v5408 = vsel %vm5407, %v3407, %v3408
    %vm5409 = vcmp.lt.s32.totalorder %v5408, %v3409
    %v5410 = vsel %vm5409, %v5408, %v3409
    %vm5411 = vcmp.lt.s32.totalorder %v5410, %v3410
    %v5412 = vsel %vm5411, %v5410, %v3410
    %v5413 = vand.u32 %v5412, 65535
    %v5414 = vshra.s32 %v5412, 16
    %v5415 = vcvt.s32.f32 %v5413
    %v5416 = vcvt.s32.f32 %v5414
    %5417 = vmin.xlane.f32.xlu0 %v5416
    %v5418 = vpop.xlane.xlu0 %5417
    %vm5419 = vcmp.eq.f32.partialorder %v5416, %v5418
    %v5420 = vsel %vm5419, %v5415, inf
    %5421 = vmin.xlane.f32.xlu0 %v5420
    %v5422 = vpop.xlane.xlu0 %5421
    %v5423 = vcvt.f32.s32 %v5422
    %v5424 = vcvt.f32.s32 %v5418
    %v5425 = vshll.u32 %v5424, 16
    %v5426 = vadd.s32 %v5425, %v5423
    %vm5427 = vcmp.lt.s32.totalorder %v3411, %v3412
    %v5428 = vsel %vm5427, %v3411, %v3412
    %vm5429 = vcmp.lt.s32.totalorder %v5428, %v3413
    %v5430 = vsel %vm5429, %v5428, %v3413
    %vm5431 = vcmp.lt.s32.totalorder %v5430, %v3414
    %v5432 = vsel %vm5431, %v5430, %v3414
    %v5433 = vand.u32 %v5432, 65535
    %v5434 = vshra.s32 %v5432, 16
    %v5435 = vcvt.s32.f32 %v5433
    %v5436 = vcvt.s32.f32 %v5434
    %5437 = vmin.xlane.f32.xlu0 %v5436
    %v5438 = vpop.xlane.xlu0 %5437
    %vm5439 = vcmp.eq.f32.partialorder %v5436, %v5438
    %v5440 = vsel %vm5439, %v5435, inf
    %5441 = vmin.xlane.f32.xlu0 %v5440
    %v5442 = vpop.xlane.xlu0 %5441
    %v5443 = vcvt.f32.s32 %v5442
    %v5444 = vcvt.f32.s32 %v5438
    %v5445 = vshll.u32 %v5444, 16
    %v5446 = vadd.s32 %v5445, %v5443
    %vm5447 = vcmp.lt.s32.totalorder %v3415, %v3416
    %v5448 = vsel %vm5447, %v3415, %v3416
    %vm5449 = vcmp.lt.s32.totalorder %v5448, %v3417
    %v5450 = vsel %vm5449, %v5448, %v3417
    %vm5451 = vcmp.lt.s32.totalorder %v5450, %v3418
    %v5452 = vsel %vm5451, %v5450, %v3418
    %v5453 = vand.u32 %v5452, 65535
    %v5454 = vshra.s32 %v5452, 16
    %v5455 = vcvt.s32.f32 %v5453
    %v5456 = vcvt.s32.f32 %v5454
    %5457 = vmin.xlane.f32.xlu0 %v5456
    %v5458 = vpop.xlane.xlu0 %5457
    %vm5459 = vcmp.eq.f32.partialorder %v5456, %v5458
    %v5460 = vsel %vm5459, %v5455, inf
    %5461 = vmin.xlane.f32.xlu0 %v5460
    %v5462 = vpop.xlane.xlu0 %5461
    %v5463 = vcvt.f32.s32 %v5462
    %v5464 = vcvt.f32.s32 %v5458
    %v5465 = vshll.u32 %v5464, 16
    %v5466 = vadd.s32 %v5465, %v5463
    %vm5467 = vcmp.lt.s32.totalorder %v3419, %v3420
    %v5468 = vsel %vm5467, %v3419, %v3420
    %vm5469 = vcmp.lt.s32.totalorder %v5468, %v3421
    %v5470 = vsel %vm5469, %v5468, %v3421
    %vm5471 = vcmp.lt.s32.totalorder %v5470, %v3422
    %v5472 = vsel %vm5471, %v5470, %v3422
    %v5473 = vand.u32 %v5472, 65535
    %v5474 = vshra.s32 %v5472, 16
    %v5475 = vcvt.s32.f32 %v5473
    %v5476 = vcvt.s32.f32 %v5474
    %5477 = vmin.xlane.f32.xlu0 %v5476
    %v5478 = vpop.xlane.xlu0 %5477
    %vm5479 = vcmp.eq.f32.partialorder %v5476, %v5478
    %v5480 = vsel %vm5479, %v5475, inf
    %5481 = vmin.xlane.f32.xlu0 %v5480
    %v5482 = vpop.xlane.xlu0 %5481
    %v5483 = vcvt.f32.s32 %v5482
    %v5484 = vcvt.f32.s32 %v5478
    %v5485 = vshll.u32 %v5484, 16
    %v5486 = vadd.s32 %v5485, %v5483
    %vm5487 = vcmp.lt.s32.totalorder %v3423, %v3424
    %v5488 = vsel %vm5487, %v3423, %v3424
    %vm5489 = vcmp.lt.s32.totalorder %v5488, %v3425
    %v5490 = vsel %vm5489, %v5488, %v3425
    %vm5491 = vcmp.lt.s32.totalorder %v5490, %v3426
    %v5492 = vsel %vm5491, %v5490, %v3426
    %v5493 = vand.u32 %v5492, 65535
    %v5494 = vshra.s32 %v5492, 16
    %v5495 = vcvt.s32.f32 %v5493
    %v5496 = vcvt.s32.f32 %v5494
    %5497 = vmin.xlane.f32.xlu0 %v5496
    %v5498 = vpop.xlane.xlu0 %5497
    %vm5499 = vcmp.eq.f32.partialorder %v5496, %v5498
    %v5500 = vsel %vm5499, %v5495, inf
    %5501 = vmin.xlane.f32.xlu0 %v5500
    %v5502 = vpop.xlane.xlu0 %5501
    %v5503 = vcvt.f32.s32 %v5502
    %v5504 = vcvt.f32.s32 %v5498
    %v5505 = vshll.u32 %v5504, 16
    %v5506 = vadd.s32 %v5505, %v5503
    %vm5507 = vcmp.lt.s32.totalorder %v3427, %v3428
    %v5508 = vsel %vm5507, %v3427, %v3428
    %vm5509 = vcmp.lt.s32.totalorder %v5508, %v3429
    %v5510 = vsel %vm5509, %v5508, %v3429
    %vm5511 = vcmp.lt.s32.totalorder %v5510, %v3430
    %v5512 = vsel %vm5511, %v5510, %v3430
    %v5513 = vand.u32 %v5512, 65535
    %v5514 = vshra.s32 %v5512, 16
    %v5515 = vcvt.s32.f32 %v5513
    %v5516 = vcvt.s32.f32 %v5514
    %5517 = vmin.xlane.f32.xlu0 %v5516
    %v5518 = vpop.xlane.xlu0 %5517
    %vm5519 = vcmp.eq.f32.partialorder %v5516, %v5518
    %v5520 = vsel %vm5519, %v5515, inf
    %5521 = vmin.xlane.f32.xlu0 %v5520
    %v5522 = vpop.xlane.xlu0 %5521
    %v5523 = vcvt.f32.s32 %v5522
    %v5524 = vcvt.f32.s32 %v5518
    %v5525 = vshll.u32 %v5524, 16
    %v5526 = vadd.s32 %v5525, %v5523
    %vm5527 = vcmp.lt.s32.totalorder %v3431, %v3432
    %v5528 = vsel %vm5527, %v3431, %v3432
    %vm5529 = vcmp.lt.s32.totalorder %v5528, %v3433
    %v5530 = vsel %vm5529, %v5528, %v3433
    %vm5531 = vcmp.lt.s32.totalorder %v5530, %v3434
    %v5532 = vsel %vm5531, %v5530, %v3434
    %v5533 = vand.u32 %v5532, 65535
    %v5534 = vshra.s32 %v5532, 16
    %v5535 = vcvt.s32.f32 %v5533
    %v5536 = vcvt.s32.f32 %v5534
    %5537 = vmin.xlane.f32.xlu0 %v5536
    %v5538 = vpop.xlane.xlu0 %5537
    %vm5539 = vcmp.eq.f32.partialorder %v5536, %v5538
    %v5540 = vsel %vm5539, %v5535, inf
    %5541 = vmin.xlane.f32.xlu0 %v5540
    %v5542 = vpop.xlane.xlu0 %5541
    %v5543 = vcvt.f32.s32 %v5542
    %v5544 = vcvt.f32.s32 %v5538
    %v5545 = vshll.u32 %v5544, 16
    %v5546 = vadd.s32 %v5545, %v5543
    %vm5547 = vcmp.lt.s32.totalorder %v3435, %v3436
    %v5548 = vsel %vm5547, %v3435, %v3436
    %vm5549 = vcmp.lt.s32.totalorder %v5548, %v3437
    %v5550 = vsel %vm5549, %v5548, %v3437
    %vm5551 = vcmp.lt.s32.totalorder %v5550, %v3438
    %v5552 = vsel %vm5551, %v5550, %v3438
    %v5553 = vand.u32 %v5552, 65535
    %v5554 = vshra.s32 %v5552, 16
    %v5555 = vcvt.s32.f32 %v5553
    %v5556 = vcvt.s32.f32 %v5554
    %5557 = vmin.xlane.f32.xlu0 %v5556
    %v5558 = vpop.xlane.xlu0 %5557
    %vm5559 = vcmp.eq.f32.partialorder %v5556, %v5558
    %v5560 = vsel %vm5559, %v5555, inf
    %5561 = vmin.xlane.f32.xlu0 %v5560
    %v5562 = vpop.xlane.xlu0 %5561
    %v5563 = vcvt.f32.s32 %v5562
    %v5564 = vcvt.f32.s32 %v5558
    %v5565 = vshll.u32 %v5564, 16
    %v5566 = vadd.s32 %v5565, %v5563
    %vm5567 = vcmp.lt.s32.totalorder %v3439, %v3440
    %v5568 = vsel %vm5567, %v3439, %v3440
    %vm5569 = vcmp.lt.s32.totalorder %v5568, %v3441
    %v5570 = vsel %vm5569, %v5568, %v3441
    %vm5571 = vcmp.lt.s32.totalorder %v5570, %v3442
    %v5572 = vsel %vm5571, %v5570, %v3442
    %v5573 = vand.u32 %v5572, 65535
    %v5574 = vshra.s32 %v5572, 16
    %v5575 = vcvt.s32.f32 %v5573
    %v5576 = vcvt.s32.f32 %v5574
    %5577 = vmin.xlane.f32.xlu0 %v5576
    %v5578 = vpop.xlane.xlu0 %5577
    %vm5579 = vcmp.eq.f32.partialorder %v5576, %v5578
    %v5580 = vsel %vm5579, %v5575, inf
    %5581 = vmin.xlane.f32.xlu0 %v5580
    %v5582 = vpop.xlane.xlu0 %5581
    %v5583 = vcvt.f32.s32 %v5582
    %v5584 = vcvt.f32.s32 %v5578
    %v5585 = vshll.u32 %v5584, 16
    %v5586 = vadd.s32 %v5585, %v5583
    %vm5587 = vcmp.lt.s32.totalorder %v3443, %v3444
    %v5588 = vsel %vm5587, %v3443, %v3444
    %vm5589 = vcmp.lt.s32.totalorder %v5588, %v3445
    %v5590 = vsel %vm5589, %v5588, %v3445
    %vm5591 = vcmp.lt.s32.totalorder %v5590, %v3446
    %v5592 = vsel %vm5591, %v5590, %v3446
    %v5593 = vand.u32 %v5592, 65535
    %v5594 = vshra.s32 %v5592, 16
    %v5595 = vcvt.s32.f32 %v5593
    %v5596 = vcvt.s32.f32 %v5594
    %5597 = vmin.xlane.f32.xlu0 %v5596
    %v5598 = vpop.xlane.xlu0 %5597
    %vm5599 = vcmp.eq.f32.partialorder %v5596, %v5598
    %v5600 = vsel %vm5599, %v5595, inf
    %5601 = vmin.xlane.f32.xlu0 %v5600
    %v5602 = vpop.xlane.xlu0 %5601
    %v5603 = vcvt.f32.s32 %v5602
    %v5604 = vcvt.f32.s32 %v5598
    %v5605 = vshll.u32 %v5604, 16
    %v5606 = vadd.s32 %v5605, %v5603
    %vm5607 = vcmp.lt.s32.totalorder %v3447, %v3448
    %v5608 = vsel %vm5607, %v3447, %v3448
    %vm5609 = vcmp.lt.s32.totalorder %v5608, %v3449
    %v5610 = vsel %vm5609, %v5608, %v3449
    %vm5611 = vcmp.lt.s32.totalorder %v5610, %v3450
    %v5612 = vsel %vm5611, %v5610, %v3450
    %v5613 = vand.u32 %v5612, 65535
    %v5614 = vshra.s32 %v5612, 16
    %v5615 = vcvt.s32.f32 %v5613
    %v5616 = vcvt.s32.f32 %v5614
    %5617 = vmin.xlane.f32.xlu0 %v5616
    %v5618 = vpop.xlane.xlu0 %5617
    %vm5619 = vcmp.eq.f32.partialorder %v5616, %v5618
    %v5620 = vsel %vm5619, %v5615, inf
    %5621 = vmin.xlane.f32.xlu0 %v5620
    %v5622 = vpop.xlane.xlu0 %5621
    %v5623 = vcvt.f32.s32 %v5622
    %v5624 = vcvt.f32.s32 %v5618
    %v5625 = vshll.u32 %v5624, 16
    %v5626 = vadd.s32 %v5625, %v5623
    %vm5627 = vcmp.lt.s32.totalorder %v3451, %v3452
    %v5628 = vsel %vm5627, %v3451, %v3452
    %vm5629 = vcmp.lt.s32.totalorder %v5628, %v3453
    %v5630 = vsel %vm5629, %v5628, %v3453
    %vm5631 = vcmp.lt.s32.totalorder %v5630, %v3454
    %v5632 = vsel %vm5631, %v5630, %v3454
    %v5633 = vand.u32 %v5632, 65535
    %v5634 = vshra.s32 %v5632, 16
    %v5635 = vcvt.s32.f32 %v5633
    %v5636 = vcvt.s32.f32 %v5634
    %5637 = vmin.xlane.f32.xlu0 %v5636
    %v5638 = vpop.xlane.xlu0 %5637
    %vm5639 = vcmp.eq.f32.partialorder %v5636, %v5638
    %v5640 = vsel %vm5639, %v5635, inf
    %5641 = vmin.xlane.f32.xlu0 %v5640
    %v5642 = vpop.xlane.xlu0 %5641
    %v5643 = vcvt.f32.s32 %v5642
    %v5644 = vcvt.f32.s32 %v5638
    %v5645 = vshll.u32 %v5644, 16
    %v5646 = vadd.s32 %v5645, %v5643
    %vm5647 = vcmp.lt.s32.totalorder %v3455, %v3456
    %v5648 = vsel %vm5647, %v3455, %v3456
    %vm5649 = vcmp.lt.s32.totalorder %v5648, %v3457
    %v5650 = vsel %vm5649, %v5648, %v3457
    %vm5651 = vcmp.lt.s32.totalorder %v5650, %v3458
    %v5652 = vsel %vm5651, %v5650, %v3458
    %v5653 = vand.u32 %v5652, 65535
    %v5654 = vshra.s32 %v5652, 16
    %v5655 = vcvt.s32.f32 %v5653
    %v5656 = vcvt.s32.f32 %v5654
    %5657 = vmin.xlane.f32.xlu0 %v5656
    %v5658 = vpop.xlane.xlu0 %5657
    %vm5659 = vcmp.eq.f32.partialorder %v5656, %v5658
    %v5660 = vsel %vm5659, %v5655, inf
    %5661 = vmin.xlane.f32.xlu0 %v5660
    %v5662 = vpop.xlane.xlu0 %5661
    %v5663 = vcvt.f32.s32 %v5662
    %v5664 = vcvt.f32.s32 %v5658
    %v5665 = vshll.u32 %v5664, 16
    %v5666 = vadd.s32 %v5665, %v5663
    %vm5667 = vcmp.lt.s32.totalorder %v3459, %v3460
    %v5668 = vsel %vm5667, %v3459, %v3460
    %vm5669 = vcmp.lt.s32.totalorder %v5668, %v3461
    %v5670 = vsel %vm5669, %v5668, %v3461
    %vm5671 = vcmp.lt.s32.totalorder %v5670, %v3462
    %v5672 = vsel %vm5671, %v5670, %v3462
    %v5673 = vand.u32 %v5672, 65535
    %v5674 = vshra.s32 %v5672, 16
    %v5675 = vcvt.s32.f32 %v5673
    %v5676 = vcvt.s32.f32 %v5674
    %5677 = vmin.xlane.f32.xlu0 %v5676
    %v5678 = vpop.xlane.xlu0 %5677
    %vm5679 = vcmp.eq.f32.partialorder %v5676, %v5678
    %v5680 = vsel %vm5679, %v5675, inf
    %5681 = vmin.xlane.f32.xlu0 %v5680
    %v5682 = vpop.xlane.xlu0 %5681
    %v5683 = vcvt.f32.s32 %v5682
    %v5684 = vcvt.f32.s32 %v5678
    %v5685 = vshll.u32 %v5684, 16
    %v5686 = vadd.s32 %v5685, %v5683
    %vm5687 = vcmp.lt.s32.totalorder %v3463, %v3464
    %v5688 = vsel %vm5687, %v3463, %v3464
    %vm5689 = vcmp.lt.s32.totalorder %v5688, %v3465
    %v5690 = vsel %vm5689, %v5688, %v3465
    %vm5691 = vcmp.lt.s32.totalorder %v5690, %v3466
    %v5692 = vsel %vm5691, %v5690, %v3466
    %v5693 = vand.u32 %v5692, 65535
    %v5694 = vshra.s32 %v5692, 16
    %v5695 = vcvt.s32.f32 %v5693
    %v5696 = vcvt.s32.f32 %v5694
    %5697 = vmin.xlane.f32.xlu0 %v5696
    %v5698 = vpop.xlane.xlu0 %5697
    %vm5699 = vcmp.eq.f32.partialorder %v5696, %v5698
    %v5700 = vsel %vm5699, %v5695, inf
    %5701 = vmin.xlane.f32.xlu0 %v5700
    %v5702 = vpop.xlane.xlu0 %5701
    %v5703 = vcvt.f32.s32 %v5702
    %v5704 = vcvt.f32.s32 %v5698
    %v5705 = vshll.u32 %v5704, 16
    %v5706 = vadd.s32 %v5705, %v5703
    %vm5707 = vcmp.lt.s32.totalorder %v3467, %v3468
    %v5708 = vsel %vm5707, %v3467, %v3468
    %vm5709 = vcmp.lt.s32.totalorder %v5708, %v3469
    %v5710 = vsel %vm5709, %v5708, %v3469
    %vm5711 = vcmp.lt.s32.totalorder %v5710, %v3470
    %v5712 = vsel %vm5711, %v5710, %v3470
    %v5713 = vand.u32 %v5712, 65535
    %v5714 = vshra.s32 %v5712, 16
    %v5715 = vcvt.s32.f32 %v5713
    %v5716 = vcvt.s32.f32 %v5714
    %5717 = vmin.xlane.f32.xlu0 %v5716
    %v5718 = vpop.xlane.xlu0 %5717
    %vm5719 = vcmp.eq.f32.partialorder %v5716, %v5718
    %v5720 = vsel %vm5719, %v5715, inf
    %5721 = vmin.xlane.f32.xlu0 %v5720
    %v5722 = vpop.xlane.xlu0 %5721
    %v5723 = vcvt.f32.s32 %v5722
    %v5724 = vcvt.f32.s32 %v5718
    %v5725 = vshll.u32 %v5724, 16
    %v5726 = vadd.s32 %v5725, %v5723
    %vm5727 = vcmp.lt.s32.totalorder %v3471, %v3472
    %v5728 = vsel %vm5727, %v3471, %v3472
    %vm5729 = vcmp.lt.s32.totalorder %v5728, %v3473
    %v5730 = vsel %vm5729, %v5728, %v3473
    %vm5731 = vcmp.lt.s32.totalorder %v5730, %v3474
    %v5732 = vsel %vm5731, %v5730, %v3474
    %v5733 = vand.u32 %v5732, 65535
    %v5734 = vshra.s32 %v5732, 16
    %v5735 = vcvt.s32.f32 %v5733
    %v5736 = vcvt.s32.f32 %v5734
    %5737 = vmin.xlane.f32.xlu0 %v5736
    %v5738 = vpop.xlane.xlu0 %5737
    %vm5739 = vcmp.eq.f32.partialorder %v5736, %v5738
    %v5740 = vsel %vm5739, %v5735, inf
    %5741 = vmin.xlane.f32.xlu0 %v5740
    %v5742 = vpop.xlane.xlu0 %5741
    %v5743 = vcvt.f32.s32 %v5742
    %v5744 = vcvt.f32.s32 %v5738
    %v5745 = vshll.u32 %v5744, 16
    %v5746 = vadd.s32 %v5745, %v5743
    %vm5747 = vcmp.lt.s32.totalorder %v3475, %v3476
    %v5748 = vsel %vm5747, %v3475, %v3476
    %vm5749 = vcmp.lt.s32.totalorder %v5748, %v3477
    %v5750 = vsel %vm5749, %v5748, %v3477
    %vm5751 = vcmp.lt.s32.totalorder %v5750, %v3478
    %v5752 = vsel %vm5751, %v5750, %v3478
    %v5753 = vand.u32 %v5752, 65535
    %v5754 = vshra.s32 %v5752, 16
    %v5755 = vcvt.s32.f32 %v5753
    %v5756 = vcvt.s32.f32 %v5754
    %5757 = vmin.xlane.f32.xlu0 %v5756
    %v5758 = vpop.xlane.xlu0 %5757
    %vm5759 = vcmp.eq.f32.partialorder %v5756, %v5758
    %v5760 = vsel %vm5759, %v5755, inf
    %5761 = vmin.xlane.f32.xlu0 %v5760
    %v5762 = vpop.xlane.xlu0 %5761
    %v5763 = vcvt.f32.s32 %v5762
    %v5764 = vcvt.f32.s32 %v5758
    %v5765 = vshll.u32 %v5764, 16
    %v5766 = vadd.s32 %v5765, %v5763
    %vm5767 = vcmp.lt.s32.totalorder %v3479, %v3480
    %v5768 = vsel %vm5767, %v3479, %v3480
    %vm5769 = vcmp.lt.s32.totalorder %v5768, %v3481
    %v5770 = vsel %vm5769, %v5768, %v3481
    %vm5771 = vcmp.lt.s32.totalorder %v5770, %v3482
    %v5772 = vsel %vm5771, %v5770, %v3482
    %v5773 = vand.u32 %v5772, 65535
    %v5774 = vshra.s32 %v5772, 16
    %v5775 = vcvt.s32.f32 %v5773
    %v5776 = vcvt.s32.f32 %v5774
    %5777 = vmin.xlane.f32.xlu0 %v5776
    %v5778 = vpop.xlane.xlu0 %5777
    %vm5779 = vcmp.eq.f32.partialorder %v5776, %v5778
    %v5780 = vsel %vm5779, %v5775, inf
    %5781 = vmin.xlane.f32.xlu0 %v5780
    %v5782 = vpop.xlane.xlu0 %5781
    %v5783 = vcvt.f32.s32 %v5782
    %v5784 = vcvt.f32.s32 %v5778
    %v5785 = vshll.u32 %v5784, 16
    %v5786 = vadd.s32 %v5785, %v5783
    %vm5787 = vcmp.lt.s32.totalorder %v3483, %v3484
    %v5788 = vsel %vm5787, %v3483, %v3484
    %vm5789 = vcmp.lt.s32.totalorder %v5788, %v3485
    %v5790 = vsel %vm5789, %v5788, %v3485
    %vm5791 = vcmp.lt.s32.totalorder %v5790, %v3486
    %v5792 = vsel %vm5791, %v5790, %v3486
    %v5793 = vand.u32 %v5792, 65535
    %v5794 = vshra.s32 %v5792, 16
    %v5795 = vcvt.s32.f32 %v5793
    %v5796 = vcvt.s32.f32 %v5794
    %5797 = vmin.xlane.f32.xlu0 %v5796
    %v5798 = vpop.xlane.xlu0 %5797
    %vm5799 = vcmp.eq.f32.partialorder %v5796, %v5798
    %v5800 = vsel %vm5799, %v5795, inf
    %5801 = vmin.xlane.f32.xlu0 %v5800
    %v5802 = vpop.xlane.xlu0 %5801
    %v5803 = vcvt.f32.s32 %v5802
    %v5804 = vcvt.f32.s32 %v5798
    %v5805 = vshll.u32 %v5804, 16
    %v5806 = vadd.s32 %v5805, %v5803
    %vm5807 = vcmp.lt.s32.totalorder %v3487, %v3488
    %v5808 = vsel %vm5807, %v3487, %v3488
    %vm5809 = vcmp.lt.s32.totalorder %v5808, %v3489
    %v5810 = vsel %vm5809, %v5808, %v3489
    %vm5811 = vcmp.lt.s32.totalorder %v5810, %v3490
    %v5812 = vsel %vm5811, %v5810, %v3490
    %v5813 = vand.u32 %v5812, 65535
    %v5814 = vshra.s32 %v5812, 16
    %v5815 = vcvt.s32.f32 %v5813
    %v5816 = vcvt.s32.f32 %v5814
    %5817 = vmin.xlane.f32.xlu0 %v5816
    %v5818 = vpop.xlane.xlu0 %5817
    %vm5819 = vcmp.eq.f32.partialorder %v5816, %v5818
    %v5820 = vsel %vm5819, %v5815, inf
    %5821 = vmin.xlane.f32.xlu0 %v5820
    %v5822 = vpop.xlane.xlu0 %5821
    %v5823 = vcvt.f32.s32 %v5822
    %v5824 = vcvt.f32.s32 %v5818
    %v5825 = vshll.u32 %v5824, 16
    %v5826 = vadd.s32 %v5825, %v5823
    %vm5827 = vcmp.lt.s32.totalorder %v3491, %v3492
    %v5828 = vsel %vm5827, %v3491, %v3492
    %vm5829 = vcmp.lt.s32.totalorder %v5828, %v3493
    %v5830 = vsel %vm5829, %v5828, %v3493
    %vm5831 = vcmp.lt.s32.totalorder %v5830, %v3494
    %v5832 = vsel %vm5831, %v5830, %v3494
    %v5833 = vand.u32 %v5832, 65535
    %v5834 = vshra.s32 %v5832, 16
    %v5835 = vcvt.s32.f32 %v5833
    %v5836 = vcvt.s32.f32 %v5834
    %5837 = vmin.xlane.f32.xlu0 %v5836
    %v5838 = vpop.xlane.xlu0 %5837
    %vm5839 = vcmp.eq.f32.partialorder %v5836, %v5838
    %v5840 = vsel %vm5839, %v5835, inf
    %5841 = vmin.xlane.f32.xlu0 %v5840
    %v5842 = vpop.xlane.xlu0 %5841
    %v5843 = vcvt.f32.s32 %v5842
    %v5844 = vcvt.f32.s32 %v5838
    %v5845 = vshll.u32 %v5844, 16
    %v5846 = vadd.s32 %v5845, %v5843
    %vm5847 = vcmp.lt.s32.totalorder %v3495, %v3496
    %v5848 = vsel %vm5847, %v3495, %v3496
    %vm5849 = vcmp.lt.s32.totalorder %v5848, %v3497
    %v5850 = vsel %vm5849, %v5848, %v3497
    %vm5851 = vcmp.lt.s32.totalorder %v5850, %v3498
    %v5852 = vsel %vm5851, %v5850, %v3498
    %v5853 = vand.u32 %v5852, 65535
    %v5854 = vshra.s32 %v5852, 16
    %v5855 = vcvt.s32.f32 %v5853
    %v5856 = vcvt.s32.f32 %v5854
    %5857 = vmin.xlane.f32.xlu0 %v5856
    %v5858 = vpop.xlane.xlu0 %5857
    %vm5859 = vcmp.eq.f32.partialorder %v5856, %v5858
    %v5860 = vsel %vm5859, %v5855, inf
    %5861 = vmin.xlane.f32.xlu0 %v5860
    %v5862 = vpop.xlane.xlu0 %5861
    %v5863 = vcvt.f32.s32 %v5862
    %v5864 = vcvt.f32.s32 %v5858
    %v5865 = vshll.u32 %v5864, 16
    %v5866 = vadd.s32 %v5865, %v5863
    %vm5867 = vcmp.lt.s32.totalorder %v3499, %v3500
    %v5868 = vsel %vm5867, %v3499, %v3500
    %vm5869 = vcmp.lt.s32.totalorder %v5868, %v3501
    %v5870 = vsel %vm5869, %v5868, %v3501
    %vm5871 = vcmp.lt.s32.totalorder %v5870, %v3502
    %v5872 = vsel %vm5871, %v5870, %v3502
    %v5873 = vand.u32 %v5872, 65535
    %v5874 = vshra.s32 %v5872, 16
    %v5875 = vcvt.s32.f32 %v5873
    %v5876 = vcvt.s32.f32 %v5874
    %5877 = vmin.xlane.f32.xlu0 %v5876
    %v5878 = vpop.xlane.xlu0 %5877
    %vm5879 = vcmp.eq.f32.partialorder %v5876, %v5878
    %v5880 = vsel %vm5879, %v5875, inf
    %5881 = vmin.xlane.f32.xlu0 %v5880
    %v5882 = vpop.xlane.xlu0 %5881
    %v5883 = vcvt.f32.s32 %v5882
    %v5884 = vcvt.f32.s32 %v5878
    %v5885 = vshll.u32 %v5884, 16
    %v5886 = vadd.s32 %v5885, %v5883
    %vm5887 = vcmp.lt.s32.totalorder %v3503, %v3504
    %v5888 = vsel %vm5887, %v3503, %v3504
    %vm5889 = vcmp.lt.s32.totalorder %v5888, %v3505
    %v5890 = vsel %vm5889, %v5888, %v3505
    %vm5891 = vcmp.lt.s32.totalorder %v5890, %v3506
    %v5892 = vsel %vm5891, %v5890, %v3506
    %v5893 = vand.u32 %v5892, 65535
    %v5894 = vshra.s32 %v5892, 16
    %v5895 = vcvt.s32.f32 %v5893
    %v5896 = vcvt.s32.f32 %v5894
    %5897 = vmin.xlane.f32.xlu0 %v5896
    %v5898 = vpop.xlane.xlu0 %5897
    %vm5899 = vcmp.eq.f32.partialorder %v5896, %v5898
    %v5900 = vsel %vm5899, %v5895, inf
    %5901 = vmin.xlane.f32.xlu0 %v5900
    %v5902 = vpop.xlane.xlu0 %5901
    %v5903 = vcvt.f32.s32 %v5902
    %v5904 = vcvt.f32.s32 %v5898
    %v5905 = vshll.u32 %v5904, 16
    %v5906 = vadd.s32 %v5905, %v5903
    %vm5907 = vcmp.lt.s32.totalorder %v3507, %v3508
    %v5908 = vsel %vm5907, %v3507, %v3508
    %vm5909 = vcmp.lt.s32.totalorder %v5908, %v3509
    %v5910 = vsel %vm5909, %v5908, %v3509
    %vm5911 = vcmp.lt.s32.totalorder %v5910, %v3510
    %v5912 = vsel %vm5911, %v5910, %v3510
    %v5913 = vand.u32 %v5912, 65535
    %v5914 = vshra.s32 %v5912, 16
    %v5915 = vcvt.s32.f32 %v5913
    %v5916 = vcvt.s32.f32 %v5914
    %5917 = vmin.xlane.f32.xlu0 %v5916
    %v5918 = vpop.xlane.xlu0 %5917
    %vm5919 = vcmp.eq.f32.partialorder %v5916, %v5918
    %v5920 = vsel %vm5919, %v5915, inf
    %5921 = vmin.xlane.f32.xlu0 %v5920
    %v5922 = vpop.xlane.xlu0 %5921
    %v5923 = vcvt.f32.s32 %v5922
    %v5924 = vcvt.f32.s32 %v5918
    %v5925 = vshll.u32 %v5924, 16
    %v5926 = vadd.s32 %v5925, %v5923
    %vm5927 = vcmp.lt.s32.totalorder %v3511, %v3512
    %v5928 = vsel %vm5927, %v3511, %v3512
    %vm5929 = vcmp.lt.s32.totalorder %v5928, %v3513
    %v5930 = vsel %vm5929, %v5928, %v3513
    %vm5931 = vcmp.lt.s32.totalorder %v5930, %v3514
    %v5932 = vsel %vm5931, %v5930, %v3514
    %v5933 = vand.u32 %v5932, 65535
    %v5934 = vshra.s32 %v5932, 16
    %v5935 = vcvt.s32.f32 %v5933
    %v5936 = vcvt.s32.f32 %v5934
    %5937 = vmin.xlane.f32.xlu0 %v5936
    %v5938 = vpop.xlane.xlu0 %5937
    %vm5939 = vcmp.eq.f32.partialorder %v5936, %v5938
    %v5940 = vsel %vm5939, %v5935, inf
    %5941 = vmin.xlane.f32.xlu0 %v5940
    %v5942 = vpop.xlane.xlu0 %5941
    %v5943 = vcvt.f32.s32 %v5942
    %v5944 = vcvt.f32.s32 %v5938
    %v5945 = vshll.u32 %v5944, 16
    %v5946 = vadd.s32 %v5945, %v5943
    %vm5947 = vcmp.lt.s32.totalorder %v3515, %v3516
    %v5948 = vsel %vm5947, %v3515, %v3516
    %vm5949 = vcmp.lt.s32.totalorder %v5948, %v3517
    %v5950 = vsel %vm5949, %v5948, %v3517
    %vm5951 = vcmp.lt.s32.totalorder %v5950, %v3518
    %v5952 = vsel %vm5951, %v5950, %v3518
    %v5953 = vand.u32 %v5952, 65535
    %v5954 = vshra.s32 %v5952, 16
    %v5955 = vcvt.s32.f32 %v5953
    %v5956 = vcvt.s32.f32 %v5954
    %5957 = vmin.xlane.f32.xlu0 %v5956
    %v5958 = vpop.xlane.xlu0 %5957
    %vm5959 = vcmp.eq.f32.partialorder %v5956, %v5958
    %v5960 = vsel %vm5959, %v5955, inf
    %5961 = vmin.xlane.f32.xlu0 %v5960
    %v5962 = vpop.xlane.xlu0 %5961
    %v5963 = vcvt.f32.s32 %v5962
    %v5964 = vcvt.f32.s32 %v5958
    %v5965 = vshll.u32 %v5964, 16
    %v5966 = vadd.s32 %v5965, %v5963
    %vm5967 = vcmp.lt.s32.totalorder %v3519, %v3520
    %v5968 = vsel %vm5967, %v3519, %v3520
    %vm5969 = vcmp.lt.s32.totalorder %v5968, %v3521
    %v5970 = vsel %vm5969, %v5968, %v3521
    %vm5971 = vcmp.lt.s32.totalorder %v5970, %v3522
    %v5972 = vsel %vm5971, %v5970, %v3522
    %v5973 = vand.u32 %v5972, 65535
    %v5974 = vshra.s32 %v5972, 16
    %v5975 = vcvt.s32.f32 %v5973
    %v5976 = vcvt.s32.f32 %v5974
    %5977 = vmin.xlane.f32.xlu0 %v5976
    %v5978 = vpop.xlane.xlu0 %5977
    %vm5979 = vcmp.eq.f32.partialorder %v5976, %v5978
    %v5980 = vsel %vm5979, %v5975, inf
    %5981 = vmin.xlane.f32.xlu0 %v5980
    %v5982 = vpop.xlane.xlu0 %5981
    %v5983 = vcvt.f32.s32 %v5982
    %v5984 = vcvt.f32.s32 %v5978
    %v5985 = vshll.u32 %v5984, 16
    %v5986 = vadd.s32 %v5985, %v5983
    %vm5987 = vcmp.lt.s32.totalorder %v3523, %v3524
    %v5988 = vsel %vm5987, %v3523, %v3524
    %vm5989 = vcmp.lt.s32.totalorder %v5988, %v3525
    %v5990 = vsel %vm5989, %v5988, %v3525
    %vm5991 = vcmp.lt.s32.totalorder %v5990, %v3526
    %v5992 = vsel %vm5991, %v5990, %v3526
    %v5993 = vand.u32 %v5992, 65535
    %v5994 = vshra.s32 %v5992, 16
    %v5995 = vcvt.s32.f32 %v5993
    %v5996 = vcvt.s32.f32 %v5994
    %5997 = vmin.xlane.f32.xlu0 %v5996
    %v5998 = vpop.xlane.xlu0 %5997
    %vm5999 = vcmp.eq.f32.partialorder %v5996, %v5998
    %v6000 = vsel %vm5999, %v5995, inf
    %6001 = vmin.xlane.f32.xlu0 %v6000
    %v6002 = vpop.xlane.xlu0 %6001
    %v6003 = vcvt.f32.s32 %v6002
    %v6004 = vcvt.f32.s32 %v5998
    %v6005 = vshll.u32 %v6004, 16
    %v6006 = vadd.s32 %v6005, %v6003
    %vm6007 = vcmp.lt.s32.totalorder %v3527, %v3528
    %v6008 = vsel %vm6007, %v3527, %v3528
    %vm6009 = vcmp.lt.s32.totalorder %v6008, %v3529
    %v6010 = vsel %vm6009, %v6008, %v3529
    %vm6011 = vcmp.lt.s32.totalorder %v6010, %v3530
    %v6012 = vsel %vm6011, %v6010, %v3530
    %v6013 = vand.u32 %v6012, 65535
    %v6014 = vshra.s32 %v6012, 16
    %v6015 = vcvt.s32.f32 %v6013
    %v6016 = vcvt.s32.f32 %v6014
    %6017 = vmin.xlane.f32.xlu0 %v6016
    %v6018 = vpop.xlane.xlu0 %6017
    %vm6019 = vcmp.eq.f32.partialorder %v6016, %v6018
    %v6020 = vsel %vm6019, %v6015, inf
    %6021 = vmin.xlane.f32.xlu0 %v6020
    %v6022 = vpop.xlane.xlu0 %6021
    %v6023 = vcvt.f32.s32 %v6022
    %v6024 = vcvt.f32.s32 %v6018
    %v6025 = vshll.u32 %v6024, 16
    %v6026 = vadd.s32 %v6025, %v6023
    %vm6027 = vcmp.lt.s32.totalorder %v3531, %v3532
    %v6028 = vsel %vm6027, %v3531, %v3532
    %vm6029 = vcmp.lt.s32.totalorder %v6028, %v3533
    %v6030 = vsel %vm6029, %v6028, %v3533
    %vm6031 = vcmp.lt.s32.totalorder %v6030, %v3534
    %v6032 = vsel %vm6031, %v6030, %v3534
    %v6033 = vand.u32 %v6032, 65535
    %v6034 = vshra.s32 %v6032, 16
    %v6035 = vcvt.s32.f32 %v6033
    %v6036 = vcvt.s32.f32 %v6034
    %6037 = vmin.xlane.f32.xlu0 %v6036
    %v6038 = vpop.xlane.xlu0 %6037
    %vm6039 = vcmp.eq.f32.partialorder %v6036, %v6038
    %v6040 = vsel %vm6039, %v6035, inf
    %6041 = vmin.xlane.f32.xlu0 %v6040
    %v6042 = vpop.xlane.xlu0 %6041
    %v6043 = vcvt.f32.s32 %v6042
    %v6044 = vcvt.f32.s32 %v6038
    %v6045 = vshll.u32 %v6044, 16
    %v6046 = vadd.s32 %v6045, %v6043
    %vm6047 = vcmp.lt.s32.totalorder %v3535, %v3536
    %v6048 = vsel %vm6047, %v3535, %v3536
    %vm6049 = vcmp.lt.s32.totalorder %v6048, %v3537
    %v6050 = vsel %vm6049, %v6048, %v3537
    %vm6051 = vcmp.lt.s32.totalorder %v6050, %v3538
    %v6052 = vsel %vm6051, %v6050, %v3538
    %v6053 = vand.u32 %v6052, 65535
    %v6054 = vshra.s32 %v6052, 16
    %v6055 = vcvt.s32.f32 %v6053
    %v6056 = vcvt.s32.f32 %v6054
    %6057 = vmin.xlane.f32.xlu0 %v6056
    %v6058 = vpop.xlane.xlu0 %6057
    %vm6059 = vcmp.eq.f32.partialorder %v6056, %v6058
    %v6060 = vsel %vm6059, %v6055, inf
    %6061 = vmin.xlane.f32.xlu0 %v6060
    %v6062 = vpop.xlane.xlu0 %6061
    %v6063 = vcvt.f32.s32 %v6062
    %v6064 = vcvt.f32.s32 %v6058
    %v6065 = vshll.u32 %v6064, 16
    %v6066 = vadd.s32 %v6065, %v6063
    %vm6067 = vcmp.lt.s32.totalorder %v3539, %v3540
    %v6068 = vsel %vm6067, %v3539, %v3540
    %vm6069 = vcmp.lt.s32.totalorder %v6068, %v3541
    %v6070 = vsel %vm6069, %v6068, %v3541
    %vm6071 = vcmp.lt.s32.totalorder %v6070, %v3542
    %v6072 = vsel %vm6071, %v6070, %v3542
    %v6073 = vand.u32 %v6072, 65535
    %v6074 = vshra.s32 %v6072, 16
    %v6075 = vcvt.s32.f32 %v6073
    %v6076 = vcvt.s32.f32 %v6074
    %6077 = vmin.xlane.f32.xlu0 %v6076
    %v6078 = vpop.xlane.xlu0 %6077
    %vm6079 = vcmp.eq.f32.partialorder %v6076, %v6078
    %v6080 = vsel %vm6079, %v6075, inf
    %6081 = vmin.xlane.f32.xlu0 %v6080
    %v6082 = vpop.xlane.xlu0 %6081
    %v6083 = vcvt.f32.s32 %v6082
    %v6084 = vcvt.f32.s32 %v6078
    %v6085 = vshll.u32 %v6084, 16
    %v6086 = vadd.s32 %v6085, %v6083
    %vm6087 = vcmp.lt.s32.totalorder %v3543, %v3544
    %v6088 = vsel %vm6087, %v3543, %v3544
    %vm6089 = vcmp.lt.s32.totalorder %v6088, %v3545
    %v6090 = vsel %vm6089, %v6088, %v3545
    %vm6091 = vcmp.lt.s32.totalorder %v6090, %v3546
    %v6092 = vsel %vm6091, %v6090, %v3546
    %v6093 = vand.u32 %v6092, 65535
    %v6094 = vshra.s32 %v6092, 16
    %v6095 = vcvt.s32.f32 %v6093
    %v6096 = vcvt.s32.f32 %v6094
    %6097 = vmin.xlane.f32.xlu0 %v6096
    %v6098 = vpop.xlane.xlu0 %6097
    %vm6099 = vcmp.eq.f32.partialorder %v6096, %v6098
    %v6100 = vsel %vm6099, %v6095, inf
    %6101 = vmin.xlane.f32.xlu0 %v6100
    %v6102 = vpop.xlane.xlu0 %6101
    %v6103 = vcvt.f32.s32 %v6102
    %v6104 = vcvt.f32.s32 %v6098
    %v6105 = vshll.u32 %v6104, 16
    %v6106 = vadd.s32 %v6105, %v6103
    %vm6107 = vcmp.eq.s32.totalorder %v2519, %v3566
    %vm6108 = vcmp.eq.s32.totalorder %v2520, %v3566
    %vm6109 = vcmp.eq.s32.totalorder %v2521, %v3566
    %vm6110 = vcmp.eq.s32.totalorder %v2522, %v3566
    %vm6111 = vcmp.eq.s32.totalorder %v2519, %v3586
    %vm6112 = vcmp.eq.s32.totalorder %v2520, %v3586
    %vm6113 = vcmp.eq.s32.totalorder %v2521, %v3586
    %vm6114 = vcmp.eq.s32.totalorder %v2522, %v3586
    %vm6115 = vcmp.eq.s32.totalorder %v2519, %v3606
    %vm6116 = vcmp.eq.s32.totalorder %v2520, %v3606
    %vm6117 = vcmp.eq.s32.totalorder %v2521, %v3606
    %vm6118 = vcmp.eq.s32.totalorder %v2522, %v3606
    %vm6119 = vcmp.eq.s32.totalorder %v2519, %v3626
    %vm6120 = vcmp.eq.s32.totalorder %v2520, %v3626
    %vm6121 = vcmp.eq.s32.totalorder %v2521, %v3626
    %vm6122 = vcmp.eq.s32.totalorder %v2522, %v3626
    %vm6123 = vcmp.eq.s32.totalorder %v2519, %v3646
    %vm6124 = vcmp.eq.s32.totalorder %v2520, %v3646
    %vm6125 = vcmp.eq.s32.totalorder %v2521, %v3646
    %vm6126 = vcmp.eq.s32.totalorder %v2522, %v3646
    %vm6127 = vcmp.eq.s32.totalorder %v2519, %v3666
    %vm6128 = vcmp.eq.s32.totalorder %v2520, %v3666
    %vm6129 = vcmp.eq.s32.totalorder %v2521, %v3666
    %vm6130 = vcmp.eq.s32.totalorder %v2522, %v3666
    %vm6131 = vcmp.eq.s32.totalorder %v2519, %v3686
    %vm6132 = vcmp.eq.s32.totalorder %v2520, %v3686
    %vm6133 = vcmp.eq.s32.totalorder %v2521, %v3686
    %vm6134 = vcmp.eq.s32.totalorder %v2522, %v3686
    %vm6135 = vcmp.eq.s32.totalorder %v2519, %v3706
    %vm6136 = vcmp.eq.s32.totalorder %v2520, %v3706
    %vm6137 = vcmp.eq.s32.totalorder %v2521, %v3706
    %vm6138 = vcmp.eq.s32.totalorder %v2522, %v3706
    %vm6139 = vcmp.eq.s32.totalorder %v2519, %v3726
    %vm6140 = vcmp.eq.s32.totalorder %v2520, %v3726
    %vm6141 = vcmp.eq.s32.totalorder %v2521, %v3726
    %vm6142 = vcmp.eq.s32.totalorder %v2522, %v3726
    %vm6143 = vcmp.eq.s32.totalorder %v2519, %v3746
    %vm6144 = vcmp.eq.s32.totalorder %v2520, %v3746
    %vm6145 = vcmp.eq.s32.totalorder %v2521, %v3746
    %vm6146 = vcmp.eq.s32.totalorder %v2522, %v3746
    %vm6147 = vcmp.eq.s32.totalorder %v2519, %v3766
    %vm6148 = vcmp.eq.s32.totalorder %v2520, %v3766
    %vm6149 = vcmp.eq.s32.totalorder %v2521, %v3766
    %vm6150 = vcmp.eq.s32.totalorder %v2522, %v3766
    %vm6151 = vcmp.eq.s32.totalorder %v2519, %v3786
    %vm6152 = vcmp.eq.s32.totalorder %v2520, %v3786
    %vm6153 = vcmp.eq.s32.totalorder %v2521, %v3786
    %vm6154 = vcmp.eq.s32.totalorder %v2522, %v3786
    %vm6155 = vcmp.eq.s32.totalorder %v2519, %v3806
    %vm6156 = vcmp.eq.s32.totalorder %v2520, %v3806
    %vm6157 = vcmp.eq.s32.totalorder %v2521, %v3806
    %vm6158 = vcmp.eq.s32.totalorder %v2522, %v3806
    %vm6159 = vcmp.eq.s32.totalorder %v2519, %v3826
    %vm6160 = vcmp.eq.s32.totalorder %v2520, %v3826
    %vm6161 = vcmp.eq.s32.totalorder %v2521, %v3826
    %vm6162 = vcmp.eq.s32.totalorder %v2522, %v3826
    %vm6163 = vcmp.eq.s32.totalorder %v2519, %v3846
    %vm6164 = vcmp.eq.s32.totalorder %v2520, %v3846
    %vm6165 = vcmp.eq.s32.totalorder %v2521, %v3846
    %vm6166 = vcmp.eq.s32.totalorder %v2522, %v3846
    %vm6167 = vcmp.eq.s32.totalorder %v2519, %v3866
    %vm6168 = vcmp.eq.s32.totalorder %v2520, %v3866
    %vm6169 = vcmp.eq.s32.totalorder %v2521, %v3866
    %vm6170 = vcmp.eq.s32.totalorder %v2522, %v3866
    %vm6171 = vcmp.eq.s32.totalorder %v2519, %v3886
    %vm6172 = vcmp.eq.s32.totalorder %v2520, %v3886
    %vm6173 = vcmp.eq.s32.totalorder %v2521, %v3886
    %vm6174 = vcmp.eq.s32.totalorder %v2522, %v3886
    %vm6175 = vcmp.eq.s32.totalorder %v2519, %v3906
    %vm6176 = vcmp.eq.s32.totalorder %v2520, %v3906
    %vm6177 = vcmp.eq.s32.totalorder %v2521, %v3906
    %vm6178 = vcmp.eq.s32.totalorder %v2522, %v3906
    %vm6179 = vcmp.eq.s32.totalorder %v2519, %v3926
    %vm6180 = vcmp.eq.s32.totalorder %v2520, %v3926
    %vm6181 = vcmp.eq.s32.totalorder %v2521, %v3926
    %vm6182 = vcmp.eq.s32.totalorder %v2522, %v3926
    %vm6183 = vcmp.eq.s32.totalorder %v2519, %v3946
    %vm6184 = vcmp.eq.s32.totalorder %v2520, %v3946
    %vm6185 = vcmp.eq.s32.totalorder %v2521, %v3946
    %vm6186 = vcmp.eq.s32.totalorder %v2522, %v3946
    %vm6187 = vcmp.eq.s32.totalorder %v2519, %v3966
    %vm6188 = vcmp.eq.s32.totalorder %v2520, %v3966
    %vm6189 = vcmp.eq.s32.totalorder %v2521, %v3966
    %vm6190 = vcmp.eq.s32.totalorder %v2522, %v3966
    %vm6191 = vcmp.eq.s32.totalorder %v2519, %v3986
    %vm6192 = vcmp.eq.s32.totalorder %v2520, %v3986
    %vm6193 = vcmp.eq.s32.totalorder %v2521, %v3986
    %vm6194 = vcmp.eq.s32.totalorder %v2522, %v3986
    %vm6195 = vcmp.eq.s32.totalorder %v2519, %v4006
    %vm6196 = vcmp.eq.s32.totalorder %v2520, %v4006
    %vm6197 = vcmp.eq.s32.totalorder %v2521, %v4006
    %vm6198 = vcmp.eq.s32.totalorder %v2522, %v4006
    %vm6199 = vcmp.eq.s32.totalorder %v2519, %v4026
    %vm6200 = vcmp.eq.s32.totalorder %v2520, %v4026
    %vm6201 = vcmp.eq.s32.totalorder %v2521, %v4026
    %vm6202 = vcmp.eq.s32.totalorder %v2522, %v4026
    %vm6203 = vcmp.eq.s32.totalorder %v2519, %v4046
    %vm6204 = vcmp.eq.s32.totalorder %v2520, %v4046
    %vm6205 = vcmp.eq.s32.totalorder %v2521, %v4046
    %vm6206 = vcmp.eq.s32.totalorder %v2522, %v4046
    %vm6207 = vcmp.eq.s32.totalorder %v2519, %v4066
    %vm6208 = vcmp.eq.s32.totalorder %v2520, %v4066
    %vm6209 = vcmp.eq.s32.totalorder %v2521, %v4066
    %vm6210 = vcmp.eq.s32.totalorder %v2522, %v4066
    %vm6211 = vcmp.eq.s32.totalorder %v2519, %v4086
    %vm6212 = vcmp.eq.s32.totalorder %v2520, %v4086
    %vm6213 = vcmp.eq.s32.totalorder %v2521, %v4086
    %vm6214 = vcmp.eq.s32.totalorder %v2522, %v4086
    %vm6215 = vcmp.eq.s32.totalorder %v2519, %v4106
    %vm6216 = vcmp.eq.s32.totalorder %v2520, %v4106
    %vm6217 = vcmp.eq.s32.totalorder %v2521, %v4106
    %vm6218 = vcmp.eq.s32.totalorder %v2522, %v4106
    %vm6219 = vcmp.eq.s32.totalorder %v2519, %v4126
    %vm6220 = vcmp.eq.s32.totalorder %v2520, %v4126
    %vm6221 = vcmp.eq.s32.totalorder %v2521, %v4126
    %vm6222 = vcmp.eq.s32.totalorder %v2522, %v4126
    %vm6223 = vcmp.eq.s32.totalorder %v2519, %v4146
    %vm6224 = vcmp.eq.s32.totalorder %v2520, %v4146
    %vm6225 = vcmp.eq.s32.totalorder %v2521, %v4146
    %vm6226 = vcmp.eq.s32.totalorder %v2522, %v4146
    %vm6227 = vcmp.eq.s32.totalorder %v2519, %v4166
    %vm6228 = vcmp.eq.s32.totalorder %v2520, %v4166
    %vm6229 = vcmp.eq.s32.totalorder %v2521, %v4166
    %vm6230 = vcmp.eq.s32.totalorder %v2522, %v4166
    %vm6231 = vcmp.eq.s32.totalorder %v2519, %v4186
    %vm6232 = vcmp.eq.s32.totalorder %v2520, %v4186
    %vm6233 = vcmp.eq.s32.totalorder %v2521, %v4186
    %vm6234 = vcmp.eq.s32.totalorder %v2522, %v4186
    %vm6235 = vcmp.eq.s32.totalorder %v2519, %v4206
    %vm6236 = vcmp.eq.s32.totalorder %v2520, %v4206
    %vm6237 = vcmp.eq.s32.totalorder %v2521, %v4206
    %vm6238 = vcmp.eq.s32.totalorder %v2522, %v4206
    %vm6239 = vcmp.eq.s32.totalorder %v2519, %v4226
    %vm6240 = vcmp.eq.s32.totalorder %v2520, %v4226
    %vm6241 = vcmp.eq.s32.totalorder %v2521, %v4226
    %vm6242 = vcmp.eq.s32.totalorder %v2522, %v4226
    %vm6243 = vcmp.eq.s32.totalorder %v2519, %v4246
    %vm6244 = vcmp.eq.s32.totalorder %v2520, %v4246
    %vm6245 = vcmp.eq.s32.totalorder %v2521, %v4246
    %vm6246 = vcmp.eq.s32.totalorder %v2522, %v4246
    %vm6247 = vcmp.eq.s32.totalorder %v2519, %v4266
    %vm6248 = vcmp.eq.s32.totalorder %v2520, %v4266
    %vm6249 = vcmp.eq.s32.totalorder %v2521, %v4266
    %vm6250 = vcmp.eq.s32.totalorder %v2522, %v4266
    %vm6251 = vcmp.eq.s32.totalorder %v2519, %v4286
    %vm6252 = vcmp.eq.s32.totalorder %v2520, %v4286
    %vm6253 = vcmp.eq.s32.totalorder %v2521, %v4286
    %vm6254 = vcmp.eq.s32.totalorder %v2522, %v4286
    %vm6255 = vcmp.eq.s32.totalorder %v2519, %v4306
    %vm6256 = vcmp.eq.s32.totalorder %v2520, %v4306
    %vm6257 = vcmp.eq.s32.totalorder %v2521, %v4306
    %vm6258 = vcmp.eq.s32.totalorder %v2522, %v4306
    %vm6259 = vcmp.eq.s32.totalorder %v2519, %v4326
    %vm6260 = vcmp.eq.s32.totalorder %v2520, %v4326
    %vm6261 = vcmp.eq.s32.totalorder %v2521, %v4326
    %vm6262 = vcmp.eq.s32.totalorder %v2522, %v4326
    %vm6263 = vcmp.eq.s32.totalorder %v2519, %v4346
    %vm6264 = vcmp.eq.s32.totalorder %v2520, %v4346
    %vm6265 = vcmp.eq.s32.totalorder %v2521, %v4346
    %vm6266 = vcmp.eq.s32.totalorder %v2522, %v4346
    %vm6267 = vcmp.eq.s32.totalorder %v2519, %v4366
    %vm6268 = vcmp.eq.s32.totalorder %v2520, %v4366
    %vm6269 = vcmp.eq.s32.totalorder %v2521, %v4366
    %vm6270 = vcmp.eq.s32.totalorder %v2522, %v4366
    %vm6271 = vcmp.eq.s32.totalorder %v2519, %v4386
    %vm6272 = vcmp.eq.s32.totalorder %v2520, %v4386
    %vm6273 = vcmp.eq.s32.totalorder %v2521, %v4386
    %vm6274 = vcmp.eq.s32.totalorder %v2522, %v4386
    %vm6275 = vcmp.eq.s32.totalorder %v2519, %v4406
    %vm6276 = vcmp.eq.s32.totalorder %v2520, %v4406
    %vm6277 = vcmp.eq.s32.totalorder %v2521, %v4406
    %vm6278 = vcmp.eq.s32.totalorder %v2522, %v4406
    %vm6279 = vcmp.eq.s32.totalorder %v2519, %v4426
    %vm6280 = vcmp.eq.s32.totalorder %v2520, %v4426
    %vm6281 = vcmp.eq.s32.totalorder %v2521, %v4426
    %vm6282 = vcmp.eq.s32.totalorder %v2522, %v4426
    %vm6283 = vcmp.eq.s32.totalorder %v2519, %v4446
    %vm6284 = vcmp.eq.s32.totalorder %v2520, %v4446
    %vm6285 = vcmp.eq.s32.totalorder %v2521, %v4446
    %vm6286 = vcmp.eq.s32.totalorder %v2522, %v4446
    %vm6287 = vcmp.eq.s32.totalorder %v2519, %v4466
    %vm6288 = vcmp.eq.s32.totalorder %v2520, %v4466
    %vm6289 = vcmp.eq.s32.totalorder %v2521, %v4466
    %vm6290 = vcmp.eq.s32.totalorder %v2522, %v4466
    %vm6291 = vcmp.eq.s32.totalorder %v2519, %v4486
    %vm6292 = vcmp.eq.s32.totalorder %v2520, %v4486
    %vm6293 = vcmp.eq.s32.totalorder %v2521, %v4486
    %vm6294 = vcmp.eq.s32.totalorder %v2522, %v4486
    %vm6295 = vcmp.eq.s32.totalorder %v2519, %v4506
    %vm6296 = vcmp.eq.s32.totalorder %v2520, %v4506
    %vm6297 = vcmp.eq.s32.totalorder %v2521, %v4506
    %vm6298 = vcmp.eq.s32.totalorder %v2522, %v4506
    %vm6299 = vcmp.eq.s32.totalorder %v2519, %v4526
    %vm6300 = vcmp.eq.s32.totalorder %v2520, %v4526
    %vm6301 = vcmp.eq.s32.totalorder %v2521, %v4526
    %vm6302 = vcmp.eq.s32.totalorder %v2522, %v4526
    %vm6303 = vcmp.eq.s32.totalorder %v2519, %v4546
    %vm6304 = vcmp.eq.s32.totalorder %v2520, %v4546
    %vm6305 = vcmp.eq.s32.totalorder %v2521, %v4546
    %vm6306 = vcmp.eq.s32.totalorder %v2522, %v4546
    %vm6307 = vcmp.eq.s32.totalorder %v2519, %v4566
    %vm6308 = vcmp.eq.s32.totalorder %v2520, %v4566
    %vm6309 = vcmp.eq.s32.totalorder %v2521, %v4566
    %vm6310 = vcmp.eq.s32.totalorder %v2522, %v4566
    %vm6311 = vcmp.eq.s32.totalorder %v2519, %v4586
    %vm6312 = vcmp.eq.s32.totalorder %v2520, %v4586
    %vm6313 = vcmp.eq.s32.totalorder %v2521, %v4586
    %vm6314 = vcmp.eq.s32.totalorder %v2522, %v4586
    %vm6315 = vcmp.eq.s32.totalorder %v2519, %v4606
    %vm6316 = vcmp.eq.s32.totalorder %v2520, %v4606
    %vm6317 = vcmp.eq.s32.totalorder %v2521, %v4606
    %vm6318 = vcmp.eq.s32.totalorder %v2522, %v4606
    %vm6319 = vcmp.eq.s32.totalorder %v2519, %v4626
    %vm6320 = vcmp.eq.s32.totalorder %v2520, %v4626
    %vm6321 = vcmp.eq.s32.totalorder %v2521, %v4626
    %vm6322 = vcmp.eq.s32.totalorder %v2522, %v4626
    %vm6323 = vcmp.eq.s32.totalorder %v2519, %v4646
    %vm6324 = vcmp.eq.s32.totalorder %v2520, %v4646
    %vm6325 = vcmp.eq.s32.totalorder %v2521, %v4646
    %vm6326 = vcmp.eq.s32.totalorder %v2522, %v4646
    %vm6327 = vcmp.eq.s32.totalorder %v2519, %v4666
    %vm6328 = vcmp.eq.s32.totalorder %v2520, %v4666
    %vm6329 = vcmp.eq.s32.totalorder %v2521, %v4666
    %vm6330 = vcmp.eq.s32.totalorder %v2522, %v4666
    %vm6331 = vcmp.eq.s32.totalorder %v2519, %v4686
    %vm6332 = vcmp.eq.s32.totalorder %v2520, %v4686
    %vm6333 = vcmp.eq.s32.totalorder %v2521, %v4686
    %vm6334 = vcmp.eq.s32.totalorder %v2522, %v4686
    %vm6335 = vcmp.eq.s32.totalorder %v2519, %v4706
    %vm6336 = vcmp.eq.s32.totalorder %v2520, %v4706
    %vm6337 = vcmp.eq.s32.totalorder %v2521, %v4706
    %vm6338 = vcmp.eq.s32.totalorder %v2522, %v4706
    %vm6339 = vcmp.eq.s32.totalorder %v2519, %v4726
    %vm6340 = vcmp.eq.s32.totalorder %v2520, %v4726
    %vm6341 = vcmp.eq.s32.totalorder %v2521, %v4726
    %vm6342 = vcmp.eq.s32.totalorder %v2522, %v4726
    %vm6343 = vcmp.eq.s32.totalorder %v2519, %v4746
    %vm6344 = vcmp.eq.s32.totalorder %v2520, %v4746
    %vm6345 = vcmp.eq.s32.totalorder %v2521, %v4746
    %vm6346 = vcmp.eq.s32.totalorder %v2522, %v4746
    %vm6347 = vcmp.eq.s32.totalorder %v2519, %v4766
    %vm6348 = vcmp.eq.s32.totalorder %v2520, %v4766
    %vm6349 = vcmp.eq.s32.totalorder %v2521, %v4766
    %vm6350 = vcmp.eq.s32.totalorder %v2522, %v4766
    %vm6351 = vcmp.eq.s32.totalorder %v2519, %v4786
    %vm6352 = vcmp.eq.s32.totalorder %v2520, %v4786
    %vm6353 = vcmp.eq.s32.totalorder %v2521, %v4786
    %vm6354 = vcmp.eq.s32.totalorder %v2522, %v4786
    %vm6355 = vcmp.eq.s32.totalorder %v2519, %v4806
    %vm6356 = vcmp.eq.s32.totalorder %v2520, %v4806
    %vm6357 = vcmp.eq.s32.totalorder %v2521, %v4806
    %vm6358 = vcmp.eq.s32.totalorder %v2522, %v4806
    %vm6359 = vcmp.eq.s32.totalorder %v2519, %v4826
    %vm6360 = vcmp.eq.s32.totalorder %v2520, %v4826
    %vm6361 = vcmp.eq.s32.totalorder %v2521, %v4826
    %vm6362 = vcmp.eq.s32.totalorder %v2522, %v4826
    %vm6363 = vcmp.eq.s32.totalorder %v2519, %v4846
    %vm6364 = vcmp.eq.s32.totalorder %v2520, %v4846
    %vm6365 = vcmp.eq.s32.totalorder %v2521, %v4846
    %vm6366 = vcmp.eq.s32.totalorder %v2522, %v4846
    %vm6367 = vcmp.eq.s32.totalorder %v2519, %v4866
    %vm6368 = vcmp.eq.s32.totalorder %v2520, %v4866
    %vm6369 = vcmp.eq.s32.totalorder %v2521, %v4866
    %vm6370 = vcmp.eq.s32.totalorder %v2522, %v4866
    %vm6371 = vcmp.eq.s32.totalorder %v2519, %v4886
    %vm6372 = vcmp.eq.s32.totalorder %v2520, %v4886
    %vm6373 = vcmp.eq.s32.totalorder %v2521, %v4886
    %vm6374 = vcmp.eq.s32.totalorder %v2522, %v4886
    %vm6375 = vcmp.eq.s32.totalorder %v2519, %v4906
    %vm6376 = vcmp.eq.s32.totalorder %v2520, %v4906
    %vm6377 = vcmp.eq.s32.totalorder %v2521, %v4906
    %vm6378 = vcmp.eq.s32.totalorder %v2522, %v4906
    %vm6379 = vcmp.eq.s32.totalorder %v2519, %v4926
    %vm6380 = vcmp.eq.s32.totalorder %v2520, %v4926
    %vm6381 = vcmp.eq.s32.totalorder %v2521, %v4926
    %vm6382 = vcmp.eq.s32.totalorder %v2522, %v4926
    %vm6383 = vcmp.eq.s32.totalorder %v2519, %v4946
    %vm6384 = vcmp.eq.s32.totalorder %v2520, %v4946
    %vm6385 = vcmp.eq.s32.totalorder %v2521, %v4946
    %vm6386 = vcmp.eq.s32.totalorder %v2522, %v4946
    %vm6387 = vcmp.eq.s32.totalorder %v2519, %v4966
    %vm6388 = vcmp.eq.s32.totalorder %v2520, %v4966
    %vm6389 = vcmp.eq.s32.totalorder %v2521, %v4966
    %vm6390 = vcmp.eq.s32.totalorder %v2522, %v4966
    %vm6391 = vcmp.eq.s32.totalorder %v2519, %v4986
    %vm6392 = vcmp.eq.s32.totalorder %v2520, %v4986
    %vm6393 = vcmp.eq.s32.totalorder %v2521, %v4986
    %vm6394 = vcmp.eq.s32.totalorder %v2522, %v4986
    %vm6395 = vcmp.eq.s32.totalorder %v2519, %v5006
    %vm6396 = vcmp.eq.s32.totalorder %v2520, %v5006
    %vm6397 = vcmp.eq.s32.totalorder %v2521, %v5006
    %vm6398 = vcmp.eq.s32.totalorder %v2522, %v5006
    %vm6399 = vcmp.eq.s32.totalorder %v2519, %v5026
    %vm6400 = vcmp.eq.s32.totalorder %v2520, %v5026
    %vm6401 = vcmp.eq.s32.totalorder %v2521, %v5026
    %vm6402 = vcmp.eq.s32.totalorder %v2522, %v5026
    %vm6403 = vcmp.eq.s32.totalorder %v2519, %v5046
    %vm6404 = vcmp.eq.s32.totalorder %v2520, %v5046
    %vm6405 = vcmp.eq.s32.totalorder %v2521, %v5046
    %vm6406 = vcmp.eq.s32.totalorder %v2522, %v5046
    %vm6407 = vcmp.eq.s32.totalorder %v2519, %v5066
    %vm6408 = vcmp.eq.s32.totalorder %v2520, %v5066
    %vm6409 = vcmp.eq.s32.totalorder %v2521, %v5066
    %vm6410 = vcmp.eq.s32.totalorder %v2522, %v5066
    %vm6411 = vcmp.eq.s32.totalorder %v2519, %v5086
    %vm6412 = vcmp.eq.s32.totalorder %v2520, %v5086
    %vm6413 = vcmp.eq.s32.totalorder %v2521, %v5086
    %vm6414 = vcmp.eq.s32.totalorder %v2522, %v5086
    %vm6415 = vcmp.eq.s32.totalorder %v2519, %v5106
    %vm6416 = vcmp.eq.s32.totalorder %v2520, %v5106
    %vm6417 = vcmp.eq.s32.totalorder %v2521, %v5106
    %vm6418 = vcmp.eq.s32.totalorder %v2522, %v5106
    %vm6419 = vcmp.eq.s32.totalorder %v2519, %v5126
    %vm6420 = vcmp.eq.s32.totalorder %v2520, %v5126
    %vm6421 = vcmp.eq.s32.totalorder %v2521, %v5126
    %vm6422 = vcmp.eq.s32.totalorder %v2522, %v5126
    %vm6423 = vcmp.eq.s32.totalorder %v2519, %v5146
    %vm6424 = vcmp.eq.s32.totalorder %v2520, %v5146
    %vm6425 = vcmp.eq.s32.totalorder %v2521, %v5146
    %vm6426 = vcmp.eq.s32.totalorder %v2522, %v5146
    %vm6427 = vcmp.eq.s32.totalorder %v2519, %v5166
    %vm6428 = vcmp.eq.s32.totalorder %v2520, %v5166
    %vm6429 = vcmp.eq.s32.totalorder %v2521, %v5166
    %vm6430 = vcmp.eq.s32.totalorder %v2522, %v5166
    %vm6431 = vcmp.eq.s32.totalorder %v2519, %v5186
    %vm6432 = vcmp.eq.s32.totalorder %v2520, %v5186
    %vm6433 = vcmp.eq.s32.totalorder %v2521, %v5186
    %vm6434 = vcmp.eq.s32.totalorder %v2522, %v5186
    %vm6435 = vcmp.eq.s32.totalorder %v2519, %v5206
    %vm6436 = vcmp.eq.s32.totalorder %v2520, %v5206
    %vm6437 = vcmp.eq.s32.totalorder %v2521, %v5206
    %vm6438 = vcmp.eq.s32.totalorder %v2522, %v5206
    %vm6439 = vcmp.eq.s32.totalorder %v2519, %v5226
    %vm6440 = vcmp.eq.s32.totalorder %v2520, %v5226
    %vm6441 = vcmp.eq.s32.totalorder %v2521, %v5226
    %vm6442 = vcmp.eq.s32.totalorder %v2522, %v5226
    %vm6443 = vcmp.eq.s32.totalorder %v2519, %v5246
    %vm6444 = vcmp.eq.s32.totalorder %v2520, %v5246
    %vm6445 = vcmp.eq.s32.totalorder %v2521, %v5246
    %vm6446 = vcmp.eq.s32.totalorder %v2522, %v5246
    %vm6447 = vcmp.eq.s32.totalorder %v2519, %v5266
    %vm6448 = vcmp.eq.s32.totalorder %v2520, %v5266
    %vm6449 = vcmp.eq.s32.totalorder %v2521, %v5266
    %vm6450 = vcmp.eq.s32.totalorder %v2522, %v5266
    %vm6451 = vcmp.eq.s32.totalorder %v2519, %v5286
    %vm6452 = vcmp.eq.s32.totalorder %v2520, %v5286
    %vm6453 = vcmp.eq.s32.totalorder %v2521, %v5286
    %vm6454 = vcmp.eq.s32.totalorder %v2522, %v5286
    %vm6455 = vcmp.eq.s32.totalorder %v2519, %v5306
    %vm6456 = vcmp.eq.s32.totalorder %v2520, %v5306
    %vm6457 = vcmp.eq.s32.totalorder %v2521, %v5306
    %vm6458 = vcmp.eq.s32.totalorder %v2522, %v5306
    %vm6459 = vcmp.eq.s32.totalorder %v2519, %v5326
    %vm6460 = vcmp.eq.s32.totalorder %v2520, %v5326
    %vm6461 = vcmp.eq.s32.totalorder %v2521, %v5326
    %vm6462 = vcmp.eq.s32.totalorder %v2522, %v5326
    %vm6463 = vcmp.eq.s32.totalorder %v2519, %v5346
    %vm6464 = vcmp.eq.s32.totalorder %v2520, %v5346
    %vm6465 = vcmp.eq.s32.totalorder %v2521, %v5346
    %vm6466 = vcmp.eq.s32.totalorder %v2522, %v5346
    %vm6467 = vcmp.eq.s32.totalorder %v2519, %v5366
    %vm6468 = vcmp.eq.s32.totalorder %v2520, %v5366
    %vm6469 = vcmp.eq.s32.totalorder %v2521, %v5366
    %vm6470 = vcmp.eq.s32.totalorder %v2522, %v5366
    %vm6471 = vcmp.eq.s32.totalorder %v2519, %v5386
    %vm6472 = vcmp.eq.s32.totalorder %v2520, %v5386
    %vm6473 = vcmp.eq.s32.totalorder %v2521, %v5386
    %vm6474 = vcmp.eq.s32.totalorder %v2522, %v5386
    %vm6475 = vcmp.eq.s32.totalorder %v2519, %v5406
    %vm6476 = vcmp.eq.s32.totalorder %v2520, %v5406
    %vm6477 = vcmp.eq.s32.totalorder %v2521, %v5406
    %vm6478 = vcmp.eq.s32.totalorder %v2522, %v5406
    %vm6479 = vcmp.eq.s32.totalorder %v2519, %v5426
    %vm6480 = vcmp.eq.s32.totalorder %v2520, %v5426
    %vm6481 = vcmp.eq.s32.totalorder %v2521, %v5426
    %vm6482 = vcmp.eq.s32.totalorder %v2522, %v5426
    %vm6483 = vcmp.eq.s32.totalorder %v2519, %v5446
    %vm6484 = vcmp.eq.s32.totalorder %v2520, %v5446
    %vm6485 = vcmp.eq.s32.totalorder %v2521, %v5446
    %vm6486 = vcmp.eq.s32.totalorder %v2522, %v5446
    %vm6487 = vcmp.eq.s32.totalorder %v2519, %v5466
    %vm6488 = vcmp.eq.s32.totalorder %v2520, %v5466
    %vm6489 = vcmp.eq.s32.totalorder %v2521, %v5466
    %vm6490 = vcmp.eq.s32.totalorder %v2522, %v5466
    %vm6491 = vcmp.eq.s32.totalorder %v2519, %v5486
    %vm6492 = vcmp.eq.s32.totalorder %v2520, %v5486
    %vm6493 = vcmp.eq.s32.totalorder %v2521, %v5486
    %vm6494 = vcmp.eq.s32.totalorder %v2522, %v5486
    %vm6495 = vcmp.eq.s32.totalorder %v2519, %v5506
    %vm6496 = vcmp.eq.s32.totalorder %v2520, %v5506
    %vm6497 = vcmp.eq.s32.totalorder %v2521, %v5506
    %vm6498 = vcmp.eq.s32.totalorder %v2522, %v5506
    %vm6499 = vcmp.eq.s32.totalorder %v2519, %v5526
    %vm6500 = vcmp.eq.s32.totalorder %v2520, %v5526
    %vm6501 = vcmp.eq.s32.totalorder %v2521, %v5526
    %vm6502 = vcmp.eq.s32.totalorder %v2522, %v5526
    %vm6503 = vcmp.eq.s32.totalorder %v2519, %v5546
    %vm6504 = vcmp.eq.s32.totalorder %v2520, %v5546
    %vm6505 = vcmp.eq.s32.totalorder %v2521, %v5546
    %vm6506 = vcmp.eq.s32.totalorder %v2522, %v5546
    %vm6507 = vcmp.eq.s32.totalorder %v2519, %v5566
    %vm6508 = vcmp.eq.s32.totalorder %v2520, %v5566
    %vm6509 = vcmp.eq.s32.totalorder %v2521, %v5566
    %vm6510 = vcmp.eq.s32.totalorder %v2522, %v5566
    %vm6511 = vcmp.eq.s32.totalorder %v2519, %v5586
    %vm6512 = vcmp.eq.s32.totalorder %v2520, %v5586
    %vm6513 = vcmp.eq.s32.totalorder %v2521, %v5586
    %vm6514 = vcmp.eq.s32.totalorder %v2522, %v5586
    %vm6515 = vcmp.eq.s32.totalorder %v2519, %v5606
    %vm6516 = vcmp.eq.s32.totalorder %v2520, %v5606
    %vm6517 = vcmp.eq.s32.totalorder %v2521, %v5606
    %vm6518 = vcmp.eq.s32.totalorder %v2522, %v5606
    %vm6519 = vcmp.eq.s32.totalorder %v2519, %v5626
    %vm6520 = vcmp.eq.s32.totalorder %v2520, %v5626
    %vm6521 = vcmp.eq.s32.totalorder %v2521, %v5626
    %vm6522 = vcmp.eq.s32.totalorder %v2522, %v5626
    %vm6523 = vcmp.eq.s32.totalorder %v2519, %v5646
    %vm6524 = vcmp.eq.s32.totalorder %v2520, %v5646
    %vm6525 = vcmp.eq.s32.totalorder %v2521, %v5646
    %vm6526 = vcmp.eq.s32.totalorder %v2522, %v5646
    %vm6527 = vcmp.eq.s32.totalorder %v2519, %v5666
    %vm6528 = vcmp.eq.s32.totalorder %v2520, %v5666
    %vm6529 = vcmp.eq.s32.totalorder %v2521, %v5666
    %vm6530 = vcmp.eq.s32.totalorder %v2522, %v5666
    %vm6531 = vcmp.eq.s32.totalorder %v2519, %v5686
    %vm6532 = vcmp.eq.s32.totalorder %v2520, %v5686
    %vm6533 = vcmp.eq.s32.totalorder %v2521, %v5686
    %vm6534 = vcmp.eq.s32.totalorder %v2522, %v5686
    %vm6535 = vcmp.eq.s32.totalorder %v2519, %v5706
    %vm6536 = vcmp.eq.s32.totalorder %v2520, %v5706
    %vm6537 = vcmp.eq.s32.totalorder %v2521, %v5706
    %vm6538 = vcmp.eq.s32.totalorder %v2522, %v5706
    %vm6539 = vcmp.eq.s32.totalorder %v2519, %v5726
    %vm6540 = vcmp.eq.s32.totalorder %v2520, %v5726
    %vm6541 = vcmp.eq.s32.totalorder %v2521, %v5726
    %vm6542 = vcmp.eq.s32.totalorder %v2522, %v5726
    %vm6543 = vcmp.eq.s32.totalorder %v2519, %v5746
    %vm6544 = vcmp.eq.s32.totalorder %v2520, %v5746
    %vm6545 = vcmp.eq.s32.totalorder %v2521, %v5746
    %vm6546 = vcmp.eq.s32.totalorder %v2522, %v5746
    %vm6547 = vcmp.eq.s32.totalorder %v2519, %v5766
    %vm6548 = vcmp.eq.s32.totalorder %v2520, %v5766
    %vm6549 = vcmp.eq.s32.totalorder %v2521, %v5766
    %vm6550 = vcmp.eq.s32.totalorder %v2522, %v5766
    %vm6551 = vcmp.eq.s32.totalorder %v2519, %v5786
    %vm6552 = vcmp.eq.s32.totalorder %v2520, %v5786
    %vm6553 = vcmp.eq.s32.totalorder %v2521, %v5786
    %vm6554 = vcmp.eq.s32.totalorder %v2522, %v5786
    %vm6555 = vcmp.eq.s32.totalorder %v2519, %v5806
    %vm6556 = vcmp.eq.s32.totalorder %v2520, %v5806
    %vm6557 = vcmp.eq.s32.totalorder %v2521, %v5806
    %vm6558 = vcmp.eq.s32.totalorder %v2522, %v5806
    %vm6559 = vcmp.eq.s32.totalorder %v2519, %v5826
    %vm6560 = vcmp.eq.s32.totalorder %v2520, %v5826
    %vm6561 = vcmp.eq.s32.totalorder %v2521, %v5826
    %vm6562 = vcmp.eq.s32.totalorder %v2522, %v5826
    %vm6563 = vcmp.eq.s32.totalorder %v2519, %v5846
    %vm6564 = vcmp.eq.s32.totalorder %v2520, %v5846
    %vm6565 = vcmp.eq.s32.totalorder %v2521, %v5846
    %vm6566 = vcmp.eq.s32.totalorder %v2522, %v5846
    %vm6567 = vcmp.eq.s32.totalorder %v2519, %v5866
    %vm6568 = vcmp.eq.s32.totalorder %v2520, %v5866
    %vm6569 = vcmp.eq.s32.totalorder %v2521, %v5866
    %vm6570 = vcmp.eq.s32.totalorder %v2522, %v5866
    %vm6571 = vcmp.eq.s32.totalorder %v2519, %v5886
    %vm6572 = vcmp.eq.s32.totalorder %v2520, %v5886
    %vm6573 = vcmp.eq.s32.totalorder %v2521, %v5886
    %vm6574 = vcmp.eq.s32.totalorder %v2522, %v5886
    %vm6575 = vcmp.eq.s32.totalorder %v2519, %v5906
    %vm6576 = vcmp.eq.s32.totalorder %v2520, %v5906
    %vm6577 = vcmp.eq.s32.totalorder %v2521, %v5906
    %vm6578 = vcmp.eq.s32.totalorder %v2522, %v5906
    %vm6579 = vcmp.eq.s32.totalorder %v2519, %v5926
    %vm6580 = vcmp.eq.s32.totalorder %v2520, %v5926
    %vm6581 = vcmp.eq.s32.totalorder %v2521, %v5926
    %vm6582 = vcmp.eq.s32.totalorder %v2522, %v5926
    %vm6583 = vcmp.eq.s32.totalorder %v2519, %v5946
    %vm6584 = vcmp.eq.s32.totalorder %v2520, %v5946
    %vm6585 = vcmp.eq.s32.totalorder %v2521, %v5946
    %vm6586 = vcmp.eq.s32.totalorder %v2522, %v5946
    %vm6587 = vcmp.eq.s32.totalorder %v2519, %v5966
    %vm6588 = vcmp.eq.s32.totalorder %v2520, %v5966
    %vm6589 = vcmp.eq.s32.totalorder %v2521, %v5966
    %vm6590 = vcmp.eq.s32.totalorder %v2522, %v5966
    %vm6591 = vcmp.eq.s32.totalorder %v2519, %v5986
    %vm6592 = vcmp.eq.s32.totalorder %v2520, %v5986
    %vm6593 = vcmp.eq.s32.totalorder %v2521, %v5986
    %vm6594 = vcmp.eq.s32.totalorder %v2522, %v5986
    %vm6595 = vcmp.eq.s32.totalorder %v2519, %v6006
    %vm6596 = vcmp.eq.s32.totalorder %v2520, %v6006
    %vm6597 = vcmp.eq.s32.totalorder %v2521, %v6006
    %vm6598 = vcmp.eq.s32.totalorder %v2522, %v6006
    %vm6599 = vcmp.eq.s32.totalorder %v2519, %v6026
    %vm6600 = vcmp.eq.s32.totalorder %v2520, %v6026
    %vm6601 = vcmp.eq.s32.totalorder %v2521, %v6026
    %vm6602 = vcmp.eq.s32.totalorder %v2522, %v6026
    %vm6603 = vcmp.eq.s32.totalorder %v2519, %v6046
    %vm6604 = vcmp.eq.s32.totalorder %v2520, %v6046
    %vm6605 = vcmp.eq.s32.totalorder %v2521, %v6046
    %vm6606 = vcmp.eq.s32.totalorder %v2522, %v6046
    %vm6607 = vcmp.eq.s32.totalorder %v2519, %v6066
    %vm6608 = vcmp.eq.s32.totalorder %v2520, %v6066
    %vm6609 = vcmp.eq.s32.totalorder %v2521, %v6066
    %vm6610 = vcmp.eq.s32.totalorder %v2522, %v6066
    %vm6611 = vcmp.eq.s32.totalorder %v2519, %v6086
    %vm6612 = vcmp.eq.s32.totalorder %v2520, %v6086
    %vm6613 = vcmp.eq.s32.totalorder %v2521, %v6086
    %vm6614 = vcmp.eq.s32.totalorder %v2522, %v6086
    %vm6615 = vcmp.eq.s32.totalorder %v2519, %v6106
    %vm6616 = vcmp.eq.s32.totalorder %v2520, %v6106
    %vm6617 = vcmp.eq.s32.totalorder %v2521, %v6106
    %vm6618 = vcmp.eq.s32.totalorder %v2522, %v6106
    %v6619 = vsel %vm6107, 1, 0
    %v6620 = vsel %vm6108, 1, 0
    %v6621 = vsel %vm6109, 1, 0
    %v6622 = vsel %vm6110, 1, 0
    %v6623 = vsel %vm6111, 1, 0
    %v6624 = vsel %vm6112, 1, 0
    %v6625 = vsel %vm6113, 1, 0
    %v6626 = vsel %vm6114, 1, 0
    %v6627 = vsel %vm6115, 1, 0
    %v6628 = vsel %vm6116, 1, 0
    %v6629 = vsel %vm6117, 1, 0
    %v6630 = vsel %vm6118, 1, 0
    %v6631 = vsel %vm6119, 1, 0
    %v6632 = vsel %vm6120, 1, 0
    %v6633 = vsel %vm6121, 1, 0
    %v6634 = vsel %vm6122, 1, 0
    %v6635 = vsel %vm6123, 1, 0
    %v6636 = vsel %vm6124, 1, 0
    %v6637 = vsel %vm6125, 1, 0
    %v6638 = vsel %vm6126, 1, 0
    %v6639 = vsel %vm6127, 1, 0
    %v6640 = vsel %vm6128, 1, 0
    %v6641 = vsel %vm6129, 1, 0
    %v6642 = vsel %vm6130, 1, 0
    %v6643 = vsel %vm6131, 1, 0
    %v6644 = vsel %vm6132, 1, 0
    %v6645 = vsel %vm6133, 1, 0
    %v6646 = vsel %vm6134, 1, 0
    %v6647 = vsel %vm6135, 1, 0
    %v6648 = vsel %vm6136, 1, 0
    %v6649 = vsel %vm6137, 1, 0
    %v6650 = vsel %vm6138, 1, 0
    %v6651 = vsel %vm6139, 1, 0
    %v6652 = vsel %vm6140, 1, 0
    %v6653 = vsel %vm6141, 1, 0
    %v6654 = vsel %vm6142, 1, 0
    %v6655 = vsel %vm6143, 1, 0
    %v6656 = vsel %vm6144, 1, 0
    %v6657 = vsel %vm6145, 1, 0
    %v6658 = vsel %vm6146, 1, 0
    %v6659 = vsel %vm6147, 1, 0
    %v6660 = vsel %vm6148, 1, 0
    %v6661 = vsel %vm6149, 1, 0
    %v6662 = vsel %vm6150, 1, 0
    %v6663 = vsel %vm6151, 1, 0
    %v6664 = vsel %vm6152, 1, 0
    %v6665 = vsel %vm6153, 1, 0
    %v6666 = vsel %vm6154, 1, 0
    %v6667 = vsel %vm6155, 1, 0
    %v6668 = vsel %vm6156, 1, 0
    %v6669 = vsel %vm6157, 1, 0
    %v6670 = vsel %vm6158, 1, 0
    %v6671 = vsel %vm6159, 1, 0
    %v6672 = vsel %vm6160, 1, 0
    %v6673 = vsel %vm6161, 1, 0
    %v6674 = vsel %vm6162, 1, 0
    %v6675 = vsel %vm6163, 1, 0
    %v6676 = vsel %vm6164, 1, 0
    %v6677 = vsel %vm6165, 1, 0
    %v6678 = vsel %vm6166, 1, 0
    %v6679 = vsel %vm6167, 1, 0
    %v6680 = vsel %vm6168, 1, 0
    %v6681 = vsel %vm6169, 1, 0
    %v6682 = vsel %vm6170, 1, 0
    %v6683 = vsel %vm6171, 1, 0
    %v6684 = vsel %vm6172, 1, 0
    %v6685 = vsel %vm6173, 1, 0
    %v6686 = vsel %vm6174, 1, 0
    %v6687 = vsel %vm6175, 1, 0
    %v6688 = vsel %vm6176, 1, 0
    %v6689 = vsel %vm6177, 1, 0
    %v6690 = vsel %vm6178, 1, 0
    %v6691 = vsel %vm6179, 1, 0
    %v6692 = vsel %vm6180, 1, 0
    %v6693 = vsel %vm6181, 1, 0
    %v6694 = vsel %vm6182, 1, 0
    %v6695 = vsel %vm6183, 1, 0
    %v6696 = vsel %vm6184, 1, 0
    %v6697 = vsel %vm6185, 1, 0
    %v6698 = vsel %vm6186, 1, 0
    %v6699 = vsel %vm6187, 1, 0
    %v6700 = vsel %vm6188, 1, 0
    %v6701 = vsel %vm6189, 1, 0
    %v6702 = vsel %vm6190, 1, 0
    %v6703 = vsel %vm6191, 1, 0
    %v6704 = vsel %vm6192, 1, 0
    %v6705 = vsel %vm6193, 1, 0
    %v6706 = vsel %vm6194, 1, 0
    %v6707 = vsel %vm6195, 1, 0
    %v6708 = vsel %vm6196, 1, 0
    %v6709 = vsel %vm6197, 1, 0
    %v6710 = vsel %vm6198, 1, 0
    %v6711 = vsel %vm6199, 1, 0
    %v6712 = vsel %vm6200, 1, 0
    %v6713 = vsel %vm6201, 1, 0
    %v6714 = vsel %vm6202, 1, 0
    %v6715 = vsel %vm6203, 1, 0
    %v6716 = vsel %vm6204, 1, 0
    %v6717 = vsel %vm6205, 1, 0
    %v6718 = vsel %vm6206, 1, 0
    %v6719 = vsel %vm6207, 1, 0
    %v6720 = vsel %vm6208, 1, 0
    %v6721 = vsel %vm6209, 1, 0
    %v6722 = vsel %vm6210, 1, 0
    %v6723 = vsel %vm6211, 1, 0
    %v6724 = vsel %vm6212, 1, 0
    %v6725 = vsel %vm6213, 1, 0
    %v6726 = vsel %vm6214, 1, 0
    %v6727 = vsel %vm6215, 1, 0
    %v6728 = vsel %vm6216, 1, 0
    %v6729 = vsel %vm6217, 1, 0
    %v6730 = vsel %vm6218, 1, 0
    %v6731 = vsel %vm6219, 1, 0
    %v6732 = vsel %vm6220, 1, 0
    %v6733 = vsel %vm6221, 1, 0
    %v6734 = vsel %vm6222, 1, 0
    %v6735 = vsel %vm6223, 1, 0
    %v6736 = vsel %vm6224, 1, 0
    %v6737 = vsel %vm6225, 1, 0
    %v6738 = vsel %vm6226, 1, 0
    %v6739 = vsel %vm6227, 1, 0
    %v6740 = vsel %vm6228, 1, 0
    %v6741 = vsel %vm6229, 1, 0
    %v6742 = vsel %vm6230, 1, 0
    %v6743 = vsel %vm6231, 1, 0
    %v6744 = vsel %vm6232, 1, 0
    %v6745 = vsel %vm6233, 1, 0
    %v6746 = vsel %vm6234, 1, 0
    %v6747 = vsel %vm6235, 1, 0
    %v6748 = vsel %vm6236, 1, 0
    %v6749 = vsel %vm6237, 1, 0
    %v6750 = vsel %vm6238, 1, 0
    %v6751 = vsel %vm6239, 1, 0
    %v6752 = vsel %vm6240, 1, 0
    %v6753 = vsel %vm6241, 1, 0
    %v6754 = vsel %vm6242, 1, 0
    %v6755 = vsel %vm6243, 1, 0
    %v6756 = vsel %vm6244, 1, 0
    %v6757 = vsel %vm6245, 1, 0
    %v6758 = vsel %vm6246, 1, 0
    %v6759 = vsel %vm6247, 1, 0
    %v6760 = vsel %vm6248, 1, 0
    %v6761 = vsel %vm6249, 1, 0
    %v6762 = vsel %vm6250, 1, 0
    %v6763 = vsel %vm6251, 1, 0
    %v6764 = vsel %vm6252, 1, 0
    %v6765 = vsel %vm6253, 1, 0
    %v6766 = vsel %vm6254, 1, 0
    %v6767 = vsel %vm6255, 1, 0
    %v6768 = vsel %vm6256, 1, 0
    %v6769 = vsel %vm6257, 1, 0
    %v6770 = vsel %vm6258, 1, 0
    %v6771 = vsel %vm6259, 1, 0
    %v6772 = vsel %vm6260, 1, 0
    %v6773 = vsel %vm6261, 1, 0
    %v6774 = vsel %vm6262, 1, 0
    %v6775 = vsel %vm6263, 1, 0
    %v6776 = vsel %vm6264, 1, 0
    %v6777 = vsel %vm6265, 1, 0
    %v6778 = vsel %vm6266, 1, 0
    %v6779 = vsel %vm6267, 1, 0
    %v6780 = vsel %vm6268, 1, 0
    %v6781 = vsel %vm6269, 1, 0
    %v6782 = vsel %vm6270, 1, 0
    %v6783 = vsel %vm6271, 1, 0
    %v6784 = vsel %vm6272, 1, 0
    %v6785 = vsel %vm6273, 1, 0
    %v6786 = vsel %vm6274, 1, 0
    %v6787 = vsel %vm6275, 1, 0
    %v6788 = vsel %vm6276, 1, 0
    %v6789 = vsel %vm6277, 1, 0
    %v6790 = vsel %vm6278, 1, 0
    %v6791 = vsel %vm6279, 1, 0
    %v6792 = vsel %vm6280, 1, 0
    %v6793 = vsel %vm6281, 1, 0
    %v6794 = vsel %vm6282, 1, 0
    %v6795 = vsel %vm6283, 1, 0
    %v6796 = vsel %vm6284, 1, 0
    %v6797 = vsel %vm6285, 1, 0
    %v6798 = vsel %vm6286, 1, 0
    %v6799 = vsel %vm6287, 1, 0
    %v6800 = vsel %vm6288, 1, 0
    %v6801 = vsel %vm6289, 1, 0
    %v6802 = vsel %vm6290, 1, 0
    %v6803 = vsel %vm6291, 1, 0
    %v6804 = vsel %vm6292, 1, 0
    %v6805 = vsel %vm6293, 1, 0
    %v6806 = vsel %vm6294, 1, 0
    %v6807 = vsel %vm6295, 1, 0
    %v6808 = vsel %vm6296, 1, 0
    %v6809 = vsel %vm6297, 1, 0
    %v6810 = vsel %vm6298, 1, 0
    %v6811 = vsel %vm6299, 1, 0
    %v6812 = vsel %vm6300, 1, 0
    %v6813 = vsel %vm6301, 1, 0
    %v6814 = vsel %vm6302, 1, 0
    %v6815 = vsel %vm6303, 1, 0
    %v6816 = vsel %vm6304, 1, 0
    %v6817 = vsel %vm6305, 1, 0
    %v6818 = vsel %vm6306, 1, 0
    %v6819 = vsel %vm6307, 1, 0
    %v6820 = vsel %vm6308, 1, 0
    %v6821 = vsel %vm6309, 1, 0
    %v6822 = vsel %vm6310, 1, 0
    %v6823 = vsel %vm6311, 1, 0
    %v6824 = vsel %vm6312, 1, 0
    %v6825 = vsel %vm6313, 1, 0
    %v6826 = vsel %vm6314, 1, 0
    %v6827 = vsel %vm6315, 1, 0
    %v6828 = vsel %vm6316, 1, 0
    %v6829 = vsel %vm6317, 1, 0
    %v6830 = vsel %vm6318, 1, 0
    %v6831 = vsel %vm6319, 1, 0
    %v6832 = vsel %vm6320, 1, 0
    %v6833 = vsel %vm6321, 1, 0
    %v6834 = vsel %vm6322, 1, 0
    %v6835 = vsel %vm6323, 1, 0
    %v6836 = vsel %vm6324, 1, 0
    %v6837 = vsel %vm6325, 1, 0
    %v6838 = vsel %vm6326, 1, 0
    %v6839 = vsel %vm6327, 1, 0
    %v6840 = vsel %vm6328, 1, 0
    %v6841 = vsel %vm6329, 1, 0
    %v6842 = vsel %vm6330, 1, 0
    %v6843 = vsel %vm6331, 1, 0
    %v6844 = vsel %vm6332, 1, 0
    %v6845 = vsel %vm6333, 1, 0
    %v6846 = vsel %vm6334, 1, 0
    %v6847 = vsel %vm6335, 1, 0
    %v6848 = vsel %vm6336, 1, 0
    %v6849 = vsel %vm6337, 1, 0
    %v6850 = vsel %vm6338, 1, 0
    %v6851 = vsel %vm6339, 1, 0
    %v6852 = vsel %vm6340, 1, 0
    %v6853 = vsel %vm6341, 1, 0
    %v6854 = vsel %vm6342, 1, 0
    %v6855 = vsel %vm6343, 1, 0
    %v6856 = vsel %vm6344, 1, 0
    %v6857 = vsel %vm6345, 1, 0
    %v6858 = vsel %vm6346, 1, 0
    %v6859 = vsel %vm6347, 1, 0
    %v6860 = vsel %vm6348, 1, 0
    %v6861 = vsel %vm6349, 1, 0
    %v6862 = vsel %vm6350, 1, 0
    %v6863 = vsel %vm6351, 1, 0
    %v6864 = vsel %vm6352, 1, 0
    %v6865 = vsel %vm6353, 1, 0
    %v6866 = vsel %vm6354, 1, 0
    %v6867 = vsel %vm6355, 1, 0
    %v6868 = vsel %vm6356, 1, 0
    %v6869 = vsel %vm6357, 1, 0
    %v6870 = vsel %vm6358, 1, 0
    %v6871 = vsel %vm6359, 1, 0
    %v6872 = vsel %vm6360, 1, 0
    %v6873 = vsel %vm6361, 1, 0
    %v6874 = vsel %vm6362, 1, 0
    %v6875 = vsel %vm6363, 1, 0
    %v6876 = vsel %vm6364, 1, 0
    %v6877 = vsel %vm6365, 1, 0
    %v6878 = vsel %vm6366, 1, 0
    %v6879 = vsel %vm6367, 1, 0
    %v6880 = vsel %vm6368, 1, 0
    %v6881 = vsel %vm6369, 1, 0
    %v6882 = vsel %vm6370, 1, 0
    %v6883 = vsel %vm6371, 1, 0
    %v6884 = vsel %vm6372, 1, 0
    %v6885 = vsel %vm6373, 1, 0
    %v6886 = vsel %vm6374, 1, 0
    %v6887 = vsel %vm6375, 1, 0
    %v6888 = vsel %vm6376, 1, 0
    %v6889 = vsel %vm6377, 1, 0
    %v6890 = vsel %vm6378, 1, 0
    %v6891 = vsel %vm6379, 1, 0
    %v6892 = vsel %vm6380, 1, 0
    %v6893 = vsel %vm6381, 1, 0
    %v6894 = vsel %vm6382, 1, 0
    %v6895 = vsel %vm6383, 1, 0
    %v6896 = vsel %vm6384, 1, 0
    %v6897 = vsel %vm6385, 1, 0
    %v6898 = vsel %vm6386, 1, 0
    %v6899 = vsel %vm6387, 1, 0
    %v6900 = vsel %vm6388, 1, 0
    %v6901 = vsel %vm6389, 1, 0
    %v6902 = vsel %vm6390, 1, 0
    %v6903 = vsel %vm6391, 1, 0
    %v6904 = vsel %vm6392, 1, 0
    %v6905 = vsel %vm6393, 1, 0
    %v6906 = vsel %vm6394, 1, 0
    %v6907 = vsel %vm6395, 1, 0
    %v6908 = vsel %vm6396, 1, 0
    %v6909 = vsel %vm6397, 1, 0
    %v6910 = vsel %vm6398, 1, 0
    %v6911 = vsel %vm6399, 1, 0
    %v6912 = vsel %vm6400, 1, 0
    %v6913 = vsel %vm6401, 1, 0
    %v6914 = vsel %vm6402, 1, 0
    %v6915 = vsel %vm6403, 1, 0
    %v6916 = vsel %vm6404, 1, 0
    %v6917 = vsel %vm6405, 1, 0
    %v6918 = vsel %vm6406, 1, 0
    %v6919 = vsel %vm6407, 1, 0
    %v6920 = vsel %vm6408, 1, 0
    %v6921 = vsel %vm6409, 1, 0
    %v6922 = vsel %vm6410, 1, 0
    %v6923 = vsel %vm6411, 1, 0
    %v6924 = vsel %vm6412, 1, 0
    %v6925 = vsel %vm6413, 1, 0
    %v6926 = vsel %vm6414, 1, 0
    %v6927 = vsel %vm6415, 1, 0
    %v6928 = vsel %vm6416, 1, 0
    %v6929 = vsel %vm6417, 1, 0
    %v6930 = vsel %vm6418, 1, 0
    %v6931 = vsel %vm6419, 1, 0
    %v6932 = vsel %vm6420, 1, 0
    %v6933 = vsel %vm6421, 1, 0
    %v6934 = vsel %vm6422, 1, 0
    %v6935 = vsel %vm6423, 1, 0
    %v6936 = vsel %vm6424, 1, 0
    %v6937 = vsel %vm6425, 1, 0
    %v6938 = vsel %vm6426, 1, 0
    %v6939 = vsel %vm6427, 1, 0
    %v6940 = vsel %vm6428, 1, 0
    %v6941 = vsel %vm6429, 1, 0
    %v6942 = vsel %vm6430, 1, 0
    %v6943 = vsel %vm6431, 1, 0
    %v6944 = vsel %vm6432, 1, 0
    %v6945 = vsel %vm6433, 1, 0
    %v6946 = vsel %vm6434, 1, 0
    %v6947 = vsel %vm6435, 1, 0
    %v6948 = vsel %vm6436, 1, 0
    %v6949 = vsel %vm6437, 1, 0
    %v6950 = vsel %vm6438, 1, 0
    %v6951 = vsel %vm6439, 1, 0
    %v6952 = vsel %vm6440, 1, 0
    %v6953 = vsel %vm6441, 1, 0
    %v6954 = vsel %vm6442, 1, 0
    %v6955 = vsel %vm6443, 1, 0
    %v6956 = vsel %vm6444, 1, 0
    %v6957 = vsel %vm6445, 1, 0
    %v6958 = vsel %vm6446, 1, 0
    %v6959 = vsel %vm6447, 1, 0
    %v6960 = vsel %vm6448, 1, 0
    %v6961 = vsel %vm6449, 1, 0
    %v6962 = vsel %vm6450, 1, 0
    %v6963 = vsel %vm6451, 1, 0
    %v6964 = vsel %vm6452, 1, 0
    %v6965 = vsel %vm6453, 1, 0
    %v6966 = vsel %vm6454, 1, 0
    %v6967 = vsel %vm6455, 1, 0
    %v6968 = vsel %vm6456, 1, 0
    %v6969 = vsel %vm6457, 1, 0
    %v6970 = vsel %vm6458, 1, 0
    %v6971 = vsel %vm6459, 1, 0
    %v6972 = vsel %vm6460, 1, 0
    %v6973 = vsel %vm6461, 1, 0
    %v6974 = vsel %vm6462, 1, 0
    %v6975 = vsel %vm6463, 1, 0
    %v6976 = vsel %vm6464, 1, 0
    %v6977 = vsel %vm6465, 1, 0
    %v6978 = vsel %vm6466, 1, 0
    %v6979 = vsel %vm6467, 1, 0
    %v6980 = vsel %vm6468, 1, 0
    %v6981 = vsel %vm6469, 1, 0
    %v6982 = vsel %vm6470, 1, 0
    %v6983 = vsel %vm6471, 1, 0
    %v6984 = vsel %vm6472, 1, 0
    %v6985 = vsel %vm6473, 1, 0
    %v6986 = vsel %vm6474, 1, 0
    %v6987 = vsel %vm6475, 1, 0
    %v6988 = vsel %vm6476, 1, 0
    %v6989 = vsel %vm6477, 1, 0
    %v6990 = vsel %vm6478, 1, 0
    %v6991 = vsel %vm6479, 1, 0
    %v6992 = vsel %vm6480, 1, 0
    %v6993 = vsel %vm6481, 1, 0
    %v6994 = vsel %vm6482, 1, 0
    %v6995 = vsel %vm6483, 1, 0
    %v6996 = vsel %vm6484, 1, 0
    %v6997 = vsel %vm6485, 1, 0
    %v6998 = vsel %vm6486, 1, 0
    %v6999 = vsel %vm6487, 1, 0
    %v7000 = vsel %vm6488, 1, 0
    %v7001 = vsel %vm6489, 1, 0
    %v7002 = vsel %vm6490, 1, 0
    %v7003 = vsel %vm6491, 1, 0
    %v7004 = vsel %vm6492, 1, 0
    %v7005 = vsel %vm6493, 1, 0
    %v7006 = vsel %vm6494, 1, 0
    %v7007 = vsel %vm6495, 1, 0
    %v7008 = vsel %vm6496, 1, 0
    %v7009 = vsel %vm6497, 1, 0
    %v7010 = vsel %vm6498, 1, 0
    %v7011 = vsel %vm6499, 1, 0
    %v7012 = vsel %vm6500, 1, 0
    %v7013 = vsel %vm6501, 1, 0
    %v7014 = vsel %vm6502, 1, 0
    %v7015 = vsel %vm6503, 1, 0
    %v7016 = vsel %vm6504, 1, 0
    %v7017 = vsel %vm6505, 1, 0
    %v7018 = vsel %vm6506, 1, 0
    %v7019 = vsel %vm6507, 1, 0
    %v7020 = vsel %vm6508, 1, 0
    %v7021 = vsel %vm6509, 1, 0
    %v7022 = vsel %vm6510, 1, 0
    %v7023 = vsel %vm6511, 1, 0
    %v7024 = vsel %vm6512, 1, 0
    %v7025 = vsel %vm6513, 1, 0
    %v7026 = vsel %vm6514, 1, 0
    %v7027 = vsel %vm6515, 1, 0
    %v7028 = vsel %vm6516, 1, 0
    %v7029 = vsel %vm6517, 1, 0
    %v7030 = vsel %vm6518, 1, 0
    %v7031 = vsel %vm6519, 1, 0
    %v7032 = vsel %vm6520, 1, 0
    %v7033 = vsel %vm6521, 1, 0
    %v7034 = vsel %vm6522, 1, 0
    %v7035 = vsel %vm6523, 1, 0
    %v7036 = vsel %vm6524, 1, 0
    %v7037 = vsel %vm6525, 1, 0
    %v7038 = vsel %vm6526, 1, 0
    %v7039 = vsel %vm6527, 1, 0
    %v7040 = vsel %vm6528, 1, 0
    %v7041 = vsel %vm6529, 1, 0
    %v7042 = vsel %vm6530, 1, 0
    %v7043 = vsel %vm6531, 1, 0
    %v7044 = vsel %vm6532, 1, 0
    %v7045 = vsel %vm6533, 1, 0
    %v7046 = vsel %vm6534, 1, 0
    %v7047 = vsel %vm6535, 1, 0
    %v7048 = vsel %vm6536, 1, 0
    %v7049 = vsel %vm6537, 1, 0
    %v7050 = vsel %vm6538, 1, 0
    %v7051 = vsel %vm6539, 1, 0
    %v7052 = vsel %vm6540, 1, 0
    %v7053 = vsel %vm6541, 1, 0
    %v7054 = vsel %vm6542, 1, 0
    %v7055 = vsel %vm6543, 1, 0
    %v7056 = vsel %vm6544, 1, 0
    %v7057 = vsel %vm6545, 1, 0
    %v7058 = vsel %vm6546, 1, 0
    %v7059 = vsel %vm6547, 1, 0
    %v7060 = vsel %vm6548, 1, 0
    %v7061 = vsel %vm6549, 1, 0
    %v7062 = vsel %vm6550, 1, 0
    %v7063 = vsel %vm6551, 1, 0
    %v7064 = vsel %vm6552, 1, 0
    %v7065 = vsel %vm6553, 1, 0
    %v7066 = vsel %vm6554, 1, 0
    %v7067 = vsel %vm6555, 1, 0
    %v7068 = vsel %vm6556, 1, 0
    %v7069 = vsel %vm6557, 1, 0
    %v7070 = vsel %vm6558, 1, 0
    %v7071 = vsel %vm6559, 1, 0
    %v7072 = vsel %vm6560, 1, 0
    %v7073 = vsel %vm6561, 1, 0
    %v7074 = vsel %vm6562, 1, 0
    %v7075 = vsel %vm6563, 1, 0
    %v7076 = vsel %vm6564, 1, 0
    %v7077 = vsel %vm6565, 1, 0
    %v7078 = vsel %vm6566, 1, 0
    %v7079 = vsel %vm6567, 1, 0
    %v7080 = vsel %vm6568, 1, 0
    %v7081 = vsel %vm6569, 1, 0
    %v7082 = vsel %vm6570, 1, 0
    %v7083 = vsel %vm6571, 1, 0
    %v7084 = vsel %vm6572, 1, 0
    %v7085 = vsel %vm6573, 1, 0
    %v7086 = vsel %vm6574, 1, 0
    %v7087 = vsel %vm6575, 1, 0
    %v7088 = vsel %vm6576, 1, 0
    %v7089 = vsel %vm6577, 1, 0
    %v7090 = vsel %vm6578, 1, 0
    %v7091 = vsel %vm6579, 1, 0
    %v7092 = vsel %vm6580, 1, 0
    %v7093 = vsel %vm6581, 1, 0
    %v7094 = vsel %vm6582, 1, 0
    %v7095 = vsel %vm6583, 1, 0
    %v7096 = vsel %vm6584, 1, 0
    %v7097 = vsel %vm6585, 1, 0
    %v7098 = vsel %vm6586, 1, 0
    %v7099 = vsel %vm6587, 1, 0
    %v7100 = vsel %vm6588, 1, 0
    %v7101 = vsel %vm6589, 1, 0
    %v7102 = vsel %vm6590, 1, 0
    %v7103 = vsel %vm6591, 1, 0
    %v7104 = vsel %vm6592, 1, 0
    %v7105 = vsel %vm6593, 1, 0
    %v7106 = vsel %vm6594, 1, 0
    %v7107 = vsel %vm6595, 1, 0
    %v7108 = vsel %vm6596, 1, 0
    %v7109 = vsel %vm6597, 1, 0
    %v7110 = vsel %vm6598, 1, 0
    %v7111 = vsel %vm6599, 1, 0
    %v7112 = vsel %vm6600, 1, 0
    %v7113 = vsel %vm6601, 1, 0
    %v7114 = vsel %vm6602, 1, 0
    %v7115 = vsel %vm6603, 1, 0
    %v7116 = vsel %vm6604, 1, 0
    %v7117 = vsel %vm6605, 1, 0
    %v7118 = vsel %vm6606, 1, 0
    %v7119 = vsel %vm6607, 1, 0
    %v7120 = vsel %vm6608, 1, 0
    %v7121 = vsel %vm6609, 1, 0
    %v7122 = vsel %vm6610, 1, 0
    %v7123 = vsel %vm6611, 1, 0
    %v7124 = vsel %vm6612, 1, 0
    %v7125 = vsel %vm6613, 1, 0
    %v7126 = vsel %vm6614, 1, 0
    %v7127 = vsel %vm6615, 1, 0
    %v7128 = vsel %vm6616, 1, 0
    %v7129 = vsel %vm6617, 1, 0
    %v7130 = vsel %vm6618, 1, 0
    %v7131 = vcvt.s32.f32 %v6619
    %v7132 = vcvt.s32.f32 %v6620
    %v7133 = vcvt.s32.f32 %v6621
    %v7134 = vcvt.s32.f32 %v6622
    %v7135 = vcvt.s32.f32 %v6623
    %v7136 = vcvt.s32.f32 %v6624
    %v7137 = vcvt.s32.f32 %v6625
    %v7138 = vcvt.s32.f32 %v6626
    %v7139 = vcvt.s32.f32 %v6627
    %v7140 = vcvt.s32.f32 %v6628
    %v7141 = vcvt.s32.f32 %v6629
    %v7142 = vcvt.s32.f32 %v6630
    %v7143 = vcvt.s32.f32 %v6631
    %v7144 = vcvt.s32.f32 %v6632
    %v7145 = vcvt.s32.f32 %v6633
    %v7146 = vcvt.s32.f32 %v6634
    %v7147 = vcvt.s32.f32 %v6635
    %v7148 = vcvt.s32.f32 %v6636
    %v7149 = vcvt.s32.f32 %v6637
    %v7150 = vcvt.s32.f32 %v6638
    %v7151 = vcvt.s32.f32 %v6639
    %v7152 = vcvt.s32.f32 %v6640
    %v7153 = vcvt.s32.f32 %v6641
    %v7154 = vcvt.s32.f32 %v6642
    %v7155 = vcvt.s32.f32 %v6643
    %v7156 = vcvt.s32.f32 %v6644
    %v7157 = vcvt.s32.f32 %v6645
    %v7158 = vcvt.s32.f32 %v6646
    %v7159 = vcvt.s32.f32 %v6647
    %v7160 = vcvt.s32.f32 %v6648
    %v7161 = vcvt.s32.f32 %v6649
    %v7162 = vcvt.s32.f32 %v6650
    %v7163 = vcvt.s32.f32 %v6651
    %v7164 = vcvt.s32.f32 %v6652
    %v7165 = vcvt.s32.f32 %v6653
    %v7166 = vcvt.s32.f32 %v6654
    %v7167 = vcvt.s32.f32 %v6655
    %v7168 = vcvt.s32.f32 %v6656
    %v7169 = vcvt.s32.f32 %v6657
    %v7170 = vcvt.s32.f32 %v6658
    %v7171 = vcvt.s32.f32 %v6659
    %v7172 = vcvt.s32.f32 %v6660
    %v7173 = vcvt.s32.f32 %v6661
    %v7174 = vcvt.s32.f32 %v6662
    %v7175 = vcvt.s32.f32 %v6663
    %v7176 = vcvt.s32.f32 %v6664
    %v7177 = vcvt.s32.f32 %v6665
    %v7178 = vcvt.s32.f32 %v6666
    %v7179 = vcvt.s32.f32 %v6667
    %v7180 = vcvt.s32.f32 %v6668
    %v7181 = vcvt.s32.f32 %v6669
    %v7182 = vcvt.s32.f32 %v6670
    %v7183 = vcvt.s32.f32 %v6671
    %v7184 = vcvt.s32.f32 %v6672
    %v7185 = vcvt.s32.f32 %v6673
    %v7186 = vcvt.s32.f32 %v6674
    %v7187 = vcvt.s32.f32 %v6675
    %v7188 = vcvt.s32.f32 %v6676
    %v7189 = vcvt.s32.f32 %v6677
    %v7190 = vcvt.s32.f32 %v6678
    %v7191 = vcvt.s32.f32 %v6679
    %v7192 = vcvt.s32.f32 %v6680
    %v7193 = vcvt.s32.f32 %v6681
    %v7194 = vcvt.s32.f32 %v6682
    %v7195 = vcvt.s32.f32 %v6683
    %v7196 = vcvt.s32.f32 %v6684
    %v7197 = vcvt.s32.f32 %v6685
    %v7198 = vcvt.s32.f32 %v6686
    %v7199 = vcvt.s32.f32 %v6687
    %v7200 = vcvt.s32.f32 %v6688
    %v7201 = vcvt.s32.f32 %v6689
    %v7202 = vcvt.s32.f32 %v6690
    %v7203 = vcvt.s32.f32 %v6691
    %v7204 = vcvt.s32.f32 %v6692
    %v7205 = vcvt.s32.f32 %v6693
    %v7206 = vcvt.s32.f32 %v6694
    %v7207 = vcvt.s32.f32 %v6695
    %v7208 = vcvt.s32.f32 %v6696
    %v7209 = vcvt.s32.f32 %v6697
    %v7210 = vcvt.s32.f32 %v6698
    %v7211 = vcvt.s32.f32 %v6699
    %v7212 = vcvt.s32.f32 %v6700
    %v7213 = vcvt.s32.f32 %v6701
    %v7214 = vcvt.s32.f32 %v6702
    %v7215 = vcvt.s32.f32 %v6703
    %v7216 = vcvt.s32.f32 %v6704
    %v7217 = vcvt.s32.f32 %v6705
    %v7218 = vcvt.s32.f32 %v6706
    %v7219 = vcvt.s32.f32 %v6707
    %v7220 = vcvt.s32.f32 %v6708
    %v7221 = vcvt.s32.f32 %v6709
    %v7222 = vcvt.s32.f32 %v6710
    %v7223 = vcvt.s32.f32 %v6711
    %v7224 = vcvt.s32.f32 %v6712
    %v7225 = vcvt.s32.f32 %v6713
    %v7226 = vcvt.s32.f32 %v6714
    %v7227 = vcvt.s32.f32 %v6715
    %v7228 = vcvt.s32.f32 %v6716
    %v7229 = vcvt.s32.f32 %v6717
    %v7230 = vcvt.s32.f32 %v6718
    %v7231 = vcvt.s32.f32 %v6719
    %v7232 = vcvt.s32.f32 %v6720
    %v7233 = vcvt.s32.f32 %v6721
    %v7234 = vcvt.s32.f32 %v6722
    %v7235 = vcvt.s32.f32 %v6723
    %v7236 = vcvt.s32.f32 %v6724
    %v7237 = vcvt.s32.f32 %v6725
    %v7238 = vcvt.s32.f32 %v6726
    %v7239 = vcvt.s32.f32 %v6727
    %v7240 = vcvt.s32.f32 %v6728
    %v7241 = vcvt.s32.f32 %v6729
    %v7242 = vcvt.s32.f32 %v6730
    %v7243 = vcvt.s32.f32 %v6731
    %v7244 = vcvt.s32.f32 %v6732
    %v7245 = vcvt.s32.f32 %v6733
    %v7246 = vcvt.s32.f32 %v6734
    %v7247 = vcvt.s32.f32 %v6735
    %v7248 = vcvt.s32.f32 %v6736
    %v7249 = vcvt.s32.f32 %v6737
    %v7250 = vcvt.s32.f32 %v6738
    %v7251 = vcvt.s32.f32 %v6739
    %v7252 = vcvt.s32.f32 %v6740
    %v7253 = vcvt.s32.f32 %v6741
    %v7254 = vcvt.s32.f32 %v6742
    %v7255 = vcvt.s32.f32 %v6743
    %v7256 = vcvt.s32.f32 %v6744
    %v7257 = vcvt.s32.f32 %v6745
    %v7258 = vcvt.s32.f32 %v6746
    %v7259 = vcvt.s32.f32 %v6747
    %v7260 = vcvt.s32.f32 %v6748
    %v7261 = vcvt.s32.f32 %v6749
    %v7262 = vcvt.s32.f32 %v6750
    %v7263 = vcvt.s32.f32 %v6751
    %v7264 = vcvt.s32.f32 %v6752
    %v7265 = vcvt.s32.f32 %v6753
    %v7266 = vcvt.s32.f32 %v6754
    %v7267 = vcvt.s32.f32 %v6755
    %v7268 = vcvt.s32.f32 %v6756
    %v7269 = vcvt.s32.f32 %v6757
    %v7270 = vcvt.s32.f32 %v6758
    %v7271 = vcvt.s32.f32 %v6759
    %v7272 = vcvt.s32.f32 %v6760
    %v7273 = vcvt.s32.f32 %v6761
    %v7274 = vcvt.s32.f32 %v6762
    %v7275 = vcvt.s32.f32 %v6763
    %v7276 = vcvt.s32.f32 %v6764
    %v7277 = vcvt.s32.f32 %v6765
    %v7278 = vcvt.s32.f32 %v6766
    %v7279 = vcvt.s32.f32 %v6767
    %v7280 = vcvt.s32.f32 %v6768
    %v7281 = vcvt.s32.f32 %v6769
    %v7282 = vcvt.s32.f32 %v6770
    %v7283 = vcvt.s32.f32 %v6771
    %v7284 = vcvt.s32.f32 %v6772
    %v7285 = vcvt.s32.f32 %v6773
    %v7286 = vcvt.s32.f32 %v6774
    %v7287 = vcvt.s32.f32 %v6775
    %v7288 = vcvt.s32.f32 %v6776
    %v7289 = vcvt.s32.f32 %v6777
    %v7290 = vcvt.s32.f32 %v6778
    %v7291 = vcvt.s32.f32 %v6779
    %v7292 = vcvt.s32.f32 %v6780
    %v7293 = vcvt.s32.f32 %v6781
    %v7294 = vcvt.s32.f32 %v6782
    %v7295 = vcvt.s32.f32 %v6783
    %v7296 = vcvt.s32.f32 %v6784
    %v7297 = vcvt.s32.f32 %v6785
    %v7298 = vcvt.s32.f32 %v6786
    %v7299 = vcvt.s32.f32 %v6787
    %v7300 = vcvt.s32.f32 %v6788
    %v7301 = vcvt.s32.f32 %v6789
    %v7302 = vcvt.s32.f32 %v6790
    %v7303 = vcvt.s32.f32 %v6791
    %v7304 = vcvt.s32.f32 %v6792
    %v7305 = vcvt.s32.f32 %v6793
    %v7306 = vcvt.s32.f32 %v6794
    %v7307 = vcvt.s32.f32 %v6795
    %v7308 = vcvt.s32.f32 %v6796
    %v7309 = vcvt.s32.f32 %v6797
    %v7310 = vcvt.s32.f32 %v6798
    %v7311 = vcvt.s32.f32 %v6799
    %v7312 = vcvt.s32.f32 %v6800
    %v7313 = vcvt.s32.f32 %v6801
    %v7314 = vcvt.s32.f32 %v6802
    %v7315 = vcvt.s32.f32 %v6803
    %v7316 = vcvt.s32.f32 %v6804
    %v7317 = vcvt.s32.f32 %v6805
    %v7318 = vcvt.s32.f32 %v6806
    %v7319 = vcvt.s32.f32 %v6807
    %v7320 = vcvt.s32.f32 %v6808
    %v7321 = vcvt.s32.f32 %v6809
    %v7322 = vcvt.s32.f32 %v6810
    %v7323 = vcvt.s32.f32 %v6811
    %v7324 = vcvt.s32.f32 %v6812
    %v7325 = vcvt.s32.f32 %v6813
    %v7326 = vcvt.s32.f32 %v6814
    %v7327 = vcvt.s32.f32 %v6815
    %v7328 = vcvt.s32.f32 %v6816
    %v7329 = vcvt.s32.f32 %v6817
    %v7330 = vcvt.s32.f32 %v6818
    %v7331 = vcvt.s32.f32 %v6819
    %v7332 = vcvt.s32.f32 %v6820
    %v7333 = vcvt.s32.f32 %v6821
    %v7334 = vcvt.s32.f32 %v6822
    %v7335 = vcvt.s32.f32 %v6823
    %v7336 = vcvt.s32.f32 %v6824
    %v7337 = vcvt.s32.f32 %v6825
    %v7338 = vcvt.s32.f32 %v6826
    %v7339 = vcvt.s32.f32 %v6827
    %v7340 = vcvt.s32.f32 %v6828
    %v7341 = vcvt.s32.f32 %v6829
    %v7342 = vcvt.s32.f32 %v6830
    %v7343 = vcvt.s32.f32 %v6831
    %v7344 = vcvt.s32.f32 %v6832
    %v7345 = vcvt.s32.f32 %v6833
    %v7346 = vcvt.s32.f32 %v6834
    %v7347 = vcvt.s32.f32 %v6835
    %v7348 = vcvt.s32.f32 %v6836
    %v7349 = vcvt.s32.f32 %v6837
    %v7350 = vcvt.s32.f32 %v6838
    %v7351 = vcvt.s32.f32 %v6839
    %v7352 = vcvt.s32.f32 %v6840
    %v7353 = vcvt.s32.f32 %v6841
    %v7354 = vcvt.s32.f32 %v6842
    %v7355 = vcvt.s32.f32 %v6843
    %v7356 = vcvt.s32.f32 %v6844
    %v7357 = vcvt.s32.f32 %v6845
    %v7358 = vcvt.s32.f32 %v6846
    %v7359 = vcvt.s32.f32 %v6847
    %v7360 = vcvt.s32.f32 %v6848
    %v7361 = vcvt.s32.f32 %v6849
    %v7362 = vcvt.s32.f32 %v6850
    %v7363 = vcvt.s32.f32 %v6851
    %v7364 = vcvt.s32.f32 %v6852
    %v7365 = vcvt.s32.f32 %v6853
    %v7366 = vcvt.s32.f32 %v6854
    %v7367 = vcvt.s32.f32 %v6855
    %v7368 = vcvt.s32.f32 %v6856
    %v7369 = vcvt.s32.f32 %v6857
    %v7370 = vcvt.s32.f32 %v6858
    %v7371 = vcvt.s32.f32 %v6859
    %v7372 = vcvt.s32.f32 %v6860
    %v7373 = vcvt.s32.f32 %v6861
    %v7374 = vcvt.s32.f32 %v6862
    %v7375 = vcvt.s32.f32 %v6863
    %v7376 = vcvt.s32.f32 %v6864
    %v7377 = vcvt.s32.f32 %v6865
    %v7378 = vcvt.s32.f32 %v6866
    %v7379 = vcvt.s32.f32 %v6867
    %v7380 = vcvt.s32.f32 %v6868
    %v7381 = vcvt.s32.f32 %v6869
    %v7382 = vcvt.s32.f32 %v6870
    %v7383 = vcvt.s32.f32 %v6871
    %v7384 = vcvt.s32.f32 %v6872
    %v7385 = vcvt.s32.f32 %v6873
    %v7386 = vcvt.s32.f32 %v6874
    %v7387 = vcvt.s32.f32 %v6875
    %v7388 = vcvt.s32.f32 %v6876
    %v7389 = vcvt.s32.f32 %v6877
    %v7390 = vcvt.s32.f32 %v6878
    %v7391 = vcvt.s32.f32 %v6879
    %v7392 = vcvt.s32.f32 %v6880
    %v7393 = vcvt.s32.f32 %v6881
    %v7394 = vcvt.s32.f32 %v6882
    %v7395 = vcvt.s32.f32 %v6883
    %v7396 = vcvt.s32.f32 %v6884
    %v7397 = vcvt.s32.f32 %v6885
    %v7398 = vcvt.s32.f32 %v6886
    %v7399 = vcvt.s32.f32 %v6887
    %v7400 = vcvt.s32.f32 %v6888
    %v7401 = vcvt.s32.f32 %v6889
    %v7402 = vcvt.s32.f32 %v6890
    %v7403 = vcvt.s32.f32 %v6891
    %v7404 = vcvt.s32.f32 %v6892
    %v7405 = vcvt.s32.f32 %v6893
    %v7406 = vcvt.s32.f32 %v6894
    %v7407 = vcvt.s32.f32 %v6895
    %v7408 = vcvt.s32.f32 %v6896
    %v7409 = vcvt.s32.f32 %v6897
    %v7410 = vcvt.s32.f32 %v6898
    %v7411 = vcvt.s32.f32 %v6899
    %v7412 = vcvt.s32.f32 %v6900
    %v7413 = vcvt.s32.f32 %v6901
    %v7414 = vcvt.s32.f32 %v6902
    %v7415 = vcvt.s32.f32 %v6903
    %v7416 = vcvt.s32.f32 %v6904
    %v7417 = vcvt.s32.f32 %v6905
    %v7418 = vcvt.s32.f32 %v6906
    %v7419 = vcvt.s32.f32 %v6907
    %v7420 = vcvt.s32.f32 %v6908
    %v7421 = vcvt.s32.f32 %v6909
    %v7422 = vcvt.s32.f32 %v6910
    %v7423 = vcvt.s32.f32 %v6911
    %v7424 = vcvt.s32.f32 %v6912
    %v7425 = vcvt.s32.f32 %v6913
    %v7426 = vcvt.s32.f32 %v6914
    %v7427 = vcvt.s32.f32 %v6915
    %v7428 = vcvt.s32.f32 %v6916
    %v7429 = vcvt.s32.f32 %v6917
    %v7430 = vcvt.s32.f32 %v6918
    %v7431 = vcvt.s32.f32 %v6919
    %v7432 = vcvt.s32.f32 %v6920
    %v7433 = vcvt.s32.f32 %v6921
    %v7434 = vcvt.s32.f32 %v6922
    %v7435 = vcvt.s32.f32 %v6923
    %v7436 = vcvt.s32.f32 %v6924
    %v7437 = vcvt.s32.f32 %v6925
    %v7438 = vcvt.s32.f32 %v6926
    %v7439 = vcvt.s32.f32 %v6927
    %v7440 = vcvt.s32.f32 %v6928
    %v7441 = vcvt.s32.f32 %v6929
    %v7442 = vcvt.s32.f32 %v6930
    %v7443 = vcvt.s32.f32 %v6931
    %v7444 = vcvt.s32.f32 %v6932
    %v7445 = vcvt.s32.f32 %v6933
    %v7446 = vcvt.s32.f32 %v6934
    %v7447 = vcvt.s32.f32 %v6935
    %v7448 = vcvt.s32.f32 %v6936
    %v7449 = vcvt.s32.f32 %v6937
    %v7450 = vcvt.s32.f32 %v6938
    %v7451 = vcvt.s32.f32 %v6939
    %v7452 = vcvt.s32.f32 %v6940
    %v7453 = vcvt.s32.f32 %v6941
    %v7454 = vcvt.s32.f32 %v6942
    %v7455 = vcvt.s32.f32 %v6943
    %v7456 = vcvt.s32.f32 %v6944
    %v7457 = vcvt.s32.f32 %v6945
    %v7458 = vcvt.s32.f32 %v6946
    %v7459 = vcvt.s32.f32 %v6947
    %v7460 = vcvt.s32.f32 %v6948
    %v7461 = vcvt.s32.f32 %v6949
    %v7462 = vcvt.s32.f32 %v6950
    %v7463 = vcvt.s32.f32 %v6951
    %v7464 = vcvt.s32.f32 %v6952
    %v7465 = vcvt.s32.f32 %v6953
    %v7466 = vcvt.s32.f32 %v6954
    %v7467 = vcvt.s32.f32 %v6955
    %v7468 = vcvt.s32.f32 %v6956
    %v7469 = vcvt.s32.f32 %v6957
    %v7470 = vcvt.s32.f32 %v6958
    %v7471 = vcvt.s32.f32 %v6959
    %v7472 = vcvt.s32.f32 %v6960
    %v7473 = vcvt.s32.f32 %v6961
    %v7474 = vcvt.s32.f32 %v6962
    %v7475 = vcvt.s32.f32 %v6963
    %v7476 = vcvt.s32.f32 %v6964
    %v7477 = vcvt.s32.f32 %v6965
    %v7478 = vcvt.s32.f32 %v6966
    %v7479 = vcvt.s32.f32 %v6967
    %v7480 = vcvt.s32.f32 %v6968
    %v7481 = vcvt.s32.f32 %v6969
    %v7482 = vcvt.s32.f32 %v6970
    %v7483 = vcvt.s32.f32 %v6971
    %v7484 = vcvt.s32.f32 %v6972
    %v7485 = vcvt.s32.f32 %v6973
    %v7486 = vcvt.s32.f32 %v6974
    %v7487 = vcvt.s32.f32 %v6975
    %v7488 = vcvt.s32.f32 %v6976
    %v7489 = vcvt.s32.f32 %v6977
    %v7490 = vcvt.s32.f32 %v6978
    %v7491 = vcvt.s32.f32 %v6979
    %v7492 = vcvt.s32.f32 %v6980
    %v7493 = vcvt.s32.f32 %v6981
    %v7494 = vcvt.s32.f32 %v6982
    %v7495 = vcvt.s32.f32 %v6983
    %v7496 = vcvt.s32.f32 %v6984
    %v7497 = vcvt.s32.f32 %v6985
    %v7498 = vcvt.s32.f32 %v6986
    %v7499 = vcvt.s32.f32 %v6987
    %v7500 = vcvt.s32.f32 %v6988
    %v7501 = vcvt.s32.f32 %v6989
    %v7502 = vcvt.s32.f32 %v6990
    %v7503 = vcvt.s32.f32 %v6991
    %v7504 = vcvt.s32.f32 %v6992
    %v7505 = vcvt.s32.f32 %v6993
    %v7506 = vcvt.s32.f32 %v6994
    %v7507 = vcvt.s32.f32 %v6995
    %v7508 = vcvt.s32.f32 %v6996
    %v7509 = vcvt.s32.f32 %v6997
    %v7510 = vcvt.s32.f32 %v6998
    %v7511 = vcvt.s32.f32 %v6999
    %v7512 = vcvt.s32.f32 %v7000
    %v7513 = vcvt.s32.f32 %v7001
    %v7514 = vcvt.s32.f32 %v7002
    %v7515 = vcvt.s32.f32 %v7003
    %v7516 = vcvt.s32.f32 %v7004
    %v7517 = vcvt.s32.f32 %v7005
    %v7518 = vcvt.s32.f32 %v7006
    %v7519 = vcvt.s32.f32 %v7007
    %v7520 = vcvt.s32.f32 %v7008
    %v7521 = vcvt.s32.f32 %v7009
    %v7522 = vcvt.s32.f32 %v7010
    %v7523 = vcvt.s32.f32 %v7011
    %v7524 = vcvt.s32.f32 %v7012
    %v7525 = vcvt.s32.f32 %v7013
    %v7526 = vcvt.s32.f32 %v7014
    %v7527 = vcvt.s32.f32 %v7015
    %v7528 = vcvt.s32.f32 %v7016
    %v7529 = vcvt.s32.f32 %v7017
    %v7530 = vcvt.s32.f32 %v7018
    %v7531 = vcvt.s32.f32 %v7019
    %v7532 = vcvt.s32.f32 %v7020
    %v7533 = vcvt.s32.f32 %v7021
    %v7534 = vcvt.s32.f32 %v7022
    %v7535 = vcvt.s32.f32 %v7023
    %v7536 = vcvt.s32.f32 %v7024
    %v7537 = vcvt.s32.f32 %v7025
    %v7538 = vcvt.s32.f32 %v7026
    %v7539 = vcvt.s32.f32 %v7027
    %v7540 = vcvt.s32.f32 %v7028
    %v7541 = vcvt.s32.f32 %v7029
    %v7542 = vcvt.s32.f32 %v7030
    %v7543 = vcvt.s32.f32 %v7031
    %v7544 = vcvt.s32.f32 %v7032
    %v7545 = vcvt.s32.f32 %v7033
    %v7546 = vcvt.s32.f32 %v7034
    %v7547 = vcvt.s32.f32 %v7035
    %v7548 = vcvt.s32.f32 %v7036
    %v7549 = vcvt.s32.f32 %v7037
    %v7550 = vcvt.s32.f32 %v7038
    %v7551 = vcvt.s32.f32 %v7039
    %v7552 = vcvt.s32.f32 %v7040
    %v7553 = vcvt.s32.f32 %v7041
    %v7554 = vcvt.s32.f32 %v7042
    %v7555 = vcvt.s32.f32 %v7043
    %v7556 = vcvt.s32.f32 %v7044
    %v7557 = vcvt.s32.f32 %v7045
    %v7558 = vcvt.s32.f32 %v7046
    %v7559 = vcvt.s32.f32 %v7047
    %v7560 = vcvt.s32.f32 %v7048
    %v7561 = vcvt.s32.f32 %v7049
    %v7562 = vcvt.s32.f32 %v7050
    %v7563 = vcvt.s32.f32 %v7051
    %v7564 = vcvt.s32.f32 %v7052
    %v7565 = vcvt.s32.f32 %v7053
    %v7566 = vcvt.s32.f32 %v7054
    %v7567 = vcvt.s32.f32 %v7055
    %v7568 = vcvt.s32.f32 %v7056
    %v7569 = vcvt.s32.f32 %v7057
    %v7570 = vcvt.s32.f32 %v7058
    %v7571 = vcvt.s32.f32 %v7059
    %v7572 = vcvt.s32.f32 %v7060
    %v7573 = vcvt.s32.f32 %v7061
    %v7574 = vcvt.s32.f32 %v7062
    %v7575 = vcvt.s32.f32 %v7063
    %v7576 = vcvt.s32.f32 %v7064
    %v7577 = vcvt.s32.f32 %v7065
    %v7578 = vcvt.s32.f32 %v7066
    %v7579 = vcvt.s32.f32 %v7067
    %v7580 = vcvt.s32.f32 %v7068
    %v7581 = vcvt.s32.f32 %v7069
    %v7582 = vcvt.s32.f32 %v7070
    %v7583 = vcvt.s32.f32 %v7071
    %v7584 = vcvt.s32.f32 %v7072
    %v7585 = vcvt.s32.f32 %v7073
    %v7586 = vcvt.s32.f32 %v7074
    %v7587 = vcvt.s32.f32 %v7075
    %v7588 = vcvt.s32.f32 %v7076
    %v7589 = vcvt.s32.f32 %v7077
    %v7590 = vcvt.s32.f32 %v7078
    %v7591 = vcvt.s32.f32 %v7079
    %v7592 = vcvt.s32.f32 %v7080
    %v7593 = vcvt.s32.f32 %v7081
    %v7594 = vcvt.s32.f32 %v7082
    %v7595 = vcvt.s32.f32 %v7083
    %v7596 = vcvt.s32.f32 %v7084
    %v7597 = vcvt.s32.f32 %v7085
    %v7598 = vcvt.s32.f32 %v7086
    %v7599 = vcvt.s32.f32 %v7087
    %v7600 = vcvt.s32.f32 %v7088
    %v7601 = vcvt.s32.f32 %v7089
    %v7602 = vcvt.s32.f32 %v7090
    %v7603 = vcvt.s32.f32 %v7091
    %v7604 = vcvt.s32.f32 %v7092
    %v7605 = vcvt.s32.f32 %v7093
    %v7606 = vcvt.s32.f32 %v7094
    %v7607 = vcvt.s32.f32 %v7095
    %v7608 = vcvt.s32.f32 %v7096
    %v7609 = vcvt.s32.f32 %v7097
    %v7610 = vcvt.s32.f32 %v7098
    %v7611 = vcvt.s32.f32 %v7099
    %v7612 = vcvt.s32.f32 %v7100
    %v7613 = vcvt.s32.f32 %v7101
    %v7614 = vcvt.s32.f32 %v7102
    %v7615 = vcvt.s32.f32 %v7103
    %v7616 = vcvt.s32.f32 %v7104
    %v7617 = vcvt.s32.f32 %v7105
    %v7618 = vcvt.s32.f32 %v7106
    %v7619 = vcvt.s32.f32 %v7107
    %v7620 = vcvt.s32.f32 %v7108
    %v7621 = vcvt.s32.f32 %v7109
    %v7622 = vcvt.s32.f32 %v7110
    %v7623 = vcvt.s32.f32 %v7111
    %v7624 = vcvt.s32.f32 %v7112
    %v7625 = vcvt.s32.f32 %v7113
    %v7626 = vcvt.s32.f32 %v7114
    %v7627 = vcvt.s32.f32 %v7115
    %v7628 = vcvt.s32.f32 %v7116
    %v7629 = vcvt.s32.f32 %v7117
    %v7630 = vcvt.s32.f32 %v7118
    %v7631 = vcvt.s32.f32 %v7119
    %v7632 = vcvt.s32.f32 %v7120
    %v7633 = vcvt.s32.f32 %v7121
    %v7634 = vcvt.s32.f32 %v7122
    %v7635 = vcvt.s32.f32 %v7123
    %v7636 = vcvt.s32.f32 %v7124
    %v7637 = vcvt.s32.f32 %v7125
    %v7638 = vcvt.s32.f32 %v7126
    %v7639 = vcvt.s32.f32 %v7127
    %v7640 = vcvt.s32.f32 %v7128
    %v7641 = vcvt.s32.f32 %v7129
    %v7642 = vcvt.s32.f32 %v7130
    %7643 = vst [vmem:[#allocation8] sm:$0xff] %v7131
    %7644 = vst [vmem:[#allocation8 + $0x8] sm:$0xff] %v7132
    %7645 = vst [vmem:[#allocation8 + $0x10] sm:$0xff] %v7133
    %7646 = vst [vmem:[#allocation8 + $0x18] sm:$0xff] %v7134
    %7647 = vst [vmem:[#allocation8 + $0x20] sm:$0xff] %v7135
    %7648 = vst [vmem:[#allocation8 + $0x28] sm:$0xff] %v7136
    %7649 = vst [vmem:[#allocation8 + $0x30] sm:$0xff] %v7137
    %7650 = vst [vmem:[#allocation8 + $0x38] sm:$0xff] %v7138
    %7651 = vst [vmem:[#allocation8 + $0x40] sm:$0xff] %v7139
    %7652 = vst [vmem:[#allocation8 + $0x48] sm:$0xff] %v7140
    %7653 = vst [vmem:[#allocation8 + $0x50] sm:$0xff] %v7141
    %7654 = vst [vmem:[#allocation8 + $0x58] sm:$0xff] %v7142
    %7655 = vst [vmem:[#allocation8 + $0x60] sm:$0xff] %v7143
    %7656 = vst [vmem:[#allocation8 + $0x68] sm:$0xff] %v7144
    %7657 = vst [vmem:[#allocation8 + $0x70] sm:$0xff] %v7145
    %7658 = vst [vmem:[#allocation8 + $0x78] sm:$0xff] %v7146
    %7659 = vst [vmem:[#allocation8 + $0x80] sm:$0xff] %v7147
    %7660 = vst [vmem:[#allocation8 + $0x88] sm:$0xff] %v7148
    %7661 = vst [vmem:[#allocation8 + $0x90] sm:$0xff] %v7149
    %7662 = vst [vmem:[#allocation8 + $0x98] sm:$0xff] %v7150
    %7663 = vst [vmem:[#allocation8 + $0xa0] sm:$0xff] %v7151
    %7664 = vst [vmem:[#allocation8 + $0xa8] sm:$0xff] %v7152
    %7665 = vst [vmem:[#allocation8 + $0xb0] sm:$0xff] %v7153
    %7666 = vst [vmem:[#allocation8 + $0xb8] sm:$0xff] %v7154
    %7667 = vst [vmem:[#allocation8 + $0xc0] sm:$0xff] %v7155
    %7668 = vst [vmem:[#allocation8 + $0xc8] sm:$0xff] %v7156
    %7669 = vst [vmem:[#allocation8 + $0xd0] sm:$0xff] %v7157
    %7670 = vst [vmem:[#allocation8 + $0xd8] sm:$0xff] %v7158
    %7671 = vst [vmem:[#allocation8 + $0xe0] sm:$0xff] %v7159
    %7672 = vst [vmem:[#allocation8 + $0xe8] sm:$0xff] %v7160
    %7673 = vst [vmem:[#allocation8 + $0xf0] sm:$0xff] %v7161
    %7674 = vst [vmem:[#allocation8 + $0xf8] sm:$0xff] %v7162
    %7675 = vst [vmem:[#allocation8 + $0x100] sm:$0xff] %v7163
    %7676 = vst [vmem:[#allocation8 + $0x108] sm:$0xff] %v7164
    %7677 = vst [vmem:[#allocation8 + $0x110] sm:$0xff] %v7165
    %7678 = vst [vmem:[#allocation8 + $0x118] sm:$0xff] %v7166
    %7679 = vst [vmem:[#allocation8 + $0x120] sm:$0xff] %v7167
    %7680 = vst [vmem:[#allocation8 + $0x128] sm:$0xff] %v7168
    %7681 = vst [vmem:[#allocation8 + $0x130] sm:$0xff] %v7169
    %7682 = vst [vmem:[#allocation8 + $0x138] sm:$0xff] %v7170
    %7683 = vst [vmem:[#allocation8 + $0x140] sm:$0xff] %v7171
    %7684 = vst [vmem:[#allocation8 + $0x148] sm:$0xff] %v7172
    %7685 = vst [vmem:[#allocation8 + $0x150] sm:$0xff] %v7173
    %7686 = vst [vmem:[#allocation8 + $0x158] sm:$0xff] %v7174
    %7687 = vst [vmem:[#allocation8 + $0x160] sm:$0xff] %v7175
    %7688 = vst [vmem:[#allocation8 + $0x168] sm:$0xff] %v7176
    %7689 = vst [vmem:[#allocation8 + $0x170] sm:$0xff] %v7177
    %7690 = vst [vmem:[#allocation8 + $0x178] sm:$0xff] %v7178
    %7691 = vst [vmem:[#allocation8 + $0x180] sm:$0xff] %v7179
    %7692 = vst [vmem:[#allocation8 + $0x188] sm:$0xff] %v7180
    %7693 = vst [vmem:[#allocation8 + $0x190] sm:$0xff] %v7181
    %7694 = vst [vmem:[#allocation8 + $0x198] sm:$0xff] %v7182
    %7695 = vst [vmem:[#allocation8 + $0x1a0] sm:$0xff] %v7183
    %7696 = vst [vmem:[#allocation8 + $0x1a8] sm:$0xff] %v7184
    %7697 = vst [vmem:[#allocation8 + $0x1b0] sm:$0xff] %v7185
    %7698 = vst [vmem:[#allocation8 + $0x1b8] sm:$0xff] %v7186
    %7699 = vst [vmem:[#allocation8 + $0x1c0] sm:$0xff] %v7187
    %7700 = vst [vmem:[#allocation8 + $0x1c8] sm:$0xff] %v7188
    %7701 = vst [vmem:[#allocation8 + $0x1d0] sm:$0xff] %v7189
    %7702 = vst [vmem:[#allocation8 + $0x1d8] sm:$0xff] %v7190
    %7703 = vst [vmem:[#allocation8 + $0x1e0] sm:$0xff] %v7191
    %7704 = vst [vmem:[#allocation8 + $0x1e8] sm:$0xff] %v7192
    %7705 = vst [vmem:[#allocation8 + $0x1f0] sm:$0xff] %v7193
    %7706 = vst [vmem:[#allocation8 + $0x1f8] sm:$0xff] %v7194
    %7707 = vst [vmem:[#allocation8 + $0x200] sm:$0xff] %v7195
    %7708 = vst [vmem:[#allocation8 + $0x208] sm:$0xff] %v7196
    %7709 = vst [vmem:[#allocation8 + $0x210] sm:$0xff] %v7197
    %7710 = vst [vmem:[#allocation8 + $0x218] sm:$0xff] %v7198
    %7711 = vst [vmem:[#allocation8 + $0x220] sm:$0xff] %v7199
    %7712 = vst [vmem:[#allocation8 + $0x228] sm:$0xff] %v7200
    %7713 = vst [vmem:[#allocation8 + $0x230] sm:$0xff] %v7201
    %7714 = vst [vmem:[#allocation8 + $0x238] sm:$0xff] %v7202
    %7715 = vst [vmem:[#allocation8 + $0x240] sm:$0xff] %v7203
    %7716 = vst [vmem:[#allocation8 + $0x248] sm:$0xff] %v7204
    %7717 = vst [vmem:[#allocation8 + $0x250] sm:$0xff] %v7205
    %7718 = vst [vmem:[#allocation8 + $0x258] sm:$0xff] %v7206
    %7719 = vst [vmem:[#allocation8 + $0x260] sm:$0xff] %v7207
    %7720 = vst [vmem:[#allocation8 + $0x268] sm:$0xff] %v7208
    %7721 = vst [vmem:[#allocation8 + $0x270] sm:$0xff] %v7209
    %7722 = vst [vmem:[#allocation8 + $0x278] sm:$0xff] %v7210
    %7723 = vst [vmem:[#allocation8 + $0x280] sm:$0xff] %v7211
    %7724 = vst [vmem:[#allocation8 + $0x288] sm:$0xff] %v7212
    %7725 = vst [vmem:[#allocation8 + $0x290] sm:$0xff] %v7213
    %7726 = vst [vmem:[#allocation8 + $0x298] sm:$0xff] %v7214
    %7727 = vst [vmem:[#allocation8 + $0x2a0] sm:$0xff] %v7215
    %7728 = vst [vmem:[#allocation8 + $0x2a8] sm:$0xff] %v7216
    %7729 = vst [vmem:[#allocation8 + $0x2b0] sm:$0xff] %v7217
    %7730 = vst [vmem:[#allocation8 + $0x2b8] sm:$0xff] %v7218
    %7731 = vst [vmem:[#allocation8 + $0x2c0] sm:$0xff] %v7219
    %7732 = vst [vmem:[#allocation8 + $0x2c8] sm:$0xff] %v7220
    %7733 = vst [vmem:[#allocation8 + $0x2d0] sm:$0xff] %v7221
    %7734 = vst [vmem:[#allocation8 + $0x2d8] sm:$0xff] %v7222
    %7735 = vst [vmem:[#allocation8 + $0x2e0] sm:$0xff] %v7223
    %7736 = vst [vmem:[#allocation8 + $0x2e8] sm:$0xff] %v7224
    %7737 = vst [vmem:[#allocation8 + $0x2f0] sm:$0xff] %v7225
    %7738 = vst [vmem:[#allocation8 + $0x2f8] sm:$0xff] %v7226
    %7739 = vst [vmem:[#allocation8 + $0x300] sm:$0xff] %v7227
    %7740 = vst [vmem:[#allocation8 + $0x308] sm:$0xff] %v7228
    %7741 = vst [vmem:[#allocation8 + $0x310] sm:$0xff] %v7229
    %7742 = vst [vmem:[#allocation8 + $0x318] sm:$0xff] %v7230
    %7743 = vst [vmem:[#allocation8 + $0x320] sm:$0xff] %v7231
    %7744 = vst [vmem:[#allocation8 + $0x328] sm:$0xff] %v7232
    %7745 = vst [vmem:[#allocation8 + $0x330] sm:$0xff] %v7233
    %7746 = vst [vmem:[#allocation8 + $0x338] sm:$0xff] %v7234
    %7747 = vst [vmem:[#allocation8 + $0x340] sm:$0xff] %v7235
    %7748 = vst [vmem:[#allocation8 + $0x348] sm:$0xff] %v7236
    %7749 = vst [vmem:[#allocation8 + $0x350] sm:$0xff] %v7237
    %7750 = vst [vmem:[#allocation8 + $0x358] sm:$0xff] %v7238
    %7751 = vst [vmem:[#allocation8 + $0x360] sm:$0xff] %v7239
    %7752 = vst [vmem:[#allocation8 + $0x368] sm:$0xff] %v7240
    %7753 = vst [vmem:[#allocation8 + $0x370] sm:$0xff] %v7241
    %7754 = vst [vmem:[#allocation8 + $0x378] sm:$0xff] %v7242
    %7755 = vst [vmem:[#allocation8 + $0x380] sm:$0xff] %v7243
    %7756 = vst [vmem:[#allocation8 + $0x388] sm:$0xff] %v7244
    %7757 = vst [vmem:[#allocation8 + $0x390] sm:$0xff] %v7245
    %7758 = vst [vmem:[#allocation8 + $0x398] sm:$0xff] %v7246
    %7759 = vst [vmem:[#allocation8 + $0x3a0] sm:$0xff] %v7247
    %7760 = vst [vmem:[#allocation8 + $0x3a8] sm:$0xff] %v7248
    %7761 = vst [vmem:[#allocation8 + $0x3b0] sm:$0xff] %v7249
    %7762 = vst [vmem:[#allocation8 + $0x3b8] sm:$0xff] %v7250
    %7763 = vst [vmem:[#allocation8 + $0x3c0] sm:$0xff] %v7251
    %7764 = vst [vmem:[#allocation8 + $0x3c8] sm:$0xff] %v7252
    %7765 = vst [vmem:[#allocation8 + $0x3d0] sm:$0xff] %v7253
    %7766 = vst [vmem:[#allocation8 + $0x3d8] sm:$0xff] %v7254
    %7767 = vst [vmem:[#allocation8 + $0x3e0] sm:$0xff] %v7255
    %7768 = vst [vmem:[#allocation8 + $0x3e8] sm:$0xff] %v7256
    %7769 = vst [vmem:[#allocation8 + $0x3f0] sm:$0xff] %v7257
    %7770 = vst [vmem:[#allocation8 + $0x3f8] sm:$0xff] %v7258
    %7771 = vst [vmem:[#allocation8 + $0x400] sm:$0xff] %v7259
    %7772 = vst [vmem:[#allocation8 + $0x408] sm:$0xff] %v7260
    %7773 = vst [vmem:[#allocation8 + $0x410] sm:$0xff] %v7261
    %7774 = vst [vmem:[#allocation8 + $0x418] sm:$0xff] %v7262
    %7775 = vst [vmem:[#allocation8 + $0x420] sm:$0xff] %v7263
    %7776 = vst [vmem:[#allocation8 + $0x428] sm:$0xff] %v7264
    %7777 = vst [vmem:[#allocation8 + $0x430] sm:$0xff] %v7265
    %7778 = vst [vmem:[#allocation8 + $0x438] sm:$0xff] %v7266
    %7779 = vst [vmem:[#allocation8 + $0x440] sm:$0xff] %v7267
    %7780 = vst [vmem:[#allocation8 + $0x448] sm:$0xff] %v7268
    %7781 = vst [vmem:[#allocation8 + $0x450] sm:$0xff] %v7269
    %7782 = vst [vmem:[#allocation8 + $0x458] sm:$0xff] %v7270
    %7783 = vst [vmem:[#allocation8 + $0x460] sm:$0xff] %v7271
    %7784 = vst [vmem:[#allocation8 + $0x468] sm:$0xff] %v7272
    %7785 = vst [vmem:[#allocation8 + $0x470] sm:$0xff] %v7273
    %7786 = vst [vmem:[#allocation8 + $0x478] sm:$0xff] %v7274
    %7787 = vst [vmem:[#allocation8 + $0x480] sm:$0xff] %v7275
    %7788 = vst [vmem:[#allocation8 + $0x488] sm:$0xff] %v7276
    %7789 = vst [vmem:[#allocation8 + $0x490] sm:$0xff] %v7277
    %7790 = vst [vmem:[#allocation8 + $0x498] sm:$0xff] %v7278
    %7791 = vst [vmem:[#allocation8 + $0x4a0] sm:$0xff] %v7279
    %7792 = vst [vmem:[#allocation8 + $0x4a8] sm:$0xff] %v7280
    %7793 = vst [vmem:[#allocation8 + $0x4b0] sm:$0xff] %v7281
    %7794 = vst [vmem:[#allocation8 + $0x4b8] sm:$0xff] %v7282
    %7795 = vst [vmem:[#allocation8 + $0x4c0] sm:$0xff] %v7283
    %7796 = vst [vmem:[#allocation8 + $0x4c8] sm:$0xff] %v7284
    %7797 = vst [vmem:[#allocation8 + $0x4d0] sm:$0xff] %v7285
    %7798 = vst [vmem:[#allocation8 + $0x4d8] sm:$0xff] %v7286
    %7799 = vst [vmem:[#allocation8 + $0x4e0] sm:$0xff] %v7287
    %7800 = vst [vmem:[#allocation8 + $0x4e8] sm:$0xff] %v7288
    %7801 = vst [vmem:[#allocation8 + $0x4f0] sm:$0xff] %v7289
    %7802 = vst [vmem:[#allocation8 + $0x4f8] sm:$0xff] %v7290
    %7803 = vst [vmem:[#allocation8 + $0x500] sm:$0xff] %v7291
    %7804 = vst [vmem:[#allocation8 + $0x508] sm:$0xff] %v7292
    %7805 = vst [vmem:[#allocation8 + $0x510] sm:$0xff] %v7293
    %7806 = vst [vmem:[#allocation8 + $0x518] sm:$0xff] %v7294
    %7807 = vst [vmem:[#allocation8 + $0x520] sm:$0xff] %v7295
    %7808 = vst [vmem:[#allocation8 + $0x528] sm:$0xff] %v7296
    %7809 = vst [vmem:[#allocation8 + $0x530] sm:$0xff] %v7297
    %7810 = vst [vmem:[#allocation8 + $0x538] sm:$0xff] %v7298
    %7811 = vst [vmem:[#allocation8 + $0x540] sm:$0xff] %v7299
    %7812 = vst [vmem:[#allocation8 + $0x548] sm:$0xff] %v7300
    %7813 = vst [vmem:[#allocation8 + $0x550] sm:$0xff] %v7301
    %7814 = vst [vmem:[#allocation8 + $0x558] sm:$0xff] %v7302
    %7815 = vst [vmem:[#allocation8 + $0x560] sm:$0xff] %v7303
    %7816 = vst [vmem:[#allocation8 + $0x568] sm:$0xff] %v7304
    %7817 = vst [vmem:[#allocation8 + $0x570] sm:$0xff] %v7305
    %7818 = vst [vmem:[#allocation8 + $0x578] sm:$0xff] %v7306
    %7819 = vst [vmem:[#allocation8 + $0x580] sm:$0xff] %v7307
    %7820 = vst [vmem:[#allocation8 + $0x588] sm:$0xff] %v7308
    %7821 = vst [vmem:[#allocation8 + $0x590] sm:$0xff] %v7309
    %7822 = vst [vmem:[#allocation8 + $0x598] sm:$0xff] %v7310
    %7823 = vst [vmem:[#allocation8 + $0x5a0] sm:$0xff] %v7311
    %7824 = vst [vmem:[#allocation8 + $0x5a8] sm:$0xff] %v7312
    %7825 = vst [vmem:[#allocation8 + $0x5b0] sm:$0xff] %v7313
    %7826 = vst [vmem:[#allocation8 + $0x5b8] sm:$0xff] %v7314
    %7827 = vst [vmem:[#allocation8 + $0x5c0] sm:$0xff] %v7315
    %7828 = vst [vmem:[#allocation8 + $0x5c8] sm:$0xff] %v7316
    %7829 = vst [vmem:[#allocation8 + $0x5d0] sm:$0xff] %v7317
    %7830 = vst [vmem:[#allocation8 + $0x5d8] sm:$0xff] %v7318
    %7831 = vst [vmem:[#allocation8 + $0x5e0] sm:$0xff] %v7319
    %7832 = vst [vmem:[#allocation8 + $0x5e8] sm:$0xff] %v7320
    %7833 = vst [vmem:[#allocation8 + $0x5f0] sm:$0xff] %v7321
    %7834 = vst [vmem:[#allocation8 + $0x5f8] sm:$0xff] %v7322
    %7835 = vst [vmem:[#allocation8 + $0x600] sm:$0xff] %v7323
    %7836 = vst [vmem:[#allocation8 + $0x608] sm:$0xff] %v7324
    %7837 = vst [vmem:[#allocation8 + $0x610] sm:$0xff] %v7325
    %7838 = vst [vmem:[#allocation8 + $0x618] sm:$0xff] %v7326
    %7839 = vst [vmem:[#allocation8 + $0x620] sm:$0xff] %v7327
    %7840 = vst [vmem:[#allocation8 + $0x628] sm:$0xff] %v7328
    %7841 = vst [vmem:[#allocation8 + $0x630] sm:$0xff] %v7329
    %7842 = vst [vmem:[#allocation8 + $0x638] sm:$0xff] %v7330
    %7843 = vst [vmem:[#allocation8 + $0x640] sm:$0xff] %v7331
    %7844 = vst [vmem:[#allocation8 + $0x648] sm:$0xff] %v7332
    %7845 = vst [vmem:[#allocation8 + $0x650] sm:$0xff] %v7333
    %7846 = vst [vmem:[#allocation8 + $0x658] sm:$0xff] %v7334
    %7847 = vst [vmem:[#allocation8 + $0x660] sm:$0xff] %v7335
    %7848 = vst [vmem:[#allocation8 + $0x668] sm:$0xff] %v7336
    %7849 = vst [vmem:[#allocation8 + $0x670] sm:$0xff] %v7337
    %7850 = vst [vmem:[#allocation8 + $0x678] sm:$0xff] %v7338
    %7851 = vst [vmem:[#allocation8 + $0x680] sm:$0xff] %v7339
    %7852 = vst [vmem:[#allocation8 + $0x688] sm:$0xff] %v7340
    %7853 = vst [vmem:[#allocation8 + $0x690] sm:$0xff] %v7341
    %7854 = vst [vmem:[#allocation8 + $0x698] sm:$0xff] %v7342
    %7855 = vst [vmem:[#allocation8 + $0x6a0] sm:$0xff] %v7343
    %7856 = vst [vmem:[#allocation8 + $0x6a8] sm:$0xff] %v7344
    %7857 = vst [vmem:[#allocation8 + $0x6b0] sm:$0xff] %v7345
    %7858 = vst [vmem:[#allocation8 + $0x6b8] sm:$0xff] %v7346
    %7859 = vst [vmem:[#allocation8 + $0x6c0] sm:$0xff] %v7347
    %7860 = vst [vmem:[#allocation8 + $0x6c8] sm:$0xff] %v7348
    %7861 = vst [vmem:[#allocation8 + $0x6d0] sm:$0xff] %v7349
    %7862 = vst [vmem:[#allocation8 + $0x6d8] sm:$0xff] %v7350
    %7863 = vst [vmem:[#allocation8 + $0x6e0] sm:$0xff] %v7351
    %7864 = vst [vmem:[#allocation8 + $0x6e8] sm:$0xff] %v7352
    %7865 = vst [vmem:[#allocation8 + $0x6f0] sm:$0xff] %v7353
    %7866 = vst [vmem:[#allocation8 + $0x6f8] sm:$0xff] %v7354
    %7867 = vst [vmem:[#allocation8 + $0x700] sm:$0xff] %v7355
    %7868 = vst [vmem:[#allocation8 + $0x708] sm:$0xff] %v7356
    %7869 = vst [vmem:[#allocation8 + $0x710] sm:$0xff] %v7357
    %7870 = vst [vmem:[#allocation8 + $0x718] sm:$0xff] %v7358
    %7871 = vst [vmem:[#allocation8 + $0x720] sm:$0xff] %v7359
    %7872 = vst [vmem:[#allocation8 + $0x728] sm:$0xff] %v7360
    %7873 = vst [vmem:[#allocation8 + $0x730] sm:$0xff] %v7361
    %7874 = vst [vmem:[#allocation8 + $0x738] sm:$0xff] %v7362
    %7875 = vst [vmem:[#allocation8 + $0x740] sm:$0xff] %v7363
    %7876 = vst [vmem:[#allocation8 + $0x748] sm:$0xff] %v7364
    %7877 = vst [vmem:[#allocation8 + $0x750] sm:$0xff] %v7365
    %7878 = vst [vmem:[#allocation8 + $0x758] sm:$0xff] %v7366
    %7879 = vst [vmem:[#allocation8 + $0x760] sm:$0xff] %v7367
    %7880 = vst [vmem:[#allocation8 + $0x768] sm:$0xff] %v7368
    %7881 = vst [vmem:[#allocation8 + $0x770] sm:$0xff] %v7369
    %7882 = vst [vmem:[#allocation8 + $0x778] sm:$0xff] %v7370
    %7883 = vst [vmem:[#allocation8 + $0x780] sm:$0xff] %v7371
    %7884 = vst [vmem:[#allocation8 + $0x788] sm:$0xff] %v7372
    %7885 = vst [vmem:[#allocation8 + $0x790] sm:$0xff] %v7373
    %7886 = vst [vmem:[#allocation8 + $0x798] sm:$0xff] %v7374
    %7887 = vst [vmem:[#allocation8 + $0x7a0] sm:$0xff] %v7375
    %7888 = vst [vmem:[#allocation8 + $0x7a8] sm:$0xff] %v7376
    %7889 = vst [vmem:[#allocation8 + $0x7b0] sm:$0xff] %v7377
    %7890 = vst [vmem:[#allocation8 + $0x7b8] sm:$0xff] %v7378
    %7891 = vst [vmem:[#allocation8 + $0x7c0] sm:$0xff] %v7379
    %7892 = vst [vmem:[#allocation8 + $0x7c8] sm:$0xff] %v7380
    %7893 = vst [vmem:[#allocation8 + $0x7d0] sm:$0xff] %v7381
    %7894 = vst [vmem:[#allocation8 + $0x7d8] sm:$0xff] %v7382
    %7895 = vst [vmem:[#allocation8 + $0x7e0] sm:$0xff] %v7383
    %7896 = vst [vmem:[#allocation8 + $0x7e8] sm:$0xff] %v7384
    %7897 = vst [vmem:[#allocation8 + $0x7f0] sm:$0xff] %v7385
    %7898 = vst [vmem:[#allocation8 + $0x7f8] sm:$0xff] %v7386
    %7899 = vst [vmem:[#allocation8 + $0x800] sm:$0xff] %v7387
    %7900 = vst [vmem:[#allocation8 + $0x808] sm:$0xff] %v7388
    %7901 = vst [vmem:[#allocation8 + $0x810] sm:$0xff] %v7389
    %7902 = vst [vmem:[#allocation8 + $0x818] sm:$0xff] %v7390
    %7903 = vst [vmem:[#allocation8 + $0x820] sm:$0xff] %v7391
    %7904 = vst [vmem:[#allocation8 + $0x828] sm:$0xff] %v7392
    %7905 = vst [vmem:[#allocation8 + $0x830] sm:$0xff] %v7393
    %7906 = vst [vmem:[#allocation8 + $0x838] sm:$0xff] %v7394
    %7907 = vst [vmem:[#allocation8 + $0x840] sm:$0xff] %v7395
    %7908 = vst [vmem:[#allocation8 + $0x848] sm:$0xff] %v7396
    %7909 = vst [vmem:[#allocation8 + $0x850] sm:$0xff] %v7397
    %7910 = vst [vmem:[#allocation8 + $0x858] sm:$0xff] %v7398
    %7911 = vst [vmem:[#allocation8 + $0x860] sm:$0xff] %v7399
    %7912 = vst [vmem:[#allocation8 + $0x868] sm:$0xff] %v7400
    %7913 = vst [vmem:[#allocation8 + $0x870] sm:$0xff] %v7401
    %7914 = vst [vmem:[#allocation8 + $0x878] sm:$0xff] %v7402
    %7915 = vst [vmem:[#allocation8 + $0x880] sm:$0xff] %v7403
    %7916 = vst [vmem:[#allocation8 + $0x888] sm:$0xff] %v7404
    %7917 = vst [vmem:[#allocation8 + $0x890] sm:$0xff] %v7405
    %7918 = vst [vmem:[#allocation8 + $0x898] sm:$0xff] %v7406
    %7919 = vst [vmem:[#allocation8 + $0x8a0] sm:$0xff] %v7407
    %7920 = vst [vmem:[#allocation8 + $0x8a8] sm:$0xff] %v7408
    %7921 = vst [vmem:[#allocation8 + $0x8b0] sm:$0xff] %v7409
    %7922 = vst [vmem:[#allocation8 + $0x8b8] sm:$0xff] %v7410
    %7923 = vst [vmem:[#allocation8 + $0x8c0] sm:$0xff] %v7411
    %7924 = vst [vmem:[#allocation8 + $0x8c8] sm:$0xff] %v7412
    %7925 = vst [vmem:[#allocation8 + $0x8d0] sm:$0xff] %v7413
    %7926 = vst [vmem:[#allocation8 + $0x8d8] sm:$0xff] %v7414
    %7927 = vst [vmem:[#allocation8 + $0x8e0] sm:$0xff] %v7415
    %7928 = vst [vmem:[#allocation8 + $0x8e8] sm:$0xff] %v7416
    %7929 = vst [vmem:[#allocation8 + $0x8f0] sm:$0xff] %v7417
    %7930 = vst [vmem:[#allocation8 + $0x8f8] sm:$0xff] %v7418
    %7931 = vst [vmem:[#allocation8 + $0x900] sm:$0xff] %v7419
    %7932 = vst [vmem:[#allocation8 + $0x908] sm:$0xff] %v7420
    %7933 = vst [vmem:[#allocation8 + $0x910] sm:$0xff] %v7421
    %7934 = vst [vmem:[#allocation8 + $0x918] sm:$0xff] %v7422
    %7935 = vst [vmem:[#allocation8 + $0x920] sm:$0xff] %v7423
    %7936 = vst [vmem:[#allocation8 + $0x928] sm:$0xff] %v7424
    %7937 = vst [vmem:[#allocation8 + $0x930] sm:$0xff] %v7425
    %7938 = vst [vmem:[#allocation8 + $0x938] sm:$0xff] %v7426
    %7939 = vst [vmem:[#allocation8 + $0x940] sm:$0xff] %v7427
    %7940 = vst [vmem:[#allocation8 + $0x948] sm:$0xff] %v7428
    %7941 = vst [vmem:[#allocation8 + $0x950] sm:$0xff] %v7429
    %7942 = vst [vmem:[#allocation8 + $0x958] sm:$0xff] %v7430
    %7943 = vst [vmem:[#allocation8 + $0x960] sm:$0xff] %v7431
    %7944 = vst [vmem:[#allocation8 + $0x968] sm:$0xff] %v7432
    %7945 = vst [vmem:[#allocation8 + $0x970] sm:$0xff] %v7433
    %7946 = vst [vmem:[#allocation8 + $0x978] sm:$0xff] %v7434
    %7947 = vst [vmem:[#allocation8 + $0x980] sm:$0xff] %v7435
    %7948 = vst [vmem:[#allocation8 + $0x988] sm:$0xff] %v7436
    %7949 = vst [vmem:[#allocation8 + $0x990] sm:$0xff] %v7437
    %7950 = vst [vmem:[#allocation8 + $0x998] sm:$0xff] %v7438
    %7951 = vst [vmem:[#allocation8 + $0x9a0] sm:$0xff] %v7439
    %7952 = vst [vmem:[#allocation8 + $0x9a8] sm:$0xff] %v7440
    %7953 = vst [vmem:[#allocation8 + $0x9b0] sm:$0xff] %v7441
    %7954 = vst [vmem:[#allocation8 + $0x9b8] sm:$0xff] %v7442
    %7955 = vst [vmem:[#allocation8 + $0x9c0] sm:$0xff] %v7443
    %7956 = vst [vmem:[#allocation8 + $0x9c8] sm:$0xff] %v7444
    %7957 = vst [vmem:[#allocation8 + $0x9d0] sm:$0xff] %v7445
    %7958 = vst [vmem:[#allocation8 + $0x9d8] sm:$0xff] %v7446
    %7959 = vst [vmem:[#allocation8 + $0x9e0] sm:$0xff] %v7447
    %7960 = vst [vmem:[#allocation8 + $0x9e8] sm:$0xff] %v7448
    %7961 = vst [vmem:[#allocation8 + $0x9f0] sm:$0xff] %v7449
    %7962 = vst [vmem:[#allocation8 + $0x9f8] sm:$0xff] %v7450
    %7963 = vst [vmem:[#allocation8 + $0xa00] sm:$0xff] %v7451
    %7964 = vst [vmem:[#allocation8 + $0xa08] sm:$0xff] %v7452
    %7965 = vst [vmem:[#allocation8 + $0xa10] sm:$0xff] %v7453
    %7966 = vst [vmem:[#allocation8 + $0xa18] sm:$0xff] %v7454
    %7967 = vst [vmem:[#allocation8 + $0xa20] sm:$0xff] %v7455
    %7968 = vst [vmem:[#allocation8 + $0xa28] sm:$0xff] %v7456
    %7969 = vst [vmem:[#allocation8 + $0xa30] sm:$0xff] %v7457
    %7970 = vst [vmem:[#allocation8 + $0xa38] sm:$0xff] %v7458
    %7971 = vst [vmem:[#allocation8 + $0xa40] sm:$0xff] %v7459
    %7972 = vst [vmem:[#allocation8 + $0xa48] sm:$0xff] %v7460
    %7973 = vst [vmem:[#allocation8 + $0xa50] sm:$0xff] %v7461
    %7974 = vst [vmem:[#allocation8 + $0xa58] sm:$0xff] %v7462
    %7975 = vst [vmem:[#allocation8 + $0xa60] sm:$0xff] %v7463
    %7976 = vst [vmem:[#allocation8 + $0xa68] sm:$0xff] %v7464
    %7977 = vst [vmem:[#allocation8 + $0xa70] sm:$0xff] %v7465
    %7978 = vst [vmem:[#allocation8 + $0xa78] sm:$0xff] %v7466
    %7979 = vst [vmem:[#allocation8 + $0xa80] sm:$0xff] %v7467
    %7980 = vst [vmem:[#allocation8 + $0xa88] sm:$0xff] %v7468
    %7981 = vst [vmem:[#allocation8 + $0xa90] sm:$0xff] %v7469
    %7982 = vst [vmem:[#allocation8 + $0xa98] sm:$0xff] %v7470
    %7983 = vst [vmem:[#allocation8 + $0xaa0] sm:$0xff] %v7471
    %7984 = vst [vmem:[#allocation8 + $0xaa8] sm:$0xff] %v7472
    %7985 = vst [vmem:[#allocation8 + $0xab0] sm:$0xff] %v7473
    %7986 = vst [vmem:[#allocation8 + $0xab8] sm:$0xff] %v7474
    %7987 = vst [vmem:[#allocation8 + $0xac0] sm:$0xff] %v7475
    %7988 = vst [vmem:[#allocation8 + $0xac8] sm:$0xff] %v7476
    %7989 = vst [vmem:[#allocation8 + $0xad0] sm:$0xff] %v7477
    %7990 = vst [vmem:[#allocation8 + $0xad8] sm:$0xff] %v7478
    %7991 = vst [vmem:[#allocation8 + $0xae0] sm:$0xff] %v7479
    %7992 = vst [vmem:[#allocation8 + $0xae8] sm:$0xff] %v7480
    %7993 = vst [vmem:[#allocation8 + $0xaf0] sm:$0xff] %v7481
    %7994 = vst [vmem:[#allocation8 + $0xaf8] sm:$0xff] %v7482
    %7995 = vst [vmem:[#allocation8 + $0xb00] sm:$0xff] %v7483
    %7996 = vst [vmem:[#allocation8 + $0xb08] sm:$0xff] %v7484
    %7997 = vst [vmem:[#allocation8 + $0xb10] sm:$0xff] %v7485
    %7998 = vst [vmem:[#allocation8 + $0xb18] sm:$0xff] %v7486
    %7999 = vst [vmem:[#allocation8 + $0xb20] sm:$0xff] %v7487
    %8000 = vst [vmem:[#allocation8 + $0xb28] sm:$0xff] %v7488
    %8001 = vst [vmem:[#allocation8 + $0xb30] sm:$0xff] %v7489
    %8002 = vst [vmem:[#allocation8 + $0xb38] sm:$0xff] %v7490
    %8003 = vst [vmem:[#allocation8 + $0xb40] sm:$0xff] %v7491
    %8004 = vst [vmem:[#allocation8 + $0xb48] sm:$0xff] %v7492
    %8005 = vst [vmem:[#allocation8 + $0xb50] sm:$0xff] %v7493
    %8006 = vst [vmem:[#allocation8 + $0xb58] sm:$0xff] %v7494
    %8007 = vst [vmem:[#allocation8 + $0xb60] sm:$0xff] %v7495
    %8008 = vst [vmem:[#allocation8 + $0xb68] sm:$0xff] %v7496
    %8009 = vst [vmem:[#allocation8 + $0xb70] sm:$0xff] %v7497
    %8010 = vst [vmem:[#allocation8 + $0xb78] sm:$0xff] %v7498
    %8011 = vst [vmem:[#allocation8 + $0xb80] sm:$0xff] %v7499
    %8012 = vst [vmem:[#allocation8 + $0xb88] sm:$0xff] %v7500
    %8013 = vst [vmem:[#allocation8 + $0xb90] sm:$0xff] %v7501
    %8014 = vst [vmem:[#allocation8 + $0xb98] sm:$0xff] %v7502
    %8015 = vst [vmem:[#allocation8 + $0xba0] sm:$0xff] %v7503
    %8016 = vst [vmem:[#allocation8 + $0xba8] sm:$0xff] %v7504
    %8017 = vst [vmem:[#allocation8 + $0xbb0] sm:$0xff] %v7505
    %8018 = vst [vmem:[#allocation8 + $0xbb8] sm:$0xff] %v7506
    %8019 = vst [vmem:[#allocation8 + $0xbc0] sm:$0xff] %v7507
    %8020 = vst [vmem:[#allocation8 + $0xbc8] sm:$0xff] %v7508
    %8021 = vst [vmem:[#allocation8 + $0xbd0] sm:$0xff] %v7509
    %8022 = vst [vmem:[#allocation8 + $0xbd8] sm:$0xff] %v7510
    %8023 = vst [vmem:[#allocation8 + $0xbe0] sm:$0xff] %v7511
    %8024 = vst [vmem:[#allocation8 + $0xbe8] sm:$0xff] %v7512
    %8025 = vst [vmem:[#allocation8 + $0xbf0] sm:$0xff] %v7513
    %8026 = vst [vmem:[#allocation8 + $0xbf8] sm:$0xff] %v7514
    %8027 = vst [vmem:[#allocation8 + $0xc00] sm:$0xff] %v7515
    %8028 = vst [vmem:[#allocation8 + $0xc08] sm:$0xff] %v7516
    %8029 = vst [vmem:[#allocation8 + $0xc10] sm:$0xff] %v7517
    %8030 = vst [vmem:[#allocation8 + $0xc18] sm:$0xff] %v7518
    %8031 = vst [vmem:[#allocation8 + $0xc20] sm:$0xff] %v7519
    %8032 = vst [vmem:[#allocation8 + $0xc28] sm:$0xff] %v7520
    %8033 = vst [vmem:[#allocation8 + $0xc30] sm:$0xff] %v7521
    %8034 = vst [vmem:[#allocation8 + $0xc38] sm:$0xff] %v7522
    %8035 = vst [vmem:[#allocation8 + $0xc40] sm:$0xff] %v7523
    %8036 = vst [vmem:[#allocation8 + $0xc48] sm:$0xff] %v7524
    %8037 = vst [vmem:[#allocation8 + $0xc50] sm:$0xff] %v7525
    %8038 = vst [vmem:[#allocation8 + $0xc58] sm:$0xff] %v7526
    %8039 = vst [vmem:[#allocation8 + $0xc60] sm:$0xff] %v7527
    %8040 = vst [vmem:[#allocation8 + $0xc68] sm:$0xff] %v7528
    %8041 = vst [vmem:[#allocation8 + $0xc70] sm:$0xff] %v7529
    %8042 = vst [vmem:[#allocation8 + $0xc78] sm:$0xff] %v7530
    %8043 = vst [vmem:[#allocation8 + $0xc80] sm:$0xff] %v7531
    %8044 = vst [vmem:[#allocation8 + $0xc88] sm:$0xff] %v7532
    %8045 = vst [vmem:[#allocation8 + $0xc90] sm:$0xff] %v7533
    %8046 = vst [vmem:[#allocation8 + $0xc98] sm:$0xff] %v7534
    %8047 = vst [vmem:[#allocation8 + $0xca0] sm:$0xff] %v7535
    %8048 = vst [vmem:[#allocation8 + $0xca8] sm:$0xff] %v7536
    %8049 = vst [vmem:[#allocation8 + $0xcb0] sm:$0xff] %v7537
    %8050 = vst [vmem:[#allocation8 + $0xcb8] sm:$0xff] %v7538
    %8051 = vst [vmem:[#allocation8 + $0xcc0] sm:$0xff] %v7539
    %8052 = vst [vmem:[#allocation8 + $0xcc8] sm:$0xff] %v7540
    %8053 = vst [vmem:[#allocation8 + $0xcd0] sm:$0xff] %v7541
    %8054 = vst [vmem:[#allocation8 + $0xcd8] sm:$0xff] %v7542
    %8055 = vst [vmem:[#allocation8 + $0xce0] sm:$0xff] %v7543
    %8056 = vst [vmem:[#allocation8 + $0xce8] sm:$0xff] %v7544
    %8057 = vst [vmem:[#allocation8 + $0xcf0] sm:$0xff] %v7545
    %8058 = vst [vmem:[#allocation8 + $0xcf8] sm:$0xff] %v7546
    %8059 = vst [vmem:[#allocation8 + $0xd00] sm:$0xff] %v7547
    %8060 = vst [vmem:[#allocation8 + $0xd08] sm:$0xff] %v7548
    %8061 = vst [vmem:[#allocation8 + $0xd10] sm:$0xff] %v7549
    %8062 = vst [vmem:[#allocation8 + $0xd18] sm:$0xff] %v7550
    %8063 = vst [vmem:[#allocation8 + $0xd20] sm:$0xff] %v7551
    %8064 = vst [vmem:[#allocation8 + $0xd28] sm:$0xff] %v7552
    %8065 = vst [vmem:[#allocation8 + $0xd30] sm:$0xff] %v7553
    %8066 = vst [vmem:[#allocation8 + $0xd38] sm:$0xff] %v7554
    %8067 = vst [vmem:[#allocation8 + $0xd40] sm:$0xff] %v7555
    %8068 = vst [vmem:[#allocation8 + $0xd48] sm:$0xff] %v7556
    %8069 = vst [vmem:[#allocation8 + $0xd50] sm:$0xff] %v7557
    %8070 = vst [vmem:[#allocation8 + $0xd58] sm:$0xff] %v7558
    %8071 = vst [vmem:[#allocation8 + $0xd60] sm:$0xff] %v7559
    %8072 = vst [vmem:[#allocation8 + $0xd68] sm:$0xff] %v7560
    %8073 = vst [vmem:[#allocation8 + $0xd70] sm:$0xff] %v7561
    %8074 = vst [vmem:[#allocation8 + $0xd78] sm:$0xff] %v7562
    %8075 = vst [vmem:[#allocation8 + $0xd80] sm:$0xff] %v7563
    %8076 = vst [vmem:[#allocation8 + $0xd88] sm:$0xff] %v7564
    %8077 = vst [vmem:[#allocation8 + $0xd90] sm:$0xff] %v7565
    %8078 = vst [vmem:[#allocation8 + $0xd98] sm:$0xff] %v7566
    %8079 = vst [vmem:[#allocation8 + $0xda0] sm:$0xff] %v7567
    %8080 = vst [vmem:[#allocation8 + $0xda8] sm:$0xff] %v7568
    %8081 = vst [vmem:[#allocation8 + $0xdb0] sm:$0xff] %v7569
    %8082 = vst [vmem:[#allocation8 + $0xdb8] sm:$0xff] %v7570
    %8083 = vst [vmem:[#allocation8 + $0xdc0] sm:$0xff] %v7571
    %8084 = vst [vmem:[#allocation8 + $0xdc8] sm:$0xff] %v7572
    %8085 = vst [vmem:[#allocation8 + $0xdd0] sm:$0xff] %v7573
    %8086 = vst [vmem:[#allocation8 + $0xdd8] sm:$0xff] %v7574
    %8087 = vst [vmem:[#allocation8 + $0xde0] sm:$0xff] %v7575
    %8088 = vst [vmem:[#allocation8 + $0xde8] sm:$0xff] %v7576
    %8089 = vst [vmem:[#allocation8 + $0xdf0] sm:$0xff] %v7577
    %8090 = vst [vmem:[#allocation8 + $0xdf8] sm:$0xff] %v7578
    %8091 = vst [vmem:[#allocation8 + $0xe00] sm:$0xff] %v7579
    %8092 = vst [vmem:[#allocation8 + $0xe08] sm:$0xff] %v7580
    %8093 = vst [vmem:[#allocation8 + $0xe10] sm:$0xff] %v7581
    %8094 = vst [vmem:[#allocation8 + $0xe18] sm:$0xff] %v7582
    %8095 = vst [vmem:[#allocation8 + $0xe20] sm:$0xff] %v7583
    %8096 = vst [vmem:[#allocation8 + $0xe28] sm:$0xff] %v7584
    %8097 = vst [vmem:[#allocation8 + $0xe30] sm:$0xff] %v7585
    %8098 = vst [vmem:[#allocation8 + $0xe38] sm:$0xff] %v7586
    %8099 = vst [vmem:[#allocation8 + $0xe40] sm:$0xff] %v7587
    %8100 = vst [vmem:[#allocation8 + $0xe48] sm:$0xff] %v7588
    %8101 = vst [vmem:[#allocation8 + $0xe50] sm:$0xff] %v7589
    %8102 = vst [vmem:[#allocation8 + $0xe58] sm:$0xff] %v7590
    %8103 = vst [vmem:[#allocation8 + $0xe60] sm:$0xff] %v7591
    %8104 = vst [vmem:[#allocation8 + $0xe68] sm:$0xff] %v7592
    %8105 = vst [vmem:[#allocation8 + $0xe70] sm:$0xff] %v7593
    %8106 = vst [vmem:[#allocation8 + $0xe78] sm:$0xff] %v7594
    %8107 = vst [vmem:[#allocation8 + $0xe80] sm:$0xff] %v7595
    %8108 = vst [vmem:[#allocation8 + $0xe88] sm:$0xff] %v7596
    %8109 = vst [vmem:[#allocation8 + $0xe90] sm:$0xff] %v7597
    %8110 = vst [vmem:[#allocation8 + $0xe98] sm:$0xff] %v7598
    %8111 = vst [vmem:[#allocation8 + $0xea0] sm:$0xff] %v7599
    %8112 = vst [vmem:[#allocation8 + $0xea8] sm:$0xff] %v7600
    %8113 = vst [vmem:[#allocation8 + $0xeb0] sm:$0xff] %v7601
    %8114 = vst [vmem:[#allocation8 + $0xeb8] sm:$0xff] %v7602
    %8115 = vst [vmem:[#allocation8 + $0xec0] sm:$0xff] %v7603
    %8116 = vst [vmem:[#allocation8 + $0xec8] sm:$0xff] %v7604
    %8117 = vst [vmem:[#allocation8 + $0xed0] sm:$0xff] %v7605
    %8118 = vst [vmem:[#allocation8 + $0xed8] sm:$0xff] %v7606
    %8119 = vst [vmem:[#allocation8 + $0xee0] sm:$0xff] %v7607
    %8120 = vst [vmem:[#allocation8 + $0xee8] sm:$0xff] %v7608
    %8121 = vst [vmem:[#allocation8 + $0xef0] sm:$0xff] %v7609
    %8122 = vst [vmem:[#allocation8 + $0xef8] sm:$0xff] %v7610
    %8123 = vst [vmem:[#allocation8 + $0xf00] sm:$0xff] %v7611
    %8124 = vst [vmem:[#allocation8 + $0xf08] sm:$0xff] %v7612
    %8125 = vst [vmem:[#allocation8 + $0xf10] sm:$0xff] %v7613
    %8126 = vst [vmem:[#allocation8 + $0xf18] sm:$0xff] %v7614
    %8127 = vst [vmem:[#allocation8 + $0xf20] sm:$0xff] %v7615
    %8128 = vst [vmem:[#allocation8 + $0xf28] sm:$0xff] %v7616
    %8129 = vst [vmem:[#allocation8 + $0xf30] sm:$0xff] %v7617
    %8130 = vst [vmem:[#allocation8 + $0xf38] sm:$0xff] %v7618
    %8131 = vst [vmem:[#allocation8 + $0xf40] sm:$0xff] %v7619
    %8132 = vst [vmem:[#allocation8 + $0xf48] sm:$0xff] %v7620
    %8133 = vst [vmem:[#allocation8 + $0xf50] sm:$0xff] %v7621
    %8134 = vst [vmem:[#allocation8 + $0xf58] sm:$0xff] %v7622
    %8135 = vst [vmem:[#allocation8 + $0xf60] sm:$0xff] %v7623
    %8136 = vst [vmem:[#allocation8 + $0xf68] sm:$0xff] %v7624
    %8137 = vst [vmem:[#allocation8 + $0xf70] sm:$0xff] %v7625
    %8138 = vst [vmem:[#allocation8 + $0xf78] sm:$0xff] %v7626
    %8139 = vst [vmem:[#allocation8 + $0xf80] sm:$0xff] %v7627
    %8140 = vst [vmem:[#allocation8 + $0xf88] sm:$0xff] %v7628
    %8141 = vst [vmem:[#allocation8 + $0xf90] sm:$0xff] %v7629
    %8142 = vst [vmem:[#allocation8 + $0xf98] sm:$0xff] %v7630
    %8143 = vst [vmem:[#allocation8 + $0xfa0] sm:$0xff] %v7631
    %8144 = vst [vmem:[#allocation8 + $0xfa8] sm:$0xff] %v7632
    %8145 = vst [vmem:[#allocation8 + $0xfb0] sm:$0xff] %v7633
    %8146 = vst [vmem:[#allocation8 + $0xfb8] sm:$0xff] %v7634
    %8147 = vst [vmem:[#allocation8 + $0xfc0] sm:$0xff] %v7635
    %8148 = vst [vmem:[#allocation8 + $0xfc8] sm:$0xff] %v7636
    %8149 = vst [vmem:[#allocation8 + $0xfd0] sm:$0xff] %v7637
    %8150 = vst [vmem:[#allocation8 + $0xfd8] sm:$0xff] %v7638
    %8151 = vst [vmem:[#allocation8 + $0xfe0] sm:$0xff] %v7639
    %8152 = vst [vmem:[#allocation8 + $0xfe8] sm:$0xff] %v7640
    %8153 = vst [vmem:[#allocation8 + $0xff0] sm:$0xff] %v7641
    %8154 = vst [vmem:[#allocation8 + $0xff8] sm:$0xff] %v7642
    %8155 = vmatprep.subr.mxu0 %v7132
    %8156 = vmatpush1.xpose.msra.mxu0 %v7131
    %8157 = vmatprep.subr.mxu0 %v7136
    %8158 = vmatpush1.xpose.msra.mxu0 %v7135
    %8159 = vmatprep.subr.mxu0 %v7140
    %8160 = vmatpush1.xpose.msra.mxu0 %v7139
    %8161 = vmatprep.subr.mxu0 %v7144
    %8162 = vmatpush1.xpose.msra.mxu0 %v7143
    %8163 = vmatprep.subr.mxu0 %v7148
    %8164 = vmatpush1.xpose.msra.mxu0 %v7147
    %8165 = vmatprep.subr.mxu0 %v7152
    %8166 = vmatpush1.xpose.msra.mxu0 %v7151
    %8167 = vmatprep.subr.mxu0 %v7156
    %8168 = vmatpush1.xpose.msra.mxu0 %v7155
    %8169 = vmatprep.subr.mxu0 %v7160
    %8170 = vmatpush1.xpose.msra.mxu0 %v7159
    %8171 = vmatprep.subr.mxu0 %v7164
    %8172 = vmatpush1.xpose.msra.mxu0 %v7163
    %8173 = vmatprep.subr.mxu0 %v7168
    %8174 = vmatpush1.xpose.msra.mxu0 %v7167
    %8175 = vmatprep.subr.mxu0 %v7172
    %8176 = vmatpush1.xpose.msra.mxu0 %v7171
    %8177 = vmatprep.subr.mxu0 %v7176
    %8178 = vmatpush1.xpose.msra.mxu0 %v7175
    %8179 = vmatprep.subr.mxu0 %v7180
    %8180 = vmatpush1.xpose.msra.mxu0 %v7179
    %8181 = vmatprep.subr.mxu0 %v7184
    %8182 = vmatpush1.xpose.msra.mxu0 %v7183
    %8183 = vmatprep.subr.mxu0 %v7188
    %8184 = vmatpush1.xpose.msra.mxu0 %v7187
    %8185 = vmatprep.subr.mxu0 %v7192
    %8186 = vmatpush1.xpose.msra.mxu0 %v7191
    %8187 = vmatprep.subr.mxu0 %v7196
    %8188 = vmatpush1.xpose.msra.mxu0 %v7195
    %8189 = vmatprep.subr.mxu0 %v7200
    %8190 = vmatpush1.xpose.msra.mxu0 %v7199
    %8191 = vmatprep.subr.mxu0 %v7204
    %8192 = vmatpush1.xpose.msra.mxu0 %v7203
    %8193 = vmatprep.subr.mxu0 %v7208
    %8194 = vmatpush1.xpose.msra.mxu0 %v7207
    %8195 = vmatprep.subr.mxu0 %v7212
    %8196 = vmatpush1.xpose.msra.mxu0 %v7211
    %8197 = vmatprep.subr.mxu0 %v7216
    %8198 = vmatpush1.xpose.msra.mxu0 %v7215
    %8199 = vmatprep.subr.mxu0 %v7220
    %8200 = vmatpush1.xpose.msra.mxu0 %v7219
    %8201 = vmatprep.subr.mxu0 %v7224
    %8202 = vmatpush1.xpose.msra.mxu0 %v7223
    %8203 = vmatprep.subr.mxu0 %v7228
    %8204 = vmatpush1.xpose.msra.mxu0 %v7227
    %8205 = vmatprep.subr.mxu0 %v7232
    %8206 = vmatpush1.xpose.msra.mxu0 %v7231
    %8207 = vmatprep.subr.mxu0 %v7236
    %8208 = vmatpush1.xpose.msra.mxu0 %v7235
    %8209 = vmatprep.subr.mxu0 %v7240
    %8210 = vmatpush1.xpose.msra.mxu0 %v7239
    %8211 = vmatprep.subr.mxu0 %v7244
    %8212 = vmatpush1.xpose.msra.mxu0 %v7243
    %8213 = vmatprep.subr.mxu0 %v7248
    %8214 = vmatpush1.xpose.msra.mxu0 %v7247
    %8215 = vmatprep.subr.mxu0 %v7252
    %8216 = vmatpush1.xpose.msra.mxu0 %v7251
    %8217 = vmatprep.subr.mxu0 %v7256
    %8218 = vmatpush1.xpose.msra.mxu0 %v7255
    %8219 = vmatprep.mubr.f32.mxu0 %v820
    %8220 = vmatmul.mubr.f32.gmra.mrb[0].mxu0 %v816
    %v8221 = vpop.f32.mrb[0].mxu0
    %v8222 = vadd.f32 0.0, %v8221
    %v8223 = vpop.f32.mrb[0].mxu0
    %v8224 = vadd.f32 0.0, %v8223
    %8225 = vdwg.mxu0
    %8226 = vmatprep.subr.mxu0 %v7134
    %8227 = vmatpush1.xpose.msra.mxu0 %v7133
    %8228 = vmatprep.subr.mxu0 %v7138
    %8229 = vmatpush1.xpose.msra.mxu0 %v7137
    %8230 = vmatprep.subr.mxu0 %v7142
    %8231 = vmatpush1.xpose.msra.mxu0 %v7141
    %8232 = vmatprep.subr.mxu0 %v7146
    %8233 = vmatpush1.xpose.msra.mxu0 %v7145
    %8234 = vmatprep.subr.mxu0 %v7150
    %8235 = vmatpush1.xpose.msra.mxu0 %v7149
    %8236 = vmatprep.subr.mxu0 %v7154
    %8237 = vmatpush1.xpose.msra.mxu0 %v7153
    %8238 = vmatprep.subr.mxu0 %v7158
    %8239 = vmatpush1.xpose.msra.mxu0 %v7157
    %8240 = vmatprep.subr.mxu0 %v7162
    %8241 = vmatpush1.xpose.msra.mxu0 %v7161
    %8242 = vmatprep.subr.mxu0 %v7166
    %8243 = vmatpush1.xpose.msra.mxu0 %v7165
    %8244 = vmatprep.subr.mxu0 %v7170
    %8245 = vmatpush1.xpose.msra.mxu0 %v7169
    %8246 = vmatprep.subr.mxu0 %v7174
    %8247 = vmatpush1.xpose.msra.mxu0 %v7173
    %8248 = vmatprep.subr.mxu0 %v7178
    %8249 = vmatpush1.xpose.msra.mxu0 %v7177
    %8250 = vmatprep.subr.mxu0 %v7182
    %8251 = vmatpush1.xpose.msra.mxu0 %v7181
    %8252 = vmatprep.subr.mxu0 %v7186
    %8253 = vmatpush1.xpose.msra.mxu0 %v7185
    %8254 = vmatprep.subr.mxu0 %v7190
    %8255 = vmatpush1.xpose.msra.mxu0 %v7189
    %8256 = vmatprep.subr.mxu0 %v7194
    %8257 = vmatpush1.xpose.msra.mxu0 %v7193
    %8258 = vmatprep.subr.mxu0 %v7198
    %8259 = vmatpush1.xpose.msra.mxu0 %v7197
    %8260 = vmatprep.subr.mxu0 %v7202
    %8261 = vmatpush1.xpose.msra.mxu0 %v7201
    %8262 = vmatprep.subr.mxu0 %v7206
    %8263 = vmatpush1.xpose.msra.mxu0 %v7205
    %8264 = vmatprep.subr.mxu0 %v7210
    %8265 = vmatpush1.xpose.msra.mxu0 %v7209
    %8266 = vmatprep.subr.mxu0 %v7214
    %8267 = vmatpush1.xpose.msra.mxu0 %v7213
    %8268 = vmatprep.subr.mxu0 %v7218
    %8269 = vmatpush1.xpose.msra.mxu0 %v7217
    %8270 = vmatprep.subr.mxu0 %v7222
    %8271 = vmatpush1.xpose.msra.mxu0 %v7221
    %8272 = vmatprep.subr.mxu0 %v7226
    %8273 = vmatpush1.xpose.msra.mxu0 %v7225
    %8274 = vmatprep.subr.mxu0 %v7230
    %8275 = vmatpush1.xpose.msra.mxu0 %v7229
    %8276 = vmatprep.subr.mxu0 %v7234
    %8277 = vmatpush1.xpose.msra.mxu0 %v7233
    %8278 = vmatprep.subr.mxu0 %v7238
    %8279 = vmatpush1.xpose.msra.mxu0 %v7237
    %8280 = vmatprep.subr.mxu0 %v7242
    %8281 = vmatpush1.xpose.msra.mxu0 %v7241
    %8282 = vmatprep.subr.mxu0 %v7246
    %8283 = vmatpush1.xpose.msra.mxu0 %v7245
    %8284 = vmatprep.subr.mxu0 %v7250
    %8285 = vmatpush1.xpose.msra.mxu0 %v7249
    %8286 = vmatprep.subr.mxu0 %v7254
    %8287 = vmatpush1.xpose.msra.mxu0 %v7253
    %8288 = vmatprep.subr.mxu0 %v7258
    %8289 = vmatpush1.xpose.msra.mxu0 %v7257
    %8290 = vmatprep.mubr.f32.mxu0 %v828
    %8291 = vmatmul.mubr.f32.gmra.mrb[0].mxu0 %v824
    %v8292 = vpop.f32.mrb[0].mxu0
    %v8293 = vadd.f32 %v8222, %v8292
    %v8294 = vpop.f32.mrb[0].mxu0
    %v8295 = vadd.f32 %v8224, %v8294
    %8296 = vdwg.mxu0
    %8297 = vmatprep.subr.mxu0 %v7260
    %8298 = vmatpush1.xpose.msra.mxu0 %v7259
    %8299 = vmatprep.subr.mxu0 %v7264
    %8300 = vmatpush1.xpose.msra.mxu0 %v7263
    %8301 = vmatprep.subr.mxu0 %v7268
    %8302 = vmatpush1.xpose.msra.mxu0 %v7267
    %8303 = vmatprep.subr.mxu0 %v7272
    %8304 = vmatpush1.xpose.msra.mxu0 %v7271
    %8305 = vmatprep.subr.mxu0 %v7276
    %8306 = vmatpush1.xpose.msra.mxu0 %v7275
    %8307 = vmatprep.subr.mxu0 %v7280
    %8308 = vmatpush1.xpose.msra.mxu0 %v7279
    %8309 = vmatprep.subr.mxu0 %v7284
    %8310 = vmatpush1.xpose.msra.mxu0 %v7283
    %8311 = vmatprep.subr.mxu0 %v7288
    %8312 = vmatpush1.xpose.msra.mxu0 %v7287
    %8313 = vmatprep.subr.mxu0 %v7292
    %8314 = vmatpush1.xpose.msra.mxu0 %v7291
    %8315 = vmatprep.subr.mxu0 %v7296
    %8316 = vmatpush1.xpose.msra.mxu0 %v7295
    %8317 = vmatprep.subr.mxu0 %v7300
    %8318 = vmatpush1.xpose.msra.mxu0 %v7299
    %8319 = vmatprep.subr.mxu0 %v7304
    %8320 = vmatpush1.xpose.msra.mxu0 %v7303
    %8321 = vmatprep.subr.mxu0 %v7308
    %8322 = vmatpush1.xpose.msra.mxu0 %v7307
    %8323 = vmatprep.subr.mxu0 %v7312
    %8324 = vmatpush1.xpose.msra.mxu0 %v7311
    %8325 = vmatprep.subr.mxu0 %v7316
    %8326 = vmatpush1.xpose.msra.mxu0 %v7315
    %8327 = vmatprep.subr.mxu0 %v7320
    %8328 = vmatpush1.xpose.msra.mxu0 %v7319
    %8329 = vmatprep.subr.mxu0 %v7324
    %8330 = vmatpush1.xpose.msra.mxu0 %v7323
    %8331 = vmatprep.subr.mxu0 %v7328
    %8332 = vmatpush1.xpose.msra.mxu0 %v7327
    %8333 = vmatprep.subr.mxu0 %v7332
    %8334 = vmatpush1.xpose.msra.mxu0 %v7331
    %8335 = vmatprep.subr.mxu0 %v7336
    %8336 = vmatpush1.xpose.msra.mxu0 %v7335
    %8337 = vmatprep.subr.mxu0 %v7340
    %8338 = vmatpush1.xpose.msra.mxu0 %v7339
    %8339 = vmatprep.subr.mxu0 %v7344
    %8340 = vmatpush1.xpose.msra.mxu0 %v7343
    %8341 = vmatprep.subr.mxu0 %v7348
    %8342 = vmatpush1.xpose.msra.mxu0 %v7347
    %8343 = vmatprep.subr.mxu0 %v7352
    %8344 = vmatpush1.xpose.msra.mxu0 %v7351
    %8345 = vmatprep.subr.mxu0 %v7356
    %8346 = vmatpush1.xpose.msra.mxu0 %v7355
    %8347 = vmatprep.subr.mxu0 %v7360
    %8348 = vmatpush1.xpose.msra.mxu0 %v7359
    %8349 = vmatprep.subr.mxu0 %v7364
    %8350 = vmatpush1.xpose.msra.mxu0 %v7363
    %8351 = vmatprep.subr.mxu0 %v7368
    %8352 = vmatpush1.xpose.msra.mxu0 %v7367
    %8353 = vmatprep.subr.mxu0 %v7372
    %8354 = vmatpush1.xpose.msra.mxu0 %v7371
    %8355 = vmatprep.subr.mxu0 %v7376
    %8356 = vmatpush1.xpose.msra.mxu0 %v7375
    %8357 = vmatprep.subr.mxu0 %v7380
    %8358 = vmatpush1.xpose.msra.mxu0 %v7379
    %8359 = vmatprep.subr.mxu0 %v7384
    %8360 = vmatpush1.xpose.msra.mxu0 %v7383
    %8361 = vmatprep.mubr.f32.mxu0 %v820
    %8362 = vmatmul.mubr.f32.gmra.mrb[0].mxu0 %v816
    %v8363 = vpop.f32.mrb[0].mxu0
    %v8364 = vadd.f32 0.0, %v8363
    %v8365 = vpop.f32.mrb[0].mxu0
    %v8366 = vadd.f32 0.0, %v8365
    %8367 = vdwg.mxu0
    %8368 = vmatprep.subr.mxu0 %v7262
    %8369 = vmatpush1.xpose.msra.mxu0 %v7261
    %8370 = vmatprep.subr.mxu0 %v7266
    %8371 = vmatpush1.xpose.msra.mxu0 %v7265
    %8372 = vmatprep.subr.mxu0 %v7270
    %8373 = vmatpush1.xpose.msra.mxu0 %v7269
    %8374 = vmatprep.subr.mxu0 %v7274
    %8375 = vmatpush1.xpose.msra.mxu0 %v7273
    %8376 = vmatprep.subr.mxu0 %v7278
    %8377 = vmatpush1.xpose.msra.mxu0 %v7277
    %8378 = vmatprep.subr.mxu0 %v7282
    %8379 = vmatpush1.xpose.msra.mxu0 %v7281
    %8380 = vmatprep.subr.mxu0 %v7286
    %8381 = vmatpush1.xpose.msra.mxu0 %v7285
    %8382 = vmatprep.subr.mxu0 %v7290
    %8383 = vmatpush1.xpose.msra.mxu0 %v7289
    %8384 = vmatprep.subr.mxu0 %v7294
    %8385 = vmatpush1.xpose.msra.mxu0 %v7293
    %8386 = vmatprep.subr.mxu0 %v7298
    %8387 = vmatpush1.xpose.msra.mxu0 %v7297
    %8388 = vmatprep.subr.mxu0 %v7302
    %8389 = vmatpush1.xpose.msra.mxu0 %v7301
    %8390 = vmatprep.subr.mxu0 %v7306
    %8391 = vmatpush1.xpose.msra.mxu0 %v7305
    %8392 = vmatprep.subr.mxu0 %v7310
    %8393 = vmatpush1.xpose.msra.mxu0 %v7309
    %8394 = vmatprep.subr.mxu0 %v7314
    %8395 = vmatpush1.xpose.msra.mxu0 %v7313
    %8396 = vmatprep.subr.mxu0 %v7318
    %8397 = vmatpush1.xpose.msra.mxu0 %v7317
    %8398 = vmatprep.subr.mxu0 %v7322
    %8399 = vmatpush1.xpose.msra.mxu0 %v7321
    %8400 = vmatprep.subr.mxu0 %v7326
    %8401 = vmatpush1.xpose.msra.mxu0 %v7325
    %8402 = vmatprep.subr.mxu0 %v7330
    %8403 = vmatpush1.xpose.msra.mxu0 %v7329
    %8404 = vmatprep.subr.mxu0 %v7334
    %8405 = vmatpush1.xpose.msra.mxu0 %v7333
    %8406 = vmatprep.subr.mxu0 %v7338
    %8407 = vmatpush1.xpose.msra.mxu0 %v7337
    %8408 = vmatprep.subr.mxu0 %v7342
    %8409 = vmatpush1.xpose.msra.mxu0 %v7341
    %8410 = vmatprep.subr.mxu0 %v7346
    %8411 = vmatpush1.xpose.msra.mxu0 %v7345
    %8412 = vmatprep.subr.mxu0 %v7350
    %8413 = vmatpush1.xpose.msra.mxu0 %v7349
    %8414 = vmatprep.subr.mxu0 %v7354
    %8415 = vmatpush1.xpose.msra.mxu0 %v7353
    %8416 = vmatprep.subr.mxu0 %v7358
    %8417 = vmatpush1.xpose.msra.mxu0 %v7357
    %8418 = vmatprep.subr.mxu0 %v7362
    %8419 = vmatpush1.xpose.msra.mxu0 %v7361
    %8420 = vmatprep.subr.mxu0 %v7366
    %8421 = vmatpush1.xpose.msra.mxu0 %v7365
    %8422 = vmatprep.subr.mxu0 %v7370
    %8423 = vmatpush1.xpose.msra.mxu0 %v7369
    %8424 = vmatprep.subr.mxu0 %v7374
    %8425 = vmatpush1.xpose.msra.mxu0 %v7373
    %8426 = vmatprep.subr.mxu0 %v7378
    %8427 = vmatpush1.xpose.msra.mxu0 %v7377
    %8428 = vmatprep.subr.mxu0 %v7382
    %8429 = vmatpush1.xpose.msra.mxu0 %v7381
    %8430 = vmatprep.subr.mxu0 %v7386
    %8431 = vmatpush1.xpose.msra.mxu0 %v7385
    %8432 = vmatprep.mubr.f32.mxu0 %v828
    %8433 = vmatmul.mubr.f32.gmra.mrb[0].mxu0 %v824
    %v8434 = vpop.f32.mrb[0].mxu0
    %v8435 = vadd.f32 %v8364, %v8434
    %v8436 = vpop.f32.mrb[0].mxu0
    %v8437 = vadd.f32 %v8366, %v8436
    %8438 = vdwg.mxu0
    %8439 = vmatprep.subr.mxu0 %v7388
    %8440 = vmatpush1.xpose.msra.mxu0 %v7387
    %8441 = vmatprep.subr.mxu0 %v7392
    %8442 = vmatpush1.xpose.msra.mxu0 %v7391
    %8443 = vmatprep.subr.mxu0 %v7396
    %8444 = vmatpush1.xpose.msra.mxu0 %v7395
    %8445 = vmatprep.subr.mxu0 %v7400
    %8446 = vmatpush1.xpose.msra.mxu0 %v7399
    %8447 = vmatprep.subr.mxu0 %v7404
    %8448 = vmatpush1.xpose.msra.mxu0 %v7403
    %8449 = vmatprep.subr.mxu0 %v7408
    %8450 = vmatpush1.xpose.msra.mxu0 %v7407
    %8451 = vmatprep.subr.mxu0 %v7412
    %8452 = vmatpush1.xpose.msra.mxu0 %v7411
    %8453 = vmatprep.subr.mxu0 %v7416
    %8454 = vmatpush1.xpose.msra.mxu0 %v7415
    %8455 = vmatprep.subr.mxu0 %v7420
    %8456 = vmatpush1.xpose.msra.mxu0 %v7419
    %8457 = vmatprep.subr.mxu0 %v7424
    %8458 = vmatpush1.xpose.msra.mxu0 %v7423
    %8459 = vmatprep.subr.mxu0 %v7428
    %8460 = vmatpush1.xpose.msra.mxu0 %v7427
    %8461 = vmatprep.subr.mxu0 %v7432
    %8462 = vmatpush1.xpose.msra.mxu0 %v7431
    %8463 = vmatprep.subr.mxu0 %v7436
    %8464 = vmatpush1.xpose.msra.mxu0 %v7435
    %8465 = vmatprep.subr.mxu0 %v7440
    %8466 = vmatpush1.xpose.msra.mxu0 %v7439
    %8467 = vmatprep.subr.mxu0 %v7444
    %8468 = vmatpush1.xpose.msra.mxu0 %v7443
    %8469 = vmatprep.subr.mxu0 %v7448
    %8470 = vmatpush1.xpose.msra.mxu0 %v7447
    %8471 = vmatprep.subr.mxu0 %v7452
    %8472 = vmatpush1.xpose.msra.mxu0 %v7451
    %8473 = vmatprep.subr.mxu0 %v7456
    %8474 = vmatpush1.xpose.msra.mxu0 %v7455
    %8475 = vmatprep.subr.mxu0 %v7460
    %8476 = vmatpush1.xpose.msra.mxu0 %v7459
    %8477 = vmatprep.subr.mxu0 %v7464
    %8478 = vmatpush1.xpose.msra.mxu0 %v7463
    %8479 = vmatprep.subr.mxu0 %v7468
    %8480 = vmatpush1.xpose.msra.mxu0 %v7467
    %8481 = vmatprep.subr.mxu0 %v7472
    %8482 = vmatpush1.xpose.msra.mxu0 %v7471
    %8483 = vmatprep.subr.mxu0 %v7476
    %8484 = vmatpush1.xpose.msra.mxu0 %v7475
    %8485 = vmatprep.subr.mxu0 %v7480
    %8486 = vmatpush1.xpose.msra.mxu0 %v7479
    %8487 = vmatprep.subr.mxu0 %v7484
    %8488 = vmatpush1.xpose.msra.mxu0 %v7483
    %8489 = vmatprep.subr.mxu0 %v7488
    %8490 = vmatpush1.xpose.msra.mxu0 %v7487
    %8491 = vmatprep.subr.mxu0 %v7492
    %8492 = vmatpush1.xpose.msra.mxu0 %v7491
    %8493 = vmatprep.subr.mxu0 %v7496
    %8494 = vmatpush1.xpose.msra.mxu0 %v7495
    %8495 = vmatprep.subr.mxu0 %v7500
    %8496 = vmatpush1.xpose.msra.mxu0 %v7499
    %8497 = vmatprep.subr.mxu0 %v7504
    %8498 = vmatpush1.xpose.msra.mxu0 %v7503
    %8499 = vmatprep.subr.mxu0 %v7508
    %8500 = vmatpush1.xpose.msra.mxu0 %v7507
    %8501 = vmatprep.subr.mxu0 %v7512
    %8502 = vmatpush1.xpose.msra.mxu0 %v7511
    %8503 = vmatprep.mubr.f32.mxu0 %v820
    %8504 = vmatmul.mubr.f32.gmra.mrb[0].mxu0 %v816
    %v8505 = vpop.f32.mrb[0].mxu0
    %v8506 = vadd.f32 0.0, %v8505
    %v8507 = vpop.f32.mrb[0].mxu0
    %v8508 = vadd.f32 0.0, %v8507
    %8509 = vdwg.mxu0
    %8510 = vmatprep.subr.mxu0 %v7390
    %8511 = vmatpush1.xpose.msra.mxu0 %v7389
    %8512 = vmatprep.subr.mxu0 %v7394
    %8513 = vmatpush1.xpose.msra.mxu0 %v7393
    %8514 = vmatprep.subr.mxu0 %v7398
    %8515 = vmatpush1.xpose.msra.mxu0 %v7397
    %8516 = vmatprep.subr.mxu0 %v7402
    %8517 = vmatpush1.xpose.msra.mxu0 %v7401
    %8518 = vmatprep.subr.mxu0 %v7406
    %8519 = vmatpush1.xpose.msra.mxu0 %v7405
    %8520 = vmatprep.subr.mxu0 %v7410
    %8521 = vmatpush1.xpose.msra.mxu0 %v7409
    %8522 = vmatprep.subr.mxu0 %v7414
    %8523 = vmatpush1.xpose.msra.mxu0 %v7413
    %8524 = vmatprep.subr.mxu0 %v7418
    %8525 = vmatpush1.xpose.msra.mxu0 %v7417
    %8526 = vmatprep.subr.mxu0 %v7422
    %8527 = vmatpush1.xpose.msra.mxu0 %v7421
    %8528 = vmatprep.subr.mxu0 %v7426
    %8529 = vmatpush1.xpose.msra.mxu0 %v7425
    %8530 = vmatprep.subr.mxu0 %v7430
    %8531 = vmatpush1.xpose.msra.mxu0 %v7429
    %8532 = vmatprep.subr.mxu0 %v7434
    %8533 = vmatpush1.xpose.msra.mxu0 %v7433
    %8534 = vmatprep.subr.mxu0 %v7438
    %8535 = vmatpush1.xpose.msra.mxu0 %v7437
    %8536 = vmatprep.subr.mxu0 %v7442
    %8537 = vmatpush1.xpose.msra.mxu0 %v7441
    %8538 = vmatprep.subr.mxu0 %v7446
    %8539 = vmatpush1.xpose.msra.mxu0 %v7445
    %8540 = vmatprep.subr.mxu0 %v7450
    %8541 = vmatpush1.xpose.msra.mxu0 %v7449
    %8542 = vmatprep.subr.mxu0 %v7454
    %8543 = vmatpush1.xpose.msra.mxu0 %v7453
    %8544 = vmatprep.subr.mxu0 %v7458
    %8545 = vmatpush1.xpose.msra.mxu0 %v7457
    %8546 = vmatprep.subr.mxu0 %v7462
    %8547 = vmatpush1.xpose.msra.mxu0 %v7461
    %8548 = vmatprep.subr.mxu0 %v7466
    %8549 = vmatpush1.xpose.msra.mxu0 %v7465
    %8550 = vmatprep.subr.mxu0 %v7470
    %8551 = vmatpush1.xpose.msra.mxu0 %v7469
    %8552 = vmatprep.subr.mxu0 %v7474
    %8553 = vmatpush1.xpose.msra.mxu0 %v7473
    %8554 = vmatprep.subr.mxu0 %v7478
    %8555 = vmatpush1.xpose.msra.mxu0 %v7477
    %8556 = vmatprep.subr.mxu0 %v7482
    %8557 = vmatpush1.xpose.msra.mxu0 %v7481
    %8558 = vmatprep.subr.mxu0 %v7486
    %8559 = vmatpush1.xpose.msra.mxu0 %v7485
    %8560 = vmatprep.subr.mxu0 %v7490
    %8561 = vmatpush1.xpose.msra.mxu0 %v7489
    %8562 = vmatprep.subr.mxu0 %v7494
    %8563 = vmatpush1.xpose.msra.mxu0 %v7493
    %8564 = vmatprep.subr.mxu0 %v7498
    %8565 = vmatpush1.xpose.msra.mxu0 %v7497
    %8566 = vmatprep.subr.mxu0 %v7502
    %8567 = vmatpush1.xpose.msra.mxu0 %v7501
    %8568 = vmatprep.subr.mxu0 %v7506
    %8569 = vmatpush1.xpose.msra.mxu0 %v7505
    %8570 = vmatprep.subr.mxu0 %v7510
    %8571 = vmatpush1.xpose.msra.mxu0 %v7509
    %8572 = vmatprep.subr.mxu0 %v7514
    %8573 = vmatpush1.xpose.msra.mxu0 %v7513
    %8574 = vmatprep.mubr.f32.mxu0 %v828
    %8575 = vmatmul.mubr.f32.gmra.mrb[0].mxu0 %v824
    %v8576 = vpop.f32.mrb[0].mxu0
    %v8577 = vadd.f32 %v8506, %v8576
    %v8578 = vpop.f32.mrb[0].mxu0
    %v8579 = vadd.f32 %v8508, %v8578
    %8580 = vdwg.mxu0
    %8581 = vmatprep.subr.mxu0 %v7516
    %8582 = vmatpush1.xpose.msra.mxu0 %v7515
    %8583 = vmatprep.subr.mxu0 %v7520
    %8584 = vmatpush1.xpose.msra.mxu0 %v7519
    %8585 = vmatprep.subr.mxu0 %v7524
    %8586 = vmatpush1.xpose.msra.mxu0 %v7523
    %8587 = vmatprep.subr.mxu0 %v7528
    %8588 = vmatpush1.xpose.msra.mxu0 %v7527
    %8589 = vmatprep.subr.mxu0 %v7532
    %8590 = vmatpush1.xpose.msra.mxu0 %v7531
    %8591 = vmatprep.subr.mxu0 %v7536
    %8592 = vmatpush1.xpose.msra.mxu0 %v7535
    %8593 = vmatprep.subr.mxu0 %v7540
    %8594 = vmatpush1.xpose.msra.mxu0 %v7539
    %8595 = vmatprep.subr.mxu0 %v7544
    %8596 = vmatpush1.xpose.msra.mxu0 %v7543
    %8597 = vmatprep.subr.mxu0 %v7548
    %8598 = vmatpush1.xpose.msra.mxu0 %v7547
    %8599 = vmatprep.subr.mxu0 %v7552
    %8600 = vmatpush1.xpose.msra.mxu0 %v7551
    %8601 = vmatprep.subr.mxu0 %v7556
    %8602 = vmatpush1.xpose.msra.mxu0 %v7555
    %8603 = vmatprep.subr.mxu0 %v7560
    %8604 = vmatpush1.xpose.msra.mxu0 %v7559
    %8605 = vmatprep.subr.mxu0 %v7564
    %8606 = vmatpush1.xpose.msra.mxu0 %v7563
    %8607 = vmatprep.subr.mxu0 %v7568
    %8608 = vmatpush1.xpose.msra.mxu0 %v7567
    %8609 = vmatprep.subr.mxu0 %v7572
    %8610 = vmatpush1.xpose.msra.mxu0 %v7571
    %8611 = vmatprep.subr.mxu0 %v7576
    %8612 = vmatpush1.xpose.msra.mxu0 %v7575
    %8613 = vmatprep.subr.mxu0 %v7580
    %8614 = vmatpush1.xpose.msra.mxu0 %v7579
    %8615 = vmatprep.subr.mxu0 %v7584
    %8616 = vmatpush1.xpose.msra.mxu0 %v7583
    %8617 = vmatprep.subr.mxu0 %v7588
    %8618 = vmatpush1.xpose.msra.mxu0 %v7587
    %8619 = vmatprep.subr.mxu0 %v7592
    %8620 = vmatpush1.xpose.msra.mxu0 %v7591
    %8621 = vmatprep.subr.mxu0 %v7596
    %8622 = vmatpush1.xpose.msra.mxu0 %v7595
    %8623 = vmatprep.subr.mxu0 %v7600
    %8624 = vmatpush1.xpose.msra.mxu0 %v7599
    %8625 = vmatprep.subr.mxu0 %v7604
    %8626 = vmatpush1.xpose.msra.mxu0 %v7603
    %8627 = vmatprep.subr.mxu0 %v7608
    %8628 = vmatpush1.xpose.msra.mxu0 %v7607
    %8629 = vmatprep.subr.mxu0 %v7612
    %8630 = vmatpush1.xpose.msra.mxu0 %v7611
    %8631 = vmatprep.subr.mxu0 %v7616
    %8632 = vmatpush1.xpose.msra.mxu0 %v7615
    %8633 = vmatprep.subr.mxu0 %v7620
    %8634 = vmatpush1.xpose.msra.mxu0 %v7619
    %8635 = vmatprep.subr.mxu0 %v7624
    %8636 = vmatpush1.xpose.msra.mxu0 %v7623
    %8637 = vmatprep.subr.mxu0 %v7628
    %8638 = vmatpush1.xpose.msra.mxu0 %v7627
    %8639 = vmatprep.subr.mxu0 %v7632
    %8640 = vmatpush1.xpose.msra.mxu0 %v7631
    %8641 = vmatprep.subr.mxu0 %v7636
    %8642 = vmatpush1.xpose.msra.mxu0 %v7635
    %8643 = vmatprep.subr.mxu0 %v7640
    %8644 = vmatpush1.xpose.msra.mxu0 %v7639
    %8645 = vmatprep.mubr.f32.mxu0 %v820
    %8646 = vmatmul.mubr.f32.gmra.mrb[0].mxu0 %v816
    %v8647 = vpop.f32.mrb[0].mxu0
    %v8648 = vadd.f32 0.0, %v8647
    %v8649 = vpop.f32.mrb[0].mxu0
    %v8650 = vadd.f32 0.0, %v8649
    %8651 = vdwg.mxu0
    %8652 = vmatprep.subr.mxu0 %v7518
    %8653 = vmatpush1.xpose.msra.mxu0 %v7517
    %8654 = vmatprep.subr.mxu0 %v7522
    %8655 = vmatpush1.xpose.msra.mxu0 %v7521
    %8656 = vmatprep.subr.mxu0 %v7526
    %8657 = vmatpush1.xpose.msra.mxu0 %v7525
    %8658 = vmatprep.subr.mxu0 %v7530
    %8659 = vmatpush1.xpose.msra.mxu0 %v7529
    %8660 = vmatprep.subr.mxu0 %v7534
    %8661 = vmatpush1.xpose.msra.mxu0 %v7533
    %8662 = vmatprep.subr.mxu0 %v7538
    %8663 = vmatpush1.xpose.msra.mxu0 %v7537
    %8664 = vmatprep.subr.mxu0 %v7542
    %8665 = vmatpush1.xpose.msra.mxu0 %v7541
    %8666 = vmatprep.subr.mxu0 %v7546
    %8667 = vmatpush1.xpose.msra.mxu0 %v7545
    %8668 = vmatprep.subr.mxu0 %v7550
    %8669 = vmatpush1.xpose.msra.mxu0 %v7549
    %8670 = vmatprep.subr.mxu0 %v7554
    %8671 = vmatpush1.xpose.msra.mxu0 %v7553
    %8672 = vmatprep.subr.mxu0 %v7558
    %8673 = vmatpush1.xpose.msra.mxu0 %v7557
    %8674 = vmatprep.subr.mxu0 %v7562
    %8675 = vmatpush1.xpose.msra.mxu0 %v7561
    %8676 = vmatprep.subr.mxu0 %v7566
    %8677 = vmatpush1.xpose.msra.mxu0 %v7565
    %8678 = vmatprep.subr.mxu0 %v7570
    %8679 = vmatpush1.xpose.msra.mxu0 %v7569
    %8680 = vmatprep.subr.mxu0 %v7574
    %8681 = vmatpush1.xpose.msra.mxu0 %v7573
    %8682 = vmatprep.subr.mxu0 %v7578
    %8683 = vmatpush1.xpose.msra.mxu0 %v7577
    %8684 = vmatprep.subr.mxu0 %v7582
    %8685 = vmatpush1.xpose.msra.mxu0 %v7581
    %8686 = vmatprep.subr.mxu0 %v7586
    %8687 = vmatpush1.xpose.msra.mxu0 %v7585
    %8688 = vmatprep.subr.mxu0 %v7590
    %8689 = vmatpush1.xpose.msra.mxu0 %v7589
    %8690 = vmatprep.subr.mxu0 %v7594
    %8691 = vmatpush1.xpose.msra.mxu0 %v7593
    %8692 = vmatprep.subr.mxu0 %v7598
    %8693 = vmatpush1.xpose.msra.mxu0 %v7597
    %8694 = vmatprep.subr.mxu0 %v7602
    %8695 = vmatpush1.xpose.msra.mxu0 %v7601
    %8696 = vmatprep.subr.mxu0 %v7606
    %8697 = vmatpush1.xpose.msra.mxu0 %v7605
    %8698 = vmatprep.subr.mxu0 %v7610
    %8699 = vmatpush1.xpose.msra.mxu0 %v7609
    %8700 = vmatprep.subr.mxu0 %v7614
    %8701 = vmatpush1.xpose.msra.mxu0 %v7613
    %8702 = vmatprep.subr.mxu0 %v7618
    %8703 = vmatpush1.xpose.msra.mxu0 %v7617
    %8704 = vmatprep.subr.mxu0 %v7622
    %8705 = vmatpush1.xpose.msra.mxu0 %v7621
    %8706 = vmatprep.subr.mxu0 %v7626
    %8707 = vmatpush1.xpose.msra.mxu0 %v7625
    %8708 = vmatprep.subr.mxu0 %v7630
    %8709 = vmatpush1.xpose.msra.mxu0 %v7629
    %8710 = vmatprep.subr.mxu0 %v7634
    %8711 = vmatpush1.xpose.msra.mxu0 %v7633
    %8712 = vmatprep.subr.mxu0 %v7638
    %8713 = vmatpush1.xpose.msra.mxu0 %v7637
    %8714 = vmatprep.subr.mxu0 %v7642
    %8715 = vmatpush1.xpose.msra.mxu0 %v7641
    %8716 = vmatprep.mubr.f32.mxu0 %v828
    %8717 = vmatmul.mubr.f32.gmra.mrb[0].mxu0 %v824
    %v8718 = vpop.f32.mrb[0].mxu0
    %v8719 = vadd.f32 %v8648, %v8718
    %v8720 = vpop.f32.mrb[0].mxu0
    %v8721 = vadd.f32 %v8650, %v8720
    %8722 = vdwg.mxu0
    %v8723 = vmul.f32 %v8293, -0.5
    %v8724 = vmul.f32 %v8295, -0.5
    %v8725 = vmul.f32 %v8435, -0.5
    %v8726 = vmul.f32 %v8437, -0.5
    %v8727 = vmul.f32 %v8577, -0.5
    %v8728 = vmul.f32 %v8579, -0.5
    %v8729 = vmul.f32 %v8719, -0.5
    %v8730 = vmul.f32 %v8721, -0.5
    %v8739 = vcombine.low %v8723, %v8724
    %v8740 = vcombine.low %v8725, %v8726
    %v8741 = vcombine.low %v8727, %v8728
    %v8742 = vcombine.low %v8729, %v8730
    %v8744 = vunpack.c.l.s4 1966171168
    %v8745 = vunpack.c.0.s8 %v8744
    %v8746 = vlaneseq
    %v8747 = vshrl.u32 %v8746, 7
    %v8748 = vsub.s32 %v8745, %v8747
    %v8749 = vrot.slane %v8739, %v8748
    %v8751 = vunpack.c.l.s4 1966171168
    %v8752 = vunpack.c.0.s8 %v8751
    %v8753 = vlaneseq
    %v8754 = vshrl.u32 %v8753, 7
    %v8755 = vsub.s32 %v8752, %v8754
    %v8756 = vrot.slane %v8740, %v8755
    %v8758 = vunpack.c.l.s4 1966171168
    %v8759 = vunpack.c.0.s8 %v8758
    %v8760 = vlaneseq
    %v8761 = vshrl.u32 %v8760, 7
    %v8762 = vsub.s32 %v8759, %v8761
    %v8763 = vrot.slane %v8741, %v8762
    %v8765 = vunpack.c.l.s4 1966171168
    %v8766 = vunpack.c.0.s8 %v8765
    %v8767 = vlaneseq
    %v8768 = vshrl.u32 %v8767, 7
    %v8769 = vsub.s32 %v8766, %v8768
    %v8770 = vrot.slane %v8742, %v8769
    %v8771 = vcombine.low %v8749, %v8756
    %v8772 = vcombine.low %v8763, %v8770
    %v8774 = vunpack.c.l.s4 1966171168
    %v8775 = vunpack.c.0.s8 %v8774
    %v8776 = vlaneseq
    %v8777 = vshrl.u32 %v8776, 7
    %v8778 = vsub.s32 %v8775, %v8777
    %v8779 = vrot.slane %v8771, %v8778
    %v8781 = vunpack.c.l.s4 1966171168
    %v8782 = vunpack.c.0.s8 %v8781
    %v8783 = vlaneseq
    %v8784 = vshrl.u32 %v8783, 7
    %v8785 = vsub.s32 %v8782, %v8784
    %v8786 = vrot.slane %v8772, %v8785
    %v8787 = vcombine.low %v8779, %v8786
    %8789 = vst [vmem:[#allocation7] sm:$0xff] %v8787
    // Predicated region
    $region22: #{tpu_custom_call.1} parent=1 // pred_check
      _
    $region23: #{tpu_custom_call.1} parent=1 // pred_check_branch
      %8791 = sbr.rel (0) target = $region25
    $region24: #{tpu_custom_call.1} parent=1 // pred_region
      %s8793 = ssub.s32 128, 128
      %8794 = vsyncadd [#allocation4], %s8793
      %s8796 = sshll.u32 [#allocation7], 4
      %s8797 = int_to_ptr.vmem [resolvable:$true] %s8796
      %8799 = dma.vmem_to_hbm [thread:$0]  %s8797, 128, %s3, [#allocation4]
    $region25: #{tpu_custom_call.1} parent=1 // pred_fallthru
      _
    // Predicated region
    $region26: #{tpu_custom_call.1} parent=1 // pred_check
      _
    $region27: #{tpu_custom_call.1} parent=1 // pred_check_branch
      %8801 = sbr.rel (0) target = $region29
    $region28: #{tpu_custom_call.1} parent=1 // pred_region
      %s8803 = ssub.s32 65536, 65536
      %8804 = vsyncadd [#allocation9], %s8803
      %s8805 = sshll.u32 [#allocation8], 4
      %s8806 = int_to_ptr.vmem [resolvable:$true] %s8805
      %8811 = dma.vmem_to_hbm [thread:$0]  %s8806, 65536, %s4, [#allocation9], 512, 512, 32
    $region29: #{tpu_custom_call.1} parent=1 // pred_fallthru
      _
    // Predicated region
    $region30: #{tpu_custom_call.1} parent=1 // pred_check
      _
    $region31: #{tpu_custom_call.1} parent=1 // pred_check_branch
      %8813 = sbr.rel (0) target = $region33
    $region32: #{tpu_custom_call.1} parent=1 // pred_region
      %8814 = dma.done [#allocation4], 128
    $region33: #{tpu_custom_call.1} parent=1 // pred_fallthru
      _
    // Predicated region
    $region34: #{tpu_custom_call.1} parent=1 // pred_check
      _
    $region35: #{tpu_custom_call.1} parent=1 // pred_check_branch
      %8816 = sbr.rel (0) target = $region37
    $region36: #{tpu_custom_call.1} parent=1 // pred_region
      %8817 = dma.done [#allocation9], 65536
    $region37: #{tpu_custom_call.1} parent=1 // pred_fallthru
      _
    %8818 = vsyncpa [#allocation3], 1
    %8819 = vsyncpa [#allocation6], 1
    %8820 = vsyncpa [#allocation4], 1
    %8821 = vsyncpa [#allocation9], 1

</llo_original>
